<compile_context>
chip_gen: v7x
topology: tpu7x:2x2x1
jax: 0.10.0
libtpu: 0.0.40
codegen_flags: <defaults>
</compile_context>

<pallas_src>
import functools

import numpy as np

import jax
import jax.numpy as jnp
from jax.experimental import pallas as pl
from jax.experimental.pallas import tpu as pltpu

TIME_FEAT = 4
INIT_C = 16
NC = 3
REDUCE = 3
HIDDEN_FC = 32
LANE = 128


def _round_up(n, m):
    return ((n + m - 1) // m) * m


# ----------------------------- fused Pallas kernel -----------------------------

def _fused_kernel(*refs, W, hw, n_combine, n_reduce, n_head):
    """Whole SampleCheck forward for G folded batch elements, VMEM resident."""
    o_ref = refs[-1]
    it = iter(refs[:-1])
    zin_ref, inw_ref, inb_ref = next(it), next(it), next(it)
    stages = [tuple(next(it) for _ in range(5)) for _ in range(n_reduce)]
    hcw_ref, hcb_ref = next(it), next(it)
    lin = [(next(it), next(it)) for _ in range(n_head)]
    clw_ref, clb_ref = next(it), next(it)
    assert next(it, None) is None

    f32, bf16 = jnp.float32, jnp.bfloat16

    def elu(v):
        # exp only on the (clamped) negative branch; selects v for v > 0.
        return jnp.where(v > 0, v, jnp.exp(jnp.minimum(v, 0.0)) - 1.0)

    # --- fused extend_y[1] / combine_x 1x1 convs (block-diagonal bf16 weight) ---
    z = jnp.dot(zin_ref[0].astype(bf16), inw_ref[...],
                preferred_element_type=f32) + inb_ref[...]

    per = hw  # rows per batch element at the current stage
    for cw_ref, cb_ref, rw_ref, rb_ref, sel_ref in stages:
        N, C = z.shape
        # single-column boundary masks (broadcast in where); per-element row index
        row = jax.lax.broadcasted_iota(jnp.int32, (N, 1), 0)
        if per != N:
            row = row % per
        m_lo = row >= W            # rows that receive an h-1 contribution
        m_hi = row < per - W       # rows that receive an h+1 contribution
        tap = cw_ref.shape[-1] // 3        # 128-aligned tap stride

        # CombineConv: residual (3,1) convs, zero padding along H
        for l in range(n_combine):
            # one lane-dense dot for all three taps: (N, C) @ (C, 3*128)
            taps = jnp.dot(z.astype(bf16), cw_ref[l], preferred_element_type=f32)
            conv = taps[:, tap:tap + C] + cb_ref[l]                                   # tap h
            conv = conv + jnp.where(m_lo, pltpu.roll(taps[:, :C], W, axis=0), 0.0)    # tap h-1
            conv = conv + jnp.where(
                m_hi, pltpu.roll(taps[:, 2 * tap:2 * tap + C], N - W, axis=0), 0.0)   # tap h+1
            z = z + elu(conv)

        # strided (2,1) reduce along H: out[h'] = z[2h'] @ w_e + z[2h'+1] @ w_o + b
        Cout = rb_ref.shape[-1]
        half = rw_ref.shape[-1] // 2       # 128-aligned odd-tap offset
        wide = jnp.dot(z.astype(bf16), rw_ref[...], preferred_element_type=f32)
        # d[i] = a[i] + c[i+W]; wrapped / cross-element rows have odd h and are
        # never selected below (H divisible by 2**REDUCE is asserted in wrapper).
        d = wide[:, :Cout] + pltpu.roll(wide[:, half:half + Cout], N - W, axis=0)
        z = jnp.dot(sel_ref[...], d.astype(bf16), preferred_element_type=f32) + rb_ref[...]
        per //= 2

    # --- head: 1x1 conv to 1 channel, flatten to one row per folded sample ---
    hrow = jax.lax.dot_general(hcw_ref[...], z, (((1,), (1,)), ((), ())),
                               preferred_element_type=f32) + hcb_ref[...]   # (1, G*per)
    G = z.shape[0] // per
    if G == 1:
        h = hrow
    else:
        h = jnp.concatenate([hrow[:, g * per:(g + 1) * per] for g in range(G)], axis=0)

    for lw_ref, lb_ref in lin:
        h = elu(jnp.dot(h.astype(bf16), lw_ref[...], preferred_element_type=f32) + lb_ref[...])

    logits = jnp.dot(h.astype(bf16), clw_ref[...], preferred_element_type=f32) + clb_ref[...]
    e = jnp.exp(logits - jnp.max(logits, axis=-1, keepdims=True))
    o_ref[0] = e / jnp.sum(e, axis=-1, keepdims=True)


# ------------------------------ constant builders (numpy, one-time) ------------------------------

def _pos_embed_np(H, W):
    hh = np.broadcast_to(np.pi * np.arange(H, dtype=np.float32)[:, None] / (2.0 * H), (H, W))
    ww = np.broadcast_to(np.pi * np.arange(W, dtype=np.float32)[None, :] / (2.0 * W), (H, W))
    return np.stack([np.sin(hh), np.sin(ww)], axis=-1).astype(np.float32)   # (H, W, 2)


def _even_select_np(G, Hs, W):
    """0/1 matrix gathering even-h rows (per folded element) from the flattened grid."""
    per_out, per_in = (Hs // 2) * W, Hs * W
    j = np.arange(G * per_out)
    g, r = j // per_out, j % per_out
    src = g * per_in + 2 * (r // W) * W + (r % W)
    sel = np.zeros((G * per_out, G * per_in), np.float32)
    sel[j, src] = 1.0
    return sel


def _pack(params, x_shape, y_shape, G):
    """Pre-pack weights (bf16, 128-lane-aligned tap blocks) and constant matrices."""
    _, Cx, H, W = x_shape
    _, Cy, _, _ = y_shape
    add = 2 + TIME_FEAT
    Cyt, Cxt = Cy + add, Cx + add
    bf16 = jnp.bfloat16

    def npf(a):
        return np.asarray(a, np.float32)

    # block-diagonal fused first projection: [y_up | x_in] @ [[ey_w, 0], [0, cx_w]]
    in_w = np.zeros((Cyt + Cxt, 2 * INIT_C), np.float32)
    in_w[:Cyt, :INIT_C] = npf(params["ey_w"])
    in_w[Cyt:, INIT_C:] = npf(params["cx_w"])
    in_b = np.concatenate([npf(params["ey_b"]), npf(params["cx_b"])]).reshape(1, 2 * INIT_C)

    stages = []
    h_cur = H
    for i in range(REDUCE):
        cw = npf(params["comb_w"][i])                    # (NC, cin, 3*cin)
        cin = cw.shape[1]
        cout = npf(params["red_b"][i]).shape[-1]
        tap = _round_up(cin, LANE)
        cw_pad = np.zeros((NC, cin, 3 * tap), np.float32)  # each tap at a 128-lane boundary
        for t_ in range(3):
            cw_pad[:, :, t_ * tap:t_ * tap + cin] = cw[:, :, t_ * cin:(t_ + 1) * cin]
        rw = npf(params["red_w"][i])                     # (cin, 2*cout) = [w_even | w_odd]
        half = _round_up(cout, LANE)
        rw_pad = np.zeros((cin, 2 * half), np.float32)
        rw_pad[:, :cout] = rw[:, :cout]
        rw_pad[:, half:half + cout] = rw[:, cout:]
        sel = _even_select_np(G, h_cur, W)
        stages.append((cw_pad.astype(bf16), npf(params["comb_b"][i]),
                       rw_pad.astype(bf16), npf(params["red_b"][i]),
                       sel.astype(bf16)))                # 0/1 exact in bf16
        h_cur //= 2

    head = dict(
        hc_w=npf(params["hc_w"]),                        # tiny (1, cfin); keep f32 A@B^T form
        hc_b=npf(params["hc_b"]),
        lin=[(npf(w).astype(bf16), npf(b)) for w, b in params["head_lin"]],
        cls_w=npf(params["cls_w"]).astype(bf16),
        cls_b=npf(params["cls_b"]),
    )
    return dict(in_w=in_w.astype(bf16), in_b=in_b, stages=stages, head=head)


# ------------------------------ parameter init ------------------------------

def init_params(key, x_shape, y_shape):
    _, Cx, H, W = x_shape
    _, Cy, _, _ = y_shape
    add = 2 + TIME_FEAT
    keys = iter(jax.random.split(key, 64))

    def dense(cin, cout):
        return jax.random.normal(next(keys), (cin, cout), jnp.float32) / jnp.sqrt(cin)

    def bias(*shape):
        return jax.random.normal(next(keys), shape, jnp.float32) * 0.05

    p = {}
    p["ey_w"], p["ey_b"] = dense(Cy + add, INIT_C), bias(INIT_C)      # extend_y[1]
    p["cx_w"], p["cx_b"] = dense(Cx + add, INIT_C), bias(INIT_C)      # combine_x

    comb_w, comb_b, red_w, red_b = [], [], [], []
    for i in range(REDUCE):
        cin = 2 * INIT_C + INIT_C * i
        cout = 2 * INIT_C + INIT_C * (i + 1)
        # per layer: three (cin, cin) taps concatenated along Cout -> (NC, cin, 3*cin)
        comb_w.append(jax.random.normal(next(keys), (NC, cin, 3 * cin), jnp.float32)
                      / jnp.sqrt(3.0 * cin))
        comb_b.append(bias(NC, 1, cin))
        # strided conv taps [w_even | w_odd] concatenated along Cout -> (cin, 2*cout)
        red_w.append(jax.random.normal(next(keys), (cin, 2 * cout), jnp.float32)
                     / jnp.sqrt(2.0 * cin))
        red_b.append(bias(1, cout))
    p["comb_w"], p["comb_b"] = comb_w, comb_b
    p["red_w"], p["red_b"] = red_w, red_b

    cfin = 2 * INIT_C + INIT_C * REDUCE
    p["hc_w"] = jax.random.normal(next(keys), (1, cfin), jnp.float32) / jnp.sqrt(cfin)
    p["hc_b"] = bias(1, 1)

    in_lin = (H * W) // (2 ** REDUCE)
    dims = [(in_lin, HIDDEN_FC)] + [(HIDDEN_FC, HIDDEN_FC)] * (NC - 1)
    p["head_lin"] = [(dense(ci, co), bias(1, co)) for ci, co in dims]   # head[1:]
    p["cls_w"], p["cls_b"] = dense(HIDDEN_FC, 2), bias(1, 2)            # classify[0]
    return p


# ------------------------------ forward builder ------------------------------

def _default_batch_per_step(B):
    """Fold whole batch into rows on single-TC chips; keep a batch grid on
    chips whose TensorCores are fed by parallel grid dimensions (v4/v5p/v7x)."""
    kind = ""
    try:
        kind = jax.devices()[0].device_kind.lower()
    except Exception:
        pass
    multi_tc = any(s in kind for s in ("v4", "v5p", "v7"))
    g = 1 if (multi_tc and B > 1) else B
    while B % g:
        g -= 1
    return g


def build_sample_check(params, x_shape, y_shape, batch_per_step=None):
    B, Cx, H, W = x_shape
    _, Cy, Hy, Wy = y_shape
    assert H % (2 ** REDUCE) == 0, "H must be divisible by 2**REDUCE"
    add = 2 + TIME_FEAT
    Cyt, Cxt = Cy + add, Cx + add
    Cin = Cyt + Cxt
    HW = H * W

    G = batch_per_step if batch_per_step is not None else _default_batch_per_step(B)
    assert B % G == 0, "batch_per_step must divide the batch size"
    steps = B // G

    packed = _pack(params, x_shape, y_shape, G)
    pos_x = _pos_embed_np(H, W)                    # shape-only constants, built once
    pos_y = _pos_embed_np(Hy, Wy)
    up_h = (np.arange(H) * Hy) // H                # nearest-neighbour upsample indices
    up_w = (np.arange(W) * Wy) // W

    weight_args = [packed["in_w"], packed["in_b"]]
    for st in packed["stages"]:
        weight_args += list(st)
    hd = packed["head"]
    weight_args += [hd["hc_w"], hd["hc_b"]]
    for wl, bl in hd["lin"]:
        weight_args += [wl, bl]
    weight_args += [hd["cls_w"], hd["cls_b"]]
    weight_args = [jnp.asarray(a) for a in weight_args]

    kernel = functools.partial(_fused_kernel, W=W, hw=HW,
                               n_combine=NC, n_reduce=REDUCE, n_head=NC)

    in_specs = [pl.BlockSpec((1, G * HW, Cin), lambda b: (b, 0, 0))]
    in_specs += [pl.BlockSpec(a.shape, (lambda n: (lambda b: (0,) * n))(a.ndim))
                 for a in weight_args]

    call = pl.pallas_call(
        kernel,
        out_shape=jax.ShapeDtypeStruct((steps, G, 2), jnp.float32),
        grid=(steps,),
        in_specs=in_specs,
        out_specs=pl.BlockSpec((1, G, 2), lambda b: (b, 0, 0)),
        compiler_params=pltpu.CompilerParams(
            dimension_semantics=("parallel",),
            internal_scratch_in_bytes=4 * 1024 * 1024,
        ),
    )

    def time_emb(t, feats, Hs, Ws):
        freqs = jnp.arange(feats, dtype=jnp.float32) * 2.0 + 1.0
        te = t[:, None] * (jnp.pi / 2.0) * freqs[None, :]
        even = (jnp.arange(feats) % 2) == 0
        te = jnp.where(even[None, :], jnp.sin(te), jnp.cos(te))
        return jnp.broadcast_to(te[:, None, None, :], (t.shape[0], Hs, Ws, feats))

    @jax.jit
    def forward(x_nchw, y_nchw, t):
        x = jnp.transpose(x_nchw, (0, 2, 3, 1)).astype(jnp.float32)
        y = jnp.transpose(y_nchw, (0, 2, 3, 1)).astype(jnp.float32)
        sp_x = jnp.broadcast_to(jnp.asarray(pos_x)[None], (B, H, W, 2))
        sp_y = jnp.broadcast_to(jnp.asarray(pos_y)[None], (B, Hy, Wy, 2))
        t_x = time_emb(t, TIME_FEAT, H, W)
        t_y = time_emb(t, TIME_FEAT, Hy, Wy)
        x_in = jnp.concatenate([t_x, sp_x, x], axis=-1)    # (B, H, W, Cx+6)
        y_in = jnp.concatenate([t_y, sp_y, y], axis=-1)    # (B, Hy, Wy, Cy+6)
        y_up = y_in[:, up_h][:, :, up_w]                   # nearest upsample to (H, W)
        # single kernel input: [y_up | x_in] along channels, batch folded into rows
        zin = jnp.concatenate([y_up, x_in], axis=-1).reshape(steps, G * HW, Cin)
        out = call(zin, *weight_args)
        return out.reshape(B, 2)

    return forward


# ------------------------------- main -------------------------------

if __name__ == "__main__":
    B, Cx, H, W = 2, 3, 32, 4
    Cy, Hy, Wy = 2, 16, 4

    key = jax.random.PRNGKey(0)
    kx, ky, kt, kp = jax.random.split(key, 4)
    x = jax.random.normal(kx, (B, Cx, H, W), jnp.float32)
    y = jax.random.normal(ky, (B, Cy, Hy, Wy), jnp.float32)
    t = jax.random.uniform(kt, (B,), jnp.float32)

    params = init_params(kp, (B, Cx, H, W), (B, Cy, Hy, Wy))
    forward = build_sample_check(params, (B, Cx, H, W), (B, Cy, Hy, Wy))
    out = jax.block_until_ready(forward(x, y, t))

    assert out.shape == (B, 2)
    assert bool(jnp.all(jnp.isfinite(out)))
    assert bool(jnp.allclose(jnp.sum(out, axis=-1), 1.0, atol=1e-5))  # softmax rows
    print("KERNEL_OK")
</pallas_src>

<mosaic_0001>
module attributes {stable_mosaic.version = 11 : i64} {
  func.func @_fused_kernel(%arg0: i32, %arg1: memref<1x256x17xf32, #tpu.memory_space<vmem>>, %arg2: memref<17x32xbf16, #tpu.memory_space<vmem>>, %arg3: memref<1x32xf32, #tpu.memory_space<vmem>>, %arg4: memref<3x32x384xbf16, #tpu.memory_space<vmem>>, %arg5: memref<3x1x32xf32, #tpu.memory_space<vmem>>, %arg6: memref<32x256xbf16, #tpu.memory_space<vmem>>, %arg7: memref<1x48xf32, #tpu.memory_space<vmem>>, %arg8: memref<128x256xbf16, #tpu.memory_space<vmem>>, %arg9: memref<3x48x384xbf16, #tpu.memory_space<vmem>>, %arg10: memref<3x1x48xf32, #tpu.memory_space<vmem>>, %arg11: memref<48x256xbf16, #tpu.memory_space<vmem>>, %arg12: memref<1x64xf32, #tpu.memory_space<vmem>>, %arg13: memref<64x128xbf16, #tpu.memory_space<vmem>>, %arg14: memref<3x64x384xbf16, #tpu.memory_space<vmem>>, %arg15: memref<3x1x64xf32, #tpu.memory_space<vmem>>, %arg16: memref<64x256xbf16, #tpu.memory_space<vmem>>, %arg17: memref<1x80xf32, #tpu.memory_space<vmem>>, %arg18: memref<32x64xbf16, #tpu.memory_space<vmem>>, %arg19: memref<1x80xf32, #tpu.memory_space<vmem>>, %arg20: memref<1x1xf32, #tpu.memory_space<vmem>>, %arg21: memref<16x32xbf16, #tpu.memory_space<vmem>>, %arg22: memref<1x32xf32, #tpu.memory_space<vmem>>, %arg23: memref<32x32xbf16, #tpu.memory_space<vmem>>, %arg24: memref<1x32xf32, #tpu.memory_space<vmem>>, %arg25: memref<32x32xbf16, #tpu.memory_space<vmem>>, %arg26: memref<1x32xf32, #tpu.memory_space<vmem>>, %arg27: memref<32x2xbf16, #tpu.memory_space<vmem>>, %arg28: memref<1x2xf32, #tpu.memory_space<vmem>>, %arg29: memref<1x2x2xf32, #tpu.memory_space<vmem>>) attributes {dimension_semantics = [#tpu.dimension_semantics<parallel>], iteration_bounds = array<i64: 1>, scalar_prefetch = 0 : i64, scratch_operands = 0 : i64, tpu.core_type = #tpu.core_type<tc>, window_params = [{transform_indices = @transform_0, window_bounds = array<i64: 1, 256, 17>}, {pipeline_mode = #tpu.pipeline_mode<synchronous>, transform_indices = @transform_1, window_bounds = array<i64: 17, 32>}, {pipeline_mode = #tpu.pipeline_mode<synchronous>, transform_indices = @transform_2, window_bounds = array<i64: 1, 32>}, {pipeline_mode = #tpu.pipeline_mode<synchronous>, transform_indices = @transform_3, window_bounds = array<i64: 3, 32, 384>}, {pipeline_mode = #tpu.pipeline_mode<synchronous>, transform_indices = @transform_4, window_bounds = array<i64: 3, 1, 32>}, {pipeline_mode = #tpu.pipeline_mode<synchronous>, transform_indices = @transform_5, window_bounds = array<i64: 32, 256>}, {pipeline_mode = #tpu.pipeline_mode<synchronous>, transform_indices = @transform_6, window_bounds = array<i64: 1, 48>}, {pipeline_mode = #tpu.pipeline_mode<synchronous>, transform_indices = @transform_7, window_bounds = array<i64: 128, 256>}, {pipeline_mode = #tpu.pipeline_mode<synchronous>, transform_indices = @transform_8, window_bounds = array<i64: 3, 48, 384>}, {pipeline_mode = #tpu.pipeline_mode<synchronous>, transform_indices = @transform_9, window_bounds = array<i64: 3, 1, 48>}, {pipeline_mode = #tpu.pipeline_mode<synchronous>, transform_indices = @transform_10, window_bounds = array<i64: 48, 256>}, {pipeline_mode = #tpu.pipeline_mode<synchronous>, transform_indices = @transform_11, window_bounds = array<i64: 1, 64>}, {pipeline_mode = #tpu.pipeline_mode<synchronous>, transform_indices = @transform_12, window_bounds = array<i64: 64, 128>}, {pipeline_mode = #tpu.pipeline_mode<synchronous>, transform_indices = @transform_13, window_bounds = array<i64: 3, 64, 384>}, {pipeline_mode = #tpu.pipeline_mode<synchronous>, transform_indices = @transform_14, window_bounds = array<i64: 3, 1, 64>}, {pipeline_mode = #tpu.pipeline_mode<synchronous>, transform_indices = @transform_15, window_bounds = array<i64: 64, 256>}, {pipeline_mode = #tpu.pipeline_mode<synchronous>, transform_indices = @transform_16, window_bounds = array<i64: 1, 80>}, {pipeline_mode = #tpu.pipeline_mode<synchronous>, transform_indices = @transform_17, window_bounds = array<i64: 32, 64>}, {pipeline_mode = #tpu.pipeline_mode<synchronous>, transform_indices = @transform_18, window_bounds = array<i64: 1, 80>}, {pipeline_mode = #tpu.pipeline_mode<synchronous>, transform_indices = @transform_19, window_bounds = array<i64: 1, 1>}, {pipeline_mode = #tpu.pipeline_mode<synchronous>, transform_indices = @transform_20, window_bounds = array<i64: 16, 32>}, {pipeline_mode = #tpu.pipeline_mode<synchronous>, transform_indices = @transform_21, window_bounds = array<i64: 1, 32>}, {pipeline_mode = #tpu.pipeline_mode<synchronous>, transform_indices = @transform_22, window_bounds = array<i64: 32, 32>}, {pipeline_mode = #tpu.pipeline_mode<synchronous>, transform_indices = @transform_23, window_bounds = array<i64: 1, 32>}, {pipeline_mode = #tpu.pipeline_mode<synchronous>, transform_indices = @transform_24, window_bounds = array<i64: 32, 32>}, {pipeline_mode = #tpu.pipeline_mode<synchronous>, transform_indices = @transform_25, window_bounds = array<i64: 1, 32>}, {pipeline_mode = #tpu.pipeline_mode<synchronous>, transform_indices = @transform_26, window_bounds = array<i64: 32, 2>}, {pipeline_mode = #tpu.pipeline_mode<synchronous>, transform_indices = @transform_27, window_bounds = array<i64: 1, 2>}, {transform_indices = @transform_28, window_bounds = array<i64: 1, 2, 2>}]} {
    %c0 = arith.constant 0 : index
    %c0_0 = arith.constant 0 : index
    %c0_1 = arith.constant 0 : index
    %0 = vector.load %arg1[%c0, %c0_0, %c0_1] : memref<1x256x17xf32, #tpu.memory_space<vmem>>, vector<1x256x17xf32>
    %1 = vector.shape_cast %0 : vector<1x256x17xf32> to vector<256x17xf32>
    %2 = arith.truncf %1 : vector<256x17xf32> to vector<256x17xbf16>
    %c0_2 = arith.constant 0 : index
    %c0_3 = arith.constant 0 : index
    %3 = vector.load %arg2[%c0_2, %c0_3] : memref<17x32xbf16, #tpu.memory_space<vmem>>, vector<17x32xbf16>
    %cst = arith.constant dense<0.000000e+00> : vector<256x32xf32>
    %4 = tpu.matmul %2, %3, %cst {dimension_numbers = #tpu.dot_dimension_numbers<[1], [0], [0], [1], [0, 0, 1, 1], [], []>} : vector<256x17xbf16>, vector<17x32xbf16>, vector<256x32xf32> -> vector<256x32xf32>
    %c0_4 = arith.constant 0 : index
    %c0_5 = arith.constant 0 : index
    %5 = vector.load %arg3[%c0_4, %c0_5] : memref<1x32xf32, #tpu.memory_space<vmem>>, vector<1x32xf32>
    %6 = vector.broadcast %5 : vector<1x32xf32> to vector<256x32xf32>
    %7 = arith.addf %4, %6 : vector<256x32xf32>
    %8 = tpu.iota {dimensions = array<i32: 0>} : vector<256x1xi32>
    %c128_i32 = arith.constant 128 : i32
    %c0_i32 = arith.constant 0 : i32
    %9 = arith.cmpi eq, %c128_i32, %c0_i32 : i32
    %c1_i32 = arith.constant 1 : i32
    %10 = arith.select %9, %c1_i32, %c128_i32 : i32
    %11 = vector.broadcast %10 : i32 to vector<256x1xi32>
    %12 = arith.remsi %8, %11 : vector<256x1xi32>
    %c0_i32_6 = arith.constant 0 : i32
    %13 = vector.broadcast %c0_i32_6 : i32 to vector<256x1xi32>
    %14 = arith.cmpi ne, %12, %13 : vector<256x1xi32>
    %c0_i32_7 = arith.constant 0 : i32
    %15 = vector.broadcast %c0_i32_7 : i32 to vector<256x1xi32>
    %16 = arith.cmpi slt, %12, %15 : vector<256x1xi32>
    %c0_i32_8 = arith.constant 0 : i32
    %17 = arith.cmpi slt, %10, %c0_i32_8 : i32
    %18 = vector.broadcast %17 : i1 to vector<256x1xi1>
    %19 = vector.broadcast %18 : vector<256x1xi1> to vector<256x1xi1>
    %20 = arith.xori %16, %19 : vector<256x1xi1>
    %21 = arith.andi %20, %14 : vector<256x1xi1>
    %22 = vector.broadcast %10 : i32 to vector<256x1xi32>
    %23 = arith.addi %12, %22 : vector<256x1xi32>
    %24 = arith.select %21, %23, %12 : vector<256x1xi1>, vector<256x1xi32>
    %c4_i32 = arith.constant 4 : i32
    %25 = vector.broadcast %c4_i32 : i32 to vector<256x1xi32>
    %26 = arith.cmpi sge, %24, %25 : vector<256x1xi32>
    %c124_i32 = arith.constant 124 : i32
    %27 = vector.broadcast %c124_i32 : i32 to vector<256x1xi32>
    %28 = arith.cmpi slt, %24, %27 : vector<256x1xi32>
    %29 = arith.truncf %7 : vector<256x32xf32> to vector<256x32xbf16>
    %c0_9 = arith.constant 0 : index
    %c0_10 = arith.constant 0 : index
    %c0_11 = arith.constant 0 : index
    %30 = vector.load %arg4[%c0_9, %c0_10, %c0_11] : memref<3x32x384xbf16, #tpu.memory_space<vmem>>, vector<1x32x384xbf16>
    %31 = vector.shape_cast %30 : vector<1x32x384xbf16> to vector<32x384xbf16>
    %cst_12 = arith.constant dense<0.000000e+00> : vector<256x384xf32>
    %32 = tpu.matmul %29, %31, %cst_12 {dimension_numbers = #tpu.dot_dimension_numbers<[1], [0], [0], [1], [0, 0, 1, 1], [], []>} : vector<256x32xbf16>, vector<32x384xbf16>, vector<256x384xf32> -> vector<256x384xf32>
    %33 = vector.extract_strided_slice %32 {offsets = [0, 128], sizes = [256, 32], strides = [1, 1]} : vector<256x384xf32> to vector<256x32xf32>
    %c0_13 = arith.constant 0 : index
    %c0_14 = arith.constant 0 : index
    %c0_15 = arith.constant 0 : index
    %34 = vector.load %arg5[%c0_13, %c0_14, %c0_15] : memref<3x1x32xf32, #tpu.memory_space<vmem>>, vector<1x1x32xf32>
    %35 = vector.shape_cast %34 : vector<1x1x32xf32> to vector<1x32xf32>
    %36 = vector.broadcast %35 : vector<1x32xf32> to vector<256x32xf32>
    %37 = arith.addf %33, %36 : vector<256x32xf32>
    %38 = vector.extract_strided_slice %32 {offsets = [0, 0], sizes = [256, 32], strides = [1, 1]} : vector<256x384xf32> to vector<256x32xf32>
    %c4_i32_16 = arith.constant 4 : i32
    %39 = tpu.dynamic_rotate %38 by %c4_i32_16 dim 0 : vector<256x32xf32>, i32 -> vector<256x32xf32>
    %cst_17 = arith.constant 0.000000e+00 : f32
    %40 = vector.shape_cast %26 : vector<256x1xi1> to vector<256x1xi1>
    %41 = vector.broadcast %40 : vector<256x1xi1> to vector<256x32xi1>
    %42 = vector.broadcast %cst_17 : f32 to vector<256x32xf32>
    %43 = arith.select %41, %39, %42 : vector<256x32xi1>, vector<256x32xf32>
    %44 = arith.addf %37, %43 : vector<256x32xf32>
    %45 = vector.extract_strided_slice %32 {offsets = [0, 256], sizes = [256, 32], strides = [1, 1]} : vector<256x384xf32> to vector<256x32xf32>
    %c252_i32 = arith.constant 252 : i32
    %46 = tpu.dynamic_rotate %45 by %c252_i32 dim 0 : vector<256x32xf32>, i32 -> vector<256x32xf32>
    %cst_18 = arith.constant 0.000000e+00 : f32
    %47 = vector.shape_cast %28 : vector<256x1xi1> to vector<256x1xi1>
    %48 = vector.broadcast %47 : vector<256x1xi1> to vector<256x32xi1>
    %49 = vector.broadcast %cst_18 : f32 to vector<256x32xf32>
    %50 = arith.select %48, %46, %49 : vector<256x32xi1>, vector<256x32xf32>
    %51 = arith.addf %44, %50 : vector<256x32xf32>
    %cst_19 = arith.constant 0.000000e+00 : f32
    %52 = vector.broadcast %cst_19 : f32 to vector<256x32xf32>
    %53 = arith.cmpf ogt, %51, %52 : vector<256x32xf32>
    %cst_20 = arith.constant 0.000000e+00 : f32
    %54 = vector.broadcast %cst_20 : f32 to vector<256x32xf32>
    %55 = arith.minimumf %51, %54 : vector<256x32xf32>
    %56 = math.exp %55 : vector<256x32xf32>
    %cst_21 = arith.constant 1.000000e+00 : f32
    %57 = vector.broadcast %cst_21 : f32 to vector<256x32xf32>
    %58 = arith.subf %56, %57 : vector<256x32xf32>
    %59 = arith.select %53, %51, %58 : vector<256x32xi1>, vector<256x32xf32>
    %60 = arith.addf %7, %59 : vector<256x32xf32>
    %61 = arith.truncf %60 : vector<256x32xf32> to vector<256x32xbf16>
    %c1 = arith.constant 1 : index
    %c0_22 = arith.constant 0 : index
    %c0_23 = arith.constant 0 : index
    %62 = vector.load %arg4[%c1, %c0_22, %c0_23] : memref<3x32x384xbf16, #tpu.memory_space<vmem>>, vector<1x32x384xbf16>
    %63 = vector.shape_cast %62 : vector<1x32x384xbf16> to vector<32x384xbf16>
    %cst_24 = arith.constant dense<0.000000e+00> : vector<256x384xf32>
    %64 = tpu.matmul %61, %63, %cst_24 {dimension_numbers = #tpu.dot_dimension_numbers<[1], [0], [0], [1], [0, 0, 1, 1], [], []>} : vector<256x32xbf16>, vector<32x384xbf16>, vector<256x384xf32> -> vector<256x384xf32>
    %65 = vector.extract_strided_slice %64 {offsets = [0, 128], sizes = [256, 32], strides = [1, 1]} : vector<256x384xf32> to vector<256x32xf32>
    %c1_25 = arith.constant 1 : index
    %c0_26 = arith.constant 0 : index
    %c0_27 = arith.constant 0 : index
    %66 = vector.load %arg5[%c1_25, %c0_26, %c0_27] : memref<3x1x32xf32, #tpu.memory_space<vmem>>, vector<1x1x32xf32>
    %67 = vector.shape_cast %66 : vector<1x1x32xf32> to vector<1x32xf32>
    %68 = vector.broadcast %67 : vector<1x32xf32> to vector<256x32xf32>
    %69 = arith.addf %65, %68 : vector<256x32xf32>
    %70 = vector.extract_strided_slice %64 {offsets = [0, 0], sizes = [256, 32], strides = [1, 1]} : vector<256x384xf32> to vector<256x32xf32>
    %c4_i32_28 = arith.constant 4 : i32
    %71 = tpu.dynamic_rotate %70 by %c4_i32_28 dim 0 : vector<256x32xf32>, i32 -> vector<256x32xf32>
    %cst_29 = arith.constant 0.000000e+00 : f32
    %72 = vector.shape_cast %26 : vector<256x1xi1> to vector<256x1xi1>
    %73 = vector.broadcast %72 : vector<256x1xi1> to vector<256x32xi1>
    %74 = vector.broadcast %cst_29 : f32 to vector<256x32xf32>
    %75 = arith.select %73, %71, %74 : vector<256x32xi1>, vector<256x32xf32>
    %76 = arith.addf %69, %75 : vector<256x32xf32>
    %77 = vector.extract_strided_slice %64 {offsets = [0, 256], sizes = [256, 32], strides = [1, 1]} : vector<256x384xf32> to vector<256x32xf32>
    %c252_i32_30 = arith.constant 252 : i32
    %78 = tpu.dynamic_rotate %77 by %c252_i32_30 dim 0 : vector<256x32xf32>, i32 -> vector<256x32xf32>
    %cst_31 = arith.constant 0.000000e+00 : f32
    %79 = vector.shape_cast %28 : vector<256x1xi1> to vector<256x1xi1>
    %80 = vector.broadcast %79 : vector<256x1xi1> to vector<256x32xi1>
    %81 = vector.broadcast %cst_31 : f32 to vector<256x32xf32>
    %82 = arith.select %80, %78, %81 : vector<256x32xi1>, vector<256x32xf32>
    %83 = arith.addf %76, %82 : vector<256x32xf32>
    %cst_32 = arith.constant 0.000000e+00 : f32
    %84 = vector.broadcast %cst_32 : f32 to vector<256x32xf32>
    %85 = arith.cmpf ogt, %83, %84 : vector<256x32xf32>
    %cst_33 = arith.constant 0.000000e+00 : f32
    %86 = vector.broadcast %cst_33 : f32 to vector<256x32xf32>
    %87 = arith.minimumf %83, %86 : vector<256x32xf32>
    %88 = math.exp %87 : vector<256x32xf32>
    %cst_34 = arith.constant 1.000000e+00 : f32
    %89 = vector.broadcast %cst_34 : f32 to vector<256x32xf32>
    %90 = arith.subf %88, %89 : vector<256x32xf32>
    %91 = arith.select %85, %83, %90 : vector<256x32xi1>, vector<256x32xf32>
    %92 = arith.addf %60, %91 : vector<256x32xf32>
    %93 = arith.truncf %92 : vector<256x32xf32> to vector<256x32xbf16>
    %c2 = arith.constant 2 : index
    %c0_35 = arith.constant 0 : index
    %c0_36 = arith.constant 0 : index
    %94 = vector.load %arg4[%c2, %c0_35, %c0_36] : memref<3x32x384xbf16, #tpu.memory_space<vmem>>, vector<1x32x384xbf16>
    %95 = vector.shape_cast %94 : vector<1x32x384xbf16> to vector<32x384xbf16>
    %cst_37 = arith.constant dense<0.000000e+00> : vector<256x384xf32>
    %96 = tpu.matmul %93, %95, %cst_37 {dimension_numbers = #tpu.dot_dimension_numbers<[1], [0], [0], [1], [0, 0, 1, 1], [], []>} : vector<256x32xbf16>, vector<32x384xbf16>, vector<256x384xf32> -> vector<256x384xf32>
    %97 = vector.extract_strided_slice %96 {offsets = [0, 128], sizes = [256, 32], strides = [1, 1]} : vector<256x384xf32> to vector<256x32xf32>
    %c2_38 = arith.constant 2 : index
    %c0_39 = arith.constant 0 : index
    %c0_40 = arith.constant 0 : index
    %98 = vector.load %arg5[%c2_38, %c0_39, %c0_40] : memref<3x1x32xf32, #tpu.memory_space<vmem>>, vector<1x1x32xf32>
    %99 = vector.shape_cast %98 : vector<1x1x32xf32> to vector<1x32xf32>
    %100 = vector.broadcast %99 : vector<1x32xf32> to vector<256x32xf32>
    %101 = arith.addf %97, %100 : vector<256x32xf32>
    %102 = vector.extract_strided_slice %96 {offsets = [0, 0], sizes = [256, 32], strides = [1, 1]} : vector<256x384xf32> to vector<256x32xf32>
    %c4_i32_41 = arith.constant 4 : i32
    %103 = tpu.dynamic_rotate %102 by %c4_i32_41 dim 0 : vector<256x32xf32>, i32 -> vector<256x32xf32>
    %cst_42 = arith.constant 0.000000e+00 : f32
    %104 = vector.shape_cast %26 : vector<256x1xi1> to vector<256x1xi1>
    %105 = vector.broadcast %104 : vector<256x1xi1> to vector<256x32xi1>
    %106 = vector.broadcast %cst_42 : f32 to vector<256x32xf32>
    %107 = arith.select %105, %103, %106 : vector<256x32xi1>, vector<256x32xf32>
    %108 = arith.addf %101, %107 : vector<256x32xf32>
    %109 = vector.extract_strided_slice %96 {offsets = [0, 256], sizes = [256, 32], strides = [1, 1]} : vector<256x384xf32> to vector<256x32xf32>
    %c252_i32_43 = arith.constant 252 : i32
    %110 = tpu.dynamic_rotate %109 by %c252_i32_43 dim 0 : vector<256x32xf32>, i32 -> vector<256x32xf32>
    %cst_44 = arith.constant 0.000000e+00 : f32
    %111 = vector.shape_cast %28 : vector<256x1xi1> to vector<256x1xi1>
    %112 = vector.broadcast %111 : vector<256x1xi1> to vector<256x32xi1>
    %113 = vector.broadcast %cst_44 : f32 to vector<256x32xf32>
    %114 = arith.select %112, %110, %113 : vector<256x32xi1>, vector<256x32xf32>
    %115 = arith.addf %108, %114 : vector<256x32xf32>
    %cst_45 = arith.constant 0.000000e+00 : f32
    %116 = vector.broadcast %cst_45 : f32 to vector<256x32xf32>
    %117 = arith.cmpf ogt, %115, %116 : vector<256x32xf32>
    %cst_46 = arith.constant 0.000000e+00 : f32
    %118 = vector.broadcast %cst_46 : f32 to vector<256x32xf32>
    %119 = arith.minimumf %115, %118 : vector<256x32xf32>
    %120 = math.exp %119 : vector<256x32xf32>
    %cst_47 = arith.constant 1.000000e+00 : f32
    %121 = vector.broadcast %cst_47 : f32 to vector<256x32xf32>
    %122 = arith.subf %120, %121 : vector<256x32xf32>
    %123 = arith.select %117, %115, %122 : vector<256x32xi1>, vector<256x32xf32>
    %124 = arith.addf %92, %123 : vector<256x32xf32>
    %125 = arith.truncf %124 : vector<256x32xf32> to vector<256x32xbf16>
    %c0_48 = arith.constant 0 : index
    %c0_49 = arith.constant 0 : index
    %126 = vector.load %arg6[%c0_48, %c0_49] : memref<32x256xbf16, #tpu.memory_space<vmem>>, vector<32x256xbf16>
    %cst_50 = arith.constant dense<0.000000e+00> : vector<256x256xf32>
    %127 = tpu.matmul %125, %126, %cst_50 {dimension_numbers = #tpu.dot_dimension_numbers<[1], [0], [0], [1], [0, 0, 1, 1], [], []>} : vector<256x32xbf16>, vector<32x256xbf16>, vector<256x256xf32> -> vector<256x256xf32>
    %128 = vector.extract_strided_slice %127 {offsets = [0, 0], sizes = [256, 48], strides = [1, 1]} : vector<256x256xf32> to vector<256x48xf32>
    %129 = vector.extract_strided_slice %127 {offsets = [0, 128], sizes = [256, 48], strides = [1, 1]} : vector<256x256xf32> to vector<256x48xf32>
    %c252_i32_51 = arith.constant 252 : i32
    %130 = tpu.dynamic_rotate %129 by %c252_i32_51 dim 0 : vector<256x48xf32>, i32 -> vector<256x48xf32>
    %131 = arith.addf %128, %130 : vector<256x48xf32>
    %c0_52 = arith.constant 0 : index
    %c0_53 = arith.constant 0 : index
    %132 = vector.load %arg8[%c0_52, %c0_53] : memref<128x256xbf16, #tpu.memory_space<vmem>>, vector<128x256xbf16>
    %133 = arith.truncf %131 : vector<256x48xf32> to vector<256x48xbf16>
    %cst_54 = arith.constant dense<0.000000e+00> : vector<128x48xf32>
    %134 = tpu.matmul %132, %133, %cst_54 {dimension_numbers = #tpu.dot_dimension_numbers<[1], [0], [0], [1], [0, 0, 1, 1], [], []>} : vector<128x256xbf16>, vector<256x48xbf16>, vector<128x48xf32> -> vector<128x48xf32>
    %c0_55 = arith.constant 0 : index
    %c0_56 = arith.constant 0 : index
    %135 = vector.load %arg7[%c0_55, %c0_56] : memref<1x48xf32, #tpu.memory_space<vmem>>, vector<1x48xf32>
    %136 = vector.broadcast %135 : vector<1x48xf32> to vector<128x48xf32>
    %137 = arith.addf %134, %136 : vector<128x48xf32>
    %138 = tpu.iota {dimensions = array<i32: 0>} : vector<128x1xi32>
    %c64_i32 = arith.constant 64 : i32
    %c0_i32_57 = arith.constant 0 : i32
    %139 = arith.cmpi eq, %c64_i32, %c0_i32_57 : i32
    %c1_i32_58 = arith.constant 1 : i32
    %140 = arith.select %139, %c1_i32_58, %c64_i32 : i32
    %141 = vector.broadcast %140 : i32 to vector<128x1xi32>
    %142 = arith.remsi %138, %141 : vector<128x1xi32>
    %c0_i32_59 = arith.constant 0 : i32
    %143 = vector.broadcast %c0_i32_59 : i32 to vector<128x1xi32>
    %144 = arith.cmpi ne, %142, %143 : vector<128x1xi32>
    %c0_i32_60 = arith.constant 0 : i32
    %145 = vector.broadcast %c0_i32_60 : i32 to vector<128x1xi32>
    %146 = arith.cmpi slt, %142, %145 : vector<128x1xi32>
    %c0_i32_61 = arith.constant 0 : i32
    %147 = arith.cmpi slt, %140, %c0_i32_61 : i32
    %148 = vector.broadcast %147 : i1 to vector<128x1xi1>
    %149 = vector.broadcast %148 : vector<128x1xi1> to vector<128x1xi1>
    %150 = arith.xori %146, %149 : vector<128x1xi1>
    %151 = arith.andi %150, %144 : vector<128x1xi1>
    %152 = vector.broadcast %140 : i32 to vector<128x1xi32>
    %153 = arith.addi %142, %152 : vector<128x1xi32>
    %154 = arith.select %151, %153, %142 : vector<128x1xi1>, vector<128x1xi32>
    %c4_i32_62 = arith.constant 4 : i32
    %155 = vector.broadcast %c4_i32_62 : i32 to vector<128x1xi32>
    %156 = arith.cmpi sge, %154, %155 : vector<128x1xi32>
    %c60_i32 = arith.constant 60 : i32
    %157 = vector.broadcast %c60_i32 : i32 to vector<128x1xi32>
    %158 = arith.cmpi slt, %154, %157 : vector<128x1xi32>
    %159 = arith.truncf %137 : vector<128x48xf32> to vector<128x48xbf16>
    %c0_63 = arith.constant 0 : index
    %c0_64 = arith.constant 0 : index
    %c0_65 = arith.constant 0 : index
    %160 = vector.load %arg9[%c0_63, %c0_64, %c0_65] : memref<3x48x384xbf16, #tpu.memory_space<vmem>>, vector<1x48x384xbf16>
    %161 = vector.shape_cast %160 : vector<1x48x384xbf16> to vector<48x384xbf16>
    %cst_66 = arith.constant dense<0.000000e+00> : vector<128x384xf32>
    %162 = tpu.matmul %159, %161, %cst_66 {dimension_numbers = #tpu.dot_dimension_numbers<[1], [0], [0], [1], [0, 0, 1, 1], [], []>} : vector<128x48xbf16>, vector<48x384xbf16>, vector<128x384xf32> -> vector<128x384xf32>
    %163 = vector.extract_strided_slice %162 {offsets = [0, 128], sizes = [128, 48], strides = [1, 1]} : vector<128x384xf32> to vector<128x48xf32>
    %c0_67 = arith.constant 0 : index
    %c0_68 = arith.constant 0 : index
    %c0_69 = arith.constant 0 : index
    %164 = vector.load %arg10[%c0_67, %c0_68, %c0_69] : memref<3x1x48xf32, #tpu.memory_space<vmem>>, vector<1x1x48xf32>
    %165 = vector.shape_cast %164 : vector<1x1x48xf32> to vector<1x48xf32>
    %166 = vector.broadcast %165 : vector<1x48xf32> to vector<128x48xf32>
    %167 = arith.addf %163, %166 : vector<128x48xf32>
    %168 = vector.extract_strided_slice %162 {offsets = [0, 0], sizes = [128, 48], strides = [1, 1]} : vector<128x384xf32> to vector<128x48xf32>
    %c4_i32_70 = arith.constant 4 : i32
    %169 = tpu.dynamic_rotate %168 by %c4_i32_70 dim 0 : vector<128x48xf32>, i32 -> vector<128x48xf32>
    %cst_71 = arith.constant 0.000000e+00 : f32
    %170 = vector.shape_cast %156 : vector<128x1xi1> to vector<128x1xi1>
    %171 = vector.broadcast %170 : vector<128x1xi1> to vector<128x48xi1>
    %172 = vector.broadcast %cst_71 : f32 to vector<128x48xf32>
    %173 = arith.select %171, %169, %172 : vector<128x48xi1>, vector<128x48xf32>
    %174 = arith.addf %167, %173 : vector<128x48xf32>
    %175 = vector.extract_strided_slice %162 {offsets = [0, 256], sizes = [128, 48], strides = [1, 1]} : vector<128x384xf32> to vector<128x48xf32>
    %c124_i32_72 = arith.constant 124 : i32
    %176 = tpu.dynamic_rotate %175 by %c124_i32_72 dim 0 : vector<128x48xf32>, i32 -> vector<128x48xf32>
    %cst_73 = arith.constant 0.000000e+00 : f32
    %177 = vector.shape_cast %158 : vector<128x1xi1> to vector<128x1xi1>
    %178 = vector.broadcast %177 : vector<128x1xi1> to vector<128x48xi1>
    %179 = vector.broadcast %cst_73 : f32 to vector<128x48xf32>
    %180 = arith.select %178, %176, %179 : vector<128x48xi1>, vector<128x48xf32>
    %181 = arith.addf %174, %180 : vector<128x48xf32>
    %cst_74 = arith.constant 0.000000e+00 : f32
    %182 = vector.broadcast %cst_74 : f32 to vector<128x48xf32>
    %183 = arith.cmpf ogt, %181, %182 : vector<128x48xf32>
    %cst_75 = arith.constant 0.000000e+00 : f32
    %184 = vector.broadcast %cst_75 : f32 to vector<128x48xf32>
    %185 = arith.minimumf %181, %184 : vector<128x48xf32>
    %186 = math.exp %185 : vector<128x48xf32>
    %cst_76 = arith.constant 1.000000e+00 : f32
    %187 = vector.broadcast %cst_76 : f32 to vector<128x48xf32>
    %188 = arith.subf %186, %187 : vector<128x48xf32>
    %189 = arith.select %183, %181, %188 : vector<128x48xi1>, vector<128x48xf32>
    %190 = arith.addf %137, %189 : vector<128x48xf32>
    %191 = arith.truncf %190 : vector<128x48xf32> to vector<128x48xbf16>
    %c1_77 = arith.constant 1 : index
    %c0_78 = arith.constant 0 : index
    %c0_79 = arith.constant 0 : index
    %192 = vector.load %arg9[%c1_77, %c0_78, %c0_79] : memref<3x48x384xbf16, #tpu.memory_space<vmem>>, vector<1x48x384xbf16>
    %193 = vector.shape_cast %192 : vector<1x48x384xbf16> to vector<48x384xbf16>
    %cst_80 = arith.constant dense<0.000000e+00> : vector<128x384xf32>
    %194 = tpu.matmul %191, %193, %cst_80 {dimension_numbers = #tpu.dot_dimension_numbers<[1], [0], [0], [1], [0, 0, 1, 1], [], []>} : vector<128x48xbf16>, vector<48x384xbf16>, vector<128x384xf32> -> vector<128x384xf32>
    %195 = vector.extract_strided_slice %194 {offsets = [0, 128], sizes = [128, 48], strides = [1, 1]} : vector<128x384xf32> to vector<128x48xf32>
    %c1_81 = arith.constant 1 : index
    %c0_82 = arith.constant 0 : index
    %c0_83 = arith.constant 0 : index
    %196 = vector.load %arg10[%c1_81, %c0_82, %c0_83] : memref<3x1x48xf32, #tpu.memory_space<vmem>>, vector<1x1x48xf32>
    %197 = vector.shape_cast %196 : vector<1x1x48xf32> to vector<1x48xf32>
    %198 = vector.broadcast %197 : vector<1x48xf32> to vector<128x48xf32>
    %199 = arith.addf %195, %198 : vector<128x48xf32>
    %200 = vector.extract_strided_slice %194 {offsets = [0, 0], sizes = [128, 48], strides = [1, 1]} : vector<128x384xf32> to vector<128x48xf32>
    %c4_i32_84 = arith.constant 4 : i32
    %201 = tpu.dynamic_rotate %200 by %c4_i32_84 dim 0 : vector<128x48xf32>, i32 -> vector<128x48xf32>
    %cst_85 = arith.constant 0.000000e+00 : f32
    %202 = vector.shape_cast %156 : vector<128x1xi1> to vector<128x1xi1>
    %203 = vector.broadcast %202 : vector<128x1xi1> to vector<128x48xi1>
    %204 = vector.broadcast %cst_85 : f32 to vector<128x48xf32>
    %205 = arith.select %203, %201, %204 : vector<128x48xi1>, vector<128x48xf32>
    %206 = arith.addf %199, %205 : vector<128x48xf32>
    %207 = vector.extract_strided_slice %194 {offsets = [0, 256], sizes = [128, 48], strides = [1, 1]} : vector<128x384xf32> to vector<128x48xf32>
    %c124_i32_86 = arith.constant 124 : i32
    %208 = tpu.dynamic_rotate %207 by %c124_i32_86 dim 0 : vector<128x48xf32>, i32 -> vector<128x48xf32>
    %cst_87 = arith.constant 0.000000e+00 : f32
    %209 = vector.shape_cast %158 : vector<128x1xi1> to vector<128x1xi1>
    %210 = vector.broadcast %209 : vector<128x1xi1> to vector<128x48xi1>
    %211 = vector.broadcast %cst_87 : f32 to vector<128x48xf32>
    %212 = arith.select %210, %208, %211 : vector<128x48xi1>, vector<128x48xf32>
    %213 = arith.addf %206, %212 : vector<128x48xf32>
    %cst_88 = arith.constant 0.000000e+00 : f32
    %214 = vector.broadcast %cst_88 : f32 to vector<128x48xf32>
    %215 = arith.cmpf ogt, %213, %214 : vector<128x48xf32>
    %cst_89 = arith.constant 0.000000e+00 : f32
    %216 = vector.broadcast %cst_89 : f32 to vector<128x48xf32>
    %217 = arith.minimumf %213, %216 : vector<128x48xf32>
    %218 = math.exp %217 : vector<128x48xf32>
    %cst_90 = arith.constant 1.000000e+00 : f32
    %219 = vector.broadcast %cst_90 : f32 to vector<128x48xf32>
    %220 = arith.subf %218, %219 : vector<128x48xf32>
    %221 = arith.select %215, %213, %220 : vector<128x48xi1>, vector<128x48xf32>
    %222 = arith.addf %190, %221 : vector<128x48xf32>
    %223 = arith.truncf %222 : vector<128x48xf32> to vector<128x48xbf16>
    %c2_91 = arith.constant 2 : index
    %c0_92 = arith.constant 0 : index
    %c0_93 = arith.constant 0 : index
    %224 = vector.load %arg9[%c2_91, %c0_92, %c0_93] : memref<3x48x384xbf16, #tpu.memory_space<vmem>>, vector<1x48x384xbf16>
    %225 = vector.shape_cast %224 : vector<1x48x384xbf16> to vector<48x384xbf16>
    %cst_94 = arith.constant dense<0.000000e+00> : vector<128x384xf32>
    %226 = tpu.matmul %223, %225, %cst_94 {dimension_numbers = #tpu.dot_dimension_numbers<[1], [0], [0], [1], [0, 0, 1, 1], [], []>} : vector<128x48xbf16>, vector<48x384xbf16>, vector<128x384xf32> -> vector<128x384xf32>
    %227 = vector.extract_strided_slice %226 {offsets = [0, 128], sizes = [128, 48], strides = [1, 1]} : vector<128x384xf32> to vector<128x48xf32>
    %c2_95 = arith.constant 2 : index
    %c0_96 = arith.constant 0 : index
    %c0_97 = arith.constant 0 : index
    %228 = vector.load %arg10[%c2_95, %c0_96, %c0_97] : memref<3x1x48xf32, #tpu.memory_space<vmem>>, vector<1x1x48xf32>
    %229 = vector.shape_cast %228 : vector<1x1x48xf32> to vector<1x48xf32>
    %230 = vector.broadcast %229 : vector<1x48xf32> to vector<128x48xf32>
    %231 = arith.addf %227, %230 : vector<128x48xf32>
    %232 = vector.extract_strided_slice %226 {offsets = [0, 0], sizes = [128, 48], strides = [1, 1]} : vector<128x384xf32> to vector<128x48xf32>
    %c4_i32_98 = arith.constant 4 : i32
    %233 = tpu.dynamic_rotate %232 by %c4_i32_98 dim 0 : vector<128x48xf32>, i32 -> vector<128x48xf32>
    %cst_99 = arith.constant 0.000000e+00 : f32
    %234 = vector.shape_cast %156 : vector<128x1xi1> to vector<128x1xi1>
    %235 = vector.broadcast %234 : vector<128x1xi1> to vector<128x48xi1>
    %236 = vector.broadcast %cst_99 : f32 to vector<128x48xf32>
    %237 = arith.select %235, %233, %236 : vector<128x48xi1>, vector<128x48xf32>
    %238 = arith.addf %231, %237 : vector<128x48xf32>
    %239 = vector.extract_strided_slice %226 {offsets = [0, 256], sizes = [128, 48], strides = [1, 1]} : vector<128x384xf32> to vector<128x48xf32>
    %c124_i32_100 = arith.constant 124 : i32
    %240 = tpu.dynamic_rotate %239 by %c124_i32_100 dim 0 : vector<128x48xf32>, i32 -> vector<128x48xf32>
    %cst_101 = arith.constant 0.000000e+00 : f32
    %241 = vector.shape_cast %158 : vector<128x1xi1> to vector<128x1xi1>
    %242 = vector.broadcast %241 : vector<128x1xi1> to vector<128x48xi1>
    %243 = vector.broadcast %cst_101 : f32 to vector<128x48xf32>
    %244 = arith.select %242, %240, %243 : vector<128x48xi1>, vector<128x48xf32>
    %245 = arith.addf %238, %244 : vector<128x48xf32>
    %cst_102 = arith.constant 0.000000e+00 : f32
    %246 = vector.broadcast %cst_102 : f32 to vector<128x48xf32>
    %247 = arith.cmpf ogt, %245, %246 : vector<128x48xf32>
    %cst_103 = arith.constant 0.000000e+00 : f32
    %248 = vector.broadcast %cst_103 : f32 to vector<128x48xf32>
    %249 = arith.minimumf %245, %248 : vector<128x48xf32>
    %250 = math.exp %249 : vector<128x48xf32>
    %cst_104 = arith.constant 1.000000e+00 : f32
    %251 = vector.broadcast %cst_104 : f32 to vector<128x48xf32>
    %252 = arith.subf %250, %251 : vector<128x48xf32>
    %253 = arith.select %247, %245, %252 : vector<128x48xi1>, vector<128x48xf32>
    %254 = arith.addf %222, %253 : vector<128x48xf32>
    %255 = arith.truncf %254 : vector<128x48xf32> to vector<128x48xbf16>
    %c0_105 = arith.constant 0 : index
    %c0_106 = arith.constant 0 : index
    %256 = vector.load %arg11[%c0_105, %c0_106] : memref<48x256xbf16, #tpu.memory_space<vmem>>, vector<48x256xbf16>
    %cst_107 = arith.constant dense<0.000000e+00> : vector<128x256xf32>
    %257 = tpu.matmul %255, %256, %cst_107 {dimension_numbers = #tpu.dot_dimension_numbers<[1], [0], [0], [1], [0, 0, 1, 1], [], []>} : vector<128x48xbf16>, vector<48x256xbf16>, vector<128x256xf32> -> vector<128x256xf32>
    %258 = vector.extract_strided_slice %257 {offsets = [0, 0], sizes = [128, 64], strides = [1, 1]} : vector<128x256xf32> to vector<128x64xf32>
    %259 = vector.extract_strided_slice %257 {offsets = [0, 128], sizes = [128, 64], strides = [1, 1]} : vector<128x256xf32> to vector<128x64xf32>
    %c124_i32_108 = arith.constant 124 : i32
    %260 = tpu.dynamic_rotate %259 by %c124_i32_108 dim 0 : vector<128x64xf32>, i32 -> vector<128x64xf32>
    %261 = arith.addf %258, %260 : vector<128x64xf32>
    %c0_109 = arith.constant 0 : index
    %c0_110 = arith.constant 0 : index
    %262 = vector.load %arg13[%c0_109, %c0_110] : memref<64x128xbf16, #tpu.memory_space<vmem>>, vector<64x128xbf16>
    %263 = arith.truncf %261 : vector<128x64xf32> to vector<128x64xbf16>
    %cst_111 = arith.constant dense<0.000000e+00> : vector<64x64xf32>
    %264 = tpu.matmul %262, %263, %cst_111 {dimension_numbers = #tpu.dot_dimension_numbers<[1], [0], [0], [1], [0, 0, 1, 1], [], []>} : vector<64x128xbf16>, vector<128x64xbf16>, vector<64x64xf32> -> vector<64x64xf32>
    %c0_112 = arith.constant 0 : index
    %c0_113 = arith.constant 0 : index
    %265 = vector.load %arg12[%c0_112, %c0_113] : memref<1x64xf32, #tpu.memory_space<vmem>>, vector<1x64xf32>
    %266 = vector.broadcast %265 : vector<1x64xf32> to vector<64x64xf32>
    %267 = arith.addf %264, %266 : vector<64x64xf32>
    %268 = tpu.iota {dimensions = array<i32: 0>} : vector<64x1xi32>
    %c32_i32 = arith.constant 32 : i32
    %c0_i32_114 = arith.constant 0 : i32
    %269 = arith.cmpi eq, %c32_i32, %c0_i32_114 : i32
    %c1_i32_115 = arith.constant 1 : i32
    %270 = arith.select %269, %c1_i32_115, %c32_i32 : i32
    %271 = vector.broadcast %270 : i32 to vector<64x1xi32>
    %272 = arith.remsi %268, %271 : vector<64x1xi32>
    %c0_i32_116 = arith.constant 0 : i32
    %273 = vector.broadcast %c0_i32_116 : i32 to vector<64x1xi32>
    %274 = arith.cmpi ne, %272, %273 : vector<64x1xi32>
    %c0_i32_117 = arith.constant 0 : i32
    %275 = vector.broadcast %c0_i32_117 : i32 to vector<64x1xi32>
    %276 = arith.cmpi slt, %272, %275 : vector<64x1xi32>
    %c0_i32_118 = arith.constant 0 : i32
    %277 = arith.cmpi slt, %270, %c0_i32_118 : i32
    %278 = vector.broadcast %277 : i1 to vector<64x1xi1>
    %279 = vector.broadcast %278 : vector<64x1xi1> to vector<64x1xi1>
    %280 = arith.xori %276, %279 : vector<64x1xi1>
    %281 = arith.andi %280, %274 : vector<64x1xi1>
    %282 = vector.broadcast %270 : i32 to vector<64x1xi32>
    %283 = arith.addi %272, %282 : vector<64x1xi32>
    %284 = arith.select %281, %283, %272 : vector<64x1xi1>, vector<64x1xi32>
    %c4_i32_119 = arith.constant 4 : i32
    %285 = vector.broadcast %c4_i32_119 : i32 to vector<64x1xi32>
    %286 = arith.cmpi sge, %284, %285 : vector<64x1xi32>
    %c28_i32 = arith.constant 28 : i32
    %287 = vector.broadcast %c28_i32 : i32 to vector<64x1xi32>
    %288 = arith.cmpi slt, %284, %287 : vector<64x1xi32>
    %289 = arith.truncf %267 : vector<64x64xf32> to vector<64x64xbf16>
    %c0_120 = arith.constant 0 : index
    %c0_121 = arith.constant 0 : index
    %c0_122 = arith.constant 0 : index
    %290 = vector.load %arg14[%c0_120, %c0_121, %c0_122] : memref<3x64x384xbf16, #tpu.memory_space<vmem>>, vector<1x64x384xbf16>
    %291 = vector.shape_cast %290 : vector<1x64x384xbf16> to vector<64x384xbf16>
    %cst_123 = arith.constant dense<0.000000e+00> : vector<64x384xf32>
    %292 = tpu.matmul %289, %291, %cst_123 {dimension_numbers = #tpu.dot_dimension_numbers<[1], [0], [0], [1], [0, 0, 1, 1], [], []>} : vector<64x64xbf16>, vector<64x384xbf16>, vector<64x384xf32> -> vector<64x384xf32>
    %293 = vector.extract_strided_slice %292 {offsets = [0, 128], sizes = [64, 64], strides = [1, 1]} : vector<64x384xf32> to vector<64x64xf32>
    %c0_124 = arith.constant 0 : index
    %c0_125 = arith.constant 0 : index
    %c0_126 = arith.constant 0 : index
    %294 = vector.load %arg15[%c0_124, %c0_125, %c0_126] : memref<3x1x64xf32, #tpu.memory_space<vmem>>, vector<1x1x64xf32>
    %295 = vector.shape_cast %294 : vector<1x1x64xf32> to vector<1x64xf32>
    %296 = vector.broadcast %295 : vector<1x64xf32> to vector<64x64xf32>
    %297 = arith.addf %293, %296 : vector<64x64xf32>
    %298 = vector.extract_strided_slice %292 {offsets = [0, 0], sizes = [64, 64], strides = [1, 1]} : vector<64x384xf32> to vector<64x64xf32>
    %c4_i32_127 = arith.constant 4 : i32
    %299 = tpu.dynamic_rotate %298 by %c4_i32_127 dim 0 : vector<64x64xf32>, i32 -> vector<64x64xf32>
    %cst_128 = arith.constant 0.000000e+00 : f32
    %300 = vector.shape_cast %286 : vector<64x1xi1> to vector<64x1xi1>
    %301 = vector.broadcast %300 : vector<64x1xi1> to vector<64x64xi1>
    %302 = vector.broadcast %cst_128 : f32 to vector<64x64xf32>
    %303 = arith.select %301, %299, %302 : vector<64x64xi1>, vector<64x64xf32>
    %304 = arith.addf %297, %303 : vector<64x64xf32>
    %305 = vector.extract_strided_slice %292 {offsets = [0, 256], sizes = [64, 64], strides = [1, 1]} : vector<64x384xf32> to vector<64x64xf32>
    %c60_i32_129 = arith.constant 60 : i32
    %306 = tpu.dynamic_rotate %305 by %c60_i32_129 dim 0 : vector<64x64xf32>, i32 -> vector<64x64xf32>
    %cst_130 = arith.constant 0.000000e+00 : f32
    %307 = vector.shape_cast %288 : vector<64x1xi1> to vector<64x1xi1>
    %308 = vector.broadcast %307 : vector<64x1xi1> to vector<64x64xi1>
    %309 = vector.broadcast %cst_130 : f32 to vector<64x64xf32>
    %310 = arith.select %308, %306, %309 : vector<64x64xi1>, vector<64x64xf32>
    %311 = arith.addf %304, %310 : vector<64x64xf32>
    %cst_131 = arith.constant 0.000000e+00 : f32
    %312 = vector.broadcast %cst_131 : f32 to vector<64x64xf32>
    %313 = arith.cmpf ogt, %311, %312 : vector<64x64xf32>
    %cst_132 = arith.constant 0.000000e+00 : f32
    %314 = vector.broadcast %cst_132 : f32 to vector<64x64xf32>
    %315 = arith.minimumf %311, %314 : vector<64x64xf32>
    %316 = math.exp %315 : vector<64x64xf32>
    %cst_133 = arith.constant 1.000000e+00 : f32
    %317 = vector.broadcast %cst_133 : f32 to vector<64x64xf32>
    %318 = arith.subf %316, %317 : vector<64x64xf32>
    %319 = arith.select %313, %311, %318 : vector<64x64xi1>, vector<64x64xf32>
    %320 = arith.addf %267, %319 : vector<64x64xf32>
    %321 = arith.truncf %320 : vector<64x64xf32> to vector<64x64xbf16>
    %c1_134 = arith.constant 1 : index
    %c0_135 = arith.constant 0 : index
    %c0_136 = arith.constant 0 : index
    %322 = vector.load %arg14[%c1_134, %c0_135, %c0_136] : memref<3x64x384xbf16, #tpu.memory_space<vmem>>, vector<1x64x384xbf16>
    %323 = vector.shape_cast %322 : vector<1x64x384xbf16> to vector<64x384xbf16>
    %cst_137 = arith.constant dense<0.000000e+00> : vector<64x384xf32>
    %324 = tpu.matmul %321, %323, %cst_137 {dimension_numbers = #tpu.dot_dimension_numbers<[1], [0], [0], [1], [0, 0, 1, 1], [], []>} : vector<64x64xbf16>, vector<64x384xbf16>, vector<64x384xf32> -> vector<64x384xf32>
    %325 = vector.extract_strided_slice %324 {offsets = [0, 128], sizes = [64, 64], strides = [1, 1]} : vector<64x384xf32> to vector<64x64xf32>
    %c1_138 = arith.constant 1 : index
    %c0_139 = arith.constant 0 : index
    %c0_140 = arith.constant 0 : index
    %326 = vector.load %arg15[%c1_138, %c0_139, %c0_140] : memref<3x1x64xf32, #tpu.memory_space<vmem>>, vector<1x1x64xf32>
    %327 = vector.shape_cast %326 : vector<1x1x64xf32> to vector<1x64xf32>
    %328 = vector.broadcast %327 : vector<1x64xf32> to vector<64x64xf32>
    %329 = arith.addf %325, %328 : vector<64x64xf32>
    %330 = vector.extract_strided_slice %324 {offsets = [0, 0], sizes = [64, 64], strides = [1, 1]} : vector<64x384xf32> to vector<64x64xf32>
    %c4_i32_141 = arith.constant 4 : i32
    %331 = tpu.dynamic_rotate %330 by %c4_i32_141 dim 0 : vector<64x64xf32>, i32 -> vector<64x64xf32>
    %cst_142 = arith.constant 0.000000e+00 : f32
    %332 = vector.shape_cast %286 : vector<64x1xi1> to vector<64x1xi1>
    %333 = vector.broadcast %332 : vector<64x1xi1> to vector<64x64xi1>
    %334 = vector.broadcast %cst_142 : f32 to vector<64x64xf32>
    %335 = arith.select %333, %331, %334 : vector<64x64xi1>, vector<64x64xf32>
    %336 = arith.addf %329, %335 : vector<64x64xf32>
    %337 = vector.extract_strided_slice %324 {offsets = [0, 256], sizes = [64, 64], strides = [1, 1]} : vector<64x384xf32> to vector<64x64xf32>
    %c60_i32_143 = arith.constant 60 : i32
    %338 = tpu.dynamic_rotate %337 by %c60_i32_143 dim 0 : vector<64x64xf32>, i32 -> vector<64x64xf32>
    %cst_144 = arith.constant 0.000000e+00 : f32
    %339 = vector.shape_cast %288 : vector<64x1xi1> to vector<64x1xi1>
    %340 = vector.broadcast %339 : vector<64x1xi1> to vector<64x64xi1>
    %341 = vector.broadcast %cst_144 : f32 to vector<64x64xf32>
    %342 = arith.select %340, %338, %341 : vector<64x64xi1>, vector<64x64xf32>
    %343 = arith.addf %336, %342 : vector<64x64xf32>
    %cst_145 = arith.constant 0.000000e+00 : f32
    %344 = vector.broadcast %cst_145 : f32 to vector<64x64xf32>
    %345 = arith.cmpf ogt, %343, %344 : vector<64x64xf32>
    %cst_146 = arith.constant 0.000000e+00 : f32
    %346 = vector.broadcast %cst_146 : f32 to vector<64x64xf32>
    %347 = arith.minimumf %343, %346 : vector<64x64xf32>
    %348 = math.exp %347 : vector<64x64xf32>
    %cst_147 = arith.constant 1.000000e+00 : f32
    %349 = vector.broadcast %cst_147 : f32 to vector<64x64xf32>
    %350 = arith.subf %348, %349 : vector<64x64xf32>
    %351 = arith.select %345, %343, %350 : vector<64x64xi1>, vector<64x64xf32>
    %352 = arith.addf %320, %351 : vector<64x64xf32>
    %353 = arith.truncf %352 : vector<64x64xf32> to vector<64x64xbf16>
    %c2_148 = arith.constant 2 : index
    %c0_149 = arith.constant 0 : index
    %c0_150 = arith.constant 0 : index
    %354 = vector.load %arg14[%c2_148, %c0_149, %c0_150] : memref<3x64x384xbf16, #tpu.memory_space<vmem>>, vector<1x64x384xbf16>
    %355 = vector.shape_cast %354 : vector<1x64x384xbf16> to vector<64x384xbf16>
    %cst_151 = arith.constant dense<0.000000e+00> : vector<64x384xf32>
    %356 = tpu.matmul %353, %355, %cst_151 {dimension_numbers = #tpu.dot_dimension_numbers<[1], [0], [0], [1], [0, 0, 1, 1], [], []>} : vector<64x64xbf16>, vector<64x384xbf16>, vector<64x384xf32> -> vector<64x384xf32>
    %357 = vector.extract_strided_slice %356 {offsets = [0, 128], sizes = [64, 64], strides = [1, 1]} : vector<64x384xf32> to vector<64x64xf32>
    %c2_152 = arith.constant 2 : index
    %c0_153 = arith.constant 0 : index
    %c0_154 = arith.constant 0 : index
    %358 = vector.load %arg15[%c2_152, %c0_153, %c0_154] : memref<3x1x64xf32, #tpu.memory_space<vmem>>, vector<1x1x64xf32>
    %359 = vector.shape_cast %358 : vector<1x1x64xf32> to vector<1x64xf32>
    %360 = vector.broadcast %359 : vector<1x64xf32> to vector<64x64xf32>
    %361 = arith.addf %357, %360 : vector<64x64xf32>
    %362 = vector.extract_strided_slice %356 {offsets = [0, 0], sizes = [64, 64], strides = [1, 1]} : vector<64x384xf32> to vector<64x64xf32>
    %c4_i32_155 = arith.constant 4 : i32
    %363 = tpu.dynamic_rotate %362 by %c4_i32_155 dim 0 : vector<64x64xf32>, i32 -> vector<64x64xf32>
    %cst_156 = arith.constant 0.000000e+00 : f32
    %364 = vector.shape_cast %286 : vector<64x1xi1> to vector<64x1xi1>
    %365 = vector.broadcast %364 : vector<64x1xi1> to vector<64x64xi1>
    %366 = vector.broadcast %cst_156 : f32 to vector<64x64xf32>
    %367 = arith.select %365, %363, %366 : vector<64x64xi1>, vector<64x64xf32>
    %368 = arith.addf %361, %367 : vector<64x64xf32>
    %369 = vector.extract_strided_slice %356 {offsets = [0, 256], sizes = [64, 64], strides = [1, 1]} : vector<64x384xf32> to vector<64x64xf32>
    %c60_i32_157 = arith.constant 60 : i32
    %370 = tpu.dynamic_rotate %369 by %c60_i32_157 dim 0 : vector<64x64xf32>, i32 -> vector<64x64xf32>
    %cst_158 = arith.constant 0.000000e+00 : f32
    %371 = vector.shape_cast %288 : vector<64x1xi1> to vector<64x1xi1>
    %372 = vector.broadcast %371 : vector<64x1xi1> to vector<64x64xi1>
    %373 = vector.broadcast %cst_158 : f32 to vector<64x64xf32>
    %374 = arith.select %372, %370, %373 : vector<64x64xi1>, vector<64x64xf32>
    %375 = arith.addf %368, %374 : vector<64x64xf32>
    %cst_159 = arith.constant 0.000000e+00 : f32
    %376 = vector.broadcast %cst_159 : f32 to vector<64x64xf32>
    %377 = arith.cmpf ogt, %375, %376 : vector<64x64xf32>
    %cst_160 = arith.constant 0.000000e+00 : f32
    %378 = vector.broadcast %cst_160 : f32 to vector<64x64xf32>
    %379 = arith.minimumf %375, %378 : vector<64x64xf32>
    %380 = math.exp %379 : vector<64x64xf32>
    %cst_161 = arith.constant 1.000000e+00 : f32
    %381 = vector.broadcast %cst_161 : f32 to vector<64x64xf32>
    %382 = arith.subf %380, %381 : vector<64x64xf32>
    %383 = arith.select %377, %375, %382 : vector<64x64xi1>, vector<64x64xf32>
    %384 = arith.addf %352, %383 : vector<64x64xf32>
    %385 = arith.truncf %384 : vector<64x64xf32> to vector<64x64xbf16>
    %c0_162 = arith.constant 0 : index
    %c0_163 = arith.constant 0 : index
    %386 = vector.load %arg16[%c0_162, %c0_163] : memref<64x256xbf16, #tpu.memory_space<vmem>>, vector<64x256xbf16>
    %cst_164 = arith.constant dense<0.000000e+00> : vector<64x256xf32>
    %387 = tpu.matmul %385, %386, %cst_164 {dimension_numbers = #tpu.dot_dimension_numbers<[1], [0], [0], [1], [0, 0, 1, 1], [], []>} : vector<64x64xbf16>, vector<64x256xbf16>, vector<64x256xf32> -> vector<64x256xf32>
    %388 = vector.extract_strided_slice %387 {offsets = [0, 0], sizes = [64, 80], strides = [1, 1]} : vector<64x256xf32> to vector<64x80xf32>
    %389 = vector.extract_strided_slice %387 {offsets = [0, 128], sizes = [64, 80], strides = [1, 1]} : vector<64x256xf32> to vector<64x80xf32>
    %c60_i32_165 = arith.constant 60 : i32
    %390 = tpu.dynamic_rotate %389 by %c60_i32_165 dim 0 : vector<64x80xf32>, i32 -> vector<64x80xf32>
    %391 = arith.addf %388, %390 : vector<64x80xf32>
    %c0_166 = arith.constant 0 : index
    %c0_167 = arith.constant 0 : index
    %392 = vector.load %arg18[%c0_166, %c0_167] : memref<32x64xbf16, #tpu.memory_space<vmem>>, vector<32x64xbf16>
    %393 = arith.truncf %391 : vector<64x80xf32> to vector<64x80xbf16>
    %cst_168 = arith.constant dense<0.000000e+00> : vector<32x80xf32>
    %394 = tpu.matmul %392, %393, %cst_168 {dimension_numbers = #tpu.dot_dimension_numbers<[1], [0], [0], [1], [0, 0, 1, 1], [], []>} : vector<32x64xbf16>, vector<64x80xbf16>, vector<32x80xf32> -> vector<32x80xf32>
    %c0_169 = arith.constant 0 : index
    %c0_170 = arith.constant 0 : index
    %395 = vector.load %arg17[%c0_169, %c0_170] : memref<1x80xf32, #tpu.memory_space<vmem>>, vector<1x80xf32>
    %396 = vector.broadcast %395 : vector<1x80xf32> to vector<32x80xf32>
    %397 = arith.addf %394, %396 : vector<32x80xf32>
    %c0_171 = arith.constant 0 : index
    %c0_172 = arith.constant 0 : index
    %398 = vector.load %arg19[%c0_171, %c0_172] : memref<1x80xf32, #tpu.memory_space<vmem>>, vector<1x80xf32>
    %cst_173 = arith.constant dense<0.000000e+00> : vector<1x32xf32>
    %399 = tpu.matmul %398, %397, %cst_173 {dimension_numbers = #tpu.dot_dimension_numbers<[1], [1], [0], [0], [0, 0, 1, 0], [], []>} : vector<1x80xf32>, vector<32x80xf32>, vector<1x32xf32> -> vector<1x32xf32>
    %c0_174 = arith.constant 0 : index
    %c0_175 = arith.constant 0 : index
    %400 = vector.load %arg20[%c0_174, %c0_175] : memref<1x1xf32, #tpu.memory_space<vmem>>, vector<1x1xf32>
    %401 = vector.broadcast %400 : vector<1x1xf32> to vector<1x32xf32>
    %402 = arith.addf %399, %401 : vector<1x32xf32>
    %403 = vector.extract_strided_slice %402 {offsets = [0, 0], sizes = [1, 16], strides = [1, 1]} : vector<1x32xf32> to vector<1x16xf32>
    %404 = vector.extract_strided_slice %402 {offsets = [0, 16], sizes = [1, 16], strides = [1, 1]} : vector<1x32xf32> to vector<1x16xf32>
    %405 = tpu.concatenate %403, %404 in 0 : vector<1x16xf32>, vector<1x16xf32> -> vector<2x16xf32>
    %406 = arith.truncf %405 : vector<2x16xf32> to vector<2x16xbf16>
    %c0_176 = arith.constant 0 : index
    %c0_177 = arith.constant 0 : index
    %407 = vector.load %arg21[%c0_176, %c0_177] : memref<16x32xbf16, #tpu.memory_space<vmem>>, vector<16x32xbf16>
    %cst_178 = arith.constant dense<0.000000e+00> : vector<2x32xf32>
    %408 = tpu.matmul %406, %407, %cst_178 {dimension_numbers = #tpu.dot_dimension_numbers<[1], [0], [0], [1], [0, 0, 1, 1], [], []>} : vector<2x16xbf16>, vector<16x32xbf16>, vector<2x32xf32> -> vector<2x32xf32>
    %c0_179 = arith.constant 0 : index
    %c0_180 = arith.constant 0 : index
    %409 = vector.load %arg22[%c0_179, %c0_180] : memref<1x32xf32, #tpu.memory_space<vmem>>, vector<1x32xf32>
    %410 = vector.broadcast %409 : vector<1x32xf32> to vector<2x32xf32>
    %411 = arith.addf %408, %410 : vector<2x32xf32>
    %cst_181 = arith.constant 0.000000e+00 : f32
    %412 = vector.broadcast %cst_181 : f32 to vector<2x32xf32>
    %413 = arith.cmpf ogt, %411, %412 : vector<2x32xf32>
    %cst_182 = arith.constant 0.000000e+00 : f32
    %414 = vector.broadcast %cst_182 : f32 to vector<2x32xf32>
    %415 = arith.minimumf %411, %414 : vector<2x32xf32>
    %416 = math.exp %415 : vector<2x32xf32>
    %cst_183 = arith.constant 1.000000e+00 : f32
    %417 = vector.broadcast %cst_183 : f32 to vector<2x32xf32>
    %418 = arith.subf %416, %417 : vector<2x32xf32>
    %419 = arith.select %413, %411, %418 : vector<2x32xi1>, vector<2x32xf32>
    %420 = arith.truncf %419 : vector<2x32xf32> to vector<2x32xbf16>
    %c0_184 = arith.constant 0 : index
    %c0_185 = arith.constant 0 : index
    %421 = vector.load %arg23[%c0_184, %c0_185] : memref<32x32xbf16, #tpu.memory_space<vmem>>, vector<32x32xbf16>
    %cst_186 = arith.constant dense<0.000000e+00> : vector<2x32xf32>
    %422 = tpu.matmul %420, %421, %cst_186 {dimension_numbers = #tpu.dot_dimension_numbers<[1], [0], [0], [1], [0, 0, 1, 1], [], []>} : vector<2x32xbf16>, vector<32x32xbf16>, vector<2x32xf32> -> vector<2x32xf32>
    %c0_187 = arith.constant 0 : index
    %c0_188 = arith.constant 0 : index
    %423 = vector.load %arg24[%c0_187, %c0_188] : memref<1x32xf32, #tpu.memory_space<vmem>>, vector<1x32xf32>
    %424 = vector.broadcast %423 : vector<1x32xf32> to vector<2x32xf32>
    %425 = arith.addf %422, %424 : vector<2x32xf32>
    %cst_189 = arith.constant 0.000000e+00 : f32
    %426 = vector.broadcast %cst_189 : f32 to vector<2x32xf32>
    %427 = arith.cmpf ogt, %425, %426 : vector<2x32xf32>
    %cst_190 = arith.constant 0.000000e+00 : f32
    %428 = vector.broadcast %cst_190 : f32 to vector<2x32xf32>
    %429 = arith.minimumf %425, %428 : vector<2x32xf32>
    %430 = math.exp %429 : vector<2x32xf32>
    %cst_191 = arith.constant 1.000000e+00 : f32
    %431 = vector.broadcast %cst_191 : f32 to vector<2x32xf32>
    %432 = arith.subf %430, %431 : vector<2x32xf32>
    %433 = arith.select %427, %425, %432 : vector<2x32xi1>, vector<2x32xf32>
    %434 = arith.truncf %433 : vector<2x32xf32> to vector<2x32xbf16>
    %c0_192 = arith.constant 0 : index
    %c0_193 = arith.constant 0 : index
    %435 = vector.load %arg25[%c0_192, %c0_193] : memref<32x32xbf16, #tpu.memory_space<vmem>>, vector<32x32xbf16>
    %cst_194 = arith.constant dense<0.000000e+00> : vector<2x32xf32>
    %436 = tpu.matmul %434, %435, %cst_194 {dimension_numbers = #tpu.dot_dimension_numbers<[1], [0], [0], [1], [0, 0, 1, 1], [], []>} : vector<2x32xbf16>, vector<32x32xbf16>, vector<2x32xf32> -> vector<2x32xf32>
    %c0_195 = arith.constant 0 : index
    %c0_196 = arith.constant 0 : index
    %437 = vector.load %arg26[%c0_195, %c0_196] : memref<1x32xf32, #tpu.memory_space<vmem>>, vector<1x32xf32>
    %438 = vector.broadcast %437 : vector<1x32xf32> to vector<2x32xf32>
    %439 = arith.addf %436, %438 : vector<2x32xf32>
    %cst_197 = arith.constant 0.000000e+00 : f32
    %440 = vector.broadcast %cst_197 : f32 to vector<2x32xf32>
    %441 = arith.cmpf ogt, %439, %440 : vector<2x32xf32>
    %cst_198 = arith.constant 0.000000e+00 : f32
    %442 = vector.broadcast %cst_198 : f32 to vector<2x32xf32>
    %443 = arith.minimumf %439, %442 : vector<2x32xf32>
    %444 = math.exp %443 : vector<2x32xf32>
    %cst_199 = arith.constant 1.000000e+00 : f32
    %445 = vector.broadcast %cst_199 : f32 to vector<2x32xf32>
    %446 = arith.subf %444, %445 : vector<2x32xf32>
    %447 = arith.select %441, %439, %446 : vector<2x32xi1>, vector<2x32xf32>
    %448 = arith.truncf %447 : vector<2x32xf32> to vector<2x32xbf16>
    %c0_200 = arith.constant 0 : index
    %c0_201 = arith.constant 0 : index
    %449 = vector.load %arg27[%c0_200, %c0_201] : memref<32x2xbf16, #tpu.memory_space<vmem>>, vector<32x2xbf16>
    %cst_202 = arith.constant dense<0.000000e+00> : vector<2x2xf32>
    %450 = tpu.matmul %448, %449, %cst_202 {dimension_numbers = #tpu.dot_dimension_numbers<[1], [0], [0], [1], [0, 0, 1, 1], [], []>} : vector<2x32xbf16>, vector<32x2xbf16>, vector<2x2xf32> -> vector<2x2xf32>
    %c0_203 = arith.constant 0 : index
    %c0_204 = arith.constant 0 : index
    %451 = vector.load %arg28[%c0_203, %c0_204] : memref<1x2xf32, #tpu.memory_space<vmem>>, vector<1x2xf32>
    %452 = vector.broadcast %451 : vector<1x2xf32> to vector<2x2xf32>
    %453 = arith.addf %450, %452 : vector<2x2xf32>
    %cst_205 = arith.constant dense<0xFF800000> : vector<2xf32>
    %454 = vector.multi_reduction <maximumf>, %453, %cst_205 [1] : vector<2x2xf32> to vector<2xf32>
    %455 = vector.shape_cast %454 : vector<2xf32> to vector<2x1xf32>
    %456 = vector.broadcast %455 : vector<2x1xf32> to vector<2x2xf32>
    %457 = arith.subf %453, %456 : vector<2x2xf32>
    %458 = math.exp %457 : vector<2x2xf32>
    %cst_206 = arith.constant dense<0.000000e+00> : vector<2xf32>
    %459 = vector.multi_reduction <add>, %458, %cst_206 [1] : vector<2x2xf32> to vector<2xf32>
    %460 = vector.shape_cast %459 : vector<2xf32> to vector<2x1xf32>
    %461 = vector.broadcast %460 : vector<2x1xf32> to vector<2x2xf32>
    %462 = arith.divf %458, %461 : vector<2x2xf32>
    %c0_207 = arith.constant 0 : index
    %c0_208 = arith.constant 0 : index
    %c0_209 = arith.constant 0 : index
    %463 = vector.load %arg29[%c0_207, %c0_208, %c0_209] : memref<1x2x2xf32, #tpu.memory_space<vmem>>, vector<1x2x2xf32>
    %464 = vector.shape_cast %463 : vector<1x2x2xf32> to vector<2x2xf32>
    %465 = vector.shape_cast %462 : vector<2x2xf32> to vector<1x2x2xf32>
    tpu.vector_store %arg29[%c0_207, %c0_208, %c0_209], %465 {strides = array<i32>} : memref<1x2x2xf32, #tpu.memory_space<vmem>>, vector<1x2x2xf32>,
    return
  }
  func.func @transform_0(%arg0: i32) -> (i32, i32, i32) {
    %c0_i32 = arith.constant 0 : i32
    %c0_i32_0 = arith.constant 0 : i32
    %c0_i32_1 = arith.constant 0 : i32
    return %arg0, %c0_i32, %c0_i32_0 : i32, i32, i32
  }
  func.func @transform_1(%arg0: i32) -> (i32, i32) {
    %c0_i32 = arith.constant 0 : i32
    %c0_i32_0 = arith.constant 0 : i32
    %c0_i32_1 = arith.constant 0 : i32
    return %c0_i32, %c0_i32_0 : i32, i32
  }
  func.func @transform_2(%arg0: i32) -> (i32, i32) {
    %c0_i32 = arith.constant 0 : i32
    %c0_i32_0 = arith.constant 0 : i32
    %c0_i32_1 = arith.constant 0 : i32
    return %c0_i32, %c0_i32_0 : i32, i32
  }
  func.func @transform_3(%arg0: i32) -> (i32, i32, i32) {
    %c0_i32 = arith.constant 0 : i32
    %c0_i32_0 = arith.constant 0 : i32
    %c0_i32_1 = arith.constant 0 : i32
    %c0_i32_2 = arith.constant 0 : i32
    return %c0_i32, %c0_i32_0, %c0_i32_1 : i32, i32, i32
  }
  func.func @transform_4(%arg0: i32) -> (i32, i32, i32) {
    %c0_i32 = arith.constant 0 : i32
    %c0_i32_0 = arith.constant 0 : i32
    %c0_i32_1 = arith.constant 0 : i32
    %c0_i32_2 = arith.constant 0 : i32
    return %c0_i32, %c0_i32_0, %c0_i32_1 : i32, i32, i32
  }
  func.func @transform_5(%arg0: i32) -> (i32, i32) {
    %c0_i32 = arith.constant 0 : i32
    %c0_i32_0 = arith.constant 0 : i32
    %c0_i32_1 = arith.constant 0 : i32
    return %c0_i32, %c0_i32_0 : i32, i32
  }
  func.func @transform_6(%arg0: i32) -> (i32, i32) {
    %c0_i32 = arith.constant 0 : i32
    %c0_i32_0 = arith.constant 0 : i32
    %c0_i32_1 = arith.constant 0 : i32
    return %c0_i32, %c0_i32_0 : i32, i32
  }
  func.func @transform_7(%arg0: i32) -> (i32, i32) {
    %c0_i32 = arith.constant 0 : i32
    %c0_i32_0 = arith.constant 0 : i32
    %c0_i32_1 = arith.constant 0 : i32
    return %c0_i32, %c0_i32_0 : i32, i32
  }
  func.func @transform_8(%arg0: i32) -> (i32, i32, i32) {
    %c0_i32 = arith.constant 0 : i32
    %c0_i32_0 = arith.constant 0 : i32
    %c0_i32_1 = arith.constant 0 : i32
    %c0_i32_2 = arith.constant 0 : i32
    return %c0_i32, %c0_i32_0, %c0_i32_1 : i32, i32, i32
  }
  func.func @transform_9(%arg0: i32) -> (i32, i32, i32) {
    %c0_i32 = arith.constant 0 : i32
    %c0_i32_0 = arith.constant 0 : i32
    %c0_i32_1 = arith.constant 0 : i32
    %c0_i32_2 = arith.constant 0 : i32
    return %c0_i32, %c0_i32_0, %c0_i32_1 : i32, i32, i32
  }
  func.func @transform_10(%arg0: i32) -> (i32, i32) {
    %c0_i32 = arith.constant 0 : i32
    %c0_i32_0 = arith.constant 0 : i32
    %c0_i32_1 = arith.constant 0 : i32
    return %c0_i32, %c0_i32_0 : i32, i32
  }
  func.func @transform_11(%arg0: i32) -> (i32, i32) {
    %c0_i32 = arith.constant 0 : i32
    %c0_i32_0 = arith.constant 0 : i32
    %c0_i32_1 = arith.constant 0 : i32
    return %c0_i32, %c0_i32_0 : i32, i32
  }
  func.func @transform_12(%arg0: i32) -> (i32, i32) {
    %c0_i32 = arith.constant 0 : i32
    %c0_i32_0 = arith.constant 0 : i32
    %c0_i32_1 = arith.constant 0 : i32
    return %c0_i32, %c0_i32_0 : i32, i32
  }
  func.func @transform_13(%arg0: i32) -> (i32, i32, i32) {
    %c0_i32 = arith.constant 0 : i32
    %c0_i32_0 = arith.constant 0 : i32
    %c0_i32_1 = arith.constant 0 : i32
    %c0_i32_2 = arith.constant 0 : i32
    return %c0_i32, %c0_i32_0, %c0_i32_1 : i32, i32, i32
  }
  func.func @transform_14(%arg0: i32) -> (i32, i32, i32) {
    %c0_i32 = arith.constant 0 : i32
    %c0_i32_0 = arith.constant 0 : i32
    %c0_i32_1 = arith.constant 0 : i32
    %c0_i32_2 = arith.constant 0 : i32
    return %c0_i32, %c0_i32_0, %c0_i32_1 : i32, i32, i32
  }
  func.func @transform_15(%arg0: i32) -> (i32, i32) {
    %c0_i32 = arith.constant 0 : i32
    %c0_i32_0 = arith.constant 0 : i32
    %c0_i32_1 = arith.constant 0 : i32
    return %c0_i32, %c0_i32_0 : i32, i32
  }
  func.func @transform_16(%arg0: i32) -> (i32, i32) {
    %c0_i32 = arith.constant 0 : i32
    %c0_i32_0 = arith.constant 0 : i32
    %c0_i32_1 = arith.constant 0 : i32
    return %c0_i32, %c0_i32_0 : i32, i32
  }
  func.func @transform_17(%arg0: i32) -> (i32, i32) {
    %c0_i32 = arith.constant 0 : i32
    %c0_i32_0 = arith.constant 0 : i32
    %c0_i32_1 = arith.constant 0 : i32
    return %c0_i32, %c0_i32_0 : i32, i32
  }
  func.func @transform_18(%arg0: i32) -> (i32, i32) {
    %c0_i32 = arith.constant 0 : i32
    %c0_i32_0 = arith.constant 0 : i32
    %c0_i32_1 = arith.constant 0 : i32
    return %c0_i32, %c0_i32_0 : i32, i32
  }
  func.func @transform_19(%arg0: i32) -> (i32, i32) {
    %c0_i32 = arith.constant 0 : i32
    %c0_i32_0 = arith.constant 0 : i32
    %c0_i32_1 = arith.constant 0 : i32
    return %c0_i32, %c0_i32_0 : i32, i32
  }
  func.func @transform_20(%arg0: i32) -> (i32, i32) {
    %c0_i32 = arith.constant 0 : i32
    %c0_i32_0 = arith.constant 0 : i32
    %c0_i32_1 = arith.constant 0 : i32
    return %c0_i32, %c0_i32_0 : i32, i32
  }
  func.func @transform_21(%arg0: i32) -> (i32, i32) {
    %c0_i32 = arith.constant 0 : i32
    %c0_i32_0 = arith.constant 0 : i32
    %c0_i32_1 = arith.constant 0 : i32
    return %c0_i32, %c0_i32_0 : i32, i32
  }
  func.func @transform_22(%arg0: i32) -> (i32, i32) {
    %c0_i32 = arith.constant 0 : i32
    %c0_i32_0 = arith.constant 0 : i32
    %c0_i32_1 = arith.constant 0 : i32
    return %c0_i32, %c0_i32_0 : i32, i32
  }
  func.func @transform_23(%arg0: i32) -> (i32, i32) {
    %c0_i32 = arith.constant 0 : i32
    %c0_i32_0 = arith.constant 0 : i32
    %c0_i32_1 = arith.constant 0 : i32
    return %c0_i32, %c0_i32_0 : i32, i32
  }
  func.func @transform_24(%arg0: i32) -> (i32, i32) {
    %c0_i32 = arith.constant 0 : i32
    %c0_i32_0 = arith.constant 0 : i32
    %c0_i32_1 = arith.constant 0 : i32
    return %c0_i32, %c0_i32_0 : i32, i32
  }
  func.func @transform_25(%arg0: i32) -> (i32, i32) {
    %c0_i32 = arith.constant 0 : i32
    %c0_i32_0 = arith.constant 0 : i32
    %c0_i32_1 = arith.constant 0 : i32
    return %c0_i32, %c0_i32_0 : i32, i32
  }
  func.func @transform_26(%arg0: i32) -> (i32, i32) {
    %c0_i32 = arith.constant 0 : i32
    %c0_i32_0 = arith.constant 0 : i32
    %c0_i32_1 = arith.constant 0 : i32
    return %c0_i32, %c0_i32_0 : i32, i32
  }
  func.func @transform_27(%arg0: i32) -> (i32, i32) {
    %c0_i32 = arith.constant 0 : i32
    %c0_i32_0 = arith.constant 0 : i32
    %c0_i32_1 = arith.constant 0 : i32
    return %c0_i32, %c0_i32_0 : i32, i32
  }
  func.func @transform_28(%arg0: i32) -> (i32, i32, i32) {
    %c0_i32 = arith.constant 0 : i32
    %c0_i32_0 = arith.constant 0 : i32
    %c0_i32_1 = arith.constant 0 : i32
    return %arg0, %c0_i32, %c0_i32_0 : i32, i32, i32
  }
}

</mosaic_0001>

<llo_original>
// kernel: forward.1
$region0: #{forward.1}
  #allocation0 [shape = 'u32[]', space=smem, size = 0x4, offset = 0x4, fixed_abs, tag = 'smem constant byte address 0x4 - core index']
  #allocation1 [shape = 'u32[8192,128]{1,0:T(1,128)}', space=vmem, size = 0x400000, scoped, tag = 'internal scratch']
  #allocation2 [shape = 'f32[1,1]{1,0:T(1,128)S(1)}', space=vmem, size = 0x200, scoped, tag = 'scoped memory for forward.1']
  %s0 = inlined_call_operand.vmem [shape: f32[1,256,17], index: 0, kind: input, shape index: {}]
  %s1 = inlined_call_operand.vmem [shape: bf16[17,32], index: 1, kind: input, shape index: {}]
  %s2 = inlined_call_operand.vmem [shape: f32[1,32], index: 2, kind: input, shape index: {}]
  %s3 = inlined_call_operand.vmem [shape: bf16[3,32,384], index: 3, kind: input, shape index: {}]
  %s4 = inlined_call_operand.vmem [shape: f32[3,1,32], index: 4, kind: input, shape index: {}]
  %s5 = inlined_call_operand.vmem [shape: bf16[32,256], index: 5, kind: input, shape index: {}]
  %s6 = inlined_call_operand.vmem [shape: f32[1,48], index: 6, kind: input, shape index: {}]
  %s7 = inlined_call_operand.vmem [shape: bf16[128,256], index: 7, kind: input, shape index: {}]
  %s8 = inlined_call_operand.vmem [shape: bf16[3,48,384], index: 8, kind: input, shape index: {}]
  %s9 = inlined_call_operand.vmem [shape: f32[3,1,48], index: 9, kind: input, shape index: {}]
  %s10 = inlined_call_operand.vmem [shape: bf16[48,256], index: 10, kind: input, shape index: {}]
  %s11 = inlined_call_operand.vmem [shape: f32[1,64], index: 11, kind: input, shape index: {}]
  %s12 = inlined_call_operand.vmem [shape: bf16[64,128], index: 12, kind: input, shape index: {}]
  %s13 = inlined_call_operand.vmem [shape: bf16[3,64,384], index: 13, kind: input, shape index: {}]
  %s14 = inlined_call_operand.vmem [shape: f32[3,1,64], index: 14, kind: input, shape index: {}]
  %s15 = inlined_call_operand.vmem [shape: bf16[64,256], index: 15, kind: input, shape index: {}]
  %s16 = inlined_call_operand.vmem [shape: f32[1,80], index: 16, kind: input, shape index: {}]
  %s17 = inlined_call_operand.vmem [shape: bf16[32,64], index: 17, kind: input, shape index: {}]
  %s18 = inlined_call_operand.vmem [shape: f32[1,80], index: 18, kind: input, shape index: {}]
  %s19 = inlined_call_operand.<no memory space> [shape: f32[1,1], index: 19, kind: input, shape index: {}]
  %s20 = inlined_call_operand.vmem [shape: bf16[16,32], index: 20, kind: input, shape index: {}]
  %s21 = inlined_call_operand.vmem [shape: f32[1,32], index: 21, kind: input, shape index: {}]
  %s22 = inlined_call_operand.vmem [shape: bf16[32,32], index: 22, kind: input, shape index: {}]
  %s23 = inlined_call_operand.vmem [shape: f32[1,32], index: 23, kind: input, shape index: {}]
  %s24 = inlined_call_operand.vmem [shape: bf16[32,32], index: 24, kind: input, shape index: {}]
  %s25 = inlined_call_operand.vmem [shape: f32[1,32], index: 25, kind: input, shape index: {}]
  %s26 = inlined_call_operand.vmem [shape: bf16[32,2], index: 26, kind: input, shape index: {}]
  %s27 = inlined_call_operand.vmem [shape: f32[1,2], index: 27, kind: input, shape index: {}]
  %s28 = inlined_call_operand.hbm [shape: f32[1,2,2], index: 28, kind: output, shape index: {}]
  %s29 = sld [smem:[#allocation0]]
  $region122: #{forward.1} parent=0
    _
  %s31 = ssub.s32 1, %s29
  %s32 = scalar_select 0, %s31, %s29
  %v33 = vstv %s19
  %34 = vst [vmem:[#allocation2] sm:$0x1] %v33
  $region1: #{forward.1} parent=0
    #allocation3 [shape = 'u8[1024]{0}', space=vmem, size = 0x400, scoped, tag = 'output window, operand 0, single buffered']
    #allocation4 [shape = 's32[1]{0}', space=sflag, size = 0x4, scoped, tag = 'scoped memory for forward.1']
    %35 = vsyncpa [#allocation4], 0
    // Predicated region
    $region2: #{forward.1} parent=1 // pred_check
      _
    $region3: #{forward.1} parent=1 // pred_check_branch
      %37 = sbr.rel (0) target = $region5
    $region4: #{forward.1} parent=1 // pred_region
      _
    $region5: #{forward.1} parent=1 // pred_fallthru
      _
    // Predicated region
    $region6: #{forward.1} parent=1 // pred_check
      _
    $region7: #{forward.1} parent=1 // pred_check_branch
      %39 = sbr.rel (0) target = $region9
    $region8: #{forward.1} parent=1 // pred_region
      _
    $region9: #{forward.1} parent=1 // pred_fallthru
      _
    // Predicated region
    $region10: #{forward.1} parent=1 // pred_check
      _
    $region11: #{forward.1} parent=1 // pred_check_branch
      %41 = sbr.rel (0) target = $region13
    $region12: #{forward.1} parent=1 // pred_region
      _
    $region13: #{forward.1} parent=1 // pred_fallthru
      _
    // Predicated region
    $region14: #{forward.1} parent=1 // pred_check
      _
    $region15: #{forward.1} parent=1 // pred_check_branch
      %43 = sbr.rel (0) target = $region17
    $region16: #{forward.1} parent=1 // pred_region
      _
    $region17: #{forward.1} parent=1 // pred_fallthru
      _
    // Predicated region
    $region18: #{forward.1} parent=1 // pred_check
      _
    $region19: #{forward.1} parent=1 // pred_check_branch
      %45 = sbr.rel (0) target = $region21
    $region20: #{forward.1} parent=1 // pred_region
      _
    $region21: #{forward.1} parent=1 // pred_fallthru
      _
    // Predicated region
    $region22: #{forward.1} parent=1 // pred_check
      _
    $region23: #{forward.1} parent=1 // pred_check_branch
      %47 = sbr.rel (0) target = $region25
    $region24: #{forward.1} parent=1 // pred_region
      _
    $region25: #{forward.1} parent=1 // pred_fallthru
      _
    // Predicated region
    $region26: #{forward.1} parent=1 // pred_check
      _
    $region27: #{forward.1} parent=1 // pred_check_branch
      %49 = sbr.rel (0) target = $region29
    $region28: #{forward.1} parent=1 // pred_region
      _
    $region29: #{forward.1} parent=1 // pred_fallthru
      _
    // Predicated region
    $region30: #{forward.1} parent=1 // pred_check
      _
    $region31: #{forward.1} parent=1 // pred_check_branch
      %51 = sbr.rel (0) target = $region33
    $region32: #{forward.1} parent=1 // pred_region
      _
    $region33: #{forward.1} parent=1 // pred_fallthru
      _
    // Predicated region
    $region34: #{forward.1} parent=1 // pred_check
      _
    $region35: #{forward.1} parent=1 // pred_check_branch
      %53 = sbr.rel (0) target = $region37
    $region36: #{forward.1} parent=1 // pred_region
      _
    $region37: #{forward.1} parent=1 // pred_fallthru
      _
    // Predicated region
    $region38: #{forward.1} parent=1 // pred_check
      _
    $region39: #{forward.1} parent=1 // pred_check_branch
      %55 = sbr.rel (0) target = $region41
    $region40: #{forward.1} parent=1 // pred_region
      _
    $region41: #{forward.1} parent=1 // pred_fallthru
      _
    // Predicated region
    $region42: #{forward.1} parent=1 // pred_check
      _
    $region43: #{forward.1} parent=1 // pred_check_branch
      %57 = sbr.rel (0) target = $region45
    $region44: #{forward.1} parent=1 // pred_region
      _
    $region45: #{forward.1} parent=1 // pred_fallthru
      _
    // Predicated region
    $region46: #{forward.1} parent=1 // pred_check
      _
    $region47: #{forward.1} parent=1 // pred_check_branch
      %59 = sbr.rel (0) target = $region49
    $region48: #{forward.1} parent=1 // pred_region
      _
    $region49: #{forward.1} parent=1 // pred_fallthru
      _
    // Predicated region
    $region50: #{forward.1} parent=1 // pred_check
      _
    $region51: #{forward.1} parent=1 // pred_check_branch
      %61 = sbr.rel (0) target = $region53
    $region52: #{forward.1} parent=1 // pred_region
      _
    $region53: #{forward.1} parent=1 // pred_fallthru
      _
    // Predicated region
    $region54: #{forward.1} parent=1 // pred_check
      _
    $region55: #{forward.1} parent=1 // pred_check_branch
      %63 = sbr.rel (0) target = $region57
    $region56: #{forward.1} parent=1 // pred_region
      _
    $region57: #{forward.1} parent=1 // pred_fallthru
      _
    // Predicated region
    $region58: #{forward.1} parent=1 // pred_check
      _
    $region59: #{forward.1} parent=1 // pred_check_branch
      %65 = sbr.rel (0) target = $region61
    $region60: #{forward.1} parent=1 // pred_region
      _
    $region61: #{forward.1} parent=1 // pred_fallthru
      _
    // Predicated region
    $region62: #{forward.1} parent=1 // pred_check
      _
    $region63: #{forward.1} parent=1 // pred_check_branch
      %67 = sbr.rel (0) target = $region65
    $region64: #{forward.1} parent=1 // pred_region
      _
    $region65: #{forward.1} parent=1 // pred_fallthru
      _
    // Predicated region
    $region66: #{forward.1} parent=1 // pred_check
      _
    $region67: #{forward.1} parent=1 // pred_check_branch
      %69 = sbr.rel (0) target = $region69
    $region68: #{forward.1} parent=1 // pred_region
      _
    $region69: #{forward.1} parent=1 // pred_fallthru
      _
    // Predicated region
    $region70: #{forward.1} parent=1 // pred_check
      _
    $region71: #{forward.1} parent=1 // pred_check_branch
      %71 = sbr.rel (0) target = $region73
    $region72: #{forward.1} parent=1 // pred_region
      _
    $region73: #{forward.1} parent=1 // pred_fallthru
      _
    // Predicated region
    $region74: #{forward.1} parent=1 // pred_check
      _
    $region75: #{forward.1} parent=1 // pred_check_branch
      %73 = sbr.rel (0) target = $region77
    $region76: #{forward.1} parent=1 // pred_region
      _
    $region77: #{forward.1} parent=1 // pred_fallthru
      _
    // Predicated region
    $region78: #{forward.1} parent=1 // pred_check
      _
    $region79: #{forward.1} parent=1 // pred_check_branch
      %75 = sbr.rel (0) target = $region81
    $region80: #{forward.1} parent=1 // pred_region
      _
    $region81: #{forward.1} parent=1 // pred_fallthru
      _
    // Predicated region
    $region82: #{forward.1} parent=1 // pred_check
      _
    $region83: #{forward.1} parent=1 // pred_check_branch
      %77 = sbr.rel (0) target = $region85
    $region84: #{forward.1} parent=1 // pred_region
      _
    $region85: #{forward.1} parent=1 // pred_fallthru
      _
    // Predicated region
    $region86: #{forward.1} parent=1 // pred_check
      _
    $region87: #{forward.1} parent=1 // pred_check_branch
      %79 = sbr.rel (0) target = $region89
    $region88: #{forward.1} parent=1 // pred_region
      _
    $region89: #{forward.1} parent=1 // pred_fallthru
      _
    // Predicated region
    $region90: #{forward.1} parent=1 // pred_check
      _
    $region91: #{forward.1} parent=1 // pred_check_branch
      %81 = sbr.rel (0) target = $region93
    $region92: #{forward.1} parent=1 // pred_region
      _
    $region93: #{forward.1} parent=1 // pred_fallthru
      _
    // Predicated region
    $region94: #{forward.1} parent=1 // pred_check
      _
    $region95: #{forward.1} parent=1 // pred_check_branch
      %83 = sbr.rel (0) target = $region97
    $region96: #{forward.1} parent=1 // pred_region
      _
    $region97: #{forward.1} parent=1 // pred_fallthru
      _
    // Predicated region
    $region98: #{forward.1} parent=1 // pred_check
      _
    $region99: #{forward.1} parent=1 // pred_check_branch
      %85 = sbr.rel (0) target = $region101
    $region100: #{forward.1} parent=1 // pred_region
      _
    $region101: #{forward.1} parent=1 // pred_fallthru
      _
    // Predicated region
    $region102: #{forward.1} parent=1 // pred_check
      _
    $region103: #{forward.1} parent=1 // pred_check_branch
      %87 = sbr.rel (0) target = $region105
    $region104: #{forward.1} parent=1 // pred_region
      _
    $region105: #{forward.1} parent=1 // pred_fallthru
      _
    // Predicated region
    $region106: #{forward.1} parent=1 // pred_check
      _
    $region107: #{forward.1} parent=1 // pred_check_branch
      %89 = sbr.rel (0) target = $region109
    $region108: #{forward.1} parent=1 // pred_region
      _
    $region109: #{forward.1} parent=1 // pred_fallthru
      _
    // Predicated region
    $region110: #{forward.1} parent=1 // pred_check
      _
    $region111: #{forward.1} parent=1 // pred_check_branch
      %91 = sbr.rel (0) target = $region113
    $region112: #{forward.1} parent=1 // pred_region
      _
    $region113: #{forward.1} parent=1 // pred_fallthru
      _
    %v93 = vld [vmem:[%s0] sm:$0xff]
    %v94 = vld [vmem:[%s0 + $0x8] sm:$0xff]
    %v95 = vld [vmem:[%s0 + $0x10] sm:$0xff]
    %v96 = vld [vmem:[%s0 + $0x18] sm:$0xff]
    %v97 = vld [vmem:[%s0 + $0x20] sm:$0xff]
    %v98 = vld [vmem:[%s0 + $0x28] sm:$0xff]
    %v99 = vld [vmem:[%s0 + $0x30] sm:$0xff]
    %v100 = vld [vmem:[%s0 + $0x38] sm:$0xff]
    %v101 = vld [vmem:[%s0 + $0x40] sm:$0xff]
    %v102 = vld [vmem:[%s0 + $0x48] sm:$0xff]
    %v103 = vld [vmem:[%s0 + $0x50] sm:$0xff]
    %v104 = vld [vmem:[%s0 + $0x58] sm:$0xff]
    %v105 = vld [vmem:[%s0 + $0x60] sm:$0xff]
    %v106 = vld [vmem:[%s0 + $0x68] sm:$0xff]
    %v107 = vld [vmem:[%s0 + $0x70] sm:$0xff]
    %v108 = vld [vmem:[%s0 + $0x78] sm:$0xff]
    %v109 = vld [vmem:[%s0 + $0x80] sm:$0xff]
    %v110 = vld [vmem:[%s0 + $0x88] sm:$0xff]
    %v111 = vld [vmem:[%s0 + $0x90] sm:$0xff]
    %v112 = vld [vmem:[%s0 + $0x98] sm:$0xff]
    %v113 = vld [vmem:[%s0 + $0xa0] sm:$0xff]
    %v114 = vld [vmem:[%s0 + $0xa8] sm:$0xff]
    %v115 = vld [vmem:[%s0 + $0xb0] sm:$0xff]
    %v116 = vld [vmem:[%s0 + $0xb8] sm:$0xff]
    %v117 = vld [vmem:[%s0 + $0xc0] sm:$0xff]
    %v118 = vld [vmem:[%s0 + $0xc8] sm:$0xff]
    %v119 = vld [vmem:[%s0 + $0xd0] sm:$0xff]
    %v120 = vld [vmem:[%s0 + $0xd8] sm:$0xff]
    %v121 = vld [vmem:[%s0 + $0xe0] sm:$0xff]
    %v122 = vld [vmem:[%s0 + $0xe8] sm:$0xff]
    %v123 = vld [vmem:[%s0 + $0xf0] sm:$0xff]
    %v124 = vld [vmem:[%s0 + $0xf8] sm:$0xff]
    %v125 = vpack.c.bf16 %v94, %v93
    %v126 = vpack.c.bf16 %v96, %v95
    %v127 = vpack.c.bf16 %v98, %v97
    %v128 = vpack.c.bf16 %v100, %v99
    %v129 = vpack.c.bf16 %v102, %v101
    %v130 = vpack.c.bf16 %v104, %v103
    %v131 = vpack.c.bf16 %v106, %v105
    %v132 = vpack.c.bf16 %v108, %v107
    %v133 = vpack.c.bf16 %v110, %v109
    %v134 = vpack.c.bf16 %v112, %v111
    %v135 = vpack.c.bf16 %v114, %v113
    %v136 = vpack.c.bf16 %v116, %v115
    %v137 = vpack.c.bf16 %v118, %v117
    %v138 = vpack.c.bf16 %v120, %v119
    %v139 = vpack.c.bf16 %v122, %v121
    %v140 = vpack.c.bf16 %v124, %v123
    %v141 = vld [vmem:[%s1] sm:$0xf]
    %v142 = vld [vmem:[%s1 + $0x4] sm:$0xf]
    %v143 = vld [vmem:[%s1 + $0x8] sm:$0x1]
    %v144 = vld [vmem:[%s2] sm:$0x1]
    %v146 = vlaneseq
    %v147 = vshrl.u32 %v146, 7
    %v148 = vsub.s32 0, %v147
    %v149 = vrot.slane %v144, %v148
    %v154 = vunpack.c.l.b16 %v141
    %v155 = vunpack.c.l.b16 %v142
    %v156 = vunpack.c.l.b16 %v143
    %v157 = vpack.c.b16 %v155, %v154
    %v158 = vpack.c.b16 %v156, %v156
    %vm160 = vcmask 138240
    %v162 = vsel %vm160, %v125, 0
    %v165 = vsel %vm160, %v126, 0
    %v168 = vsel %vm160, %v127, 0
    %v171 = vsel %vm160, %v128, 0
    %v174 = vsel %vm160, %v129, 0
    %v177 = vsel %vm160, %v130, 0
    %v180 = vsel %vm160, %v131, 0
    %v183 = vsel %vm160, %v132, 0
    %v186 = vsel %vm160, %v133, 0
    %v189 = vsel %vm160, %v134, 0
    %v192 = vsel %vm160, %v135, 0
    %v195 = vsel %vm160, %v136, 0
    %v198 = vsel %vm160, %v137, 0
    %v201 = vsel %vm160, %v138, 0
    %v204 = vsel %vm160, %v139, 0
    %v207 = vsel %vm160, %v140, 0
    %vm209 = vcmask 1040384
    %v210 = vsel 0, 4294967295, 65535
    %v211 = vsel %vm209, %v210, 0
    %v213 = vand.u32 %v158, %v211
    %215 = vmatprep.subr.bf16.mxu0 0
    %216 = vmatpush1.bf16.msra.mxu0 %v157
    %217 = vmatprep.subr.bf16.mxu0 0
    %218 = vmatpush1.bf16.msra.mxu0 %v213
    %219 = vmatprep.subr.bf16.mxu0 0
    %220 = vmatpush1.bf16.msra.mxu0 0
    %221 = vmatprep.subr.bf16.mxu0 0
    %222 = vmatpush1.bf16.msra.mxu0 0
    %223 = vmatprep.subr.bf16.mxu0 0
    %224 = vmatpush1.bf16.msra.mxu0 0
    %225 = vmatprep.subr.bf16.mxu0 0
    %226 = vmatpush1.bf16.msra.mxu0 0
    %227 = vmatprep.subr.bf16.mxu0 0
    %228 = vmatpush1.bf16.msra.mxu0 0
    %229 = vmatprep.subr.bf16.mxu0 0
    %230 = vmatpush1.bf16.msra.mxu0 0
    %231 = vmatprep.subr.bf16.mxu0 0
    %232 = vmatpush1.bf16.msra.mxu0 0
    %233 = vmatprep.subr.bf16.mxu0 0
    %234 = vmatpush1.bf16.msra.mxu0 0
    %235 = vmatprep.subr.bf16.mxu0 0
    %236 = vmatpush1.bf16.msra.mxu0 0
    %237 = vmatprep.subr.bf16.mxu0 0
    %238 = vmatpush1.bf16.msra.mxu0 0
    %239 = vmatprep.subr.bf16.mxu0 0
    %240 = vmatpush1.bf16.msra.mxu0 0
    %241 = vmatprep.subr.bf16.mxu0 0
    %242 = vmatpush1.bf16.msra.mxu0 0
    %243 = vmatprep.subr.bf16.mxu0 0
    %244 = vmatpush1.bf16.msra.mxu0 0
    %245 = vmatprep.subr.bf16.mxu0 0
    %246 = vmatpush1.bf16.msra.mxu0 0
    %247 = vmatprep.mubr.bf16.mxu0 0
    %248 = vmatmul.mubr.bf16.gmra.mrb[0].mxu0 %v162
    %v249 = vpop.f32.mrb[0].mxu0
    %v250 = vadd.f32 %v149, %v249
    %v251 = vpop.f32.mrb[0].mxu0
    %v252 = vpop.f32.mrb[0].mxu0
    %v253 = vadd.f32 %v149, %v252
    %v254 = vpop.f32.mrb[0].mxu0
    %255 = vmatprep.mubr.bf16.mxu0 0
    %256 = vmatmul.mubr.bf16.gmra.mrb[0].mxu0 %v165
    %v257 = vpop.f32.mrb[0].mxu0
    %v258 = vadd.f32 %v149, %v257
    %v259 = vpop.f32.mrb[0].mxu0
    %v260 = vpop.f32.mrb[0].mxu0
    %v261 = vadd.f32 %v149, %v260
    %v262 = vpop.f32.mrb[0].mxu0
    %263 = vmatprep.mubr.bf16.mxu0 0
    %264 = vmatmul.mubr.bf16.gmra.mrb[0].mxu0 %v168
    %v265 = vpop.f32.mrb[0].mxu0
    %v266 = vadd.f32 %v149, %v265
    %v267 = vpop.f32.mrb[0].mxu0
    %v268 = vpop.f32.mrb[0].mxu0
    %v269 = vadd.f32 %v149, %v268
    %v270 = vpop.f32.mrb[0].mxu0
    %271 = vmatprep.mubr.bf16.mxu0 0
    %272 = vmatmul.mubr.bf16.gmra.mrb[0].mxu0 %v171
    %v273 = vpop.f32.mrb[0].mxu0
    %v274 = vadd.f32 %v149, %v273
    %v275 = vpop.f32.mrb[0].mxu0
    %v276 = vpop.f32.mrb[0].mxu0
    %v277 = vadd.f32 %v149, %v276
    %v278 = vpop.f32.mrb[0].mxu0
    %279 = vmatprep.mubr.bf16.mxu0 0
    %280 = vmatmul.mubr.bf16.gmra.mrb[0].mxu0 %v174
    %v281 = vpop.f32.mrb[0].mxu0
    %v282 = vadd.f32 %v149, %v281
    %v283 = vpop.f32.mrb[0].mxu0
    %v284 = vpop.f32.mrb[0].mxu0
    %v285 = vadd.f32 %v149, %v284
    %v286 = vpop.f32.mrb[0].mxu0
    %287 = vmatprep.mubr.bf16.mxu0 0
    %288 = vmatmul.mubr.bf16.gmra.mrb[0].mxu0 %v177
    %v289 = vpop.f32.mrb[0].mxu0
    %v290 = vadd.f32 %v149, %v289
    %v291 = vpop.f32.mrb[0].mxu0
    %v292 = vpop.f32.mrb[0].mxu0
    %v293 = vadd.f32 %v149, %v292
    %v294 = vpop.f32.mrb[0].mxu0
    %295 = vmatprep.mubr.bf16.mxu0 0
    %296 = vmatmul.mubr.bf16.gmra.mrb[0].mxu0 %v180
    %v297 = vpop.f32.mrb[0].mxu0
    %v298 = vadd.f32 %v149, %v297
    %v299 = vpop.f32.mrb[0].mxu0
    %v300 = vpop.f32.mrb[0].mxu0
    %v301 = vadd.f32 %v149, %v300
    %v302 = vpop.f32.mrb[0].mxu0
    %303 = vmatprep.mubr.bf16.mxu0 0
    %304 = vmatmul.mubr.bf16.gmra.mrb[0].mxu0 %v183
    %v305 = vpop.f32.mrb[0].mxu0
    %v306 = vadd.f32 %v149, %v305
    %v307 = vpop.f32.mrb[0].mxu0
    %v308 = vpop.f32.mrb[0].mxu0
    %v309 = vadd.f32 %v149, %v308
    %v310 = vpop.f32.mrb[0].mxu0
    %311 = vmatprep.mubr.bf16.mxu0 0
    %312 = vmatmul.mubr.bf16.gmra.mrb[0].mxu0 %v186
    %v313 = vpop.f32.mrb[0].mxu0
    %v314 = vadd.f32 %v149, %v313
    %v315 = vpop.f32.mrb[0].mxu0
    %v316 = vpop.f32.mrb[0].mxu0
    %v317 = vadd.f32 %v149, %v316
    %v318 = vpop.f32.mrb[0].mxu0
    %319 = vmatprep.mubr.bf16.mxu0 0
    %320 = vmatmul.mubr.bf16.gmra.mrb[0].mxu0 %v189
    %v321 = vpop.f32.mrb[0].mxu0
    %v322 = vadd.f32 %v149, %v321
    %v323 = vpop.f32.mrb[0].mxu0
    %v324 = vpop.f32.mrb[0].mxu0
    %v325 = vadd.f32 %v149, %v324
    %v326 = vpop.f32.mrb[0].mxu0
    %327 = vmatprep.mubr.bf16.mxu0 0
    %328 = vmatmul.mubr.bf16.gmra.mrb[0].mxu0 %v192
    %v329 = vpop.f32.mrb[0].mxu0
    %v330 = vadd.f32 %v149, %v329
    %v331 = vpop.f32.mrb[0].mxu0
    %v332 = vpop.f32.mrb[0].mxu0
    %v333 = vadd.f32 %v149, %v332
    %v334 = vpop.f32.mrb[0].mxu0
    %335 = vmatprep.mubr.bf16.mxu0 0
    %336 = vmatmul.mubr.bf16.gmra.mrb[0].mxu0 %v195
    %v337 = vpop.f32.mrb[0].mxu0
    %v338 = vadd.f32 %v149, %v337
    %v339 = vpop.f32.mrb[0].mxu0
    %v340 = vpop.f32.mrb[0].mxu0
    %v341 = vadd.f32 %v149, %v340
    %v342 = vpop.f32.mrb[0].mxu0
    %343 = vmatprep.mubr.bf16.mxu0 0
    %344 = vmatmul.mubr.bf16.gmra.mrb[0].mxu0 %v198
    %v345 = vpop.f32.mrb[0].mxu0
    %v346 = vadd.f32 %v149, %v345
    %v347 = vpop.f32.mrb[0].mxu0
    %v348 = vpop.f32.mrb[0].mxu0
    %v349 = vadd.f32 %v149, %v348
    %v350 = vpop.f32.mrb[0].mxu0
    %351 = vmatprep.mubr.bf16.mxu0 0
    %352 = vmatmul.mubr.bf16.gmra.mrb[0].mxu0 %v201
    %v353 = vpop.f32.mrb[0].mxu0
    %v354 = vadd.f32 %v149, %v353
    %v355 = vpop.f32.mrb[0].mxu0
    %v356 = vpop.f32.mrb[0].mxu0
    %v357 = vadd.f32 %v149, %v356
    %v358 = vpop.f32.mrb[0].mxu0
    %359 = vmatprep.mubr.bf16.mxu0 0
    %360 = vmatmul.mubr.bf16.gmra.mrb[0].mxu0 %v204
    %v361 = vpop.f32.mrb[0].mxu0
    %v362 = vadd.f32 %v149, %v361
    %v363 = vpop.f32.mrb[0].mxu0
    %v364 = vpop.f32.mrb[0].mxu0
    %v365 = vadd.f32 %v149, %v364
    %v366 = vpop.f32.mrb[0].mxu0
    %367 = vmatprep.mubr.bf16.mxu0 0
    %368 = vmatmul.mubr.bf16.gmra.mrb[0].mxu0 %v207
    %v369 = vpop.f32.mrb[0].mxu0
    %v370 = vadd.f32 %v149, %v369
    %v371 = vpop.f32.mrb[0].mxu0
    %v372 = vpop.f32.mrb[0].mxu0
    %v373 = vadd.f32 %v149, %v372
    %v374 = vpop.f32.mrb[0].mxu0
    %375 = vdwg.mxu0
    %v376 = vlaneseq
    %v377 = vshrl.u32 %v376, 7
    %v378 = vadd.s32 %v377, 8
    %v379 = vadd.s32 %v377, 16
    %v380 = vadd.s32 %v377, 24
    %v381 = vadd.s32 %v377, 32
    %v382 = vadd.s32 %v377, 40
    %v383 = vadd.s32 %v377, 48
    %v384 = vadd.s32 %v377, 56
    %v385 = vadd.s32 %v377, 64
    %v386 = vadd.s32 %v377, 72
    %v387 = vadd.s32 %v377, 80
    %v388 = vadd.s32 %v377, 88
    %v389 = vadd.s32 %v377, 96
    %v390 = vadd.s32 %v377, 104
    %v391 = vadd.s32 %v377, 112
    %v392 = vadd.s32 %v377, 120
    %v393 = vadd.s32 %v377, 128
    %v394 = vadd.s32 %v377, 136
    %v395 = vadd.s32 %v377, 144
    %v396 = vadd.s32 %v377, 152
    %v397 = vadd.s32 %v377, 160
    %v398 = vadd.s32 %v377, 168
    %v399 = vadd.s32 %v377, 176
    %v400 = vadd.s32 %v377, 184
    %v401 = vadd.s32 %v377, 192
    %v402 = vadd.s32 %v377, 200
    %v403 = vadd.s32 %v377, 208
    %v404 = vadd.s32 %v377, 216
    %v405 = vadd.s32 %v377, 224
    %v406 = vadd.s32 %v377, 232
    %v407 = vadd.s32 %v377, 240
    %v408 = vadd.s32 %v377, 248
    %vm409 = vcmp.lt.s32.totalorder %v377, 0
    %v410 = vsub.s32 0, %v377
    %v411 = vsel %vm409, %v410, %v377
    %v412 = vshrl.u32 %v411, 7
    %v413 = vand.u32 %v411, 127
    %v414 = vsub.s32 0, %v413
    %v415 = vsel %vm409, %v414, %v413
    %vm416 = vcmp.lt.s32.totalorder %v378, 0
    %v417 = vsub.s32 0, %v378
    %v418 = vsel %vm416, %v417, %v378
    %v419 = vshrl.u32 %v418, 7
    %v420 = vand.u32 %v418, 127
    %v421 = vsub.s32 0, %v420
    %v422 = vsel %vm416, %v421, %v420
    %vm423 = vcmp.lt.s32.totalorder %v379, 0
    %v424 = vsub.s32 0, %v379
    %v425 = vsel %vm423, %v424, %v379
    %v426 = vshrl.u32 %v425, 7
    %v427 = vand.u32 %v425, 127
    %v428 = vsub.s32 0, %v427
    %v429 = vsel %vm423, %v428, %v427
    %vm430 = vcmp.lt.s32.totalorder %v380, 0
    %v431 = vsub.s32 0, %v380
    %v432 = vsel %vm430, %v431, %v380
    %v433 = vshrl.u32 %v432, 7
    %v434 = vand.u32 %v432, 127
    %v435 = vsub.s32 0, %v434
    %v436 = vsel %vm430, %v435, %v434
    %vm437 = vcmp.lt.s32.totalorder %v381, 0
    %v438 = vsub.s32 0, %v381
    %v439 = vsel %vm437, %v438, %v381
    %v440 = vshrl.u32 %v439, 7
    %v441 = vand.u32 %v439, 127
    %v442 = vsub.s32 0, %v441
    %v443 = vsel %vm437, %v442, %v441
    %vm444 = vcmp.lt.s32.totalorder %v382, 0
    %v445 = vsub.s32 0, %v382
    %v446 = vsel %vm444, %v445, %v382
    %v447 = vshrl.u32 %v446, 7
    %v448 = vand.u32 %v446, 127
    %v449 = vsub.s32 0, %v448
    %v450 = vsel %vm444, %v449, %v448
    %vm451 = vcmp.lt.s32.totalorder %v383, 0
    %v452 = vsub.s32 0, %v383
    %v453 = vsel %vm451, %v452, %v383
    %v454 = vshrl.u32 %v453, 7
    %v455 = vand.u32 %v453, 127
    %v456 = vsub.s32 0, %v455
    %v457 = vsel %vm451, %v456, %v455
    %vm458 = vcmp.lt.s32.totalorder %v384, 0
    %v459 = vsub.s32 0, %v384
    %v460 = vsel %vm458, %v459, %v384
    %v461 = vshrl.u32 %v460, 7
    %v462 = vand.u32 %v460, 127
    %v463 = vsub.s32 0, %v462
    %v464 = vsel %vm458, %v463, %v462
    %vm465 = vcmp.lt.s32.totalorder %v385, 0
    %v466 = vsub.s32 0, %v385
    %v467 = vsel %vm465, %v466, %v385
    %v468 = vshrl.u32 %v467, 7
    %v469 = vand.u32 %v467, 127
    %v470 = vsub.s32 0, %v469
    %v471 = vsel %vm465, %v470, %v469
    %vm472 = vcmp.lt.s32.totalorder %v386, 0
    %v473 = vsub.s32 0, %v386
    %v474 = vsel %vm472, %v473, %v386
    %v475 = vshrl.u32 %v474, 7
    %v476 = vand.u32 %v474, 127
    %v477 = vsub.s32 0, %v476
    %v478 = vsel %vm472, %v477, %v476
    %vm479 = vcmp.lt.s32.totalorder %v387, 0
    %v480 = vsub.s32 0, %v387
    %v481 = vsel %vm479, %v480, %v387
    %v482 = vshrl.u32 %v481, 7
    %v483 = vand.u32 %v481, 127
    %v484 = vsub.s32 0, %v483
    %v485 = vsel %vm479, %v484, %v483
    %vm486 = vcmp.lt.s32.totalorder %v388, 0
    %v487 = vsub.s32 0, %v388
    %v488 = vsel %vm486, %v487, %v388
    %v489 = vshrl.u32 %v488, 7
    %v490 = vand.u32 %v488, 127
    %v491 = vsub.s32 0, %v490
    %v492 = vsel %vm486, %v491, %v490
    %vm493 = vcmp.lt.s32.totalorder %v389, 0
    %v494 = vsub.s32 0, %v389
    %v495 = vsel %vm493, %v494, %v389
    %v496 = vshrl.u32 %v495, 7
    %v497 = vand.u32 %v495, 127
    %v498 = vsub.s32 0, %v497
    %v499 = vsel %vm493, %v498, %v497
    %vm500 = vcmp.lt.s32.totalorder %v390, 0
    %v501 = vsub.s32 0, %v390
    %v502 = vsel %vm500, %v501, %v390
    %v503 = vshrl.u32 %v502, 7
    %v504 = vand.u32 %v502, 127
    %v505 = vsub.s32 0, %v504
    %v506 = vsel %vm500, %v505, %v504
    %vm507 = vcmp.lt.s32.totalorder %v391, 0
    %v508 = vsub.s32 0, %v391
    %v509 = vsel %vm507, %v508, %v391
    %v510 = vshrl.u32 %v509, 7
    %v511 = vand.u32 %v509, 127
    %v512 = vsub.s32 0, %v511
    %v513 = vsel %vm507, %v512, %v511
    %vm514 = vcmp.lt.s32.totalorder %v392, 0
    %v515 = vsub.s32 0, %v392
    %v516 = vsel %vm514, %v515, %v392
    %v517 = vshrl.u32 %v516, 7
    %v518 = vand.u32 %v516, 127
    %v519 = vsub.s32 0, %v518
    %v520 = vsel %vm514, %v519, %v518
    %vm521 = vcmp.lt.s32.totalorder %v393, 0
    %v522 = vsub.s32 0, %v393
    %v523 = vsel %vm521, %v522, %v393
    %v524 = vshrl.u32 %v523, 7
    %v525 = vand.u32 %v523, 127
    %v526 = vsub.s32 0, %v525
    %v527 = vsel %vm521, %v526, %v525
    %vm528 = vcmp.lt.s32.totalorder %v394, 0
    %v529 = vsub.s32 0, %v394
    %v530 = vsel %vm528, %v529, %v394
    %v531 = vshrl.u32 %v530, 7
    %v532 = vand.u32 %v530, 127
    %v533 = vsub.s32 0, %v532
    %v534 = vsel %vm528, %v533, %v532
    %vm535 = vcmp.lt.s32.totalorder %v395, 0
    %v536 = vsub.s32 0, %v395
    %v537 = vsel %vm535, %v536, %v395
    %v538 = vshrl.u32 %v537, 7
    %v539 = vand.u32 %v537, 127
    %v540 = vsub.s32 0, %v539
    %v541 = vsel %vm535, %v540, %v539
    %vm542 = vcmp.lt.s32.totalorder %v396, 0
    %v543 = vsub.s32 0, %v396
    %v544 = vsel %vm542, %v543, %v396
    %v545 = vshrl.u32 %v544, 7
    %v546 = vand.u32 %v544, 127
    %v547 = vsub.s32 0, %v546
    %v548 = vsel %vm542, %v547, %v546
    %vm549 = vcmp.lt.s32.totalorder %v397, 0
    %v550 = vsub.s32 0, %v397
    %v551 = vsel %vm549, %v550, %v397
    %v552 = vshrl.u32 %v551, 7
    %v553 = vand.u32 %v551, 127
    %v554 = vsub.s32 0, %v553
    %v555 = vsel %vm549, %v554, %v553
    %vm556 = vcmp.lt.s32.totalorder %v398, 0
    %v557 = vsub.s32 0, %v398
    %v558 = vsel %vm556, %v557, %v398
    %v559 = vshrl.u32 %v558, 7
    %v560 = vand.u32 %v558, 127
    %v561 = vsub.s32 0, %v560
    %v562 = vsel %vm556, %v561, %v560
    %vm563 = vcmp.lt.s32.totalorder %v399, 0
    %v564 = vsub.s32 0, %v399
    %v565 = vsel %vm563, %v564, %v399
    %v566 = vshrl.u32 %v565, 7
    %v567 = vand.u32 %v565, 127
    %v568 = vsub.s32 0, %v567
    %v569 = vsel %vm563, %v568, %v567
    %vm570 = vcmp.lt.s32.totalorder %v400, 0
    %v571 = vsub.s32 0, %v400
    %v572 = vsel %vm570, %v571, %v400
    %v573 = vshrl.u32 %v572, 7
    %v574 = vand.u32 %v572, 127
    %v575 = vsub.s32 0, %v574
    %v576 = vsel %vm570, %v575, %v574
    %vm577 = vcmp.lt.s32.totalorder %v401, 0
    %v578 = vsub.s32 0, %v401
    %v579 = vsel %vm577, %v578, %v401
    %v580 = vshrl.u32 %v579, 7
    %v581 = vand.u32 %v579, 127
    %v582 = vsub.s32 0, %v581
    %v583 = vsel %vm577, %v582, %v581
    %vm584 = vcmp.lt.s32.totalorder %v402, 0
    %v585 = vsub.s32 0, %v402
    %v586 = vsel %vm584, %v585, %v402
    %v587 = vshrl.u32 %v586, 7
    %v588 = vand.u32 %v586, 127
    %v589 = vsub.s32 0, %v588
    %v590 = vsel %vm584, %v589, %v588
    %vm591 = vcmp.lt.s32.totalorder %v403, 0
    %v592 = vsub.s32 0, %v403
    %v593 = vsel %vm591, %v592, %v403
    %v594 = vshrl.u32 %v593, 7
    %v595 = vand.u32 %v593, 127
    %v596 = vsub.s32 0, %v595
    %v597 = vsel %vm591, %v596, %v595
    %vm598 = vcmp.lt.s32.totalorder %v404, 0
    %v599 = vsub.s32 0, %v404
    %v600 = vsel %vm598, %v599, %v404
    %v601 = vshrl.u32 %v600, 7
    %v602 = vand.u32 %v600, 127
    %v603 = vsub.s32 0, %v602
    %v604 = vsel %vm598, %v603, %v602
    %vm605 = vcmp.lt.s32.totalorder %v405, 0
    %v606 = vsub.s32 0, %v405
    %v607 = vsel %vm605, %v606, %v405
    %v608 = vshrl.u32 %v607, 7
    %v609 = vand.u32 %v607, 127
    %v610 = vsub.s32 0, %v609
    %v611 = vsel %vm605, %v610, %v609
    %vm612 = vcmp.lt.s32.totalorder %v406, 0
    %v613 = vsub.s32 0, %v406
    %v614 = vsel %vm612, %v613, %v406
    %v615 = vshrl.u32 %v614, 7
    %v616 = vand.u32 %v614, 127
    %v617 = vsub.s32 0, %v616
    %v618 = vsel %vm612, %v617, %v616
    %vm619 = vcmp.lt.s32.totalorder %v407, 0
    %v620 = vsub.s32 0, %v407
    %v621 = vsel %vm619, %v620, %v407
    %v622 = vshrl.u32 %v621, 7
    %v623 = vand.u32 %v621, 127
    %v624 = vsub.s32 0, %v623
    %v625 = vsel %vm619, %v624, %v623
    %vm626 = vcmp.lt.s32.totalorder %v408, 0
    %v627 = vsub.s32 0, %v408
    %v628 = vsel %vm626, %v627, %v408
    %v629 = vshrl.u32 %v628, 7
    %v630 = vand.u32 %v628, 127
    %v631 = vsub.s32 0, %v630
    %v632 = vsel %vm626, %v631, %v630
    %vm633 = vcmp.ne.s32.totalorder %v415, 0
    %vm634 = vcmp.ne.s32.totalorder %v422, 0
    %vm635 = vcmp.ne.s32.totalorder %v429, 0
    %vm636 = vcmp.ne.s32.totalorder %v436, 0
    %vm637 = vcmp.ne.s32.totalorder %v443, 0
    %vm638 = vcmp.ne.s32.totalorder %v450, 0
    %vm639 = vcmp.ne.s32.totalorder %v457, 0
    %vm640 = vcmp.ne.s32.totalorder %v464, 0
    %vm641 = vcmp.ne.s32.totalorder %v471, 0
    %vm642 = vcmp.ne.s32.totalorder %v478, 0
    %vm643 = vcmp.ne.s32.totalorder %v485, 0
    %vm644 = vcmp.ne.s32.totalorder %v492, 0
    %vm645 = vcmp.ne.s32.totalorder %v499, 0
    %vm646 = vcmp.ne.s32.totalorder %v506, 0
    %vm647 = vcmp.ne.s32.totalorder %v513, 0
    %vm648 = vcmp.ne.s32.totalorder %v520, 0
    %vm649 = vcmp.ne.s32.totalorder %v527, 0
    %vm650 = vcmp.ne.s32.totalorder %v534, 0
    %vm651 = vcmp.ne.s32.totalorder %v541, 0
    %vm652 = vcmp.ne.s32.totalorder %v548, 0
    %vm653 = vcmp.ne.s32.totalorder %v555, 0
    %vm654 = vcmp.ne.s32.totalorder %v562, 0
    %vm655 = vcmp.ne.s32.totalorder %v569, 0
    %vm656 = vcmp.ne.s32.totalorder %v576, 0
    %vm657 = vcmp.ne.s32.totalorder %v583, 0
    %vm658 = vcmp.ne.s32.totalorder %v590, 0
    %vm659 = vcmp.ne.s32.totalorder %v597, 0
    %vm660 = vcmp.ne.s32.totalorder %v604, 0
    %vm661 = vcmp.ne.s32.totalorder %v611, 0
    %vm662 = vcmp.ne.s32.totalorder %v618, 0
    %vm663 = vcmp.ne.s32.totalorder %v625, 0
    %vm664 = vcmp.ne.s32.totalorder %v632, 0
    %vm665 = vcmp.lt.s32.totalorder %v415, 0
    %vm666 = vcmp.lt.s32.totalorder %v422, 0
    %vm667 = vcmp.lt.s32.totalorder %v429, 0
    %vm668 = vcmp.lt.s32.totalorder %v436, 0
    %vm669 = vcmp.lt.s32.totalorder %v443, 0
    %vm670 = vcmp.lt.s32.totalorder %v450, 0
    %vm671 = vcmp.lt.s32.totalorder %v457, 0
    %vm672 = vcmp.lt.s32.totalorder %v464, 0
    %vm673 = vcmp.lt.s32.totalorder %v471, 0
    %vm674 = vcmp.lt.s32.totalorder %v478, 0
    %vm675 = vcmp.lt.s32.totalorder %v485, 0
    %vm676 = vcmp.lt.s32.totalorder %v492, 0
    %vm677 = vcmp.lt.s32.totalorder %v499, 0
    %vm678 = vcmp.lt.s32.totalorder %v506, 0
    %vm679 = vcmp.lt.s32.totalorder %v513, 0
    %vm680 = vcmp.lt.s32.totalorder %v520, 0
    %vm681 = vcmp.lt.s32.totalorder %v527, 0
    %vm682 = vcmp.lt.s32.totalorder %v534, 0
    %vm683 = vcmp.lt.s32.totalorder %v541, 0
    %vm684 = vcmp.lt.s32.totalorder %v548, 0
    %vm685 = vcmp.lt.s32.totalorder %v555, 0
    %vm686 = vcmp.lt.s32.totalorder %v562, 0
    %vm687 = vcmp.lt.s32.totalorder %v569, 0
    %vm688 = vcmp.lt.s32.totalorder %v576, 0
    %vm689 = vcmp.lt.s32.totalorder %v583, 0
    %vm690 = vcmp.lt.s32.totalorder %v590, 0
    %vm691 = vcmp.lt.s32.totalorder %v597, 0
    %vm692 = vcmp.lt.s32.totalorder %v604, 0
    %vm693 = vcmp.lt.s32.totalorder %v611, 0
    %vm694 = vcmp.lt.s32.totalorder %v618, 0
    %vm695 = vcmp.lt.s32.totalorder %v625, 0
    %vm696 = vcmp.lt.s32.totalorder %v632, 0
    %vm697 = vmand %vm665, %vm633
    %vm698 = vmand %vm666, %vm634
    %vm699 = vmand %vm667, %vm635
    %vm700 = vmand %vm668, %vm636
    %vm701 = vmand %vm669, %vm637
    %vm702 = vmand %vm670, %vm638
    %vm703 = vmand %vm671, %vm639
    %vm704 = vmand %vm672, %vm640
    %vm705 = vmand %vm673, %vm641
    %vm706 = vmand %vm674, %vm642
    %vm707 = vmand %vm675, %vm643
    %vm708 = vmand %vm676, %vm644
    %vm709 = vmand %vm677, %vm645
    %vm710 = vmand %vm678, %vm646
    %vm711 = vmand %vm679, %vm647
    %vm712 = vmand %vm680, %vm648
    %vm713 = vmand %vm681, %vm649
    %vm714 = vmand %vm682, %vm650
    %vm715 = vmand %vm683, %vm651
    %vm716 = vmand %vm684, %vm652
    %vm717 = vmand %vm685, %vm653
    %vm718 = vmand %vm686, %vm654
    %vm719 = vmand %vm687, %vm655
    %vm720 = vmand %vm688, %vm656
    %vm721 = vmand %vm689, %vm657
    %vm722 = vmand %vm690, %vm658
    %vm723 = vmand %vm691, %vm659
    %vm724 = vmand %vm692, %vm660
    %vm725 = vmand %vm693, %vm661
    %vm726 = vmand %vm694, %vm662
    %vm727 = vmand %vm695, %vm663
    %vm728 = vmand %vm696, %vm664
    %v729 = vadd.s32 %v415, 128
    %v730 = vadd.s32 %v422, 128
    %v731 = vadd.s32 %v429, 128
    %v732 = vadd.s32 %v436, 128
    %v733 = vadd.s32 %v443, 128
    %v734 = vadd.s32 %v450, 128
    %v735 = vadd.s32 %v457, 128
    %v736 = vadd.s32 %v464, 128
    %v737 = vadd.s32 %v471, 128
    %v738 = vadd.s32 %v478, 128
    %v739 = vadd.s32 %v485, 128
    %v740 = vadd.s32 %v492, 128
    %v741 = vadd.s32 %v499, 128
    %v742 = vadd.s32 %v506, 128
    %v743 = vadd.s32 %v513, 128
    %v744 = vadd.s32 %v520, 128
    %v745 = vadd.s32 %v527, 128
    %v746 = vadd.s32 %v534, 128
    %v747 = vadd.s32 %v541, 128
    %v748 = vadd.s32 %v548, 128
    %v749 = vadd.s32 %v555, 128
    %v750 = vadd.s32 %v562, 128
    %v751 = vadd.s32 %v569, 128
    %v752 = vadd.s32 %v576, 128
    %v753 = vadd.s32 %v583, 128
    %v754 = vadd.s32 %v590, 128
    %v755 = vadd.s32 %v597, 128
    %v756 = vadd.s32 %v604, 128
    %v757 = vadd.s32 %v611, 128
    %v758 = vadd.s32 %v618, 128
    %v759 = vadd.s32 %v625, 128
    %v760 = vadd.s32 %v632, 128
    %v761 = vsel %vm697, %v729, %v415
    %v762 = vsel %vm698, %v730, %v422
    %v763 = vsel %vm699, %v731, %v429
    %v764 = vsel %vm700, %v732, %v436
    %v765 = vsel %vm701, %v733, %v443
    %v766 = vsel %vm702, %v734, %v450
    %v767 = vsel %vm703, %v735, %v457
    %v768 = vsel %vm704, %v736, %v464
    %v769 = vsel %vm705, %v737, %v471
    %v770 = vsel %vm706, %v738, %v478
    %v771 = vsel %vm707, %v739, %v485
    %v772 = vsel %vm708, %v740, %v492
    %v773 = vsel %vm709, %v741, %v499
    %v774 = vsel %vm710, %v742, %v506
    %v775 = vsel %vm711, %v743, %v513
    %v776 = vsel %vm712, %v744, %v520
    %v777 = vsel %vm713, %v745, %v527
    %v778 = vsel %vm714, %v746, %v534
    %v779 = vsel %vm715, %v747, %v541
    %v780 = vsel %vm716, %v748, %v548
    %v781 = vsel %vm717, %v749, %v555
    %v782 = vsel %vm718, %v750, %v562
    %v783 = vsel %vm719, %v751, %v569
    %v784 = vsel %vm720, %v752, %v576
    %v785 = vsel %vm721, %v753, %v583
    %v786 = vsel %vm722, %v754, %v590
    %v787 = vsel %vm723, %v755, %v597
    %v788 = vsel %vm724, %v756, %v604
    %v789 = vsel %vm725, %v757, %v611
    %v790 = vsel %vm726, %v758, %v618
    %v791 = vsel %vm727, %v759, %v625
    %v792 = vsel %vm728, %v760, %v632
    %vm793 = vcmp.ge.s32.totalorder %v761, 4
    %vm794 = vcmp.ge.s32.totalorder %v762, 4
    %vm795 = vcmp.ge.s32.totalorder %v763, 4
    %vm796 = vcmp.ge.s32.totalorder %v764, 4
    %vm797 = vcmp.ge.s32.totalorder %v765, 4
    %vm798 = vcmp.ge.s32.totalorder %v766, 4
    %vm799 = vcmp.ge.s32.totalorder %v767, 4
    %vm800 = vcmp.ge.s32.totalorder %v768, 4
    %vm801 = vcmp.ge.s32.totalorder %v769, 4
    %vm802 = vcmp.ge.s32.totalorder %v770, 4
    %vm803 = vcmp.ge.s32.totalorder %v771, 4
    %vm804 = vcmp.ge.s32.totalorder %v772, 4
    %vm805 = vcmp.ge.s32.totalorder %v773, 4
    %vm806 = vcmp.ge.s32.totalorder %v774, 4
    %vm807 = vcmp.ge.s32.totalorder %v775, 4
    %vm808 = vcmp.ge.s32.totalorder %v776, 4
    %vm809 = vcmp.ge.s32.totalorder %v777, 4
    %vm810 = vcmp.ge.s32.totalorder %v778, 4
    %vm811 = vcmp.ge.s32.totalorder %v779, 4
    %vm812 = vcmp.ge.s32.totalorder %v780, 4
    %vm813 = vcmp.ge.s32.totalorder %v781, 4
    %vm814 = vcmp.ge.s32.totalorder %v782, 4
    %vm815 = vcmp.ge.s32.totalorder %v783, 4
    %vm816 = vcmp.ge.s32.totalorder %v784, 4
    %vm817 = vcmp.ge.s32.totalorder %v785, 4
    %vm818 = vcmp.ge.s32.totalorder %v786, 4
    %vm819 = vcmp.ge.s32.totalorder %v787, 4
    %vm820 = vcmp.ge.s32.totalorder %v788, 4
    %vm821 = vcmp.ge.s32.totalorder %v789, 4
    %vm822 = vcmp.ge.s32.totalorder %v790, 4
    %vm823 = vcmp.ge.s32.totalorder %v791, 4
    %vm824 = vcmp.ge.s32.totalorder %v792, 4
    %vm825 = vcmp.lt.s32.totalorder %v761, 124
    %vm826 = vcmp.lt.s32.totalorder %v762, 124
    %vm827 = vcmp.lt.s32.totalorder %v763, 124
    %vm828 = vcmp.lt.s32.totalorder %v764, 124
    %vm829 = vcmp.lt.s32.totalorder %v765, 124
    %vm830 = vcmp.lt.s32.totalorder %v766, 124
    %vm831 = vcmp.lt.s32.totalorder %v767, 124
    %vm832 = vcmp.lt.s32.totalorder %v768, 124
    %vm833 = vcmp.lt.s32.totalorder %v769, 124
    %vm834 = vcmp.lt.s32.totalorder %v770, 124
    %vm835 = vcmp.lt.s32.totalorder %v771, 124
    %vm836 = vcmp.lt.s32.totalorder %v772, 124
    %vm837 = vcmp.lt.s32.totalorder %v773, 124
    %vm838 = vcmp.lt.s32.totalorder %v774, 124
    %vm839 = vcmp.lt.s32.totalorder %v775, 124
    %vm840 = vcmp.lt.s32.totalorder %v776, 124
    %vm841 = vcmp.lt.s32.totalorder %v777, 124
    %vm842 = vcmp.lt.s32.totalorder %v778, 124
    %vm843 = vcmp.lt.s32.totalorder %v779, 124
    %vm844 = vcmp.lt.s32.totalorder %v780, 124
    %vm845 = vcmp.lt.s32.totalorder %v781, 124
    %vm846 = vcmp.lt.s32.totalorder %v782, 124
    %vm847 = vcmp.lt.s32.totalorder %v783, 124
    %vm848 = vcmp.lt.s32.totalorder %v784, 124
    %vm849 = vcmp.lt.s32.totalorder %v785, 124
    %vm850 = vcmp.lt.s32.totalorder %v786, 124
    %vm851 = vcmp.lt.s32.totalorder %v787, 124
    %vm852 = vcmp.lt.s32.totalorder %v788, 124
    %vm853 = vcmp.lt.s32.totalorder %v789, 124
    %vm854 = vcmp.lt.s32.totalorder %v790, 124
    %vm855 = vcmp.lt.s32.totalorder %v791, 124
    %vm856 = vcmp.lt.s32.totalorder %v792, 124
    %v857 = vpack.c.bf16 %v253, %v250
    %v858 = vpack.c.bf16 %v261, %v258
    %v859 = vpack.c.bf16 %v269, %v266
    %v860 = vpack.c.bf16 %v277, %v274
    %v861 = vpack.c.bf16 %v285, %v282
    %v862 = vpack.c.bf16 %v293, %v290
    %v863 = vpack.c.bf16 %v301, %v298
    %v864 = vpack.c.bf16 %v309, %v306
    %v865 = vpack.c.bf16 %v317, %v314
    %v866 = vpack.c.bf16 %v325, %v322
    %v867 = vpack.c.bf16 %v333, %v330
    %v868 = vpack.c.bf16 %v341, %v338
    %v869 = vpack.c.bf16 %v349, %v346
    %v870 = vpack.c.bf16 %v357, %v354
    %v871 = vpack.c.bf16 %v365, %v362
    %v872 = vpack.c.bf16 %v373, %v370
    %v873 = vld [vmem:[%s3] sm:$0xff]
    %v874 = vld [vmem:[%s3 + $0x8] sm:$0xf]
    %v875 = vld [vmem:[%s3 + $0xc] sm:$0xff]
    %v876 = vld [vmem:[%s3 + $0x14] sm:$0xf]
    %v877 = vld [vmem:[%s3 + $0x18] sm:$0xff]
    %v878 = vld [vmem:[%s3 + $0x20] sm:$0xf]
    %v879 = vld [vmem:[%s3 + $0x24] sm:$0xff]
    %v880 = vld [vmem:[%s3 + $0x2c] sm:$0xf]
    %v889 = vunpack.c.l.b16 %v873
    %v890 = vunpack.c.h.b16 %v873
    %v891 = vunpack.c.l.b16 %v874
    %v892 = vunpack.c.l.b16 %v875
    %v893 = vunpack.c.h.b16 %v875
    %v894 = vunpack.c.l.b16 %v876
    %v895 = vunpack.c.l.b16 %v877
    %v896 = vunpack.c.h.b16 %v877
    %v897 = vunpack.c.l.b16 %v878
    %v898 = vunpack.c.l.b16 %v879
    %v899 = vunpack.c.h.b16 %v879
    %v900 = vunpack.c.l.b16 %v880
    %v901 = vpack.c.b16 %v892, %v889
    %v902 = vpack.c.b16 %v893, %v890
    %v903 = vpack.c.b16 %v894, %v891
    %v904 = vpack.c.b16 %v898, %v895
    %v905 = vpack.c.b16 %v899, %v896
    %v906 = vpack.c.b16 %v900, %v897
    %vm913 = vcmask 261120
    %v915 = vsel %vm913, %v857, 0
    %v918 = vsel %vm913, %v858, 0
    %v921 = vsel %vm913, %v859, 0
    %v924 = vsel %vm913, %v860, 0
    %v927 = vsel %vm913, %v861, 0
    %v930 = vsel %vm913, %v862, 0
    %v933 = vsel %vm913, %v863, 0
    %v936 = vsel %vm913, %v864, 0
    %v939 = vsel %vm913, %v865, 0
    %v942 = vsel %vm913, %v866, 0
    %v945 = vsel %vm913, %v867, 0
    %v948 = vsel %vm913, %v868, 0
    %v951 = vsel %vm913, %v869, 0
    %v954 = vsel %vm913, %v870, 0
    %v957 = vsel %vm913, %v871, 0
    %v960 = vsel %vm913, %v872, 0
    %962 = vmatprep.subr.bf16.mxu0 %v902
    %963 = vmatpush1.bf16.msra.mxu0 %v901
    %964 = vmatprep.subr.bf16.mxu0 %v905
    %965 = vmatpush1.bf16.msra.mxu0 %v904
    %966 = vmatprep.subr.bf16.mxu0 0
    %967 = vmatpush1.bf16.msra.mxu0 0
    %968 = vmatprep.subr.bf16.mxu0 0
    %969 = vmatpush1.bf16.msra.mxu0 0
    %970 = vmatprep.subr.bf16.mxu0 0
    %971 = vmatpush1.bf16.msra.mxu0 0
    %972 = vmatprep.subr.bf16.mxu0 0
    %973 = vmatpush1.bf16.msra.mxu0 0
    %974 = vmatprep.subr.bf16.mxu0 0
    %975 = vmatpush1.bf16.msra.mxu0 0
    %976 = vmatprep.subr.bf16.mxu0 0
    %977 = vmatpush1.bf16.msra.mxu0 0
    %978 = vmatprep.subr.bf16.mxu0 0
    %979 = vmatpush1.bf16.msra.mxu0 0
    %980 = vmatprep.subr.bf16.mxu0 0
    %981 = vmatpush1.bf16.msra.mxu0 0
    %982 = vmatprep.subr.bf16.mxu0 0
    %983 = vmatpush1.bf16.msra.mxu0 0
    %984 = vmatprep.subr.bf16.mxu0 0
    %985 = vmatpush1.bf16.msra.mxu0 0
    %986 = vmatprep.subr.bf16.mxu0 0
    %987 = vmatpush1.bf16.msra.mxu0 0
    %988 = vmatprep.subr.bf16.mxu0 0
    %989 = vmatpush1.bf16.msra.mxu0 0
    %990 = vmatprep.subr.bf16.mxu0 0
    %991 = vmatpush1.bf16.msra.mxu0 0
    %992 = vmatprep.subr.bf16.mxu0 0
    %993 = vmatpush1.bf16.msra.mxu0 0
    %994 = vmatprep.mubr.bf16.mxu0 0
    %995 = vmatmul.mubr.bf16.gmra.mrb[0].mxu0 %v915
    %v996 = vpop.f32.mrb[0].mxu0
    %v997 = vadd.f32 0.0, %v996
    %v998 = vpop.f32.mrb[0].mxu0
    %v999 = vadd.f32 0.0, %v998
    %v1000 = vpop.f32.mrb[0].mxu0
    %v1001 = vadd.f32 0.0, %v1000
    %v1002 = vpop.f32.mrb[0].mxu0
    %v1003 = vadd.f32 0.0, %v1002
    %1004 = vmatprep.mubr.bf16.mxu0 0
    %1005 = vmatmul.mubr.bf16.gmra.mrb[0].mxu0 %v918
    %v1006 = vpop.f32.mrb[0].mxu0
    %v1007 = vadd.f32 0.0, %v1006
    %v1008 = vpop.f32.mrb[0].mxu0
    %v1009 = vadd.f32 0.0, %v1008
    %v1010 = vpop.f32.mrb[0].mxu0
    %v1011 = vadd.f32 0.0, %v1010
    %v1012 = vpop.f32.mrb[0].mxu0
    %v1013 = vadd.f32 0.0, %v1012
    %1014 = vmatprep.mubr.bf16.mxu0 0
    %1015 = vmatmul.mubr.bf16.gmra.mrb[0].mxu0 %v921
    %v1016 = vpop.f32.mrb[0].mxu0
    %v1017 = vadd.f32 0.0, %v1016
    %v1018 = vpop.f32.mrb[0].mxu0
    %v1019 = vadd.f32 0.0, %v1018
    %v1020 = vpop.f32.mrb[0].mxu0
    %v1021 = vadd.f32 0.0, %v1020
    %v1022 = vpop.f32.mrb[0].mxu0
    %v1023 = vadd.f32 0.0, %v1022
    %1024 = vmatprep.mubr.bf16.mxu0 0
    %1025 = vmatmul.mubr.bf16.gmra.mrb[0].mxu0 %v924
    %v1026 = vpop.f32.mrb[0].mxu0
    %v1027 = vadd.f32 0.0, %v1026
    %v1028 = vpop.f32.mrb[0].mxu0
    %v1029 = vadd.f32 0.0, %v1028
    %v1030 = vpop.f32.mrb[0].mxu0
    %v1031 = vadd.f32 0.0, %v1030
    %v1032 = vpop.f32.mrb[0].mxu0
    %v1033 = vadd.f32 0.0, %v1032
    %1034 = vmatprep.mubr.bf16.mxu0 0
    %1035 = vmatmul.mubr.bf16.gmra.mrb[0].mxu0 %v927
    %v1036 = vpop.f32.mrb[0].mxu0
    %v1037 = vadd.f32 0.0, %v1036
    %v1038 = vpop.f32.mrb[0].mxu0
    %v1039 = vadd.f32 0.0, %v1038
    %v1040 = vpop.f32.mrb[0].mxu0
    %v1041 = vadd.f32 0.0, %v1040
    %v1042 = vpop.f32.mrb[0].mxu0
    %v1043 = vadd.f32 0.0, %v1042
    %1044 = vmatprep.mubr.bf16.mxu0 0
    %1045 = vmatmul.mubr.bf16.gmra.mrb[0].mxu0 %v930
    %v1046 = vpop.f32.mrb[0].mxu0
    %v1047 = vadd.f32 0.0, %v1046
    %v1048 = vpop.f32.mrb[0].mxu0
    %v1049 = vadd.f32 0.0, %v1048
    %v1050 = vpop.f32.mrb[0].mxu0
    %v1051 = vadd.f32 0.0, %v1050
    %v1052 = vpop.f32.mrb[0].mxu0
    %v1053 = vadd.f32 0.0, %v1052
    %1054 = vmatprep.mubr.bf16.mxu0 0
    %1055 = vmatmul.mubr.bf16.gmra.mrb[0].mxu0 %v933
    %v1056 = vpop.f32.mrb[0].mxu0
    %v1057 = vadd.f32 0.0, %v1056
    %v1058 = vpop.f32.mrb[0].mxu0
    %v1059 = vadd.f32 0.0, %v1058
    %v1060 = vpop.f32.mrb[0].mxu0
    %v1061 = vadd.f32 0.0, %v1060
    %v1062 = vpop.f32.mrb[0].mxu0
    %v1063 = vadd.f32 0.0, %v1062
    %1064 = vmatprep.mubr.bf16.mxu0 0
    %1065 = vmatmul.mubr.bf16.gmra.mrb[0].mxu0 %v936
    %v1066 = vpop.f32.mrb[0].mxu0
    %v1067 = vadd.f32 0.0, %v1066
    %v1068 = vpop.f32.mrb[0].mxu0
    %v1069 = vadd.f32 0.0, %v1068
    %v1070 = vpop.f32.mrb[0].mxu0
    %v1071 = vadd.f32 0.0, %v1070
    %v1072 = vpop.f32.mrb[0].mxu0
    %v1073 = vadd.f32 0.0, %v1072
    %1074 = vmatprep.mubr.bf16.mxu0 0
    %1075 = vmatmul.mubr.bf16.gmra.mrb[0].mxu0 %v939
    %v1076 = vpop.f32.mrb[0].mxu0
    %v1077 = vadd.f32 0.0, %v1076
    %v1078 = vpop.f32.mrb[0].mxu0
    %v1079 = vadd.f32 0.0, %v1078
    %v1080 = vpop.f32.mrb[0].mxu0
    %v1081 = vadd.f32 0.0, %v1080
    %v1082 = vpop.f32.mrb[0].mxu0
    %v1083 = vadd.f32 0.0, %v1082
    %1084 = vmatprep.mubr.bf16.mxu0 0
    %1085 = vmatmul.mubr.bf16.gmra.mrb[0].mxu0 %v942
    %v1086 = vpop.f32.mrb[0].mxu0
    %v1087 = vadd.f32 0.0, %v1086
    %v1088 = vpop.f32.mrb[0].mxu0
    %v1089 = vadd.f32 0.0, %v1088
    %v1090 = vpop.f32.mrb[0].mxu0
    %v1091 = vadd.f32 0.0, %v1090
    %v1092 = vpop.f32.mrb[0].mxu0
    %v1093 = vadd.f32 0.0, %v1092
    %1094 = vmatprep.mubr.bf16.mxu0 0
    %1095 = vmatmul.mubr.bf16.gmra.mrb[0].mxu0 %v945
    %v1096 = vpop.f32.mrb[0].mxu0
    %v1097 = vadd.f32 0.0, %v1096
    %v1098 = vpop.f32.mrb[0].mxu0
    %v1099 = vadd.f32 0.0, %v1098
    %v1100 = vpop.f32.mrb[0].mxu0
    %v1101 = vadd.f32 0.0, %v1100
    %v1102 = vpop.f32.mrb[0].mxu0
    %v1103 = vadd.f32 0.0, %v1102
    %1104 = vmatprep.mubr.bf16.mxu0 0
    %1105 = vmatmul.mubr.bf16.gmra.mrb[0].mxu0 %v948
    %v1106 = vpop.f32.mrb[0].mxu0
    %v1107 = vadd.f32 0.0, %v1106
    %v1108 = vpop.f32.mrb[0].mxu0
    %v1109 = vadd.f32 0.0, %v1108
    %v1110 = vpop.f32.mrb[0].mxu0
    %v1111 = vadd.f32 0.0, %v1110
    %v1112 = vpop.f32.mrb[0].mxu0
    %v1113 = vadd.f32 0.0, %v1112
    %1114 = vmatprep.mubr.bf16.mxu0 0
    %1115 = vmatmul.mubr.bf16.gmra.mrb[0].mxu0 %v951
    %v1116 = vpop.f32.mrb[0].mxu0
    %v1117 = vadd.f32 0.0, %v1116
    %v1118 = vpop.f32.mrb[0].mxu0
    %v1119 = vadd.f32 0.0, %v1118
    %v1120 = vpop.f32.mrb[0].mxu0
    %v1121 = vadd.f32 0.0, %v1120
    %v1122 = vpop.f32.mrb[0].mxu0
    %v1123 = vadd.f32 0.0, %v1122
    %1124 = vmatprep.mubr.bf16.mxu0 0
    %1125 = vmatmul.mubr.bf16.gmra.mrb[0].mxu0 %v954
    %v1126 = vpop.f32.mrb[0].mxu0
    %v1127 = vadd.f32 0.0, %v1126
    %v1128 = vpop.f32.mrb[0].mxu0
    %v1129 = vadd.f32 0.0, %v1128
    %v1130 = vpop.f32.mrb[0].mxu0
    %v1131 = vadd.f32 0.0, %v1130
    %v1132 = vpop.f32.mrb[0].mxu0
    %v1133 = vadd.f32 0.0, %v1132
    %1134 = vmatprep.mubr.bf16.mxu0 0
    %1135 = vmatmul.mubr.bf16.gmra.mrb[0].mxu0 %v957
    %v1136 = vpop.f32.mrb[0].mxu0
    %v1137 = vadd.f32 0.0, %v1136
    %v1138 = vpop.f32.mrb[0].mxu0
    %v1139 = vadd.f32 0.0, %v1138
    %v1140 = vpop.f32.mrb[0].mxu0
    %v1141 = vadd.f32 0.0, %v1140
    %v1142 = vpop.f32.mrb[0].mxu0
    %v1143 = vadd.f32 0.0, %v1142
    %1144 = vmatprep.mubr.bf16.mxu0 0
    %1145 = vmatmul.mubr.bf16.gmra.mrb[0].mxu0 %v960
    %v1146 = vpop.f32.mrb[0].mxu0
    %v1147 = vadd.f32 0.0, %v1146
    %v1148 = vpop.f32.mrb[0].mxu0
    %v1149 = vadd.f32 0.0, %v1148
    %v1150 = vpop.f32.mrb[0].mxu0
    %v1151 = vadd.f32 0.0, %v1150
    %v1152 = vpop.f32.mrb[0].mxu0
    %v1153 = vadd.f32 0.0, %v1152
    %1154 = vdwg.mxu0
    %1155 = vmatprep.subr.bf16.mxu0 0
    %1156 = vmatpush1.bf16.msra.mxu0 %v903
    %1157 = vmatprep.subr.bf16.mxu0 0
    %1158 = vmatpush1.bf16.msra.mxu0 %v906
    %1159 = vmatprep.subr.bf16.mxu0 0
    %1160 = vmatpush1.bf16.msra.mxu0 0
    %1161 = vmatprep.subr.bf16.mxu0 0
    %1162 = vmatpush1.bf16.msra.mxu0 0
    %1163 = vmatprep.subr.bf16.mxu0 0
    %1164 = vmatpush1.bf16.msra.mxu0 0
    %1165 = vmatprep.subr.bf16.mxu0 0
    %1166 = vmatpush1.bf16.msra.mxu0 0
    %1167 = vmatprep.subr.bf16.mxu0 0
    %1168 = vmatpush1.bf16.msra.mxu0 0
    %1169 = vmatprep.subr.bf16.mxu0 0
    %1170 = vmatpush1.bf16.msra.mxu0 0
    %1171 = vmatprep.subr.bf16.mxu0 0
    %1172 = vmatpush1.bf16.msra.mxu0 0
    %1173 = vmatprep.subr.bf16.mxu0 0
    %1174 = vmatpush1.bf16.msra.mxu0 0
    %1175 = vmatprep.subr.bf16.mxu0 0
    %1176 = vmatpush1.bf16.msra.mxu0 0
    %1177 = vmatprep.subr.bf16.mxu0 0
    %1178 = vmatpush1.bf16.msra.mxu0 0
    %1179 = vmatprep.subr.bf16.mxu0 0
    %1180 = vmatpush1.bf16.msra.mxu0 0
    %1181 = vmatprep.subr.bf16.mxu0 0
    %1182 = vmatpush1.bf16.msra.mxu0 0
    %1183 = vmatprep.subr.bf16.mxu0 0
    %1184 = vmatpush1.bf16.msra.mxu0 0
    %1185 = vmatprep.subr.bf16.mxu0 0
    %1186 = vmatpush1.bf16.msra.mxu0 0
    %1187 = vmatprep.mubr.bf16.mxu0 0
    %1188 = vmatmul.mubr.bf16.gmra.mrb[0].mxu0 %v915
    %v1189 = vpop.f32.mrb[0].mxu0
    %v1190 = vadd.f32 0.0, %v1189
    %v1191 = vpop.f32.mrb[0].mxu0
    %v1192 = vpop.f32.mrb[0].mxu0
    %v1193 = vadd.f32 0.0, %v1192
    %v1194 = vpop.f32.mrb[0].mxu0
    %1195 = vmatprep.mubr.bf16.mxu0 0
    %1196 = vmatmul.mubr.bf16.gmra.mrb[0].mxu0 %v918
    %v1197 = vpop.f32.mrb[0].mxu0
    %v1198 = vadd.f32 0.0, %v1197
    %v1199 = vpop.f32.mrb[0].mxu0
    %v1200 = vpop.f32.mrb[0].mxu0
    %v1201 = vadd.f32 0.0, %v1200
    %v1202 = vpop.f32.mrb[0].mxu0
    %1203 = vmatprep.mubr.bf16.mxu0 0
    %1204 = vmatmul.mubr.bf16.gmra.mrb[0].mxu0 %v921
    %v1205 = vpop.f32.mrb[0].mxu0
    %v1206 = vadd.f32 0.0, %v1205
    %v1207 = vpop.f32.mrb[0].mxu0
    %v1208 = vpop.f32.mrb[0].mxu0
    %v1209 = vadd.f32 0.0, %v1208
    %v1210 = vpop.f32.mrb[0].mxu0
    %1211 = vmatprep.mubr.bf16.mxu0 0
    %1212 = vmatmul.mubr.bf16.gmra.mrb[0].mxu0 %v924
    %v1213 = vpop.f32.mrb[0].mxu0
    %v1214 = vadd.f32 0.0, %v1213
    %v1215 = vpop.f32.mrb[0].mxu0
    %v1216 = vpop.f32.mrb[0].mxu0
    %v1217 = vadd.f32 0.0, %v1216
    %v1218 = vpop.f32.mrb[0].mxu0
    %1219 = vmatprep.mubr.bf16.mxu0 0
    %1220 = vmatmul.mubr.bf16.gmra.mrb[0].mxu0 %v927
    %v1221 = vpop.f32.mrb[0].mxu0
    %v1222 = vadd.f32 0.0, %v1221
    %v1223 = vpop.f32.mrb[0].mxu0
    %v1224 = vpop.f32.mrb[0].mxu0
    %v1225 = vadd.f32 0.0, %v1224
    %v1226 = vpop.f32.mrb[0].mxu0
    %1227 = vmatprep.mubr.bf16.mxu0 0
    %1228 = vmatmul.mubr.bf16.gmra.mrb[0].mxu0 %v930
    %v1229 = vpop.f32.mrb[0].mxu0
    %v1230 = vadd.f32 0.0, %v1229
    %v1231 = vpop.f32.mrb[0].mxu0
    %v1232 = vpop.f32.mrb[0].mxu0
    %v1233 = vadd.f32 0.0, %v1232
    %v1234 = vpop.f32.mrb[0].mxu0
    %1235 = vmatprep.mubr.bf16.mxu0 0
    %1236 = vmatmul.mubr.bf16.gmra.mrb[0].mxu0 %v933
    %v1237 = vpop.f32.mrb[0].mxu0
    %v1238 = vadd.f32 0.0, %v1237
    %v1239 = vpop.f32.mrb[0].mxu0
    %v1240 = vpop.f32.mrb[0].mxu0
    %v1241 = vadd.f32 0.0, %v1240
    %v1242 = vpop.f32.mrb[0].mxu0
    %1243 = vmatprep.mubr.bf16.mxu0 0
    %1244 = vmatmul.mubr.bf16.gmra.mrb[0].mxu0 %v936
    %v1245 = vpop.f32.mrb[0].mxu0
    %v1246 = vadd.f32 0.0, %v1245
    %v1247 = vpop.f32.mrb[0].mxu0
    %v1248 = vpop.f32.mrb[0].mxu0
    %v1249 = vadd.f32 0.0, %v1248
    %v1250 = vpop.f32.mrb[0].mxu0
    %1251 = vmatprep.mubr.bf16.mxu0 0
    %1252 = vmatmul.mubr.bf16.gmra.mrb[0].mxu0 %v939
    %v1253 = vpop.f32.mrb[0].mxu0
    %v1254 = vadd.f32 0.0, %v1253
    %v1255 = vpop.f32.mrb[0].mxu0
    %v1256 = vpop.f32.mrb[0].mxu0
    %v1257 = vadd.f32 0.0, %v1256
    %v1258 = vpop.f32.mrb[0].mxu0
    %1259 = vmatprep.mubr.bf16.mxu0 0
    %1260 = vmatmul.mubr.bf16.gmra.mrb[0].mxu0 %v942
    %v1261 = vpop.f32.mrb[0].mxu0
    %v1262 = vadd.f32 0.0, %v1261
    %v1263 = vpop.f32.mrb[0].mxu0
    %v1264 = vpop.f32.mrb[0].mxu0
    %v1265 = vadd.f32 0.0, %v1264
    %v1266 = vpop.f32.mrb[0].mxu0
    %1267 = vmatprep.mubr.bf16.mxu0 0
    %1268 = vmatmul.mubr.bf16.gmra.mrb[0].mxu0 %v945
    %v1269 = vpop.f32.mrb[0].mxu0
    %v1270 = vadd.f32 0.0, %v1269
    %v1271 = vpop.f32.mrb[0].mxu0
    %v1272 = vpop.f32.mrb[0].mxu0
    %v1273 = vadd.f32 0.0, %v1272
    %v1274 = vpop.f32.mrb[0].mxu0
    %1275 = vmatprep.mubr.bf16.mxu0 0
    %1276 = vmatmul.mubr.bf16.gmra.mrb[0].mxu0 %v948
    %v1277 = vpop.f32.mrb[0].mxu0
    %v1278 = vadd.f32 0.0, %v1277
    %v1279 = vpop.f32.mrb[0].mxu0
    %v1280 = vpop.f32.mrb[0].mxu0
    %v1281 = vadd.f32 0.0, %v1280
    %v1282 = vpop.f32.mrb[0].mxu0
    %1283 = vmatprep.mubr.bf16.mxu0 0
    %1284 = vmatmul.mubr.bf16.gmra.mrb[0].mxu0 %v951
    %v1285 = vpop.f32.mrb[0].mxu0
    %v1286 = vadd.f32 0.0, %v1285
    %v1287 = vpop.f32.mrb[0].mxu0
    %v1288 = vpop.f32.mrb[0].mxu0
    %v1289 = vadd.f32 0.0, %v1288
    %v1290 = vpop.f32.mrb[0].mxu0
    %1291 = vmatprep.mubr.bf16.mxu0 0
    %1292 = vmatmul.mubr.bf16.gmra.mrb[0].mxu0 %v954
    %v1293 = vpop.f32.mrb[0].mxu0
    %v1294 = vadd.f32 0.0, %v1293
    %v1295 = vpop.f32.mrb[0].mxu0
    %v1296 = vpop.f32.mrb[0].mxu0
    %v1297 = vadd.f32 0.0, %v1296
    %v1298 = vpop.f32.mrb[0].mxu0
    %1299 = vmatprep.mubr.bf16.mxu0 0
    %1300 = vmatmul.mubr.bf16.gmra.mrb[0].mxu0 %v957
    %v1301 = vpop.f32.mrb[0].mxu0
    %v1302 = vadd.f32 0.0, %v1301
    %v1303 = vpop.f32.mrb[0].mxu0
    %v1304 = vpop.f32.mrb[0].mxu0
    %v1305 = vadd.f32 0.0, %v1304
    %v1306 = vpop.f32.mrb[0].mxu0
    %1307 = vmatprep.mubr.bf16.mxu0 0
    %1308 = vmatmul.mubr.bf16.gmra.mrb[0].mxu0 %v960
    %v1309 = vpop.f32.mrb[0].mxu0
    %v1310 = vadd.f32 0.0, %v1309
    %v1311 = vpop.f32.mrb[0].mxu0
    %v1312 = vpop.f32.mrb[0].mxu0
    %v1313 = vadd.f32 0.0, %v1312
    %v1314 = vpop.f32.mrb[0].mxu0
    %1315 = vdwg.mxu0
    %v1316 = vld [vmem:[%s4] sm:$0x1]
    %v1318 = vlaneseq
    %v1319 = vshrl.u32 %v1318, 7
    %v1320 = vsub.s32 0, %v1319
    %v1321 = vrot.slane %v1316, %v1320
    %v1323 = vadd.f32 %v999, %v1321
    %v1324 = vadd.f32 %v1003, %v1321
    %v1325 = vadd.f32 %v1009, %v1321
    %v1326 = vadd.f32 %v1013, %v1321
    %v1327 = vadd.f32 %v1019, %v1321
    %v1328 = vadd.f32 %v1023, %v1321
    %v1329 = vadd.f32 %v1029, %v1321
    %v1330 = vadd.f32 %v1033, %v1321
    %v1331 = vadd.f32 %v1039, %v1321
    %v1332 = vadd.f32 %v1043, %v1321
    %v1333 = vadd.f32 %v1049, %v1321
    %v1334 = vadd.f32 %v1053, %v1321
    %v1335 = vadd.f32 %v1059, %v1321
    %v1336 = vadd.f32 %v1063, %v1321
    %v1337 = vadd.f32 %v1069, %v1321
    %v1338 = vadd.f32 %v1073, %v1321
    %v1339 = vadd.f32 %v1079, %v1321
    %v1340 = vadd.f32 %v1083, %v1321
    %v1341 = vadd.f32 %v1089, %v1321
    %v1342 = vadd.f32 %v1093, %v1321
    %v1343 = vadd.f32 %v1099, %v1321
    %v1344 = vadd.f32 %v1103, %v1321
    %v1345 = vadd.f32 %v1109, %v1321
    %v1346 = vadd.f32 %v1113, %v1321
    %v1347 = vadd.f32 %v1119, %v1321
    %v1348 = vadd.f32 %v1123, %v1321
    %v1349 = vadd.f32 %v1129, %v1321
    %v1350 = vadd.f32 %v1133, %v1321
    %v1351 = vadd.f32 %v1139, %v1321
    %v1352 = vadd.f32 %v1143, %v1321
    %v1353 = vadd.f32 %v1149, %v1321
    %v1354 = vadd.f32 %v1153, %v1321
    %v1355 = vrot.slane %v997, 4
    %v1356 = vrot.slane %v1001, 4
    %v1357 = vrot.slane %v1007, 4
    %v1358 = vrot.slane %v1011, 4
    %v1359 = vrot.slane %v1017, 4
    %v1360 = vrot.slane %v1021, 4
    %v1361 = vrot.slane %v1027, 4
    %v1362 = vrot.slane %v1031, 4
    %v1363 = vrot.slane %v1037, 4
    %v1364 = vrot.slane %v1041, 4
    %v1365 = vrot.slane %v1047, 4
    %v1366 = vrot.slane %v1051, 4
    %v1367 = vrot.slane %v1057, 4
    %v1368 = vrot.slane %v1061, 4
    %v1369 = vrot.slane %v1067, 4
    %v1370 = vrot.slane %v1071, 4
    %v1371 = vrot.slane %v1077, 4
    %v1372 = vrot.slane %v1081, 4
    %v1373 = vrot.slane %v1087, 4
    %v1374 = vrot.slane %v1091, 4
    %v1375 = vrot.slane %v1097, 4
    %v1376 = vrot.slane %v1101, 4
    %v1377 = vrot.slane %v1107, 4
    %v1378 = vrot.slane %v1111, 4
    %v1379 = vrot.slane %v1117, 4
    %v1380 = vrot.slane %v1121, 4
    %v1381 = vrot.slane %v1127, 4
    %v1382 = vrot.slane %v1131, 4
    %v1383 = vrot.slane %v1137, 4
    %v1384 = vrot.slane %v1141, 4
    %v1385 = vrot.slane %v1147, 4
    %v1386 = vrot.slane %v1151, 4
    %vm1387 = vcmp.lt.s32.totalorder %v377, 4
    %v1388 = vsel %vm1387, %v1385, %v1386
    %v1389 = vsel %vm1387, %v1384, %v1385
    %v1390 = vsel %vm1387, %v1383, %v1384
    %v1391 = vsel %vm1387, %v1382, %v1383
    %v1392 = vsel %vm1387, %v1381, %v1382
    %v1393 = vsel %vm1387, %v1380, %v1381
    %v1394 = vsel %vm1387, %v1379, %v1380
    %v1395 = vsel %vm1387, %v1378, %v1379
    %v1396 = vsel %vm1387, %v1377, %v1378
    %v1397 = vsel %vm1387, %v1376, %v1377
    %v1398 = vsel %vm1387, %v1375, %v1376
    %v1399 = vsel %vm1387, %v1374, %v1375
    %v1400 = vsel %vm1387, %v1373, %v1374
    %v1401 = vsel %vm1387, %v1372, %v1373
    %v1402 = vsel %vm1387, %v1371, %v1372
    %v1403 = vsel %vm1387, %v1370, %v1371
    %v1404 = vsel %vm1387, %v1369, %v1370
    %v1405 = vsel %vm1387, %v1368, %v1369
    %v1406 = vsel %vm1387, %v1367, %v1368
    %v1407 = vsel %vm1387, %v1366, %v1367
    %v1408 = vsel %vm1387, %v1365, %v1366
    %v1409 = vsel %vm1387, %v1364, %v1365
    %v1410 = vsel %vm1387, %v1363, %v1364
    %v1411 = vsel %vm1387, %v1362, %v1363
    %v1412 = vsel %vm1387, %v1361, %v1362
    %v1413 = vsel %vm1387, %v1360, %v1361
    %v1414 = vsel %vm1387, %v1359, %v1360
    %v1415 = vsel %vm1387, %v1358, %v1359
    %v1416 = vsel %vm1387, %v1357, %v1358
    %v1417 = vsel %vm1387, %v1356, %v1357
    %v1418 = vsel %vm1387, %v1355, %v1356
    %v1419 = vsel %vm1387, %v1386, %v1355
    %v1420 = vsel %vm793, 1, 0
    %v1421 = vsel %vm794, 1, 0
    %v1422 = vsel %vm795, 1, 0
    %v1423 = vsel %vm796, 1, 0
    %v1424 = vsel %vm797, 1, 0
    %v1425 = vsel %vm798, 1, 0
    %v1426 = vsel %vm799, 1, 0
    %v1427 = vsel %vm800, 1, 0
    %v1428 = vsel %vm801, 1, 0
    %v1429 = vsel %vm802, 1, 0
    %v1430 = vsel %vm803, 1, 0
    %v1431 = vsel %vm804, 1, 0
    %v1432 = vsel %vm805, 1, 0
    %v1433 = vsel %vm806, 1, 0
    %v1434 = vsel %vm807, 1, 0
    %v1435 = vsel %vm808, 1, 0
    %v1436 = vsel %vm809, 1, 0
    %v1437 = vsel %vm810, 1, 0
    %v1438 = vsel %vm811, 1, 0
    %v1439 = vsel %vm812, 1, 0
    %v1440 = vsel %vm813, 1, 0
    %v1441 = vsel %vm814, 1, 0
    %v1442 = vsel %vm815, 1, 0
    %v1443 = vsel %vm816, 1, 0
    %v1444 = vsel %vm817, 1, 0
    %v1445 = vsel %vm818, 1, 0
    %v1446 = vsel %vm819, 1, 0
    %v1447 = vsel %vm820, 1, 0
    %v1448 = vsel %vm821, 1, 0
    %v1449 = vsel %vm822, 1, 0
    %v1450 = vsel %vm823, 1, 0
    %v1451 = vsel %vm824, 1, 0
    %vm1452 = vcmp.eq.s32.totalorder %v1420, 1
    %vm1453 = vcmp.eq.s32.totalorder %v1421, 1
    %vm1454 = vcmp.eq.s32.totalorder %v1422, 1
    %vm1455 = vcmp.eq.s32.totalorder %v1423, 1
    %vm1456 = vcmp.eq.s32.totalorder %v1424, 1
    %vm1457 = vcmp.eq.s32.totalorder %v1425, 1
    %vm1458 = vcmp.eq.s32.totalorder %v1426, 1
    %vm1459 = vcmp.eq.s32.totalorder %v1427, 1
    %vm1460 = vcmp.eq.s32.totalorder %v1428, 1
    %vm1461 = vcmp.eq.s32.totalorder %v1429, 1
    %vm1462 = vcmp.eq.s32.totalorder %v1430, 1
    %vm1463 = vcmp.eq.s32.totalorder %v1431, 1
    %vm1464 = vcmp.eq.s32.totalorder %v1432, 1
    %vm1465 = vcmp.eq.s32.totalorder %v1433, 1
    %vm1466 = vcmp.eq.s32.totalorder %v1434, 1
    %vm1467 = vcmp.eq.s32.totalorder %v1435, 1
    %vm1468 = vcmp.eq.s32.totalorder %v1436, 1
    %vm1469 = vcmp.eq.s32.totalorder %v1437, 1
    %vm1470 = vcmp.eq.s32.totalorder %v1438, 1
    %vm1471 = vcmp.eq.s32.totalorder %v1439, 1
    %vm1472 = vcmp.eq.s32.totalorder %v1440, 1
    %vm1473 = vcmp.eq.s32.totalorder %v1441, 1
    %vm1474 = vcmp.eq.s32.totalorder %v1442, 1
    %vm1475 = vcmp.eq.s32.totalorder %v1443, 1
    %vm1476 = vcmp.eq.s32.totalorder %v1444, 1
    %vm1477 = vcmp.eq.s32.totalorder %v1445, 1
    %vm1478 = vcmp.eq.s32.totalorder %v1446, 1
    %vm1479 = vcmp.eq.s32.totalorder %v1447, 1
    %vm1480 = vcmp.eq.s32.totalorder %v1448, 1
    %vm1481 = vcmp.eq.s32.totalorder %v1449, 1
    %vm1482 = vcmp.eq.s32.totalorder %v1450, 1
    %vm1483 = vcmp.eq.s32.totalorder %v1451, 1
    %v1484 = vsel %vm1452, %v1419, 0.0
    %v1485 = vsel %vm1453, %v1418, 0.0
    %v1486 = vsel %vm1454, %v1417, 0.0
    %v1487 = vsel %vm1455, %v1416, 0.0
    %v1488 = vsel %vm1456, %v1415, 0.0
    %v1489 = vsel %vm1457, %v1414, 0.0
    %v1490 = vsel %vm1458, %v1413, 0.0
    %v1491 = vsel %vm1459, %v1412, 0.0
    %v1492 = vsel %vm1460, %v1411, 0.0
    %v1493 = vsel %vm1461, %v1410, 0.0
    %v1494 = vsel %vm1462, %v1409, 0.0
    %v1495 = vsel %vm1463, %v1408, 0.0
    %v1496 = vsel %vm1464, %v1407, 0.0
    %v1497 = vsel %vm1465, %v1406, 0.0
    %v1498 = vsel %vm1466, %v1405, 0.0
    %v1499 = vsel %vm1467, %v1404, 0.0
    %v1500 = vsel %vm1468, %v1403, 0.0
    %v1501 = vsel %vm1469, %v1402, 0.0
    %v1502 = vsel %vm1470, %v1401, 0.0
    %v1503 = vsel %vm1471, %v1400, 0.0
    %v1504 = vsel %vm1472, %v1399, 0.0
    %v1505 = vsel %vm1473, %v1398, 0.0
    %v1506 = vsel %vm1474, %v1397, 0.0
    %v1507 = vsel %vm1475, %v1396, 0.0
    %v1508 = vsel %vm1476, %v1395, 0.0
    %v1509 = vsel %vm1477, %v1394, 0.0
    %v1510 = vsel %vm1478, %v1393, 0.0
    %v1511 = vsel %vm1479, %v1392, 0.0
    %v1512 = vsel %vm1480, %v1391, 0.0
    %v1513 = vsel %vm1481, %v1390, 0.0
    %v1514 = vsel %vm1482, %v1389, 0.0
    %v1515 = vsel %vm1483, %v1388, 0.0
    %v1516 = vadd.f32 %v1323, %v1484
    %v1517 = vadd.f32 %v1324, %v1485
    %v1518 = vadd.f32 %v1325, %v1486
    %v1519 = vadd.f32 %v1326, %v1487
    %v1520 = vadd.f32 %v1327, %v1488
    %v1521 = vadd.f32 %v1328, %v1489
    %v1522 = vadd.f32 %v1329, %v1490
    %v1523 = vadd.f32 %v1330, %v1491
    %v1524 = vadd.f32 %v1331, %v1492
    %v1525 = vadd.f32 %v1332, %v1493
    %v1526 = vadd.f32 %v1333, %v1494
    %v1527 = vadd.f32 %v1334, %v1495
    %v1528 = vadd.f32 %v1335, %v1496
    %v1529 = vadd.f32 %v1336, %v1497
    %v1530 = vadd.f32 %v1337, %v1498
    %v1531 = vadd.f32 %v1338, %v1499
    %v1532 = vadd.f32 %v1339, %v1500
    %v1533 = vadd.f32 %v1340, %v1501
    %v1534 = vadd.f32 %v1341, %v1502
    %v1535 = vadd.f32 %v1342, %v1503
    %v1536 = vadd.f32 %v1343, %v1504
    %v1537 = vadd.f32 %v1344, %v1505
    %v1538 = vadd.f32 %v1345, %v1506
    %v1539 = vadd.f32 %v1346, %v1507
    %v1540 = vadd.f32 %v1347, %v1508
    %v1541 = vadd.f32 %v1348, %v1509
    %v1542 = vadd.f32 %v1349, %v1510
    %v1543 = vadd.f32 %v1350, %v1511
    %v1544 = vadd.f32 %v1351, %v1512
    %v1545 = vadd.f32 %v1352, %v1513
    %v1546 = vadd.f32 %v1353, %v1514
    %v1547 = vadd.f32 %v1354, %v1515
    %v1548 = vrot.slane %v1190, 4
    %v1549 = vrot.slane %v1193, 4
    %v1550 = vrot.slane %v1198, 4
    %v1551 = vrot.slane %v1201, 4
    %v1552 = vrot.slane %v1206, 4
    %v1553 = vrot.slane %v1209, 4
    %v1554 = vrot.slane %v1214, 4
    %v1555 = vrot.slane %v1217, 4
    %v1556 = vrot.slane %v1222, 4
    %v1557 = vrot.slane %v1225, 4
    %v1558 = vrot.slane %v1230, 4
    %v1559 = vrot.slane %v1233, 4
    %v1560 = vrot.slane %v1238, 4
    %v1561 = vrot.slane %v1241, 4
    %v1562 = vrot.slane %v1246, 4
    %v1563 = vrot.slane %v1249, 4
    %v1564 = vrot.slane %v1254, 4
    %v1565 = vrot.slane %v1257, 4
    %v1566 = vrot.slane %v1262, 4
    %v1567 = vrot.slane %v1265, 4
    %v1568 = vrot.slane %v1270, 4
    %v1569 = vrot.slane %v1273, 4
    %v1570 = vrot.slane %v1278, 4
    %v1571 = vrot.slane %v1281, 4
    %v1572 = vrot.slane %v1286, 4
    %v1573 = vrot.slane %v1289, 4
    %v1574 = vrot.slane %v1294, 4
    %v1575 = vrot.slane %v1297, 4
    %v1576 = vrot.slane %v1302, 4
    %v1577 = vrot.slane %v1305, 4
    %v1578 = vrot.slane %v1310, 4
    %v1579 = vrot.slane %v1313, 4
    %v1580 = vsel %vm1387, %v1578, %v1579
    %v1581 = vsel %vm1387, %v1577, %v1578
    %v1582 = vsel %vm1387, %v1576, %v1577
    %v1583 = vsel %vm1387, %v1575, %v1576
    %v1584 = vsel %vm1387, %v1574, %v1575
    %v1585 = vsel %vm1387, %v1573, %v1574
    %v1586 = vsel %vm1387, %v1572, %v1573
    %v1587 = vsel %vm1387, %v1571, %v1572
    %v1588 = vsel %vm1387, %v1570, %v1571
    %v1589 = vsel %vm1387, %v1569, %v1570
    %v1590 = vsel %vm1387, %v1568, %v1569
    %v1591 = vsel %vm1387, %v1567, %v1568
    %v1592 = vsel %vm1387, %v1566, %v1567
    %v1593 = vsel %vm1387, %v1565, %v1566
    %v1594 = vsel %vm1387, %v1564, %v1565
    %v1595 = vsel %vm1387, %v1563, %v1564
    %v1596 = vsel %vm1387, %v1562, %v1563
    %v1597 = vsel %vm1387, %v1561, %v1562
    %v1598 = vsel %vm1387, %v1560, %v1561
    %v1599 = vsel %vm1387, %v1559, %v1560
    %v1600 = vsel %vm1387, %v1558, %v1559
    %v1601 = vsel %vm1387, %v1557, %v1558
    %v1602 = vsel %vm1387, %v1556, %v1557
    %v1603 = vsel %vm1387, %v1555, %v1556
    %v1604 = vsel %vm1387, %v1554, %v1555
    %v1605 = vsel %vm1387, %v1553, %v1554
    %v1606 = vsel %vm1387, %v1552, %v1553
    %v1607 = vsel %vm1387, %v1551, %v1552
    %v1608 = vsel %vm1387, %v1550, %v1551
    %v1609 = vsel %vm1387, %v1549, %v1550
    %v1610 = vsel %vm1387, %v1548, %v1549
    %v1611 = vsel %vm1387, %v1579, %v1548
    %v1612 = vsel %vm825, 1, 0
    %v1613 = vsel %vm826, 1, 0
    %v1614 = vsel %vm827, 1, 0
    %v1615 = vsel %vm828, 1, 0
    %v1616 = vsel %vm829, 1, 0
    %v1617 = vsel %vm830, 1, 0
    %v1618 = vsel %vm831, 1, 0
    %v1619 = vsel %vm832, 1, 0
    %v1620 = vsel %vm833, 1, 0
    %v1621 = vsel %vm834, 1, 0
    %v1622 = vsel %vm835, 1, 0
    %v1623 = vsel %vm836, 1, 0
    %v1624 = vsel %vm837, 1, 0
    %v1625 = vsel %vm838, 1, 0
    %v1626 = vsel %vm839, 1, 0
    %v1627 = vsel %vm840, 1, 0
    %v1628 = vsel %vm841, 1, 0
    %v1629 = vsel %vm842, 1, 0
    %v1630 = vsel %vm843, 1, 0
    %v1631 = vsel %vm844, 1, 0
    %v1632 = vsel %vm845, 1, 0
    %v1633 = vsel %vm846, 1, 0
    %v1634 = vsel %vm847, 1, 0
    %v1635 = vsel %vm848, 1, 0
    %v1636 = vsel %vm849, 1, 0
    %v1637 = vsel %vm850, 1, 0
    %v1638 = vsel %vm851, 1, 0
    %v1639 = vsel %vm852, 1, 0
    %v1640 = vsel %vm853, 1, 0
    %v1641 = vsel %vm854, 1, 0
    %v1642 = vsel %vm855, 1, 0
    %v1643 = vsel %vm856, 1, 0
    %vm1644 = vcmp.eq.s32.totalorder %v1612, 1
    %vm1645 = vcmp.eq.s32.totalorder %v1613, 1
    %vm1646 = vcmp.eq.s32.totalorder %v1614, 1
    %vm1647 = vcmp.eq.s32.totalorder %v1615, 1
    %vm1648 = vcmp.eq.s32.totalorder %v1616, 1
    %vm1649 = vcmp.eq.s32.totalorder %v1617, 1
    %vm1650 = vcmp.eq.s32.totalorder %v1618, 1
    %vm1651 = vcmp.eq.s32.totalorder %v1619, 1
    %vm1652 = vcmp.eq.s32.totalorder %v1620, 1
    %vm1653 = vcmp.eq.s32.totalorder %v1621, 1
    %vm1654 = vcmp.eq.s32.totalorder %v1622, 1
    %vm1655 = vcmp.eq.s32.totalorder %v1623, 1
    %vm1656 = vcmp.eq.s32.totalorder %v1624, 1
    %vm1657 = vcmp.eq.s32.totalorder %v1625, 1
    %vm1658 = vcmp.eq.s32.totalorder %v1626, 1
    %vm1659 = vcmp.eq.s32.totalorder %v1627, 1
    %vm1660 = vcmp.eq.s32.totalorder %v1628, 1
    %vm1661 = vcmp.eq.s32.totalorder %v1629, 1
    %vm1662 = vcmp.eq.s32.totalorder %v1630, 1
    %vm1663 = vcmp.eq.s32.totalorder %v1631, 1
    %vm1664 = vcmp.eq.s32.totalorder %v1632, 1
    %vm1665 = vcmp.eq.s32.totalorder %v1633, 1
    %vm1666 = vcmp.eq.s32.totalorder %v1634, 1
    %vm1667 = vcmp.eq.s32.totalorder %v1635, 1
    %vm1668 = vcmp.eq.s32.totalorder %v1636, 1
    %vm1669 = vcmp.eq.s32.totalorder %v1637, 1
    %vm1670 = vcmp.eq.s32.totalorder %v1638, 1
    %vm1671 = vcmp.eq.s32.totalorder %v1639, 1
    %vm1672 = vcmp.eq.s32.totalorder %v1640, 1
    %vm1673 = vcmp.eq.s32.totalorder %v1641, 1
    %vm1674 = vcmp.eq.s32.totalorder %v1642, 1
    %vm1675 = vcmp.eq.s32.totalorder %v1643, 1
    %v1676 = vsel %vm1644, %v1610, 0.0
    %v1677 = vsel %vm1645, %v1609, 0.0
    %v1678 = vsel %vm1646, %v1608, 0.0
    %v1679 = vsel %vm1647, %v1607, 0.0
    %v1680 = vsel %vm1648, %v1606, 0.0
    %v1681 = vsel %vm1649, %v1605, 0.0
    %v1682 = vsel %vm1650, %v1604, 0.0
    %v1683 = vsel %vm1651, %v1603, 0.0
    %v1684 = vsel %vm1652, %v1602, 0.0
    %v1685 = vsel %vm1653, %v1601, 0.0
    %v1686 = vsel %vm1654, %v1600, 0.0
    %v1687 = vsel %vm1655, %v1599, 0.0
    %v1688 = vsel %vm1656, %v1598, 0.0
    %v1689 = vsel %vm1657, %v1597, 0.0
    %v1690 = vsel %vm1658, %v1596, 0.0
    %v1691 = vsel %vm1659, %v1595, 0.0
    %v1692 = vsel %vm1660, %v1594, 0.0
    %v1693 = vsel %vm1661, %v1593, 0.0
    %v1694 = vsel %vm1662, %v1592, 0.0
    %v1695 = vsel %vm1663, %v1591, 0.0
    %v1696 = vsel %vm1664, %v1590, 0.0
    %v1697 = vsel %vm1665, %v1589, 0.0
    %v1698 = vsel %vm1666, %v1588, 0.0
    %v1699 = vsel %vm1667, %v1587, 0.0
    %v1700 = vsel %vm1668, %v1586, 0.0
    %v1701 = vsel %vm1669, %v1585, 0.0
    %v1702 = vsel %vm1670, %v1584, 0.0
    %v1703 = vsel %vm1671, %v1583, 0.0
    %v1704 = vsel %vm1672, %v1582, 0.0
    %v1705 = vsel %vm1673, %v1581, 0.0
    %v1706 = vsel %vm1674, %v1580, 0.0
    %v1707 = vsel %vm1675, %v1611, 0.0
    %v1708 = vadd.f32 %v1516, %v1676
    %v1709 = vadd.f32 %v1517, %v1677
    %v1710 = vadd.f32 %v1518, %v1678
    %v1711 = vadd.f32 %v1519, %v1679
    %v1712 = vadd.f32 %v1520, %v1680
    %v1713 = vadd.f32 %v1521, %v1681
    %v1714 = vadd.f32 %v1522, %v1682
    %v1715 = vadd.f32 %v1523, %v1683
    %v1716 = vadd.f32 %v1524, %v1684
    %v1717 = vadd.f32 %v1525, %v1685
    %v1718 = vadd.f32 %v1526, %v1686
    %v1719 = vadd.f32 %v1527, %v1687
    %v1720 = vadd.f32 %v1528, %v1688
    %v1721 = vadd.f32 %v1529, %v1689
    %v1722 = vadd.f32 %v1530, %v1690
    %v1723 = vadd.f32 %v1531, %v1691
    %v1724 = vadd.f32 %v1532, %v1692
    %v1725 = vadd.f32 %v1533, %v1693
    %v1726 = vadd.f32 %v1534, %v1694
    %v1727 = vadd.f32 %v1535, %v1695
    %v1728 = vadd.f32 %v1536, %v1696
    %v1729 = vadd.f32 %v1537, %v1697
    %v1730 = vadd.f32 %v1538, %v1698
    %v1731 = vadd.f32 %v1539, %v1699
    %v1732 = vadd.f32 %v1540, %v1700
    %v1733 = vadd.f32 %v1541, %v1701
    %v1734 = vadd.f32 %v1542, %v1702
    %v1735 = vadd.f32 %v1543, %v1703
    %v1736 = vadd.f32 %v1544, %v1704
    %v1737 = vadd.f32 %v1545, %v1705
    %v1738 = vadd.f32 %v1546, %v1706
    %v1739 = vadd.f32 %v1547, %v1707
    %vm1740 = vcmp.gt.f32.partialorder %v1708, 0.0
    %vm1741 = vcmp.gt.f32.partialorder %v1709, 0.0
    %vm1742 = vcmp.gt.f32.partialorder %v1710, 0.0
    %vm1743 = vcmp.gt.f32.partialorder %v1711, 0.0
    %vm1744 = vcmp.gt.f32.partialorder %v1712, 0.0
    %vm1745 = vcmp.gt.f32.partialorder %v1713, 0.0
    %vm1746 = vcmp.gt.f32.partialorder %v1714, 0.0
    %vm1747 = vcmp.gt.f32.partialorder %v1715, 0.0
    %vm1748 = vcmp.gt.f32.partialorder %v1716, 0.0
    %vm1749 = vcmp.gt.f32.partialorder %v1717, 0.0
    %vm1750 = vcmp.gt.f32.partialorder %v1718, 0.0
    %vm1751 = vcmp.gt.f32.partialorder %v1719, 0.0
    %vm1752 = vcmp.gt.f32.partialorder %v1720, 0.0
    %vm1753 = vcmp.gt.f32.partialorder %v1721, 0.0
    %vm1754 = vcmp.gt.f32.partialorder %v1722, 0.0
    %vm1755 = vcmp.gt.f32.partialorder %v1723, 0.0
    %vm1756 = vcmp.gt.f32.partialorder %v1724, 0.0
    %vm1757 = vcmp.gt.f32.partialorder %v1725, 0.0
    %vm1758 = vcmp.gt.f32.partialorder %v1726, 0.0
    %vm1759 = vcmp.gt.f32.partialorder %v1727, 0.0
    %vm1760 = vcmp.gt.f32.partialorder %v1728, 0.0
    %vm1761 = vcmp.gt.f32.partialorder %v1729, 0.0
    %vm1762 = vcmp.gt.f32.partialorder %v1730, 0.0
    %vm1763 = vcmp.gt.f32.partialorder %v1731, 0.0
    %vm1764 = vcmp.gt.f32.partialorder %v1732, 0.0
    %vm1765 = vcmp.gt.f32.partialorder %v1733, 0.0
    %vm1766 = vcmp.gt.f32.partialorder %v1734, 0.0
    %vm1767 = vcmp.gt.f32.partialorder %v1735, 0.0
    %vm1768 = vcmp.gt.f32.partialorder %v1736, 0.0
    %vm1769 = vcmp.gt.f32.partialorder %v1737, 0.0
    %vm1770 = vcmp.gt.f32.partialorder %v1738, 0.0
    %vm1771 = vcmp.gt.f32.partialorder %v1739, 0.0
    %v1772 = vmin.f32 %v1708, 0.0
    %v1773 = vmin.f32 %v1709, 0.0
    %v1774 = vmin.f32 %v1710, 0.0
    %v1775 = vmin.f32 %v1711, 0.0
    %v1776 = vmin.f32 %v1712, 0.0
    %v1777 = vmin.f32 %v1713, 0.0
    %v1778 = vmin.f32 %v1714, 0.0
    %v1779 = vmin.f32 %v1715, 0.0
    %v1780 = vmin.f32 %v1716, 0.0
    %v1781 = vmin.f32 %v1717, 0.0
    %v1782 = vmin.f32 %v1718, 0.0
    %v1783 = vmin.f32 %v1719, 0.0
    %v1784 = vmin.f32 %v1720, 0.0
    %v1785 = vmin.f32 %v1721, 0.0
    %v1786 = vmin.f32 %v1722, 0.0
    %v1787 = vmin.f32 %v1723, 0.0
    %v1788 = vmin.f32 %v1724, 0.0
    %v1789 = vmin.f32 %v1725, 0.0
    %v1790 = vmin.f32 %v1726, 0.0
    %v1791 = vmin.f32 %v1727, 0.0
    %v1792 = vmin.f32 %v1728, 0.0
    %v1793 = vmin.f32 %v1729, 0.0
    %v1794 = vmin.f32 %v1730, 0.0
    %v1795 = vmin.f32 %v1731, 0.0
    %v1796 = vmin.f32 %v1732, 0.0
    %v1797 = vmin.f32 %v1733, 0.0
    %v1798 = vmin.f32 %v1734, 0.0
    %v1799 = vmin.f32 %v1735, 0.0
    %v1800 = vmin.f32 %v1736, 0.0
    %v1801 = vmin.f32 %v1737, 0.0
    %v1802 = vmin.f32 %v1738, 0.0
    %v1803 = vmin.f32 %v1739, 0.0
    %v1804 = vmul.f32 %v1772, 1.442695
    %v1805 = vpow.pop %v1804
    %v1806 = vmul.f32 %v1773, 1.442695
    %v1807 = vpow.pop %v1806
    %v1808 = vmul.f32 %v1774, 1.442695
    %v1809 = vpow.pop %v1808
    %v1810 = vmul.f32 %v1775, 1.442695
    %v1811 = vpow.pop %v1810
    %v1812 = vmul.f32 %v1776, 1.442695
    %v1813 = vpow.pop %v1812
    %v1814 = vmul.f32 %v1777, 1.442695
    %v1815 = vpow.pop %v1814
    %v1816 = vmul.f32 %v1778, 1.442695
    %v1817 = vpow.pop %v1816
    %v1818 = vmul.f32 %v1779, 1.442695
    %v1819 = vpow.pop %v1818
    %v1820 = vmul.f32 %v1780, 1.442695
    %v1821 = vpow.pop %v1820
    %v1822 = vmul.f32 %v1781, 1.442695
    %v1823 = vpow.pop %v1822
    %v1824 = vmul.f32 %v1782, 1.442695
    %v1825 = vpow.pop %v1824
    %v1826 = vmul.f32 %v1783, 1.442695
    %v1827 = vpow.pop %v1826
    %v1828 = vmul.f32 %v1784, 1.442695
    %v1829 = vpow.pop %v1828
    %v1830 = vmul.f32 %v1785, 1.442695
    %v1831 = vpow.pop %v1830
    %v1832 = vmul.f32 %v1786, 1.442695
    %v1833 = vpow.pop %v1832
    %v1834 = vmul.f32 %v1787, 1.442695
    %v1835 = vpow.pop %v1834
    %v1836 = vmul.f32 %v1788, 1.442695
    %v1837 = vpow.pop %v1836
    %v1838 = vmul.f32 %v1789, 1.442695
    %v1839 = vpow.pop %v1838
    %v1840 = vmul.f32 %v1790, 1.442695
    %v1841 = vpow.pop %v1840
    %v1842 = vmul.f32 %v1791, 1.442695
    %v1843 = vpow.pop %v1842
    %v1844 = vmul.f32 %v1792, 1.442695
    %v1845 = vpow.pop %v1844
    %v1846 = vmul.f32 %v1793, 1.442695
    %v1847 = vpow.pop %v1846
    %v1848 = vmul.f32 %v1794, 1.442695
    %v1849 = vpow.pop %v1848
    %v1850 = vmul.f32 %v1795, 1.442695
    %v1851 = vpow.pop %v1850
    %v1852 = vmul.f32 %v1796, 1.442695
    %v1853 = vpow.pop %v1852
    %v1854 = vmul.f32 %v1797, 1.442695
    %v1855 = vpow.pop %v1854
    %v1856 = vmul.f32 %v1798, 1.442695
    %v1857 = vpow.pop %v1856
    %v1858 = vmul.f32 %v1799, 1.442695
    %v1859 = vpow.pop %v1858
    %v1860 = vmul.f32 %v1800, 1.442695
    %v1861 = vpow.pop %v1860
    %v1862 = vmul.f32 %v1801, 1.442695
    %v1863 = vpow.pop %v1862
    %v1864 = vmul.f32 %v1802, 1.442695
    %v1865 = vpow.pop %v1864
    %v1866 = vmul.f32 %v1803, 1.442695
    %v1867 = vpow.pop %v1866
    %v1868 = vsub.f32 %v1805, 1.0
    %v1869 = vsub.f32 %v1807, 1.0
    %v1870 = vsub.f32 %v1809, 1.0
    %v1871 = vsub.f32 %v1811, 1.0
    %v1872 = vsub.f32 %v1813, 1.0
    %v1873 = vsub.f32 %v1815, 1.0
    %v1874 = vsub.f32 %v1817, 1.0
    %v1875 = vsub.f32 %v1819, 1.0
    %v1876 = vsub.f32 %v1821, 1.0
    %v1877 = vsub.f32 %v1823, 1.0
    %v1878 = vsub.f32 %v1825, 1.0
    %v1879 = vsub.f32 %v1827, 1.0
    %v1880 = vsub.f32 %v1829, 1.0
    %v1881 = vsub.f32 %v1831, 1.0
    %v1882 = vsub.f32 %v1833, 1.0
    %v1883 = vsub.f32 %v1835, 1.0
    %v1884 = vsub.f32 %v1837, 1.0
    %v1885 = vsub.f32 %v1839, 1.0
    %v1886 = vsub.f32 %v1841, 1.0
    %v1887 = vsub.f32 %v1843, 1.0
    %v1888 = vsub.f32 %v1845, 1.0
    %v1889 = vsub.f32 %v1847, 1.0
    %v1890 = vsub.f32 %v1849, 1.0
    %v1891 = vsub.f32 %v1851, 1.0
    %v1892 = vsub.f32 %v1853, 1.0
    %v1893 = vsub.f32 %v1855, 1.0
    %v1894 = vsub.f32 %v1857, 1.0
    %v1895 = vsub.f32 %v1859, 1.0
    %v1896 = vsub.f32 %v1861, 1.0
    %v1897 = vsub.f32 %v1863, 1.0
    %v1898 = vsub.f32 %v1865, 1.0
    %v1899 = vsub.f32 %v1867, 1.0
    %v1900 = vsel %vm1740, %v1708, %v1868
    %v1901 = vsel %vm1741, %v1709, %v1869
    %v1902 = vsel %vm1742, %v1710, %v1870
    %v1903 = vsel %vm1743, %v1711, %v1871
    %v1904 = vsel %vm1744, %v1712, %v1872
    %v1905 = vsel %vm1745, %v1713, %v1873
    %v1906 = vsel %vm1746, %v1714, %v1874
    %v1907 = vsel %vm1747, %v1715, %v1875
    %v1908 = vsel %vm1748, %v1716, %v1876
    %v1909 = vsel %vm1749, %v1717, %v1877
    %v1910 = vsel %vm1750, %v1718, %v1878
    %v1911 = vsel %vm1751, %v1719, %v1879
    %v1912 = vsel %vm1752, %v1720, %v1880
    %v1913 = vsel %vm1753, %v1721, %v1881
    %v1914 = vsel %vm1754, %v1722, %v1882
    %v1915 = vsel %vm1755, %v1723, %v1883
    %v1916 = vsel %vm1756, %v1724, %v1884
    %v1917 = vsel %vm1757, %v1725, %v1885
    %v1918 = vsel %vm1758, %v1726, %v1886
    %v1919 = vsel %vm1759, %v1727, %v1887
    %v1920 = vsel %vm1760, %v1728, %v1888
    %v1921 = vsel %vm1761, %v1729, %v1889
    %v1922 = vsel %vm1762, %v1730, %v1890
    %v1923 = vsel %vm1763, %v1731, %v1891
    %v1924 = vsel %vm1764, %v1732, %v1892
    %v1925 = vsel %vm1765, %v1733, %v1893
    %v1926 = vsel %vm1766, %v1734, %v1894
    %v1927 = vsel %vm1767, %v1735, %v1895
    %v1928 = vsel %vm1768, %v1736, %v1896
    %v1929 = vsel %vm1769, %v1737, %v1897
    %v1930 = vsel %vm1770, %v1738, %v1898
    %v1931 = vsel %vm1771, %v1739, %v1899
    %v1932 = vadd.f32 %v250, %v1900
    %v1933 = vadd.f32 %v253, %v1901
    %v1934 = vadd.f32 %v258, %v1902
    %v1935 = vadd.f32 %v261, %v1903
    %v1936 = vadd.f32 %v266, %v1904
    %v1937 = vadd.f32 %v269, %v1905
    %v1938 = vadd.f32 %v274, %v1906
    %v1939 = vadd.f32 %v277, %v1907
    %v1940 = vadd.f32 %v282, %v1908
    %v1941 = vadd.f32 %v285, %v1909
    %v1942 = vadd.f32 %v290, %v1910
    %v1943 = vadd.f32 %v293, %v1911
    %v1944 = vadd.f32 %v298, %v1912
    %v1945 = vadd.f32 %v301, %v1913
    %v1946 = vadd.f32 %v306, %v1914
    %v1947 = vadd.f32 %v309, %v1915
    %v1948 = vadd.f32 %v314, %v1916
    %v1949 = vadd.f32 %v317, %v1917
    %v1950 = vadd.f32 %v322, %v1918
    %v1951 = vadd.f32 %v325, %v1919
    %v1952 = vadd.f32 %v330, %v1920
    %v1953 = vadd.f32 %v333, %v1921
    %v1954 = vadd.f32 %v338, %v1922
    %v1955 = vadd.f32 %v341, %v1923
    %v1956 = vadd.f32 %v346, %v1924
    %v1957 = vadd.f32 %v349, %v1925
    %v1958 = vadd.f32 %v354, %v1926
    %v1959 = vadd.f32 %v357, %v1927
    %v1960 = vadd.f32 %v362, %v1928
    %v1961 = vadd.f32 %v365, %v1929
    %v1962 = vadd.f32 %v370, %v1930
    %v1963 = vadd.f32 %v373, %v1931
    %v1964 = vpack.c.bf16 %v1933, %v1932
    %v1965 = vpack.c.bf16 %v1935, %v1934
    %v1966 = vpack.c.bf16 %v1937, %v1936
    %v1967 = vpack.c.bf16 %v1939, %v1938
    %v1968 = vpack.c.bf16 %v1941, %v1940
    %v1969 = vpack.c.bf16 %v1943, %v1942
    %v1970 = vpack.c.bf16 %v1945, %v1944
    %v1971 = vpack.c.bf16 %v1947, %v1946
    %v1972 = vpack.c.bf16 %v1949, %v1948
    %v1973 = vpack.c.bf16 %v1951, %v1950
    %v1974 = vpack.c.bf16 %v1953, %v1952
    %v1975 = vpack.c.bf16 %v1955, %v1954
    %v1976 = vpack.c.bf16 %v1957, %v1956
    %v1977 = vpack.c.bf16 %v1959, %v1958
    %v1978 = vpack.c.bf16 %v1961, %v1960
    %v1979 = vpack.c.bf16 %v1963, %v1962
    %s1980 = scalar_lea.vmem %s3, 48
    %v1981 = vld [vmem:[%s1980] sm:$0xff]
    %v1982 = vld [vmem:[%s1980 + $0x8] sm:$0xf]
    %v1983 = vld [vmem:[%s1980 + $0xc] sm:$0xff]
    %v1984 = vld [vmem:[%s1980 + $0x14] sm:$0xf]
    %v1985 = vld [vmem:[%s1980 + $0x18] sm:$0xff]
    %v1986 = vld [vmem:[%s1980 + $0x20] sm:$0xf]
    %v1987 = vld [vmem:[%s1980 + $0x24] sm:$0xff]
    %v1988 = vld [vmem:[%s1980 + $0x2c] sm:$0xf]
    %v1997 = vunpack.c.l.b16 %v1981
    %v1998 = vunpack.c.h.b16 %v1981
    %v1999 = vunpack.c.l.b16 %v1982
    %v2000 = vunpack.c.l.b16 %v1983
    %v2001 = vunpack.c.h.b16 %v1983
    %v2002 = vunpack.c.l.b16 %v1984
    %v2003 = vunpack.c.l.b16 %v1985
    %v2004 = vunpack.c.h.b16 %v1985
    %v2005 = vunpack.c.l.b16 %v1986
    %v2006 = vunpack.c.l.b16 %v1987
    %v2007 = vunpack.c.h.b16 %v1987
    %v2008 = vunpack.c.l.b16 %v1988
    %v2009 = vpack.c.b16 %v2000, %v1997
    %v2010 = vpack.c.b16 %v2001, %v1998
    %v2011 = vpack.c.b16 %v2002, %v1999
    %v2012 = vpack.c.b16 %v2006, %v2003
    %v2013 = vpack.c.b16 %v2007, %v2004
    %v2014 = vpack.c.b16 %v2008, %v2005
    %v2022 = vsel %vm913, %v1964, 0
    %v2025 = vsel %vm913, %v1965, 0
    %v2028 = vsel %vm913, %v1966, 0
    %v2031 = vsel %vm913, %v1967, 0
    %v2034 = vsel %vm913, %v1968, 0
    %v2037 = vsel %vm913, %v1969, 0
    %v2040 = vsel %vm913, %v1970, 0
    %v2043 = vsel %vm913, %v1971, 0
    %v2046 = vsel %vm913, %v1972, 0
    %v2049 = vsel %vm913, %v1973, 0
    %v2052 = vsel %vm913, %v1974, 0
    %v2055 = vsel %vm913, %v1975, 0
    %v2058 = vsel %vm913, %v1976, 0
    %v2061 = vsel %vm913, %v1977, 0
    %v2064 = vsel %vm913, %v1978, 0
    %v2067 = vsel %vm913, %v1979, 0
    %2069 = vmatprep.subr.bf16.mxu0 %v2010
    %2070 = vmatpush1.bf16.msra.mxu0 %v2009
    %2071 = vmatprep.subr.bf16.mxu0 %v2013
    %2072 = vmatpush1.bf16.msra.mxu0 %v2012
    %2073 = vmatprep.subr.bf16.mxu0 0
    %2074 = vmatpush1.bf16.msra.mxu0 0
    %2075 = vmatprep.subr.bf16.mxu0 0
    %2076 = vmatpush1.bf16.msra.mxu0 0
    %2077 = vmatprep.subr.bf16.mxu0 0
    %2078 = vmatpush1.bf16.msra.mxu0 0
    %2079 = vmatprep.subr.bf16.mxu0 0
    %2080 = vmatpush1.bf16.msra.mxu0 0
    %2081 = vmatprep.subr.bf16.mxu0 0
    %2082 = vmatpush1.bf16.msra.mxu0 0
    %2083 = vmatprep.subr.bf16.mxu0 0
    %2084 = vmatpush1.bf16.msra.mxu0 0
    %2085 = vmatprep.subr.bf16.mxu0 0
    %2086 = vmatpush1.bf16.msra.mxu0 0
    %2087 = vmatprep.subr.bf16.mxu0 0
    %2088 = vmatpush1.bf16.msra.mxu0 0
    %2089 = vmatprep.subr.bf16.mxu0 0
    %2090 = vmatpush1.bf16.msra.mxu0 0
    %2091 = vmatprep.subr.bf16.mxu0 0
    %2092 = vmatpush1.bf16.msra.mxu0 0
    %2093 = vmatprep.subr.bf16.mxu0 0
    %2094 = vmatpush1.bf16.msra.mxu0 0
    %2095 = vmatprep.subr.bf16.mxu0 0
    %2096 = vmatpush1.bf16.msra.mxu0 0
    %2097 = vmatprep.subr.bf16.mxu0 0
    %2098 = vmatpush1.bf16.msra.mxu0 0
    %2099 = vmatprep.subr.bf16.mxu0 0
    %2100 = vmatpush1.bf16.msra.mxu0 0
    %2101 = vmatprep.mubr.bf16.mxu0 0
    %2102 = vmatmul.mubr.bf16.gmra.mrb[0].mxu0 %v2022
    %v2103 = vpop.f32.mrb[0].mxu0
    %v2104 = vadd.f32 0.0, %v2103
    %v2105 = vpop.f32.mrb[0].mxu0
    %v2106 = vadd.f32 0.0, %v2105
    %v2107 = vpop.f32.mrb[0].mxu0
    %v2108 = vadd.f32 0.0, %v2107
    %v2109 = vpop.f32.mrb[0].mxu0
    %v2110 = vadd.f32 0.0, %v2109
    %2111 = vmatprep.mubr.bf16.mxu0 0
    %2112 = vmatmul.mubr.bf16.gmra.mrb[0].mxu0 %v2025
    %v2113 = vpop.f32.mrb[0].mxu0
    %v2114 = vadd.f32 0.0, %v2113
    %v2115 = vpop.f32.mrb[0].mxu0
    %v2116 = vadd.f32 0.0, %v2115
    %v2117 = vpop.f32.mrb[0].mxu0
    %v2118 = vadd.f32 0.0, %v2117
    %v2119 = vpop.f32.mrb[0].mxu0
    %v2120 = vadd.f32 0.0, %v2119
    %2121 = vmatprep.mubr.bf16.mxu0 0
    %2122 = vmatmul.mubr.bf16.gmra.mrb[0].mxu0 %v2028
    %v2123 = vpop.f32.mrb[0].mxu0
    %v2124 = vadd.f32 0.0, %v2123
    %v2125 = vpop.f32.mrb[0].mxu0
    %v2126 = vadd.f32 0.0, %v2125
    %v2127 = vpop.f32.mrb[0].mxu0
    %v2128 = vadd.f32 0.0, %v2127
    %v2129 = vpop.f32.mrb[0].mxu0
    %v2130 = vadd.f32 0.0, %v2129
    %2131 = vmatprep.mubr.bf16.mxu0 0
    %2132 = vmatmul.mubr.bf16.gmra.mrb[0].mxu0 %v2031
    %v2133 = vpop.f32.mrb[0].mxu0
    %v2134 = vadd.f32 0.0, %v2133
    %v2135 = vpop.f32.mrb[0].mxu0
    %v2136 = vadd.f32 0.0, %v2135
    %v2137 = vpop.f32.mrb[0].mxu0
    %v2138 = vadd.f32 0.0, %v2137
    %v2139 = vpop.f32.mrb[0].mxu0
    %v2140 = vadd.f32 0.0, %v2139
    %2141 = vmatprep.mubr.bf16.mxu0 0
    %2142 = vmatmul.mubr.bf16.gmra.mrb[0].mxu0 %v2034
    %v2143 = vpop.f32.mrb[0].mxu0
    %v2144 = vadd.f32 0.0, %v2143
    %v2145 = vpop.f32.mrb[0].mxu0
    %v2146 = vadd.f32 0.0, %v2145
    %v2147 = vpop.f32.mrb[0].mxu0
    %v2148 = vadd.f32 0.0, %v2147
    %v2149 = vpop.f32.mrb[0].mxu0
    %v2150 = vadd.f32 0.0, %v2149
    %2151 = vmatprep.mubr.bf16.mxu0 0
    %2152 = vmatmul.mubr.bf16.gmra.mrb[0].mxu0 %v2037
    %v2153 = vpop.f32.mrb[0].mxu0
    %v2154 = vadd.f32 0.0, %v2153
    %v2155 = vpop.f32.mrb[0].mxu0
    %v2156 = vadd.f32 0.0, %v2155
    %v2157 = vpop.f32.mrb[0].mxu0
    %v2158 = vadd.f32 0.0, %v2157
    %v2159 = vpop.f32.mrb[0].mxu0
    %v2160 = vadd.f32 0.0, %v2159
    %2161 = vmatprep.mubr.bf16.mxu0 0
    %2162 = vmatmul.mubr.bf16.gmra.mrb[0].mxu0 %v2040
    %v2163 = vpop.f32.mrb[0].mxu0
    %v2164 = vadd.f32 0.0, %v2163
    %v2165 = vpop.f32.mrb[0].mxu0
    %v2166 = vadd.f32 0.0, %v2165
    %v2167 = vpop.f32.mrb[0].mxu0
    %v2168 = vadd.f32 0.0, %v2167
    %v2169 = vpop.f32.mrb[0].mxu0
    %v2170 = vadd.f32 0.0, %v2169
    %2171 = vmatprep.mubr.bf16.mxu0 0
    %2172 = vmatmul.mubr.bf16.gmra.mrb[0].mxu0 %v2043
    %v2173 = vpop.f32.mrb[0].mxu0
    %v2174 = vadd.f32 0.0, %v2173
    %v2175 = vpop.f32.mrb[0].mxu0
    %v2176 = vadd.f32 0.0, %v2175
    %v2177 = vpop.f32.mrb[0].mxu0
    %v2178 = vadd.f32 0.0, %v2177
    %v2179 = vpop.f32.mrb[0].mxu0
    %v2180 = vadd.f32 0.0, %v2179
    %2181 = vmatprep.mubr.bf16.mxu0 0
    %2182 = vmatmul.mubr.bf16.gmra.mrb[0].mxu0 %v2046
    %v2183 = vpop.f32.mrb[0].mxu0
    %v2184 = vadd.f32 0.0, %v2183
    %v2185 = vpop.f32.mrb[0].mxu0
    %v2186 = vadd.f32 0.0, %v2185
    %v2187 = vpop.f32.mrb[0].mxu0
    %v2188 = vadd.f32 0.0, %v2187
    %v2189 = vpop.f32.mrb[0].mxu0
    %v2190 = vadd.f32 0.0, %v2189
    %2191 = vmatprep.mubr.bf16.mxu0 0
    %2192 = vmatmul.mubr.bf16.gmra.mrb[0].mxu0 %v2049
    %v2193 = vpop.f32.mrb[0].mxu0
    %v2194 = vadd.f32 0.0, %v2193
    %v2195 = vpop.f32.mrb[0].mxu0
    %v2196 = vadd.f32 0.0, %v2195
    %v2197 = vpop.f32.mrb[0].mxu0
    %v2198 = vadd.f32 0.0, %v2197
    %v2199 = vpop.f32.mrb[0].mxu0
    %v2200 = vadd.f32 0.0, %v2199
    %2201 = vmatprep.mubr.bf16.mxu0 0
    %2202 = vmatmul.mubr.bf16.gmra.mrb[0].mxu0 %v2052
    %v2203 = vpop.f32.mrb[0].mxu0
    %v2204 = vadd.f32 0.0, %v2203
    %v2205 = vpop.f32.mrb[0].mxu0
    %v2206 = vadd.f32 0.0, %v2205
    %v2207 = vpop.f32.mrb[0].mxu0
    %v2208 = vadd.f32 0.0, %v2207
    %v2209 = vpop.f32.mrb[0].mxu0
    %v2210 = vadd.f32 0.0, %v2209
    %2211 = vmatprep.mubr.bf16.mxu0 0
    %2212 = vmatmul.mubr.bf16.gmra.mrb[0].mxu0 %v2055
    %v2213 = vpop.f32.mrb[0].mxu0
    %v2214 = vadd.f32 0.0, %v2213
    %v2215 = vpop.f32.mrb[0].mxu0
    %v2216 = vadd.f32 0.0, %v2215
    %v2217 = vpop.f32.mrb[0].mxu0
    %v2218 = vadd.f32 0.0, %v2217
    %v2219 = vpop.f32.mrb[0].mxu0
    %v2220 = vadd.f32 0.0, %v2219
    %2221 = vmatprep.mubr.bf16.mxu0 0
    %2222 = vmatmul.mubr.bf16.gmra.mrb[0].mxu0 %v2058
    %v2223 = vpop.f32.mrb[0].mxu0
    %v2224 = vadd.f32 0.0, %v2223
    %v2225 = vpop.f32.mrb[0].mxu0
    %v2226 = vadd.f32 0.0, %v2225
    %v2227 = vpop.f32.mrb[0].mxu0
    %v2228 = vadd.f32 0.0, %v2227
    %v2229 = vpop.f32.mrb[0].mxu0
    %v2230 = vadd.f32 0.0, %v2229
    %2231 = vmatprep.mubr.bf16.mxu0 0
    %2232 = vmatmul.mubr.bf16.gmra.mrb[0].mxu0 %v2061
    %v2233 = vpop.f32.mrb[0].mxu0
    %v2234 = vadd.f32 0.0, %v2233
    %v2235 = vpop.f32.mrb[0].mxu0
    %v2236 = vadd.f32 0.0, %v2235
    %v2237 = vpop.f32.mrb[0].mxu0
    %v2238 = vadd.f32 0.0, %v2237
    %v2239 = vpop.f32.mrb[0].mxu0
    %v2240 = vadd.f32 0.0, %v2239
    %2241 = vmatprep.mubr.bf16.mxu0 0
    %2242 = vmatmul.mubr.bf16.gmra.mrb[0].mxu0 %v2064
    %v2243 = vpop.f32.mrb[0].mxu0
    %v2244 = vadd.f32 0.0, %v2243
    %v2245 = vpop.f32.mrb[0].mxu0
    %v2246 = vadd.f32 0.0, %v2245
    %v2247 = vpop.f32.mrb[0].mxu0
    %v2248 = vadd.f32 0.0, %v2247
    %v2249 = vpop.f32.mrb[0].mxu0
    %v2250 = vadd.f32 0.0, %v2249
    %2251 = vmatprep.mubr.bf16.mxu0 0
    %2252 = vmatmul.mubr.bf16.gmra.mrb[0].mxu0 %v2067
    %v2253 = vpop.f32.mrb[0].mxu0
    %v2254 = vadd.f32 0.0, %v2253
    %v2255 = vpop.f32.mrb[0].mxu0
    %v2256 = vadd.f32 0.0, %v2255
    %v2257 = vpop.f32.mrb[0].mxu0
    %v2258 = vadd.f32 0.0, %v2257
    %v2259 = vpop.f32.mrb[0].mxu0
    %v2260 = vadd.f32 0.0, %v2259
    %2261 = vdwg.mxu0
    %2262 = vmatprep.subr.bf16.mxu0 0
    %2263 = vmatpush1.bf16.msra.mxu0 %v2011
    %2264 = vmatprep.subr.bf16.mxu0 0
    %2265 = vmatpush1.bf16.msra.mxu0 %v2014
    %2266 = vmatprep.subr.bf16.mxu0 0
    %2267 = vmatpush1.bf16.msra.mxu0 0
    %2268 = vmatprep.subr.bf16.mxu0 0
    %2269 = vmatpush1.bf16.msra.mxu0 0
    %2270 = vmatprep.subr.bf16.mxu0 0
    %2271 = vmatpush1.bf16.msra.mxu0 0
    %2272 = vmatprep.subr.bf16.mxu0 0
    %2273 = vmatpush1.bf16.msra.mxu0 0
    %2274 = vmatprep.subr.bf16.mxu0 0
    %2275 = vmatpush1.bf16.msra.mxu0 0
    %2276 = vmatprep.subr.bf16.mxu0 0
    %2277 = vmatpush1.bf16.msra.mxu0 0
    %2278 = vmatprep.subr.bf16.mxu0 0
    %2279 = vmatpush1.bf16.msra.mxu0 0
    %2280 = vmatprep.subr.bf16.mxu0 0
    %2281 = vmatpush1.bf16.msra.mxu0 0
    %2282 = vmatprep.subr.bf16.mxu0 0
    %2283 = vmatpush1.bf16.msra.mxu0 0
    %2284 = vmatprep.subr.bf16.mxu0 0
    %2285 = vmatpush1.bf16.msra.mxu0 0
    %2286 = vmatprep.subr.bf16.mxu0 0
    %2287 = vmatpush1.bf16.msra.mxu0 0
    %2288 = vmatprep.subr.bf16.mxu0 0
    %2289 = vmatpush1.bf16.msra.mxu0 0
    %2290 = vmatprep.subr.bf16.mxu0 0
    %2291 = vmatpush1.bf16.msra.mxu0 0
    %2292 = vmatprep.subr.bf16.mxu0 0
    %2293 = vmatpush1.bf16.msra.mxu0 0
    %2294 = vmatprep.mubr.bf16.mxu0 0
    %2295 = vmatmul.mubr.bf16.gmra.mrb[0].mxu0 %v2022
    %v2296 = vpop.f32.mrb[0].mxu0
    %v2297 = vadd.f32 0.0, %v2296
    %v2298 = vpop.f32.mrb[0].mxu0
    %v2299 = vpop.f32.mrb[0].mxu0
    %v2300 = vadd.f32 0.0, %v2299
    %v2301 = vpop.f32.mrb[0].mxu0
    %2302 = vmatprep.mubr.bf16.mxu0 0
    %2303 = vmatmul.mubr.bf16.gmra.mrb[0].mxu0 %v2025
    %v2304 = vpop.f32.mrb[0].mxu0
    %v2305 = vadd.f32 0.0, %v2304
    %v2306 = vpop.f32.mrb[0].mxu0
    %v2307 = vpop.f32.mrb[0].mxu0
    %v2308 = vadd.f32 0.0, %v2307
    %v2309 = vpop.f32.mrb[0].mxu0
    %2310 = vmatprep.mubr.bf16.mxu0 0
    %2311 = vmatmul.mubr.bf16.gmra.mrb[0].mxu0 %v2028
    %v2312 = vpop.f32.mrb[0].mxu0
    %v2313 = vadd.f32 0.0, %v2312
    %v2314 = vpop.f32.mrb[0].mxu0
    %v2315 = vpop.f32.mrb[0].mxu0
    %v2316 = vadd.f32 0.0, %v2315
    %v2317 = vpop.f32.mrb[0].mxu0
    %2318 = vmatprep.mubr.bf16.mxu0 0
    %2319 = vmatmul.mubr.bf16.gmra.mrb[0].mxu0 %v2031
    %v2320 = vpop.f32.mrb[0].mxu0
    %v2321 = vadd.f32 0.0, %v2320
    %v2322 = vpop.f32.mrb[0].mxu0
    %v2323 = vpop.f32.mrb[0].mxu0
    %v2324 = vadd.f32 0.0, %v2323
    %v2325 = vpop.f32.mrb[0].mxu0
    %2326 = vmatprep.mubr.bf16.mxu0 0
    %2327 = vmatmul.mubr.bf16.gmra.mrb[0].mxu0 %v2034
    %v2328 = vpop.f32.mrb[0].mxu0
    %v2329 = vadd.f32 0.0, %v2328
    %v2330 = vpop.f32.mrb[0].mxu0
    %v2331 = vpop.f32.mrb[0].mxu0
    %v2332 = vadd.f32 0.0, %v2331
    %v2333 = vpop.f32.mrb[0].mxu0
    %2334 = vmatprep.mubr.bf16.mxu0 0
    %2335 = vmatmul.mubr.bf16.gmra.mrb[0].mxu0 %v2037
    %v2336 = vpop.f32.mrb[0].mxu0
    %v2337 = vadd.f32 0.0, %v2336
    %v2338 = vpop.f32.mrb[0].mxu0
    %v2339 = vpop.f32.mrb[0].mxu0
    %v2340 = vadd.f32 0.0, %v2339
    %v2341 = vpop.f32.mrb[0].mxu0
    %2342 = vmatprep.mubr.bf16.mxu0 0
    %2343 = vmatmul.mubr.bf16.gmra.mrb[0].mxu0 %v2040
    %v2344 = vpop.f32.mrb[0].mxu0
    %v2345 = vadd.f32 0.0, %v2344
    %v2346 = vpop.f32.mrb[0].mxu0
    %v2347 = vpop.f32.mrb[0].mxu0
    %v2348 = vadd.f32 0.0, %v2347
    %v2349 = vpop.f32.mrb[0].mxu0
    %2350 = vmatprep.mubr.bf16.mxu0 0
    %2351 = vmatmul.mubr.bf16.gmra.mrb[0].mxu0 %v2043
    %v2352 = vpop.f32.mrb[0].mxu0
    %v2353 = vadd.f32 0.0, %v2352
    %v2354 = vpop.f32.mrb[0].mxu0
    %v2355 = vpop.f32.mrb[0].mxu0
    %v2356 = vadd.f32 0.0, %v2355
    %v2357 = vpop.f32.mrb[0].mxu0
    %2358 = vmatprep.mubr.bf16.mxu0 0
    %2359 = vmatmul.mubr.bf16.gmra.mrb[0].mxu0 %v2046
    %v2360 = vpop.f32.mrb[0].mxu0
    %v2361 = vadd.f32 0.0, %v2360
    %v2362 = vpop.f32.mrb[0].mxu0
    %v2363 = vpop.f32.mrb[0].mxu0
    %v2364 = vadd.f32 0.0, %v2363
    %v2365 = vpop.f32.mrb[0].mxu0
    %2366 = vmatprep.mubr.bf16.mxu0 0
    %2367 = vmatmul.mubr.bf16.gmra.mrb[0].mxu0 %v2049
    %v2368 = vpop.f32.mrb[0].mxu0
    %v2369 = vadd.f32 0.0, %v2368
    %v2370 = vpop.f32.mrb[0].mxu0
    %v2371 = vpop.f32.mrb[0].mxu0
    %v2372 = vadd.f32 0.0, %v2371
    %v2373 = vpop.f32.mrb[0].mxu0
    %2374 = vmatprep.mubr.bf16.mxu0 0
    %2375 = vmatmul.mubr.bf16.gmra.mrb[0].mxu0 %v2052
    %v2376 = vpop.f32.mrb[0].mxu0
    %v2377 = vadd.f32 0.0, %v2376
    %v2378 = vpop.f32.mrb[0].mxu0
    %v2379 = vpop.f32.mrb[0].mxu0
    %v2380 = vadd.f32 0.0, %v2379
    %v2381 = vpop.f32.mrb[0].mxu0
    %2382 = vmatprep.mubr.bf16.mxu0 0
    %2383 = vmatmul.mubr.bf16.gmra.mrb[0].mxu0 %v2055
    %v2384 = vpop.f32.mrb[0].mxu0
    %v2385 = vadd.f32 0.0, %v2384
    %v2386 = vpop.f32.mrb[0].mxu0
    %v2387 = vpop.f32.mrb[0].mxu0
    %v2388 = vadd.f32 0.0, %v2387
    %v2389 = vpop.f32.mrb[0].mxu0
    %2390 = vmatprep.mubr.bf16.mxu0 0
    %2391 = vmatmul.mubr.bf16.gmra.mrb[0].mxu0 %v2058
    %v2392 = vpop.f32.mrb[0].mxu0
    %v2393 = vadd.f32 0.0, %v2392
    %v2394 = vpop.f32.mrb[0].mxu0
    %v2395 = vpop.f32.mrb[0].mxu0
    %v2396 = vadd.f32 0.0, %v2395
    %v2397 = vpop.f32.mrb[0].mxu0
    %2398 = vmatprep.mubr.bf16.mxu0 0
    %2399 = vmatmul.mubr.bf16.gmra.mrb[0].mxu0 %v2061
    %v2400 = vpop.f32.mrb[0].mxu0
    %v2401 = vadd.f32 0.0, %v2400
    %v2402 = vpop.f32.mrb[0].mxu0
    %v2403 = vpop.f32.mrb[0].mxu0
    %v2404 = vadd.f32 0.0, %v2403
    %v2405 = vpop.f32.mrb[0].mxu0
    %2406 = vmatprep.mubr.bf16.mxu0 0
    %2407 = vmatmul.mubr.bf16.gmra.mrb[0].mxu0 %v2064
    %v2408 = vpop.f32.mrb[0].mxu0
    %v2409 = vadd.f32 0.0, %v2408
    %v2410 = vpop.f32.mrb[0].mxu0
    %v2411 = vpop.f32.mrb[0].mxu0
    %v2412 = vadd.f32 0.0, %v2411
    %v2413 = vpop.f32.mrb[0].mxu0
    %2414 = vmatprep.mubr.bf16.mxu0 0
    %2415 = vmatmul.mubr.bf16.gmra.mrb[0].mxu0 %v2067
    %v2416 = vpop.f32.mrb[0].mxu0
    %v2417 = vadd.f32 0.0, %v2416
    %v2418 = vpop.f32.mrb[0].mxu0
    %v2419 = vpop.f32.mrb[0].mxu0
    %v2420 = vadd.f32 0.0, %v2419
    %v2421 = vpop.f32.mrb[0].mxu0
    %2422 = vdwg.mxu0
    %s2423 = scalar_lea.vmem %s4, 1
    %v2424 = vld [vmem:[%s2423] sm:$0x1]
    %v2426 = vlaneseq
    %v2427 = vshrl.u32 %v2426, 7
    %v2428 = vsub.s32 0, %v2427
    %v2429 = vrot.slane %v2424, %v2428
    %v2431 = vadd.f32 %v2106, %v2429
    %v2432 = vadd.f32 %v2110, %v2429
    %v2433 = vadd.f32 %v2116, %v2429
    %v2434 = vadd.f32 %v2120, %v2429
    %v2435 = vadd.f32 %v2126, %v2429
    %v2436 = vadd.f32 %v2130, %v2429
    %v2437 = vadd.f32 %v2136, %v2429
    %v2438 = vadd.f32 %v2140, %v2429
    %v2439 = vadd.f32 %v2146, %v2429
    %v2440 = vadd.f32 %v2150, %v2429
    %v2441 = vadd.f32 %v2156, %v2429
    %v2442 = vadd.f32 %v2160, %v2429
    %v2443 = vadd.f32 %v2166, %v2429
    %v2444 = vadd.f32 %v2170, %v2429
    %v2445 = vadd.f32 %v2176, %v2429
    %v2446 = vadd.f32 %v2180, %v2429
    %v2447 = vadd.f32 %v2186, %v2429
    %v2448 = vadd.f32 %v2190, %v2429
    %v2449 = vadd.f32 %v2196, %v2429
    %v2450 = vadd.f32 %v2200, %v2429
    %v2451 = vadd.f32 %v2206, %v2429
    %v2452 = vadd.f32 %v2210, %v2429
    %v2453 = vadd.f32 %v2216, %v2429
    %v2454 = vadd.f32 %v2220, %v2429
    %v2455 = vadd.f32 %v2226, %v2429
    %v2456 = vadd.f32 %v2230, %v2429
    %v2457 = vadd.f32 %v2236, %v2429
    %v2458 = vadd.f32 %v2240, %v2429
    %v2459 = vadd.f32 %v2246, %v2429
    %v2460 = vadd.f32 %v2250, %v2429
    %v2461 = vadd.f32 %v2256, %v2429
    %v2462 = vadd.f32 %v2260, %v2429
    %v2463 = vrot.slane %v2104, 4
    %v2464 = vrot.slane %v2108, 4
    %v2465 = vrot.slane %v2114, 4
    %v2466 = vrot.slane %v2118, 4
    %v2467 = vrot.slane %v2124, 4
    %v2468 = vrot.slane %v2128, 4
    %v2469 = vrot.slane %v2134, 4
    %v2470 = vrot.slane %v2138, 4
    %v2471 = vrot.slane %v2144, 4
    %v2472 = vrot.slane %v2148, 4
    %v2473 = vrot.slane %v2154, 4
    %v2474 = vrot.slane %v2158, 4
    %v2475 = vrot.slane %v2164, 4
    %v2476 = vrot.slane %v2168, 4
    %v2477 = vrot.slane %v2174, 4
    %v2478 = vrot.slane %v2178, 4
    %v2479 = vrot.slane %v2184, 4
    %v2480 = vrot.slane %v2188, 4
    %v2481 = vrot.slane %v2194, 4
    %v2482 = vrot.slane %v2198, 4
    %v2483 = vrot.slane %v2204, 4
    %v2484 = vrot.slane %v2208, 4
    %v2485 = vrot.slane %v2214, 4
    %v2486 = vrot.slane %v2218, 4
    %v2487 = vrot.slane %v2224, 4
    %v2488 = vrot.slane %v2228, 4
    %v2489 = vrot.slane %v2234, 4
    %v2490 = vrot.slane %v2238, 4
    %v2491 = vrot.slane %v2244, 4
    %v2492 = vrot.slane %v2248, 4
    %v2493 = vrot.slane %v2254, 4
    %v2494 = vrot.slane %v2258, 4
    %v2495 = vsel %vm1387, %v2493, %v2494
    %v2496 = vsel %vm1387, %v2492, %v2493
    %v2497 = vsel %vm1387, %v2491, %v2492
    %v2498 = vsel %vm1387, %v2490, %v2491
    %v2499 = vsel %vm1387, %v2489, %v2490
    %v2500 = vsel %vm1387, %v2488, %v2489
    %v2501 = vsel %vm1387, %v2487, %v2488
    %v2502 = vsel %vm1387, %v2486, %v2487
    %v2503 = vsel %vm1387, %v2485, %v2486
    %v2504 = vsel %vm1387, %v2484, %v2485
    %v2505 = vsel %vm1387, %v2483, %v2484
    %v2506 = vsel %vm1387, %v2482, %v2483
    %v2507 = vsel %vm1387, %v2481, %v2482
    %v2508 = vsel %vm1387, %v2480, %v2481
    %v2509 = vsel %vm1387, %v2479, %v2480
    %v2510 = vsel %vm1387, %v2478, %v2479
    %v2511 = vsel %vm1387, %v2477, %v2478
    %v2512 = vsel %vm1387, %v2476, %v2477
    %v2513 = vsel %vm1387, %v2475, %v2476
    %v2514 = vsel %vm1387, %v2474, %v2475
    %v2515 = vsel %vm1387, %v2473, %v2474
    %v2516 = vsel %vm1387, %v2472, %v2473
    %v2517 = vsel %vm1387, %v2471, %v2472
    %v2518 = vsel %vm1387, %v2470, %v2471
    %v2519 = vsel %vm1387, %v2469, %v2470
    %v2520 = vsel %vm1387, %v2468, %v2469
    %v2521 = vsel %vm1387, %v2467, %v2468
    %v2522 = vsel %vm1387, %v2466, %v2467
    %v2523 = vsel %vm1387, %v2465, %v2466
    %v2524 = vsel %vm1387, %v2464, %v2465
    %v2525 = vsel %vm1387, %v2463, %v2464
    %v2526 = vsel %vm1387, %v2494, %v2463
    %v2527 = vsel %vm1452, %v2526, 0.0
    %v2528 = vsel %vm1453, %v2525, 0.0
    %v2529 = vsel %vm1454, %v2524, 0.0
    %v2530 = vsel %vm1455, %v2523, 0.0
    %v2531 = vsel %vm1456, %v2522, 0.0
    %v2532 = vsel %vm1457, %v2521, 0.0
    %v2533 = vsel %vm1458, %v2520, 0.0
    %v2534 = vsel %vm1459, %v2519, 0.0
    %v2535 = vsel %vm1460, %v2518, 0.0
    %v2536 = vsel %vm1461, %v2517, 0.0
    %v2537 = vsel %vm1462, %v2516, 0.0
    %v2538 = vsel %vm1463, %v2515, 0.0
    %v2539 = vsel %vm1464, %v2514, 0.0
    %v2540 = vsel %vm1465, %v2513, 0.0
    %v2541 = vsel %vm1466, %v2512, 0.0
    %v2542 = vsel %vm1467, %v2511, 0.0
    %v2543 = vsel %vm1468, %v2510, 0.0
    %v2544 = vsel %vm1469, %v2509, 0.0
    %v2545 = vsel %vm1470, %v2508, 0.0
    %v2546 = vsel %vm1471, %v2507, 0.0
    %v2547 = vsel %vm1472, %v2506, 0.0
    %v2548 = vsel %vm1473, %v2505, 0.0
    %v2549 = vsel %vm1474, %v2504, 0.0
    %v2550 = vsel %vm1475, %v2503, 0.0
    %v2551 = vsel %vm1476, %v2502, 0.0
    %v2552 = vsel %vm1477, %v2501, 0.0
    %v2553 = vsel %vm1478, %v2500, 0.0
    %v2554 = vsel %vm1479, %v2499, 0.0
    %v2555 = vsel %vm1480, %v2498, 0.0
    %v2556 = vsel %vm1481, %v2497, 0.0
    %v2557 = vsel %vm1482, %v2496, 0.0
    %v2558 = vsel %vm1483, %v2495, 0.0
    %v2559 = vadd.f32 %v2431, %v2527
    %v2560 = vadd.f32 %v2432, %v2528
    %v2561 = vadd.f32 %v2433, %v2529
    %v2562 = vadd.f32 %v2434, %v2530
    %v2563 = vadd.f32 %v2435, %v2531
    %v2564 = vadd.f32 %v2436, %v2532
    %v2565 = vadd.f32 %v2437, %v2533
    %v2566 = vadd.f32 %v2438, %v2534
    %v2567 = vadd.f32 %v2439, %v2535
    %v2568 = vadd.f32 %v2440, %v2536
    %v2569 = vadd.f32 %v2441, %v2537
    %v2570 = vadd.f32 %v2442, %v2538
    %v2571 = vadd.f32 %v2443, %v2539
    %v2572 = vadd.f32 %v2444, %v2540
    %v2573 = vadd.f32 %v2445, %v2541
    %v2574 = vadd.f32 %v2446, %v2542
    %v2575 = vadd.f32 %v2447, %v2543
    %v2576 = vadd.f32 %v2448, %v2544
    %v2577 = vadd.f32 %v2449, %v2545
    %v2578 = vadd.f32 %v2450, %v2546
    %v2579 = vadd.f32 %v2451, %v2547
    %v2580 = vadd.f32 %v2452, %v2548
    %v2581 = vadd.f32 %v2453, %v2549
    %v2582 = vadd.f32 %v2454, %v2550
    %v2583 = vadd.f32 %v2455, %v2551
    %v2584 = vadd.f32 %v2456, %v2552
    %v2585 = vadd.f32 %v2457, %v2553
    %v2586 = vadd.f32 %v2458, %v2554
    %v2587 = vadd.f32 %v2459, %v2555
    %v2588 = vadd.f32 %v2460, %v2556
    %v2589 = vadd.f32 %v2461, %v2557
    %v2590 = vadd.f32 %v2462, %v2558
    %v2591 = vrot.slane %v2297, 4
    %v2592 = vrot.slane %v2300, 4
    %v2593 = vrot.slane %v2305, 4
    %v2594 = vrot.slane %v2308, 4
    %v2595 = vrot.slane %v2313, 4
    %v2596 = vrot.slane %v2316, 4
    %v2597 = vrot.slane %v2321, 4
    %v2598 = vrot.slane %v2324, 4
    %v2599 = vrot.slane %v2329, 4
    %v2600 = vrot.slane %v2332, 4
    %v2601 = vrot.slane %v2337, 4
    %v2602 = vrot.slane %v2340, 4
    %v2603 = vrot.slane %v2345, 4
    %v2604 = vrot.slane %v2348, 4
    %v2605 = vrot.slane %v2353, 4
    %v2606 = vrot.slane %v2356, 4
    %v2607 = vrot.slane %v2361, 4
    %v2608 = vrot.slane %v2364, 4
    %v2609 = vrot.slane %v2369, 4
    %v2610 = vrot.slane %v2372, 4
    %v2611 = vrot.slane %v2377, 4
    %v2612 = vrot.slane %v2380, 4
    %v2613 = vrot.slane %v2385, 4
    %v2614 = vrot.slane %v2388, 4
    %v2615 = vrot.slane %v2393, 4
    %v2616 = vrot.slane %v2396, 4
    %v2617 = vrot.slane %v2401, 4
    %v2618 = vrot.slane %v2404, 4
    %v2619 = vrot.slane %v2409, 4
    %v2620 = vrot.slane %v2412, 4
    %v2621 = vrot.slane %v2417, 4
    %v2622 = vrot.slane %v2420, 4
    %v2623 = vsel %vm1387, %v2621, %v2622
    %v2624 = vsel %vm1387, %v2620, %v2621
    %v2625 = vsel %vm1387, %v2619, %v2620
    %v2626 = vsel %vm1387, %v2618, %v2619
    %v2627 = vsel %vm1387, %v2617, %v2618
    %v2628 = vsel %vm1387, %v2616, %v2617
    %v2629 = vsel %vm1387, %v2615, %v2616
    %v2630 = vsel %vm1387, %v2614, %v2615
    %v2631 = vsel %vm1387, %v2613, %v2614
    %v2632 = vsel %vm1387, %v2612, %v2613
    %v2633 = vsel %vm1387, %v2611, %v2612
    %v2634 = vsel %vm1387, %v2610, %v2611
    %v2635 = vsel %vm1387, %v2609, %v2610
    %v2636 = vsel %vm1387, %v2608, %v2609
    %v2637 = vsel %vm1387, %v2607, %v2608
    %v2638 = vsel %vm1387, %v2606, %v2607
    %v2639 = vsel %vm1387, %v2605, %v2606
    %v2640 = vsel %vm1387, %v2604, %v2605
    %v2641 = vsel %vm1387, %v2603, %v2604
    %v2642 = vsel %vm1387, %v2602, %v2603
    %v2643 = vsel %vm1387, %v2601, %v2602
    %v2644 = vsel %vm1387, %v2600, %v2601
    %v2645 = vsel %vm1387, %v2599, %v2600
    %v2646 = vsel %vm1387, %v2598, %v2599
    %v2647 = vsel %vm1387, %v2597, %v2598
    %v2648 = vsel %vm1387, %v2596, %v2597
    %v2649 = vsel %vm1387, %v2595, %v2596
    %v2650 = vsel %vm1387, %v2594, %v2595
    %v2651 = vsel %vm1387, %v2593, %v2594
    %v2652 = vsel %vm1387, %v2592, %v2593
    %v2653 = vsel %vm1387, %v2591, %v2592
    %v2654 = vsel %vm1387, %v2622, %v2591
    %v2655 = vsel %vm1644, %v2653, 0.0
    %v2656 = vsel %vm1645, %v2652, 0.0
    %v2657 = vsel %vm1646, %v2651, 0.0
    %v2658 = vsel %vm1647, %v2650, 0.0
    %v2659 = vsel %vm1648, %v2649, 0.0
    %v2660 = vsel %vm1649, %v2648, 0.0
    %v2661 = vsel %vm1650, %v2647, 0.0
    %v2662 = vsel %vm1651, %v2646, 0.0
    %v2663 = vsel %vm1652, %v2645, 0.0
    %v2664 = vsel %vm1653, %v2644, 0.0
    %v2665 = vsel %vm1654, %v2643, 0.0
    %v2666 = vsel %vm1655, %v2642, 0.0
    %v2667 = vsel %vm1656, %v2641, 0.0
    %v2668 = vsel %vm1657, %v2640, 0.0
    %v2669 = vsel %vm1658, %v2639, 0.0
    %v2670 = vsel %vm1659, %v2638, 0.0
    %v2671 = vsel %vm1660, %v2637, 0.0
    %v2672 = vsel %vm1661, %v2636, 0.0
    %v2673 = vsel %vm1662, %v2635, 0.0
    %v2674 = vsel %vm1663, %v2634, 0.0
    %v2675 = vsel %vm1664, %v2633, 0.0
    %v2676 = vsel %vm1665, %v2632, 0.0
    %v2677 = vsel %vm1666, %v2631, 0.0
    %v2678 = vsel %vm1667, %v2630, 0.0
    %v2679 = vsel %vm1668, %v2629, 0.0
    %v2680 = vsel %vm1669, %v2628, 0.0
    %v2681 = vsel %vm1670, %v2627, 0.0
    %v2682 = vsel %vm1671, %v2626, 0.0
    %v2683 = vsel %vm1672, %v2625, 0.0
    %v2684 = vsel %vm1673, %v2624, 0.0
    %v2685 = vsel %vm1674, %v2623, 0.0
    %v2686 = vsel %vm1675, %v2654, 0.0
    %v2687 = vadd.f32 %v2559, %v2655
    %v2688 = vadd.f32 %v2560, %v2656
    %v2689 = vadd.f32 %v2561, %v2657
    %v2690 = vadd.f32 %v2562, %v2658
    %v2691 = vadd.f32 %v2563, %v2659
    %v2692 = vadd.f32 %v2564, %v2660
    %v2693 = vadd.f32 %v2565, %v2661
    %v2694 = vadd.f32 %v2566, %v2662
    %v2695 = vadd.f32 %v2567, %v2663
    %v2696 = vadd.f32 %v2568, %v2664
    %v2697 = vadd.f32 %v2569, %v2665
    %v2698 = vadd.f32 %v2570, %v2666
    %v2699 = vadd.f32 %v2571, %v2667
    %v2700 = vadd.f32 %v2572, %v2668
    %v2701 = vadd.f32 %v2573, %v2669
    %v2702 = vadd.f32 %v2574, %v2670
    %v2703 = vadd.f32 %v2575, %v2671
    %v2704 = vadd.f32 %v2576, %v2672
    %v2705 = vadd.f32 %v2577, %v2673
    %v2706 = vadd.f32 %v2578, %v2674
    %v2707 = vadd.f32 %v2579, %v2675
    %v2708 = vadd.f32 %v2580, %v2676
    %v2709 = vadd.f32 %v2581, %v2677
    %v2710 = vadd.f32 %v2582, %v2678
    %v2711 = vadd.f32 %v2583, %v2679
    %v2712 = vadd.f32 %v2584, %v2680
    %v2713 = vadd.f32 %v2585, %v2681
    %v2714 = vadd.f32 %v2586, %v2682
    %v2715 = vadd.f32 %v2587, %v2683
    %v2716 = vadd.f32 %v2588, %v2684
    %v2717 = vadd.f32 %v2589, %v2685
    %v2718 = vadd.f32 %v2590, %v2686
    %vm2719 = vcmp.gt.f32.partialorder %v2687, 0.0
    %vm2720 = vcmp.gt.f32.partialorder %v2688, 0.0
    %vm2721 = vcmp.gt.f32.partialorder %v2689, 0.0
    %vm2722 = vcmp.gt.f32.partialorder %v2690, 0.0
    %vm2723 = vcmp.gt.f32.partialorder %v2691, 0.0
    %vm2724 = vcmp.gt.f32.partialorder %v2692, 0.0
    %vm2725 = vcmp.gt.f32.partialorder %v2693, 0.0
    %vm2726 = vcmp.gt.f32.partialorder %v2694, 0.0
    %vm2727 = vcmp.gt.f32.partialorder %v2695, 0.0
    %vm2728 = vcmp.gt.f32.partialorder %v2696, 0.0
    %vm2729 = vcmp.gt.f32.partialorder %v2697, 0.0
    %vm2730 = vcmp.gt.f32.partialorder %v2698, 0.0
    %vm2731 = vcmp.gt.f32.partialorder %v2699, 0.0
    %vm2732 = vcmp.gt.f32.partialorder %v2700, 0.0
    %vm2733 = vcmp.gt.f32.partialorder %v2701, 0.0
    %vm2734 = vcmp.gt.f32.partialorder %v2702, 0.0
    %vm2735 = vcmp.gt.f32.partialorder %v2703, 0.0
    %vm2736 = vcmp.gt.f32.partialorder %v2704, 0.0
    %vm2737 = vcmp.gt.f32.partialorder %v2705, 0.0
    %vm2738 = vcmp.gt.f32.partialorder %v2706, 0.0
    %vm2739 = vcmp.gt.f32.partialorder %v2707, 0.0
    %vm2740 = vcmp.gt.f32.partialorder %v2708, 0.0
    %vm2741 = vcmp.gt.f32.partialorder %v2709, 0.0
    %vm2742 = vcmp.gt.f32.partialorder %v2710, 0.0
    %vm2743 = vcmp.gt.f32.partialorder %v2711, 0.0
    %vm2744 = vcmp.gt.f32.partialorder %v2712, 0.0
    %vm2745 = vcmp.gt.f32.partialorder %v2713, 0.0
    %vm2746 = vcmp.gt.f32.partialorder %v2714, 0.0
    %vm2747 = vcmp.gt.f32.partialorder %v2715, 0.0
    %vm2748 = vcmp.gt.f32.partialorder %v2716, 0.0
    %vm2749 = vcmp.gt.f32.partialorder %v2717, 0.0
    %vm2750 = vcmp.gt.f32.partialorder %v2718, 0.0
    %v2751 = vmin.f32 %v2687, 0.0
    %v2752 = vmin.f32 %v2688, 0.0
    %v2753 = vmin.f32 %v2689, 0.0
    %v2754 = vmin.f32 %v2690, 0.0
    %v2755 = vmin.f32 %v2691, 0.0
    %v2756 = vmin.f32 %v2692, 0.0
    %v2757 = vmin.f32 %v2693, 0.0
    %v2758 = vmin.f32 %v2694, 0.0
    %v2759 = vmin.f32 %v2695, 0.0
    %v2760 = vmin.f32 %v2696, 0.0
    %v2761 = vmin.f32 %v2697, 0.0
    %v2762 = vmin.f32 %v2698, 0.0
    %v2763 = vmin.f32 %v2699, 0.0
    %v2764 = vmin.f32 %v2700, 0.0
    %v2765 = vmin.f32 %v2701, 0.0
    %v2766 = vmin.f32 %v2702, 0.0
    %v2767 = vmin.f32 %v2703, 0.0
    %v2768 = vmin.f32 %v2704, 0.0
    %v2769 = vmin.f32 %v2705, 0.0
    %v2770 = vmin.f32 %v2706, 0.0
    %v2771 = vmin.f32 %v2707, 0.0
    %v2772 = vmin.f32 %v2708, 0.0
    %v2773 = vmin.f32 %v2709, 0.0
    %v2774 = vmin.f32 %v2710, 0.0
    %v2775 = vmin.f32 %v2711, 0.0
    %v2776 = vmin.f32 %v2712, 0.0
    %v2777 = vmin.f32 %v2713, 0.0
    %v2778 = vmin.f32 %v2714, 0.0
    %v2779 = vmin.f32 %v2715, 0.0
    %v2780 = vmin.f32 %v2716, 0.0
    %v2781 = vmin.f32 %v2717, 0.0
    %v2782 = vmin.f32 %v2718, 0.0
    %v2783 = vmul.f32 %v2751, 1.442695
    %v2784 = vpow.pop %v2783
    %v2785 = vmul.f32 %v2752, 1.442695
    %v2786 = vpow.pop %v2785
    %v2787 = vmul.f32 %v2753, 1.442695
    %v2788 = vpow.pop %v2787
    %v2789 = vmul.f32 %v2754, 1.442695
    %v2790 = vpow.pop %v2789
    %v2791 = vmul.f32 %v2755, 1.442695
    %v2792 = vpow.pop %v2791
    %v2793 = vmul.f32 %v2756, 1.442695
    %v2794 = vpow.pop %v2793
    %v2795 = vmul.f32 %v2757, 1.442695
    %v2796 = vpow.pop %v2795
    %v2797 = vmul.f32 %v2758, 1.442695
    %v2798 = vpow.pop %v2797
    %v2799 = vmul.f32 %v2759, 1.442695
    %v2800 = vpow.pop %v2799
    %v2801 = vmul.f32 %v2760, 1.442695
    %v2802 = vpow.pop %v2801
    %v2803 = vmul.f32 %v2761, 1.442695
    %v2804 = vpow.pop %v2803
    %v2805 = vmul.f32 %v2762, 1.442695
    %v2806 = vpow.pop %v2805
    %v2807 = vmul.f32 %v2763, 1.442695
    %v2808 = vpow.pop %v2807
    %v2809 = vmul.f32 %v2764, 1.442695
    %v2810 = vpow.pop %v2809
    %v2811 = vmul.f32 %v2765, 1.442695
    %v2812 = vpow.pop %v2811
    %v2813 = vmul.f32 %v2766, 1.442695
    %v2814 = vpow.pop %v2813
    %v2815 = vmul.f32 %v2767, 1.442695
    %v2816 = vpow.pop %v2815
    %v2817 = vmul.f32 %v2768, 1.442695
    %v2818 = vpow.pop %v2817
    %v2819 = vmul.f32 %v2769, 1.442695
    %v2820 = vpow.pop %v2819
    %v2821 = vmul.f32 %v2770, 1.442695
    %v2822 = vpow.pop %v2821
    %v2823 = vmul.f32 %v2771, 1.442695
    %v2824 = vpow.pop %v2823
    %v2825 = vmul.f32 %v2772, 1.442695
    %v2826 = vpow.pop %v2825
    %v2827 = vmul.f32 %v2773, 1.442695
    %v2828 = vpow.pop %v2827
    %v2829 = vmul.f32 %v2774, 1.442695
    %v2830 = vpow.pop %v2829
    %v2831 = vmul.f32 %v2775, 1.442695
    %v2832 = vpow.pop %v2831
    %v2833 = vmul.f32 %v2776, 1.442695
    %v2834 = vpow.pop %v2833
    %v2835 = vmul.f32 %v2777, 1.442695
    %v2836 = vpow.pop %v2835
    %v2837 = vmul.f32 %v2778, 1.442695
    %v2838 = vpow.pop %v2837
    %v2839 = vmul.f32 %v2779, 1.442695
    %v2840 = vpow.pop %v2839
    %v2841 = vmul.f32 %v2780, 1.442695
    %v2842 = vpow.pop %v2841
    %v2843 = vmul.f32 %v2781, 1.442695
    %v2844 = vpow.pop %v2843
    %v2845 = vmul.f32 %v2782, 1.442695
    %v2846 = vpow.pop %v2845
    %v2847 = vsub.f32 %v2784, 1.0
    %v2848 = vsub.f32 %v2786, 1.0
    %v2849 = vsub.f32 %v2788, 1.0
    %v2850 = vsub.f32 %v2790, 1.0
    %v2851 = vsub.f32 %v2792, 1.0
    %v2852 = vsub.f32 %v2794, 1.0
    %v2853 = vsub.f32 %v2796, 1.0
    %v2854 = vsub.f32 %v2798, 1.0
    %v2855 = vsub.f32 %v2800, 1.0
    %v2856 = vsub.f32 %v2802, 1.0
    %v2857 = vsub.f32 %v2804, 1.0
    %v2858 = vsub.f32 %v2806, 1.0
    %v2859 = vsub.f32 %v2808, 1.0
    %v2860 = vsub.f32 %v2810, 1.0
    %v2861 = vsub.f32 %v2812, 1.0
    %v2862 = vsub.f32 %v2814, 1.0
    %v2863 = vsub.f32 %v2816, 1.0
    %v2864 = vsub.f32 %v2818, 1.0
    %v2865 = vsub.f32 %v2820, 1.0
    %v2866 = vsub.f32 %v2822, 1.0
    %v2867 = vsub.f32 %v2824, 1.0
    %v2868 = vsub.f32 %v2826, 1.0
    %v2869 = vsub.f32 %v2828, 1.0
    %v2870 = vsub.f32 %v2830, 1.0
    %v2871 = vsub.f32 %v2832, 1.0
    %v2872 = vsub.f32 %v2834, 1.0
    %v2873 = vsub.f32 %v2836, 1.0
    %v2874 = vsub.f32 %v2838, 1.0
    %v2875 = vsub.f32 %v2840, 1.0
    %v2876 = vsub.f32 %v2842, 1.0
    %v2877 = vsub.f32 %v2844, 1.0
    %v2878 = vsub.f32 %v2846, 1.0
    %v2879 = vsel %vm2719, %v2687, %v2847
    %v2880 = vsel %vm2720, %v2688, %v2848
    %v2881 = vsel %vm2721, %v2689, %v2849
    %v2882 = vsel %vm2722, %v2690, %v2850
    %v2883 = vsel %vm2723, %v2691, %v2851
    %v2884 = vsel %vm2724, %v2692, %v2852
    %v2885 = vsel %vm2725, %v2693, %v2853
    %v2886 = vsel %vm2726, %v2694, %v2854
    %v2887 = vsel %vm2727, %v2695, %v2855
    %v2888 = vsel %vm2728, %v2696, %v2856
    %v2889 = vsel %vm2729, %v2697, %v2857
    %v2890 = vsel %vm2730, %v2698, %v2858
    %v2891 = vsel %vm2731, %v2699, %v2859
    %v2892 = vsel %vm2732, %v2700, %v2860
    %v2893 = vsel %vm2733, %v2701, %v2861
    %v2894 = vsel %vm2734, %v2702, %v2862
    %v2895 = vsel %vm2735, %v2703, %v2863
    %v2896 = vsel %vm2736, %v2704, %v2864
    %v2897 = vsel %vm2737, %v2705, %v2865
    %v2898 = vsel %vm2738, %v2706, %v2866
    %v2899 = vsel %vm2739, %v2707, %v2867
    %v2900 = vsel %vm2740, %v2708, %v2868
    %v2901 = vsel %vm2741, %v2709, %v2869
    %v2902 = vsel %vm2742, %v2710, %v2870
    %v2903 = vsel %vm2743, %v2711, %v2871
    %v2904 = vsel %vm2744, %v2712, %v2872
    %v2905 = vsel %vm2745, %v2713, %v2873
    %v2906 = vsel %vm2746, %v2714, %v2874
    %v2907 = vsel %vm2747, %v2715, %v2875
    %v2908 = vsel %vm2748, %v2716, %v2876
    %v2909 = vsel %vm2749, %v2717, %v2877
    %v2910 = vsel %vm2750, %v2718, %v2878
    %v2911 = vadd.f32 %v1932, %v2879
    %v2912 = vadd.f32 %v1933, %v2880
    %v2913 = vadd.f32 %v1934, %v2881
    %v2914 = vadd.f32 %v1935, %v2882
    %v2915 = vadd.f32 %v1936, %v2883
    %v2916 = vadd.f32 %v1937, %v2884
    %v2917 = vadd.f32 %v1938, %v2885
    %v2918 = vadd.f32 %v1939, %v2886
    %v2919 = vadd.f32 %v1940, %v2887
    %v2920 = vadd.f32 %v1941, %v2888
    %v2921 = vadd.f32 %v1942, %v2889
    %v2922 = vadd.f32 %v1943, %v2890
    %v2923 = vadd.f32 %v1944, %v2891
    %v2924 = vadd.f32 %v1945, %v2892
    %v2925 = vadd.f32 %v1946, %v2893
    %v2926 = vadd.f32 %v1947, %v2894
    %v2927 = vadd.f32 %v1948, %v2895
    %v2928 = vadd.f32 %v1949, %v2896
    %v2929 = vadd.f32 %v1950, %v2897
    %v2930 = vadd.f32 %v1951, %v2898
    %v2931 = vadd.f32 %v1952, %v2899
    %v2932 = vadd.f32 %v1953, %v2900
    %v2933 = vadd.f32 %v1954, %v2901
    %v2934 = vadd.f32 %v1955, %v2902
    %v2935 = vadd.f32 %v1956, %v2903
    %v2936 = vadd.f32 %v1957, %v2904
    %v2937 = vadd.f32 %v1958, %v2905
    %v2938 = vadd.f32 %v1959, %v2906
    %v2939 = vadd.f32 %v1960, %v2907
    %v2940 = vadd.f32 %v1961, %v2908
    %v2941 = vadd.f32 %v1962, %v2909
    %v2942 = vadd.f32 %v1963, %v2910
    %v2943 = vpack.c.bf16 %v2912, %v2911
    %v2944 = vpack.c.bf16 %v2914, %v2913
    %v2945 = vpack.c.bf16 %v2916, %v2915
    %v2946 = vpack.c.bf16 %v2918, %v2917
    %v2947 = vpack.c.bf16 %v2920, %v2919
    %v2948 = vpack.c.bf16 %v2922, %v2921
    %v2949 = vpack.c.bf16 %v2924, %v2923
    %v2950 = vpack.c.bf16 %v2926, %v2925
    %v2951 = vpack.c.bf16 %v2928, %v2927
    %v2952 = vpack.c.bf16 %v2930, %v2929
    %v2953 = vpack.c.bf16 %v2932, %v2931
    %v2954 = vpack.c.bf16 %v2934, %v2933
    %v2955 = vpack.c.bf16 %v2936, %v2935
    %v2956 = vpack.c.bf16 %v2938, %v2937
    %v2957 = vpack.c.bf16 %v2940, %v2939
    %v2958 = vpack.c.bf16 %v2942, %v2941
    %s2959 = scalar_lea.vmem %s3, 96
    %v2960 = vld [vmem:[%s2959] sm:$0xff]
    %v2961 = vld [vmem:[%s2959 + $0x8] sm:$0xf]
    %v2962 = vld [vmem:[%s2959 + $0xc] sm:$0xff]
    %v2963 = vld [vmem:[%s2959 + $0x14] sm:$0xf]
    %v2964 = vld [vmem:[%s2959 + $0x18] sm:$0xff]
    %v2965 = vld [vmem:[%s2959 + $0x20] sm:$0xf]
    %v2966 = vld [vmem:[%s2959 + $0x24] sm:$0xff]
    %v2967 = vld [vmem:[%s2959 + $0x2c] sm:$0xf]
    %v2976 = vunpack.c.l.b16 %v2960
    %v2977 = vunpack.c.h.b16 %v2960
    %v2978 = vunpack.c.l.b16 %v2961
    %v2979 = vunpack.c.l.b16 %v2962
    %v2980 = vunpack.c.h.b16 %v2962
    %v2981 = vunpack.c.l.b16 %v2963
    %v2982 = vunpack.c.l.b16 %v2964
    %v2983 = vunpack.c.h.b16 %v2964
    %v2984 = vunpack.c.l.b16 %v2965
    %v2985 = vunpack.c.l.b16 %v2966
    %v2986 = vunpack.c.h.b16 %v2966
    %v2987 = vunpack.c.l.b16 %v2967
    %v2988 = vpack.c.b16 %v2979, %v2976
    %v2989 = vpack.c.b16 %v2980, %v2977
    %v2990 = vpack.c.b16 %v2981, %v2978
    %v2991 = vpack.c.b16 %v2985, %v2982
    %v2992 = vpack.c.b16 %v2986, %v2983
    %v2993 = vpack.c.b16 %v2987, %v2984
    %v3001 = vsel %vm913, %v2943, 0
    %v3004 = vsel %vm913, %v2944, 0
    %v3007 = vsel %vm913, %v2945, 0
    %v3010 = vsel %vm913, %v2946, 0
    %v3013 = vsel %vm913, %v2947, 0
    %v3016 = vsel %vm913, %v2948, 0
    %v3019 = vsel %vm913, %v2949, 0
    %v3022 = vsel %vm913, %v2950, 0
    %v3025 = vsel %vm913, %v2951, 0
    %v3028 = vsel %vm913, %v2952, 0
    %v3031 = vsel %vm913, %v2953, 0
    %v3034 = vsel %vm913, %v2954, 0
    %v3037 = vsel %vm913, %v2955, 0
    %v3040 = vsel %vm913, %v2956, 0
    %v3043 = vsel %vm913, %v2957, 0
    %v3046 = vsel %vm913, %v2958, 0
    %3048 = vmatprep.subr.bf16.mxu0 %v2989
    %3049 = vmatpush1.bf16.msra.mxu0 %v2988
    %3050 = vmatprep.subr.bf16.mxu0 %v2992
    %3051 = vmatpush1.bf16.msra.mxu0 %v2991
    %3052 = vmatprep.subr.bf16.mxu0 0
    %3053 = vmatpush1.bf16.msra.mxu0 0
    %3054 = vmatprep.subr.bf16.mxu0 0
    %3055 = vmatpush1.bf16.msra.mxu0 0
    %3056 = vmatprep.subr.bf16.mxu0 0
    %3057 = vmatpush1.bf16.msra.mxu0 0
    %3058 = vmatprep.subr.bf16.mxu0 0
    %3059 = vmatpush1.bf16.msra.mxu0 0
    %3060 = vmatprep.subr.bf16.mxu0 0
    %3061 = vmatpush1.bf16.msra.mxu0 0
    %3062 = vmatprep.subr.bf16.mxu0 0
    %3063 = vmatpush1.bf16.msra.mxu0 0
    %3064 = vmatprep.subr.bf16.mxu0 0
    %3065 = vmatpush1.bf16.msra.mxu0 0
    %3066 = vmatprep.subr.bf16.mxu0 0
    %3067 = vmatpush1.bf16.msra.mxu0 0
    %3068 = vmatprep.subr.bf16.mxu0 0
    %3069 = vmatpush1.bf16.msra.mxu0 0
    %3070 = vmatprep.subr.bf16.mxu0 0
    %3071 = vmatpush1.bf16.msra.mxu0 0
    %3072 = vmatprep.subr.bf16.mxu0 0
    %3073 = vmatpush1.bf16.msra.mxu0 0
    %3074 = vmatprep.subr.bf16.mxu0 0
    %3075 = vmatpush1.bf16.msra.mxu0 0
    %3076 = vmatprep.subr.bf16.mxu0 0
    %3077 = vmatpush1.bf16.msra.mxu0 0
    %3078 = vmatprep.subr.bf16.mxu0 0
    %3079 = vmatpush1.bf16.msra.mxu0 0
    %3080 = vmatprep.mubr.bf16.mxu0 0
    %3081 = vmatmul.mubr.bf16.gmra.mrb[0].mxu0 %v3001
    %v3082 = vpop.f32.mrb[0].mxu0
    %v3083 = vadd.f32 0.0, %v3082
    %v3084 = vpop.f32.mrb[0].mxu0
    %v3085 = vadd.f32 0.0, %v3084
    %v3086 = vpop.f32.mrb[0].mxu0
    %v3087 = vadd.f32 0.0, %v3086
    %v3088 = vpop.f32.mrb[0].mxu0
    %v3089 = vadd.f32 0.0, %v3088
    %3090 = vmatprep.mubr.bf16.mxu0 0
    %3091 = vmatmul.mubr.bf16.gmra.mrb[0].mxu0 %v3004
    %v3092 = vpop.f32.mrb[0].mxu0
    %v3093 = vadd.f32 0.0, %v3092
    %v3094 = vpop.f32.mrb[0].mxu0
    %v3095 = vadd.f32 0.0, %v3094
    %v3096 = vpop.f32.mrb[0].mxu0
    %v3097 = vadd.f32 0.0, %v3096
    %v3098 = vpop.f32.mrb[0].mxu0
    %v3099 = vadd.f32 0.0, %v3098
    %3100 = vmatprep.mubr.bf16.mxu0 0
    %3101 = vmatmul.mubr.bf16.gmra.mrb[0].mxu0 %v3007
    %v3102 = vpop.f32.mrb[0].mxu0
    %v3103 = vadd.f32 0.0, %v3102
    %v3104 = vpop.f32.mrb[0].mxu0
    %v3105 = vadd.f32 0.0, %v3104
    %v3106 = vpop.f32.mrb[0].mxu0
    %v3107 = vadd.f32 0.0, %v3106
    %v3108 = vpop.f32.mrb[0].mxu0
    %v3109 = vadd.f32 0.0, %v3108
    %3110 = vmatprep.mubr.bf16.mxu0 0
    %3111 = vmatmul.mubr.bf16.gmra.mrb[0].mxu0 %v3010
    %v3112 = vpop.f32.mrb[0].mxu0
    %v3113 = vadd.f32 0.0, %v3112
    %v3114 = vpop.f32.mrb[0].mxu0
    %v3115 = vadd.f32 0.0, %v3114
    %v3116 = vpop.f32.mrb[0].mxu0
    %v3117 = vadd.f32 0.0, %v3116
    %v3118 = vpop.f32.mrb[0].mxu0
    %v3119 = vadd.f32 0.0, %v3118
    %3120 = vmatprep.mubr.bf16.mxu0 0
    %3121 = vmatmul.mubr.bf16.gmra.mrb[0].mxu0 %v3013
    %v3122 = vpop.f32.mrb[0].mxu0
    %v3123 = vadd.f32 0.0, %v3122
    %v3124 = vpop.f32.mrb[0].mxu0
    %v3125 = vadd.f32 0.0, %v3124
    %v3126 = vpop.f32.mrb[0].mxu0
    %v3127 = vadd.f32 0.0, %v3126
    %v3128 = vpop.f32.mrb[0].mxu0
    %v3129 = vadd.f32 0.0, %v3128
    %3130 = vmatprep.mubr.bf16.mxu0 0
    %3131 = vmatmul.mubr.bf16.gmra.mrb[0].mxu0 %v3016
    %v3132 = vpop.f32.mrb[0].mxu0
    %v3133 = vadd.f32 0.0, %v3132
    %v3134 = vpop.f32.mrb[0].mxu0
    %v3135 = vadd.f32 0.0, %v3134
    %v3136 = vpop.f32.mrb[0].mxu0
    %v3137 = vadd.f32 0.0, %v3136
    %v3138 = vpop.f32.mrb[0].mxu0
    %v3139 = vadd.f32 0.0, %v3138
    %3140 = vmatprep.mubr.bf16.mxu0 0
    %3141 = vmatmul.mubr.bf16.gmra.mrb[0].mxu0 %v3019
    %v3142 = vpop.f32.mrb[0].mxu0
    %v3143 = vadd.f32 0.0, %v3142
    %v3144 = vpop.f32.mrb[0].mxu0
    %v3145 = vadd.f32 0.0, %v3144
    %v3146 = vpop.f32.mrb[0].mxu0
    %v3147 = vadd.f32 0.0, %v3146
    %v3148 = vpop.f32.mrb[0].mxu0
    %v3149 = vadd.f32 0.0, %v3148
    %3150 = vmatprep.mubr.bf16.mxu0 0
    %3151 = vmatmul.mubr.bf16.gmra.mrb[0].mxu0 %v3022
    %v3152 = vpop.f32.mrb[0].mxu0
    %v3153 = vadd.f32 0.0, %v3152
    %v3154 = vpop.f32.mrb[0].mxu0
    %v3155 = vadd.f32 0.0, %v3154
    %v3156 = vpop.f32.mrb[0].mxu0
    %v3157 = vadd.f32 0.0, %v3156
    %v3158 = vpop.f32.mrb[0].mxu0
    %v3159 = vadd.f32 0.0, %v3158
    %3160 = vmatprep.mubr.bf16.mxu0 0
    %3161 = vmatmul.mubr.bf16.gmra.mrb[0].mxu0 %v3025
    %v3162 = vpop.f32.mrb[0].mxu0
    %v3163 = vadd.f32 0.0, %v3162
    %v3164 = vpop.f32.mrb[0].mxu0
    %v3165 = vadd.f32 0.0, %v3164
    %v3166 = vpop.f32.mrb[0].mxu0
    %v3167 = vadd.f32 0.0, %v3166
    %v3168 = vpop.f32.mrb[0].mxu0
    %v3169 = vadd.f32 0.0, %v3168
    %3170 = vmatprep.mubr.bf16.mxu0 0
    %3171 = vmatmul.mubr.bf16.gmra.mrb[0].mxu0 %v3028
    %v3172 = vpop.f32.mrb[0].mxu0
    %v3173 = vadd.f32 0.0, %v3172
    %v3174 = vpop.f32.mrb[0].mxu0
    %v3175 = vadd.f32 0.0, %v3174
    %v3176 = vpop.f32.mrb[0].mxu0
    %v3177 = vadd.f32 0.0, %v3176
    %v3178 = vpop.f32.mrb[0].mxu0
    %v3179 = vadd.f32 0.0, %v3178
    %3180 = vmatprep.mubr.bf16.mxu0 0
    %3181 = vmatmul.mubr.bf16.gmra.mrb[0].mxu0 %v3031
    %v3182 = vpop.f32.mrb[0].mxu0
    %v3183 = vadd.f32 0.0, %v3182
    %v3184 = vpop.f32.mrb[0].mxu0
    %v3185 = vadd.f32 0.0, %v3184
    %v3186 = vpop.f32.mrb[0].mxu0
    %v3187 = vadd.f32 0.0, %v3186
    %v3188 = vpop.f32.mrb[0].mxu0
    %v3189 = vadd.f32 0.0, %v3188
    %3190 = vmatprep.mubr.bf16.mxu0 0
    %3191 = vmatmul.mubr.bf16.gmra.mrb[0].mxu0 %v3034
    %v3192 = vpop.f32.mrb[0].mxu0
    %v3193 = vadd.f32 0.0, %v3192
    %v3194 = vpop.f32.mrb[0].mxu0
    %v3195 = vadd.f32 0.0, %v3194
    %v3196 = vpop.f32.mrb[0].mxu0
    %v3197 = vadd.f32 0.0, %v3196
    %v3198 = vpop.f32.mrb[0].mxu0
    %v3199 = vadd.f32 0.0, %v3198
    %3200 = vmatprep.mubr.bf16.mxu0 0
    %3201 = vmatmul.mubr.bf16.gmra.mrb[0].mxu0 %v3037
    %v3202 = vpop.f32.mrb[0].mxu0
    %v3203 = vadd.f32 0.0, %v3202
    %v3204 = vpop.f32.mrb[0].mxu0
    %v3205 = vadd.f32 0.0, %v3204
    %v3206 = vpop.f32.mrb[0].mxu0
    %v3207 = vadd.f32 0.0, %v3206
    %v3208 = vpop.f32.mrb[0].mxu0
    %v3209 = vadd.f32 0.0, %v3208
    %3210 = vmatprep.mubr.bf16.mxu0 0
    %3211 = vmatmul.mubr.bf16.gmra.mrb[0].mxu0 %v3040
    %v3212 = vpop.f32.mrb[0].mxu0
    %v3213 = vadd.f32 0.0, %v3212
    %v3214 = vpop.f32.mrb[0].mxu0
    %v3215 = vadd.f32 0.0, %v3214
    %v3216 = vpop.f32.mrb[0].mxu0
    %v3217 = vadd.f32 0.0, %v3216
    %v3218 = vpop.f32.mrb[0].mxu0
    %v3219 = vadd.f32 0.0, %v3218
    %3220 = vmatprep.mubr.bf16.mxu0 0
    %3221 = vmatmul.mubr.bf16.gmra.mrb[0].mxu0 %v3043
    %v3222 = vpop.f32.mrb[0].mxu0
    %v3223 = vadd.f32 0.0, %v3222
    %v3224 = vpop.f32.mrb[0].mxu0
    %v3225 = vadd.f32 0.0, %v3224
    %v3226 = vpop.f32.mrb[0].mxu0
    %v3227 = vadd.f32 0.0, %v3226
    %v3228 = vpop.f32.mrb[0].mxu0
    %v3229 = vadd.f32 0.0, %v3228
    %3230 = vmatprep.mubr.bf16.mxu0 0
    %3231 = vmatmul.mubr.bf16.gmra.mrb[0].mxu0 %v3046
    %v3232 = vpop.f32.mrb[0].mxu0
    %v3233 = vadd.f32 0.0, %v3232
    %v3234 = vpop.f32.mrb[0].mxu0
    %v3235 = vadd.f32 0.0, %v3234
    %v3236 = vpop.f32.mrb[0].mxu0
    %v3237 = vadd.f32 0.0, %v3236
    %v3238 = vpop.f32.mrb[0].mxu0
    %v3239 = vadd.f32 0.0, %v3238
    %3240 = vdwg.mxu0
    %3241 = vmatprep.subr.bf16.mxu0 0
    %3242 = vmatpush1.bf16.msra.mxu0 %v2990
    %3243 = vmatprep.subr.bf16.mxu0 0
    %3244 = vmatpush1.bf16.msra.mxu0 %v2993
    %3245 = vmatprep.subr.bf16.mxu0 0
    %3246 = vmatpush1.bf16.msra.mxu0 0
    %3247 = vmatprep.subr.bf16.mxu0 0
    %3248 = vmatpush1.bf16.msra.mxu0 0
    %3249 = vmatprep.subr.bf16.mxu0 0
    %3250 = vmatpush1.bf16.msra.mxu0 0
    %3251 = vmatprep.subr.bf16.mxu0 0
    %3252 = vmatpush1.bf16.msra.mxu0 0
    %3253 = vmatprep.subr.bf16.mxu0 0
    %3254 = vmatpush1.bf16.msra.mxu0 0
    %3255 = vmatprep.subr.bf16.mxu0 0
    %3256 = vmatpush1.bf16.msra.mxu0 0
    %3257 = vmatprep.subr.bf16.mxu0 0
    %3258 = vmatpush1.bf16.msra.mxu0 0
    %3259 = vmatprep.subr.bf16.mxu0 0
    %3260 = vmatpush1.bf16.msra.mxu0 0
    %3261 = vmatprep.subr.bf16.mxu0 0
    %3262 = vmatpush1.bf16.msra.mxu0 0
    %3263 = vmatprep.subr.bf16.mxu0 0
    %3264 = vmatpush1.bf16.msra.mxu0 0
    %3265 = vmatprep.subr.bf16.mxu0 0
    %3266 = vmatpush1.bf16.msra.mxu0 0
    %3267 = vmatprep.subr.bf16.mxu0 0
    %3268 = vmatpush1.bf16.msra.mxu0 0
    %3269 = vmatprep.subr.bf16.mxu0 0
    %3270 = vmatpush1.bf16.msra.mxu0 0
    %3271 = vmatprep.subr.bf16.mxu0 0
    %3272 = vmatpush1.bf16.msra.mxu0 0
    %3273 = vmatprep.mubr.bf16.mxu0 0
    %3274 = vmatmul.mubr.bf16.gmra.mrb[0].mxu0 %v3001
    %v3275 = vpop.f32.mrb[0].mxu0
    %v3276 = vadd.f32 0.0, %v3275
    %v3277 = vpop.f32.mrb[0].mxu0
    %v3278 = vpop.f32.mrb[0].mxu0
    %v3279 = vadd.f32 0.0, %v3278
    %v3280 = vpop.f32.mrb[0].mxu0
    %3281 = vmatprep.mubr.bf16.mxu0 0
    %3282 = vmatmul.mubr.bf16.gmra.mrb[0].mxu0 %v3004
    %v3283 = vpop.f32.mrb[0].mxu0
    %v3284 = vadd.f32 0.0, %v3283
    %v3285 = vpop.f32.mrb[0].mxu0
    %v3286 = vpop.f32.mrb[0].mxu0
    %v3287 = vadd.f32 0.0, %v3286
    %v3288 = vpop.f32.mrb[0].mxu0
    %3289 = vmatprep.mubr.bf16.mxu0 0
    %3290 = vmatmul.mubr.bf16.gmra.mrb[0].mxu0 %v3007
    %v3291 = vpop.f32.mrb[0].mxu0
    %v3292 = vadd.f32 0.0, %v3291
    %v3293 = vpop.f32.mrb[0].mxu0
    %v3294 = vpop.f32.mrb[0].mxu0
    %v3295 = vadd.f32 0.0, %v3294
    %v3296 = vpop.f32.mrb[0].mxu0
    %3297 = vmatprep.mubr.bf16.mxu0 0
    %3298 = vmatmul.mubr.bf16.gmra.mrb[0].mxu0 %v3010
    %v3299 = vpop.f32.mrb[0].mxu0
    %v3300 = vadd.f32 0.0, %v3299
    %v3301 = vpop.f32.mrb[0].mxu0
    %v3302 = vpop.f32.mrb[0].mxu0
    %v3303 = vadd.f32 0.0, %v3302
    %v3304 = vpop.f32.mrb[0].mxu0
    %3305 = vmatprep.mubr.bf16.mxu0 0
    %3306 = vmatmul.mubr.bf16.gmra.mrb[0].mxu0 %v3013
    %v3307 = vpop.f32.mrb[0].mxu0
    %v3308 = vadd.f32 0.0, %v3307
    %v3309 = vpop.f32.mrb[0].mxu0
    %v3310 = vpop.f32.mrb[0].mxu0
    %v3311 = vadd.f32 0.0, %v3310
    %v3312 = vpop.f32.mrb[0].mxu0
    %3313 = vmatprep.mubr.bf16.mxu0 0
    %3314 = vmatmul.mubr.bf16.gmra.mrb[0].mxu0 %v3016
    %v3315 = vpop.f32.mrb[0].mxu0
    %v3316 = vadd.f32 0.0, %v3315
    %v3317 = vpop.f32.mrb[0].mxu0
    %v3318 = vpop.f32.mrb[0].mxu0
    %v3319 = vadd.f32 0.0, %v3318
    %v3320 = vpop.f32.mrb[0].mxu0
    %3321 = vmatprep.mubr.bf16.mxu0 0
    %3322 = vmatmul.mubr.bf16.gmra.mrb[0].mxu0 %v3019
    %v3323 = vpop.f32.mrb[0].mxu0
    %v3324 = vadd.f32 0.0, %v3323
    %v3325 = vpop.f32.mrb[0].mxu0
    %v3326 = vpop.f32.mrb[0].mxu0
    %v3327 = vadd.f32 0.0, %v3326
    %v3328 = vpop.f32.mrb[0].mxu0
    %3329 = vmatprep.mubr.bf16.mxu0 0
    %3330 = vmatmul.mubr.bf16.gmra.mrb[0].mxu0 %v3022
    %v3331 = vpop.f32.mrb[0].mxu0
    %v3332 = vadd.f32 0.0, %v3331
    %v3333 = vpop.f32.mrb[0].mxu0
    %v3334 = vpop.f32.mrb[0].mxu0
    %v3335 = vadd.f32 0.0, %v3334
    %v3336 = vpop.f32.mrb[0].mxu0
    %3337 = vmatprep.mubr.bf16.mxu0 0
    %3338 = vmatmul.mubr.bf16.gmra.mrb[0].mxu0 %v3025
    %v3339 = vpop.f32.mrb[0].mxu0
    %v3340 = vadd.f32 0.0, %v3339
    %v3341 = vpop.f32.mrb[0].mxu0
    %v3342 = vpop.f32.mrb[0].mxu0
    %v3343 = vadd.f32 0.0, %v3342
    %v3344 = vpop.f32.mrb[0].mxu0
    %3345 = vmatprep.mubr.bf16.mxu0 0
    %3346 = vmatmul.mubr.bf16.gmra.mrb[0].mxu0 %v3028
    %v3347 = vpop.f32.mrb[0].mxu0
    %v3348 = vadd.f32 0.0, %v3347
    %v3349 = vpop.f32.mrb[0].mxu0
    %v3350 = vpop.f32.mrb[0].mxu0
    %v3351 = vadd.f32 0.0, %v3350
    %v3352 = vpop.f32.mrb[0].mxu0
    %3353 = vmatprep.mubr.bf16.mxu0 0
    %3354 = vmatmul.mubr.bf16.gmra.mrb[0].mxu0 %v3031
    %v3355 = vpop.f32.mrb[0].mxu0
    %v3356 = vadd.f32 0.0, %v3355
    %v3357 = vpop.f32.mrb[0].mxu0
    %v3358 = vpop.f32.mrb[0].mxu0
    %v3359 = vadd.f32 0.0, %v3358
    %v3360 = vpop.f32.mrb[0].mxu0
    %3361 = vmatprep.mubr.bf16.mxu0 0
    %3362 = vmatmul.mubr.bf16.gmra.mrb[0].mxu0 %v3034
    %v3363 = vpop.f32.mrb[0].mxu0
    %v3364 = vadd.f32 0.0, %v3363
    %v3365 = vpop.f32.mrb[0].mxu0
    %v3366 = vpop.f32.mrb[0].mxu0
    %v3367 = vadd.f32 0.0, %v3366
    %v3368 = vpop.f32.mrb[0].mxu0
    %3369 = vmatprep.mubr.bf16.mxu0 0
    %3370 = vmatmul.mubr.bf16.gmra.mrb[0].mxu0 %v3037
    %v3371 = vpop.f32.mrb[0].mxu0
    %v3372 = vadd.f32 0.0, %v3371
    %v3373 = vpop.f32.mrb[0].mxu0
    %v3374 = vpop.f32.mrb[0].mxu0
    %v3375 = vadd.f32 0.0, %v3374
    %v3376 = vpop.f32.mrb[0].mxu0
    %3377 = vmatprep.mubr.bf16.mxu0 0
    %3378 = vmatmul.mubr.bf16.gmra.mrb[0].mxu0 %v3040
    %v3379 = vpop.f32.mrb[0].mxu0
    %v3380 = vadd.f32 0.0, %v3379
    %v3381 = vpop.f32.mrb[0].mxu0
    %v3382 = vpop.f32.mrb[0].mxu0
    %v3383 = vadd.f32 0.0, %v3382
    %v3384 = vpop.f32.mrb[0].mxu0
    %3385 = vmatprep.mubr.bf16.mxu0 0
    %3386 = vmatmul.mubr.bf16.gmra.mrb[0].mxu0 %v3043
    %v3387 = vpop.f32.mrb[0].mxu0
    %v3388 = vadd.f32 0.0, %v3387
    %v3389 = vpop.f32.mrb[0].mxu0
    %v3390 = vpop.f32.mrb[0].mxu0
    %v3391 = vadd.f32 0.0, %v3390
    %v3392 = vpop.f32.mrb[0].mxu0
    %3393 = vmatprep.mubr.bf16.mxu0 0
    %3394 = vmatmul.mubr.bf16.gmra.mrb[0].mxu0 %v3046
    %v3395 = vpop.f32.mrb[0].mxu0
    %v3396 = vadd.f32 0.0, %v3395
    %v3397 = vpop.f32.mrb[0].mxu0
    %v3398 = vpop.f32.mrb[0].mxu0
    %v3399 = vadd.f32 0.0, %v3398
    %v3400 = vpop.f32.mrb[0].mxu0
    %3401 = vdwg.mxu0
    %s3402 = scalar_lea.vmem %s4, 2
    %v3403 = vld [vmem:[%s3402] sm:$0x1]
    %v3405 = vlaneseq
    %v3406 = vshrl.u32 %v3405, 7
    %v3407 = vsub.s32 0, %v3406
    %v3408 = vrot.slane %v3403, %v3407
    %v3410 = vadd.f32 %v3085, %v3408
    %v3411 = vadd.f32 %v3089, %v3408
    %v3412 = vadd.f32 %v3095, %v3408
    %v3413 = vadd.f32 %v3099, %v3408
    %v3414 = vadd.f32 %v3105, %v3408
    %v3415 = vadd.f32 %v3109, %v3408
    %v3416 = vadd.f32 %v3115, %v3408
    %v3417 = vadd.f32 %v3119, %v3408
    %v3418 = vadd.f32 %v3125, %v3408
    %v3419 = vadd.f32 %v3129, %v3408
    %v3420 = vadd.f32 %v3135, %v3408
    %v3421 = vadd.f32 %v3139, %v3408
    %v3422 = vadd.f32 %v3145, %v3408
    %v3423 = vadd.f32 %v3149, %v3408
    %v3424 = vadd.f32 %v3155, %v3408
    %v3425 = vadd.f32 %v3159, %v3408
    %v3426 = vadd.f32 %v3165, %v3408
    %v3427 = vadd.f32 %v3169, %v3408
    %v3428 = vadd.f32 %v3175, %v3408
    %v3429 = vadd.f32 %v3179, %v3408
    %v3430 = vadd.f32 %v3185, %v3408
    %v3431 = vadd.f32 %v3189, %v3408
    %v3432 = vadd.f32 %v3195, %v3408
    %v3433 = vadd.f32 %v3199, %v3408
    %v3434 = vadd.f32 %v3205, %v3408
    %v3435 = vadd.f32 %v3209, %v3408
    %v3436 = vadd.f32 %v3215, %v3408
    %v3437 = vadd.f32 %v3219, %v3408
    %v3438 = vadd.f32 %v3225, %v3408
    %v3439 = vadd.f32 %v3229, %v3408
    %v3440 = vadd.f32 %v3235, %v3408
    %v3441 = vadd.f32 %v3239, %v3408
    %v3442 = vrot.slane %v3083, 4
    %v3443 = vrot.slane %v3087, 4
    %v3444 = vrot.slane %v3093, 4
    %v3445 = vrot.slane %v3097, 4
    %v3446 = vrot.slane %v3103, 4
    %v3447 = vrot.slane %v3107, 4
    %v3448 = vrot.slane %v3113, 4
    %v3449 = vrot.slane %v3117, 4
    %v3450 = vrot.slane %v3123, 4
    %v3451 = vrot.slane %v3127, 4
    %v3452 = vrot.slane %v3133, 4
    %v3453 = vrot.slane %v3137, 4
    %v3454 = vrot.slane %v3143, 4
    %v3455 = vrot.slane %v3147, 4
    %v3456 = vrot.slane %v3153, 4
    %v3457 = vrot.slane %v3157, 4
    %v3458 = vrot.slane %v3163, 4
    %v3459 = vrot.slane %v3167, 4
    %v3460 = vrot.slane %v3173, 4
    %v3461 = vrot.slane %v3177, 4
    %v3462 = vrot.slane %v3183, 4
    %v3463 = vrot.slane %v3187, 4
    %v3464 = vrot.slane %v3193, 4
    %v3465 = vrot.slane %v3197, 4
    %v3466 = vrot.slane %v3203, 4
    %v3467 = vrot.slane %v3207, 4
    %v3468 = vrot.slane %v3213, 4
    %v3469 = vrot.slane %v3217, 4
    %v3470 = vrot.slane %v3223, 4
    %v3471 = vrot.slane %v3227, 4
    %v3472 = vrot.slane %v3233, 4
    %v3473 = vrot.slane %v3237, 4
    %v3474 = vsel %vm1387, %v3472, %v3473
    %v3475 = vsel %vm1387, %v3471, %v3472
    %v3476 = vsel %vm1387, %v3470, %v3471
    %v3477 = vsel %vm1387, %v3469, %v3470
    %v3478 = vsel %vm1387, %v3468, %v3469
    %v3479 = vsel %vm1387, %v3467, %v3468
    %v3480 = vsel %vm1387, %v3466, %v3467
    %v3481 = vsel %vm1387, %v3465, %v3466
    %v3482 = vsel %vm1387, %v3464, %v3465
    %v3483 = vsel %vm1387, %v3463, %v3464
    %v3484 = vsel %vm1387, %v3462, %v3463
    %v3485 = vsel %vm1387, %v3461, %v3462
    %v3486 = vsel %vm1387, %v3460, %v3461
    %v3487 = vsel %vm1387, %v3459, %v3460
    %v3488 = vsel %vm1387, %v3458, %v3459
    %v3489 = vsel %vm1387, %v3457, %v3458
    %v3490 = vsel %vm1387, %v3456, %v3457
    %v3491 = vsel %vm1387, %v3455, %v3456
    %v3492 = vsel %vm1387, %v3454, %v3455
    %v3493 = vsel %vm1387, %v3453, %v3454
    %v3494 = vsel %vm1387, %v3452, %v3453
    %v3495 = vsel %vm1387, %v3451, %v3452
    %v3496 = vsel %vm1387, %v3450, %v3451
    %v3497 = vsel %vm1387, %v3449, %v3450
    %v3498 = vsel %vm1387, %v3448, %v3449
    %v3499 = vsel %vm1387, %v3447, %v3448
    %v3500 = vsel %vm1387, %v3446, %v3447
    %v3501 = vsel %vm1387, %v3445, %v3446
    %v3502 = vsel %vm1387, %v3444, %v3445
    %v3503 = vsel %vm1387, %v3443, %v3444
    %v3504 = vsel %vm1387, %v3442, %v3443
    %v3505 = vsel %vm1387, %v3473, %v3442
    %v3506 = vsel %vm1452, %v3505, 0.0
    %v3507 = vsel %vm1453, %v3504, 0.0
    %v3508 = vsel %vm1454, %v3503, 0.0
    %v3509 = vsel %vm1455, %v3502, 0.0
    %v3510 = vsel %vm1456, %v3501, 0.0
    %v3511 = vsel %vm1457, %v3500, 0.0
    %v3512 = vsel %vm1458, %v3499, 0.0
    %v3513 = vsel %vm1459, %v3498, 0.0
    %v3514 = vsel %vm1460, %v3497, 0.0
    %v3515 = vsel %vm1461, %v3496, 0.0
    %v3516 = vsel %vm1462, %v3495, 0.0
    %v3517 = vsel %vm1463, %v3494, 0.0
    %v3518 = vsel %vm1464, %v3493, 0.0
    %v3519 = vsel %vm1465, %v3492, 0.0
    %v3520 = vsel %vm1466, %v3491, 0.0
    %v3521 = vsel %vm1467, %v3490, 0.0
    %v3522 = vsel %vm1468, %v3489, 0.0
    %v3523 = vsel %vm1469, %v3488, 0.0
    %v3524 = vsel %vm1470, %v3487, 0.0
    %v3525 = vsel %vm1471, %v3486, 0.0
    %v3526 = vsel %vm1472, %v3485, 0.0
    %v3527 = vsel %vm1473, %v3484, 0.0
    %v3528 = vsel %vm1474, %v3483, 0.0
    %v3529 = vsel %vm1475, %v3482, 0.0
    %v3530 = vsel %vm1476, %v3481, 0.0
    %v3531 = vsel %vm1477, %v3480, 0.0
    %v3532 = vsel %vm1478, %v3479, 0.0
    %v3533 = vsel %vm1479, %v3478, 0.0
    %v3534 = vsel %vm1480, %v3477, 0.0
    %v3535 = vsel %vm1481, %v3476, 0.0
    %v3536 = vsel %vm1482, %v3475, 0.0
    %v3537 = vsel %vm1483, %v3474, 0.0
    %v3538 = vadd.f32 %v3410, %v3506
    %v3539 = vadd.f32 %v3411, %v3507
    %v3540 = vadd.f32 %v3412, %v3508
    %v3541 = vadd.f32 %v3413, %v3509
    %v3542 = vadd.f32 %v3414, %v3510
    %v3543 = vadd.f32 %v3415, %v3511
    %v3544 = vadd.f32 %v3416, %v3512
    %v3545 = vadd.f32 %v3417, %v3513
    %v3546 = vadd.f32 %v3418, %v3514
    %v3547 = vadd.f32 %v3419, %v3515
    %v3548 = vadd.f32 %v3420, %v3516
    %v3549 = vadd.f32 %v3421, %v3517
    %v3550 = vadd.f32 %v3422, %v3518
    %v3551 = vadd.f32 %v3423, %v3519
    %v3552 = vadd.f32 %v3424, %v3520
    %v3553 = vadd.f32 %v3425, %v3521
    %v3554 = vadd.f32 %v3426, %v3522
    %v3555 = vadd.f32 %v3427, %v3523
    %v3556 = vadd.f32 %v3428, %v3524
    %v3557 = vadd.f32 %v3429, %v3525
    %v3558 = vadd.f32 %v3430, %v3526
    %v3559 = vadd.f32 %v3431, %v3527
    %v3560 = vadd.f32 %v3432, %v3528
    %v3561 = vadd.f32 %v3433, %v3529
    %v3562 = vadd.f32 %v3434, %v3530
    %v3563 = vadd.f32 %v3435, %v3531
    %v3564 = vadd.f32 %v3436, %v3532
    %v3565 = vadd.f32 %v3437, %v3533
    %v3566 = vadd.f32 %v3438, %v3534
    %v3567 = vadd.f32 %v3439, %v3535
    %v3568 = vadd.f32 %v3440, %v3536
    %v3569 = vadd.f32 %v3441, %v3537
    %v3570 = vrot.slane %v3276, 4
    %v3571 = vrot.slane %v3279, 4
    %v3572 = vrot.slane %v3284, 4
    %v3573 = vrot.slane %v3287, 4
    %v3574 = vrot.slane %v3292, 4
    %v3575 = vrot.slane %v3295, 4
    %v3576 = vrot.slane %v3300, 4
    %v3577 = vrot.slane %v3303, 4
    %v3578 = vrot.slane %v3308, 4
    %v3579 = vrot.slane %v3311, 4
    %v3580 = vrot.slane %v3316, 4
    %v3581 = vrot.slane %v3319, 4
    %v3582 = vrot.slane %v3324, 4
    %v3583 = vrot.slane %v3327, 4
    %v3584 = vrot.slane %v3332, 4
    %v3585 = vrot.slane %v3335, 4
    %v3586 = vrot.slane %v3340, 4
    %v3587 = vrot.slane %v3343, 4
    %v3588 = vrot.slane %v3348, 4
    %v3589 = vrot.slane %v3351, 4
    %v3590 = vrot.slane %v3356, 4
    %v3591 = vrot.slane %v3359, 4
    %v3592 = vrot.slane %v3364, 4
    %v3593 = vrot.slane %v3367, 4
    %v3594 = vrot.slane %v3372, 4
    %v3595 = vrot.slane %v3375, 4
    %v3596 = vrot.slane %v3380, 4
    %v3597 = vrot.slane %v3383, 4
    %v3598 = vrot.slane %v3388, 4
    %v3599 = vrot.slane %v3391, 4
    %v3600 = vrot.slane %v3396, 4
    %v3601 = vrot.slane %v3399, 4
    %v3602 = vsel %vm1387, %v3600, %v3601
    %v3603 = vsel %vm1387, %v3599, %v3600
    %v3604 = vsel %vm1387, %v3598, %v3599
    %v3605 = vsel %vm1387, %v3597, %v3598
    %v3606 = vsel %vm1387, %v3596, %v3597
    %v3607 = vsel %vm1387, %v3595, %v3596
    %v3608 = vsel %vm1387, %v3594, %v3595
    %v3609 = vsel %vm1387, %v3593, %v3594
    %v3610 = vsel %vm1387, %v3592, %v3593
    %v3611 = vsel %vm1387, %v3591, %v3592
    %v3612 = vsel %vm1387, %v3590, %v3591
    %v3613 = vsel %vm1387, %v3589, %v3590
    %v3614 = vsel %vm1387, %v3588, %v3589
    %v3615 = vsel %vm1387, %v3587, %v3588
    %v3616 = vsel %vm1387, %v3586, %v3587
    %v3617 = vsel %vm1387, %v3585, %v3586
    %v3618 = vsel %vm1387, %v3584, %v3585
    %v3619 = vsel %vm1387, %v3583, %v3584
    %v3620 = vsel %vm1387, %v3582, %v3583
    %v3621 = vsel %vm1387, %v3581, %v3582
    %v3622 = vsel %vm1387, %v3580, %v3581
    %v3623 = vsel %vm1387, %v3579, %v3580
    %v3624 = vsel %vm1387, %v3578, %v3579
    %v3625 = vsel %vm1387, %v3577, %v3578
    %v3626 = vsel %vm1387, %v3576, %v3577
    %v3627 = vsel %vm1387, %v3575, %v3576
    %v3628 = vsel %vm1387, %v3574, %v3575
    %v3629 = vsel %vm1387, %v3573, %v3574
    %v3630 = vsel %vm1387, %v3572, %v3573
    %v3631 = vsel %vm1387, %v3571, %v3572
    %v3632 = vsel %vm1387, %v3570, %v3571
    %v3633 = vsel %vm1387, %v3601, %v3570
    %v3634 = vsel %vm1644, %v3632, 0.0
    %v3635 = vsel %vm1645, %v3631, 0.0
    %v3636 = vsel %vm1646, %v3630, 0.0
    %v3637 = vsel %vm1647, %v3629, 0.0
    %v3638 = vsel %vm1648, %v3628, 0.0
    %v3639 = vsel %vm1649, %v3627, 0.0
    %v3640 = vsel %vm1650, %v3626, 0.0
    %v3641 = vsel %vm1651, %v3625, 0.0
    %v3642 = vsel %vm1652, %v3624, 0.0
    %v3643 = vsel %vm1653, %v3623, 0.0
    %v3644 = vsel %vm1654, %v3622, 0.0
    %v3645 = vsel %vm1655, %v3621, 0.0
    %v3646 = vsel %vm1656, %v3620, 0.0
    %v3647 = vsel %vm1657, %v3619, 0.0
    %v3648 = vsel %vm1658, %v3618, 0.0
    %v3649 = vsel %vm1659, %v3617, 0.0
    %v3650 = vsel %vm1660, %v3616, 0.0
    %v3651 = vsel %vm1661, %v3615, 0.0
    %v3652 = vsel %vm1662, %v3614, 0.0
    %v3653 = vsel %vm1663, %v3613, 0.0
    %v3654 = vsel %vm1664, %v3612, 0.0
    %v3655 = vsel %vm1665, %v3611, 0.0
    %v3656 = vsel %vm1666, %v3610, 0.0
    %v3657 = vsel %vm1667, %v3609, 0.0
    %v3658 = vsel %vm1668, %v3608, 0.0
    %v3659 = vsel %vm1669, %v3607, 0.0
    %v3660 = vsel %vm1670, %v3606, 0.0
    %v3661 = vsel %vm1671, %v3605, 0.0
    %v3662 = vsel %vm1672, %v3604, 0.0
    %v3663 = vsel %vm1673, %v3603, 0.0
    %v3664 = vsel %vm1674, %v3602, 0.0
    %v3665 = vsel %vm1675, %v3633, 0.0
    %v3666 = vadd.f32 %v3538, %v3634
    %v3667 = vadd.f32 %v3539, %v3635
    %v3668 = vadd.f32 %v3540, %v3636
    %v3669 = vadd.f32 %v3541, %v3637
    %v3670 = vadd.f32 %v3542, %v3638
    %v3671 = vadd.f32 %v3543, %v3639
    %v3672 = vadd.f32 %v3544, %v3640
    %v3673 = vadd.f32 %v3545, %v3641
    %v3674 = vadd.f32 %v3546, %v3642
    %v3675 = vadd.f32 %v3547, %v3643
    %v3676 = vadd.f32 %v3548, %v3644
    %v3677 = vadd.f32 %v3549, %v3645
    %v3678 = vadd.f32 %v3550, %v3646
    %v3679 = vadd.f32 %v3551, %v3647
    %v3680 = vadd.f32 %v3552, %v3648
    %v3681 = vadd.f32 %v3553, %v3649
    %v3682 = vadd.f32 %v3554, %v3650
    %v3683 = vadd.f32 %v3555, %v3651
    %v3684 = vadd.f32 %v3556, %v3652
    %v3685 = vadd.f32 %v3557, %v3653
    %v3686 = vadd.f32 %v3558, %v3654
    %v3687 = vadd.f32 %v3559, %v3655
    %v3688 = vadd.f32 %v3560, %v3656
    %v3689 = vadd.f32 %v3561, %v3657
    %v3690 = vadd.f32 %v3562, %v3658
    %v3691 = vadd.f32 %v3563, %v3659
    %v3692 = vadd.f32 %v3564, %v3660
    %v3693 = vadd.f32 %v3565, %v3661
    %v3694 = vadd.f32 %v3566, %v3662
    %v3695 = vadd.f32 %v3567, %v3663
    %v3696 = vadd.f32 %v3568, %v3664
    %v3697 = vadd.f32 %v3569, %v3665
    %vm3698 = vcmp.gt.f32.partialorder %v3666, 0.0
    %vm3699 = vcmp.gt.f32.partialorder %v3667, 0.0
    %vm3700 = vcmp.gt.f32.partialorder %v3668, 0.0
    %vm3701 = vcmp.gt.f32.partialorder %v3669, 0.0
    %vm3702 = vcmp.gt.f32.partialorder %v3670, 0.0
    %vm3703 = vcmp.gt.f32.partialorder %v3671, 0.0
    %vm3704 = vcmp.gt.f32.partialorder %v3672, 0.0
    %vm3705 = vcmp.gt.f32.partialorder %v3673, 0.0
    %vm3706 = vcmp.gt.f32.partialorder %v3674, 0.0
    %vm3707 = vcmp.gt.f32.partialorder %v3675, 0.0
    %vm3708 = vcmp.gt.f32.partialorder %v3676, 0.0
    %vm3709 = vcmp.gt.f32.partialorder %v3677, 0.0
    %vm3710 = vcmp.gt.f32.partialorder %v3678, 0.0
    %vm3711 = vcmp.gt.f32.partialorder %v3679, 0.0
    %vm3712 = vcmp.gt.f32.partialorder %v3680, 0.0
    %vm3713 = vcmp.gt.f32.partialorder %v3681, 0.0
    %vm3714 = vcmp.gt.f32.partialorder %v3682, 0.0
    %vm3715 = vcmp.gt.f32.partialorder %v3683, 0.0
    %vm3716 = vcmp.gt.f32.partialorder %v3684, 0.0
    %vm3717 = vcmp.gt.f32.partialorder %v3685, 0.0
    %vm3718 = vcmp.gt.f32.partialorder %v3686, 0.0
    %vm3719 = vcmp.gt.f32.partialorder %v3687, 0.0
    %vm3720 = vcmp.gt.f32.partialorder %v3688, 0.0
    %vm3721 = vcmp.gt.f32.partialorder %v3689, 0.0
    %vm3722 = vcmp.gt.f32.partialorder %v3690, 0.0
    %vm3723 = vcmp.gt.f32.partialorder %v3691, 0.0
    %vm3724 = vcmp.gt.f32.partialorder %v3692, 0.0
    %vm3725 = vcmp.gt.f32.partialorder %v3693, 0.0
    %vm3726 = vcmp.gt.f32.partialorder %v3694, 0.0
    %vm3727 = vcmp.gt.f32.partialorder %v3695, 0.0
    %vm3728 = vcmp.gt.f32.partialorder %v3696, 0.0
    %vm3729 = vcmp.gt.f32.partialorder %v3697, 0.0
    %v3730 = vmin.f32 %v3666, 0.0
    %v3731 = vmin.f32 %v3667, 0.0
    %v3732 = vmin.f32 %v3668, 0.0
    %v3733 = vmin.f32 %v3669, 0.0
    %v3734 = vmin.f32 %v3670, 0.0
    %v3735 = vmin.f32 %v3671, 0.0
    %v3736 = vmin.f32 %v3672, 0.0
    %v3737 = vmin.f32 %v3673, 0.0
    %v3738 = vmin.f32 %v3674, 0.0
    %v3739 = vmin.f32 %v3675, 0.0
    %v3740 = vmin.f32 %v3676, 0.0
    %v3741 = vmin.f32 %v3677, 0.0
    %v3742 = vmin.f32 %v3678, 0.0
    %v3743 = vmin.f32 %v3679, 0.0
    %v3744 = vmin.f32 %v3680, 0.0
    %v3745 = vmin.f32 %v3681, 0.0
    %v3746 = vmin.f32 %v3682, 0.0
    %v3747 = vmin.f32 %v3683, 0.0
    %v3748 = vmin.f32 %v3684, 0.0
    %v3749 = vmin.f32 %v3685, 0.0
    %v3750 = vmin.f32 %v3686, 0.0
    %v3751 = vmin.f32 %v3687, 0.0
    %v3752 = vmin.f32 %v3688, 0.0
    %v3753 = vmin.f32 %v3689, 0.0
    %v3754 = vmin.f32 %v3690, 0.0
    %v3755 = vmin.f32 %v3691, 0.0
    %v3756 = vmin.f32 %v3692, 0.0
    %v3757 = vmin.f32 %v3693, 0.0
    %v3758 = vmin.f32 %v3694, 0.0
    %v3759 = vmin.f32 %v3695, 0.0
    %v3760 = vmin.f32 %v3696, 0.0
    %v3761 = vmin.f32 %v3697, 0.0
    %v3762 = vmul.f32 %v3730, 1.442695
    %v3763 = vpow.pop %v3762
    %v3764 = vmul.f32 %v3731, 1.442695
    %v3765 = vpow.pop %v3764
    %v3766 = vmul.f32 %v3732, 1.442695
    %v3767 = vpow.pop %v3766
    %v3768 = vmul.f32 %v3733, 1.442695
    %v3769 = vpow.pop %v3768
    %v3770 = vmul.f32 %v3734, 1.442695
    %v3771 = vpow.pop %v3770
    %v3772 = vmul.f32 %v3735, 1.442695
    %v3773 = vpow.pop %v3772
    %v3774 = vmul.f32 %v3736, 1.442695
    %v3775 = vpow.pop %v3774
    %v3776 = vmul.f32 %v3737, 1.442695
    %v3777 = vpow.pop %v3776
    %v3778 = vmul.f32 %v3738, 1.442695
    %v3779 = vpow.pop %v3778
    %v3780 = vmul.f32 %v3739, 1.442695
    %v3781 = vpow.pop %v3780
    %v3782 = vmul.f32 %v3740, 1.442695
    %v3783 = vpow.pop %v3782
    %v3784 = vmul.f32 %v3741, 1.442695
    %v3785 = vpow.pop %v3784
    %v3786 = vmul.f32 %v3742, 1.442695
    %v3787 = vpow.pop %v3786
    %v3788 = vmul.f32 %v3743, 1.442695
    %v3789 = vpow.pop %v3788
    %v3790 = vmul.f32 %v3744, 1.442695
    %v3791 = vpow.pop %v3790
    %v3792 = vmul.f32 %v3745, 1.442695
    %v3793 = vpow.pop %v3792
    %v3794 = vmul.f32 %v3746, 1.442695
    %v3795 = vpow.pop %v3794
    %v3796 = vmul.f32 %v3747, 1.442695
    %v3797 = vpow.pop %v3796
    %v3798 = vmul.f32 %v3748, 1.442695
    %v3799 = vpow.pop %v3798
    %v3800 = vmul.f32 %v3749, 1.442695
    %v3801 = vpow.pop %v3800
    %v3802 = vmul.f32 %v3750, 1.442695
    %v3803 = vpow.pop %v3802
    %v3804 = vmul.f32 %v3751, 1.442695
    %v3805 = vpow.pop %v3804
    %v3806 = vmul.f32 %v3752, 1.442695
    %v3807 = vpow.pop %v3806
    %v3808 = vmul.f32 %v3753, 1.442695
    %v3809 = vpow.pop %v3808
    %v3810 = vmul.f32 %v3754, 1.442695
    %v3811 = vpow.pop %v3810
    %v3812 = vmul.f32 %v3755, 1.442695
    %v3813 = vpow.pop %v3812
    %v3814 = vmul.f32 %v3756, 1.442695
    %v3815 = vpow.pop %v3814
    %v3816 = vmul.f32 %v3757, 1.442695
    %v3817 = vpow.pop %v3816
    %v3818 = vmul.f32 %v3758, 1.442695
    %v3819 = vpow.pop %v3818
    %v3820 = vmul.f32 %v3759, 1.442695
    %v3821 = vpow.pop %v3820
    %v3822 = vmul.f32 %v3760, 1.442695
    %v3823 = vpow.pop %v3822
    %v3824 = vmul.f32 %v3761, 1.442695
    %v3825 = vpow.pop %v3824
    %v3826 = vsub.f32 %v3763, 1.0
    %v3827 = vsub.f32 %v3765, 1.0
    %v3828 = vsub.f32 %v3767, 1.0
    %v3829 = vsub.f32 %v3769, 1.0
    %v3830 = vsub.f32 %v3771, 1.0
    %v3831 = vsub.f32 %v3773, 1.0
    %v3832 = vsub.f32 %v3775, 1.0
    %v3833 = vsub.f32 %v3777, 1.0
    %v3834 = vsub.f32 %v3779, 1.0
    %v3835 = vsub.f32 %v3781, 1.0
    %v3836 = vsub.f32 %v3783, 1.0
    %v3837 = vsub.f32 %v3785, 1.0
    %v3838 = vsub.f32 %v3787, 1.0
    %v3839 = vsub.f32 %v3789, 1.0
    %v3840 = vsub.f32 %v3791, 1.0
    %v3841 = vsub.f32 %v3793, 1.0
    %v3842 = vsub.f32 %v3795, 1.0
    %v3843 = vsub.f32 %v3797, 1.0
    %v3844 = vsub.f32 %v3799, 1.0
    %v3845 = vsub.f32 %v3801, 1.0
    %v3846 = vsub.f32 %v3803, 1.0
    %v3847 = vsub.f32 %v3805, 1.0
    %v3848 = vsub.f32 %v3807, 1.0
    %v3849 = vsub.f32 %v3809, 1.0
    %v3850 = vsub.f32 %v3811, 1.0
    %v3851 = vsub.f32 %v3813, 1.0
    %v3852 = vsub.f32 %v3815, 1.0
    %v3853 = vsub.f32 %v3817, 1.0
    %v3854 = vsub.f32 %v3819, 1.0
    %v3855 = vsub.f32 %v3821, 1.0
    %v3856 = vsub.f32 %v3823, 1.0
    %v3857 = vsub.f32 %v3825, 1.0
    %v3858 = vsel %vm3698, %v3666, %v3826
    %v3859 = vsel %vm3699, %v3667, %v3827
    %v3860 = vsel %vm3700, %v3668, %v3828
    %v3861 = vsel %vm3701, %v3669, %v3829
    %v3862 = vsel %vm3702, %v3670, %v3830
    %v3863 = vsel %vm3703, %v3671, %v3831
    %v3864 = vsel %vm3704, %v3672, %v3832
    %v3865 = vsel %vm3705, %v3673, %v3833
    %v3866 = vsel %vm3706, %v3674, %v3834
    %v3867 = vsel %vm3707, %v3675, %v3835
    %v3868 = vsel %vm3708, %v3676, %v3836
    %v3869 = vsel %vm3709, %v3677, %v3837
    %v3870 = vsel %vm3710, %v3678, %v3838
    %v3871 = vsel %vm3711, %v3679, %v3839
    %v3872 = vsel %vm3712, %v3680, %v3840
    %v3873 = vsel %vm3713, %v3681, %v3841
    %v3874 = vsel %vm3714, %v3682, %v3842
    %v3875 = vsel %vm3715, %v3683, %v3843
    %v3876 = vsel %vm3716, %v3684, %v3844
    %v3877 = vsel %vm3717, %v3685, %v3845
    %v3878 = vsel %vm3718, %v3686, %v3846
    %v3879 = vsel %vm3719, %v3687, %v3847
    %v3880 = vsel %vm3720, %v3688, %v3848
    %v3881 = vsel %vm3721, %v3689, %v3849
    %v3882 = vsel %vm3722, %v3690, %v3850
    %v3883 = vsel %vm3723, %v3691, %v3851
    %v3884 = vsel %vm3724, %v3692, %v3852
    %v3885 = vsel %vm3725, %v3693, %v3853
    %v3886 = vsel %vm3726, %v3694, %v3854
    %v3887 = vsel %vm3727, %v3695, %v3855
    %v3888 = vsel %vm3728, %v3696, %v3856
    %v3889 = vsel %vm3729, %v3697, %v3857
    %v3890 = vadd.f32 %v2911, %v3858
    %v3891 = vadd.f32 %v2912, %v3859
    %v3892 = vadd.f32 %v2913, %v3860
    %v3893 = vadd.f32 %v2914, %v3861
    %v3894 = vadd.f32 %v2915, %v3862
    %v3895 = vadd.f32 %v2916, %v3863
    %v3896 = vadd.f32 %v2917, %v3864
    %v3897 = vadd.f32 %v2918, %v3865
    %v3898 = vadd.f32 %v2919, %v3866
    %v3899 = vadd.f32 %v2920, %v3867
    %v3900 = vadd.f32 %v2921, %v3868
    %v3901 = vadd.f32 %v2922, %v3869
    %v3902 = vadd.f32 %v2923, %v3870
    %v3903 = vadd.f32 %v2924, %v3871
    %v3904 = vadd.f32 %v2925, %v3872
    %v3905 = vadd.f32 %v2926, %v3873
    %v3906 = vadd.f32 %v2927, %v3874
    %v3907 = vadd.f32 %v2928, %v3875
    %v3908 = vadd.f32 %v2929, %v3876
    %v3909 = vadd.f32 %v2930, %v3877
    %v3910 = vadd.f32 %v2931, %v3878
    %v3911 = vadd.f32 %v2932, %v3879
    %v3912 = vadd.f32 %v2933, %v3880
    %v3913 = vadd.f32 %v2934, %v3881
    %v3914 = vadd.f32 %v2935, %v3882
    %v3915 = vadd.f32 %v2936, %v3883
    %v3916 = vadd.f32 %v2937, %v3884
    %v3917 = vadd.f32 %v2938, %v3885
    %v3918 = vadd.f32 %v2939, %v3886
    %v3919 = vadd.f32 %v2940, %v3887
    %v3920 = vadd.f32 %v2941, %v3888
    %v3921 = vadd.f32 %v2942, %v3889
    %v3922 = vpack.c.bf16 %v3891, %v3890
    %v3923 = vpack.c.bf16 %v3893, %v3892
    %v3924 = vpack.c.bf16 %v3895, %v3894
    %v3925 = vpack.c.bf16 %v3897, %v3896
    %v3926 = vpack.c.bf16 %v3899, %v3898
    %v3927 = vpack.c.bf16 %v3901, %v3900
    %v3928 = vpack.c.bf16 %v3903, %v3902
    %v3929 = vpack.c.bf16 %v3905, %v3904
    %v3930 = vpack.c.bf16 %v3907, %v3906
    %v3931 = vpack.c.bf16 %v3909, %v3908
    %v3932 = vpack.c.bf16 %v3911, %v3910
    %v3933 = vpack.c.bf16 %v3913, %v3912
    %v3934 = vpack.c.bf16 %v3915, %v3914
    %v3935 = vpack.c.bf16 %v3917, %v3916
    %v3936 = vpack.c.bf16 %v3919, %v3918
    %v3937 = vpack.c.bf16 %v3921, %v3920
    %v3938 = vld [vmem:[%s5] sm:$0xff]
    %v3939 = vld [vmem:[%s5 + $0x8] sm:$0xff]
    %v3940 = vld [vmem:[%s5 + $0x10] sm:$0xff]
    %v3941 = vld [vmem:[%s5 + $0x18] sm:$0xff]
    %v3946 = vunpack.c.l.b16 %v3938
    %v3947 = vunpack.c.h.b16 %v3938
    %v3948 = vunpack.c.l.b16 %v3939
    %v3949 = vunpack.c.h.b16 %v3939
    %v3950 = vunpack.c.l.b16 %v3940
    %v3951 = vunpack.c.h.b16 %v3940
    %v3952 = vunpack.c.l.b16 %v3941
    %v3953 = vunpack.c.h.b16 %v3941
    %v3954 = vpack.c.b16 %v3948, %v3946
    %v3955 = vpack.c.b16 %v3949, %v3947
    %v3956 = vpack.c.b16 %v3952, %v3950
    %v3957 = vpack.c.b16 %v3953, %v3951
    %v3963 = vsel %vm913, %v3922, 0
    %v3966 = vsel %vm913, %v3923, 0
    %v3969 = vsel %vm913, %v3924, 0
    %v3972 = vsel %vm913, %v3925, 0
    %v3975 = vsel %vm913, %v3926, 0
    %v3978 = vsel %vm913, %v3927, 0
    %v3981 = vsel %vm913, %v3928, 0
    %v3984 = vsel %vm913, %v3929, 0
    %v3987 = vsel %vm913, %v3930, 0
    %v3990 = vsel %vm913, %v3931, 0
    %v3993 = vsel %vm913, %v3932, 0
    %v3996 = vsel %vm913, %v3933, 0
    %v3999 = vsel %vm913, %v3934, 0
    %v4002 = vsel %vm913, %v3935, 0
    %v4005 = vsel %vm913, %v3936, 0
    %v4008 = vsel %vm913, %v3937, 0
    %4010 = vmatprep.subr.bf16.mxu0 %v3955
    %4011 = vmatpush1.bf16.msra.mxu0 %v3954
    %4012 = vmatprep.subr.bf16.mxu0 %v3957
    %4013 = vmatpush1.bf16.msra.mxu0 %v3956
    %4014 = vmatprep.subr.bf16.mxu0 0
    %4015 = vmatpush1.bf16.msra.mxu0 0
    %4016 = vmatprep.subr.bf16.mxu0 0
    %4017 = vmatpush1.bf16.msra.mxu0 0
    %4018 = vmatprep.subr.bf16.mxu0 0
    %4019 = vmatpush1.bf16.msra.mxu0 0
    %4020 = vmatprep.subr.bf16.mxu0 0
    %4021 = vmatpush1.bf16.msra.mxu0 0
    %4022 = vmatprep.subr.bf16.mxu0 0
    %4023 = vmatpush1.bf16.msra.mxu0 0
    %4024 = vmatprep.subr.bf16.mxu0 0
    %4025 = vmatpush1.bf16.msra.mxu0 0
    %4026 = vmatprep.subr.bf16.mxu0 0
    %4027 = vmatpush1.bf16.msra.mxu0 0
    %4028 = vmatprep.subr.bf16.mxu0 0
    %4029 = vmatpush1.bf16.msra.mxu0 0
    %4030 = vmatprep.subr.bf16.mxu0 0
    %4031 = vmatpush1.bf16.msra.mxu0 0
    %4032 = vmatprep.subr.bf16.mxu0 0
    %4033 = vmatpush1.bf16.msra.mxu0 0
    %4034 = vmatprep.subr.bf16.mxu0 0
    %4035 = vmatpush1.bf16.msra.mxu0 0
    %4036 = vmatprep.subr.bf16.mxu0 0
    %4037 = vmatpush1.bf16.msra.mxu0 0
    %4038 = vmatprep.subr.bf16.mxu0 0
    %4039 = vmatpush1.bf16.msra.mxu0 0
    %4040 = vmatprep.subr.bf16.mxu0 0
    %4041 = vmatpush1.bf16.msra.mxu0 0
    %4042 = vmatprep.mubr.bf16.mxu0 0
    %4043 = vmatmul.mubr.bf16.gmra.mrb[0].mxu0 %v3963
    %v4044 = vpop.f32.mrb[0].mxu0
    %v4045 = vadd.f32 0.0, %v4044
    %v4046 = vpop.f32.mrb[0].mxu0
    %v4047 = vadd.f32 0.0, %v4046
    %v4048 = vpop.f32.mrb[0].mxu0
    %v4049 = vadd.f32 0.0, %v4048
    %v4050 = vpop.f32.mrb[0].mxu0
    %v4051 = vadd.f32 0.0, %v4050
    %4052 = vmatprep.mubr.bf16.mxu0 0
    %4053 = vmatmul.mubr.bf16.gmra.mrb[0].mxu0 %v3966
    %v4054 = vpop.f32.mrb[0].mxu0
    %v4055 = vadd.f32 0.0, %v4054
    %v4056 = vpop.f32.mrb[0].mxu0
    %v4057 = vadd.f32 0.0, %v4056
    %v4058 = vpop.f32.mrb[0].mxu0
    %v4059 = vadd.f32 0.0, %v4058
    %v4060 = vpop.f32.mrb[0].mxu0
    %v4061 = vadd.f32 0.0, %v4060
    %4062 = vmatprep.mubr.bf16.mxu0 0
    %4063 = vmatmul.mubr.bf16.gmra.mrb[0].mxu0 %v3969
    %v4064 = vpop.f32.mrb[0].mxu0
    %v4065 = vadd.f32 0.0, %v4064
    %v4066 = vpop.f32.mrb[0].mxu0
    %v4067 = vadd.f32 0.0, %v4066
    %v4068 = vpop.f32.mrb[0].mxu0
    %v4069 = vadd.f32 0.0, %v4068
    %v4070 = vpop.f32.mrb[0].mxu0
    %v4071 = vadd.f32 0.0, %v4070
    %4072 = vmatprep.mubr.bf16.mxu0 0
    %4073 = vmatmul.mubr.bf16.gmra.mrb[0].mxu0 %v3972
    %v4074 = vpop.f32.mrb[0].mxu0
    %v4075 = vadd.f32 0.0, %v4074
    %v4076 = vpop.f32.mrb[0].mxu0
    %v4077 = vadd.f32 0.0, %v4076
    %v4078 = vpop.f32.mrb[0].mxu0
    %v4079 = vadd.f32 0.0, %v4078
    %v4080 = vpop.f32.mrb[0].mxu0
    %v4081 = vadd.f32 0.0, %v4080
    %4082 = vmatprep.mubr.bf16.mxu0 0
    %4083 = vmatmul.mubr.bf16.gmra.mrb[0].mxu0 %v3975
    %v4084 = vpop.f32.mrb[0].mxu0
    %v4085 = vadd.f32 0.0, %v4084
    %v4086 = vpop.f32.mrb[0].mxu0
    %v4087 = vadd.f32 0.0, %v4086
    %v4088 = vpop.f32.mrb[0].mxu0
    %v4089 = vadd.f32 0.0, %v4088
    %v4090 = vpop.f32.mrb[0].mxu0
    %v4091 = vadd.f32 0.0, %v4090
    %4092 = vmatprep.mubr.bf16.mxu0 0
    %4093 = vmatmul.mubr.bf16.gmra.mrb[0].mxu0 %v3978
    %v4094 = vpop.f32.mrb[0].mxu0
    %v4095 = vadd.f32 0.0, %v4094
    %v4096 = vpop.f32.mrb[0].mxu0
    %v4097 = vadd.f32 0.0, %v4096
    %v4098 = vpop.f32.mrb[0].mxu0
    %v4099 = vadd.f32 0.0, %v4098
    %v4100 = vpop.f32.mrb[0].mxu0
    %v4101 = vadd.f32 0.0, %v4100
    %4102 = vmatprep.mubr.bf16.mxu0 0
    %4103 = vmatmul.mubr.bf16.gmra.mrb[0].mxu0 %v3981
    %v4104 = vpop.f32.mrb[0].mxu0
    %v4105 = vadd.f32 0.0, %v4104
    %v4106 = vpop.f32.mrb[0].mxu0
    %v4107 = vadd.f32 0.0, %v4106
    %v4108 = vpop.f32.mrb[0].mxu0
    %v4109 = vadd.f32 0.0, %v4108
    %v4110 = vpop.f32.mrb[0].mxu0
    %v4111 = vadd.f32 0.0, %v4110
    %4112 = vmatprep.mubr.bf16.mxu0 0
    %4113 = vmatmul.mubr.bf16.gmra.mrb[0].mxu0 %v3984
    %v4114 = vpop.f32.mrb[0].mxu0
    %v4115 = vadd.f32 0.0, %v4114
    %v4116 = vpop.f32.mrb[0].mxu0
    %v4117 = vadd.f32 0.0, %v4116
    %v4118 = vpop.f32.mrb[0].mxu0
    %v4119 = vadd.f32 0.0, %v4118
    %v4120 = vpop.f32.mrb[0].mxu0
    %v4121 = vadd.f32 0.0, %v4120
    %4122 = vmatprep.mubr.bf16.mxu0 0
    %4123 = vmatmul.mubr.bf16.gmra.mrb[0].mxu0 %v3987
    %v4124 = vpop.f32.mrb[0].mxu0
    %v4125 = vadd.f32 0.0, %v4124
    %v4126 = vpop.f32.mrb[0].mxu0
    %v4127 = vadd.f32 0.0, %v4126
    %v4128 = vpop.f32.mrb[0].mxu0
    %v4129 = vadd.f32 0.0, %v4128
    %v4130 = vpop.f32.mrb[0].mxu0
    %v4131 = vadd.f32 0.0, %v4130
    %4132 = vmatprep.mubr.bf16.mxu0 0
    %4133 = vmatmul.mubr.bf16.gmra.mrb[0].mxu0 %v3990
    %v4134 = vpop.f32.mrb[0].mxu0
    %v4135 = vadd.f32 0.0, %v4134
    %v4136 = vpop.f32.mrb[0].mxu0
    %v4137 = vadd.f32 0.0, %v4136
    %v4138 = vpop.f32.mrb[0].mxu0
    %v4139 = vadd.f32 0.0, %v4138
    %v4140 = vpop.f32.mrb[0].mxu0
    %v4141 = vadd.f32 0.0, %v4140
    %4142 = vmatprep.mubr.bf16.mxu0 0
    %4143 = vmatmul.mubr.bf16.gmra.mrb[0].mxu0 %v3993
    %v4144 = vpop.f32.mrb[0].mxu0
    %v4145 = vadd.f32 0.0, %v4144
    %v4146 = vpop.f32.mrb[0].mxu0
    %v4147 = vadd.f32 0.0, %v4146
    %v4148 = vpop.f32.mrb[0].mxu0
    %v4149 = vadd.f32 0.0, %v4148
    %v4150 = vpop.f32.mrb[0].mxu0
    %v4151 = vadd.f32 0.0, %v4150
    %4152 = vmatprep.mubr.bf16.mxu0 0
    %4153 = vmatmul.mubr.bf16.gmra.mrb[0].mxu0 %v3996
    %v4154 = vpop.f32.mrb[0].mxu0
    %v4155 = vadd.f32 0.0, %v4154
    %v4156 = vpop.f32.mrb[0].mxu0
    %v4157 = vadd.f32 0.0, %v4156
    %v4158 = vpop.f32.mrb[0].mxu0
    %v4159 = vadd.f32 0.0, %v4158
    %v4160 = vpop.f32.mrb[0].mxu0
    %v4161 = vadd.f32 0.0, %v4160
    %4162 = vmatprep.mubr.bf16.mxu0 0
    %4163 = vmatmul.mubr.bf16.gmra.mrb[0].mxu0 %v3999
    %v4164 = vpop.f32.mrb[0].mxu0
    %v4165 = vadd.f32 0.0, %v4164
    %v4166 = vpop.f32.mrb[0].mxu0
    %v4167 = vadd.f32 0.0, %v4166
    %v4168 = vpop.f32.mrb[0].mxu0
    %v4169 = vadd.f32 0.0, %v4168
    %v4170 = vpop.f32.mrb[0].mxu0
    %v4171 = vadd.f32 0.0, %v4170
    %4172 = vmatprep.mubr.bf16.mxu0 0
    %4173 = vmatmul.mubr.bf16.gmra.mrb[0].mxu0 %v4002
    %v4174 = vpop.f32.mrb[0].mxu0
    %v4175 = vadd.f32 0.0, %v4174
    %v4176 = vpop.f32.mrb[0].mxu0
    %v4177 = vadd.f32 0.0, %v4176
    %v4178 = vpop.f32.mrb[0].mxu0
    %v4179 = vadd.f32 0.0, %v4178
    %v4180 = vpop.f32.mrb[0].mxu0
    %v4181 = vadd.f32 0.0, %v4180
    %4182 = vmatprep.mubr.bf16.mxu0 0
    %4183 = vmatmul.mubr.bf16.gmra.mrb[0].mxu0 %v4005
    %v4184 = vpop.f32.mrb[0].mxu0
    %v4185 = vadd.f32 0.0, %v4184
    %v4186 = vpop.f32.mrb[0].mxu0
    %v4187 = vadd.f32 0.0, %v4186
    %v4188 = vpop.f32.mrb[0].mxu0
    %v4189 = vadd.f32 0.0, %v4188
    %v4190 = vpop.f32.mrb[0].mxu0
    %v4191 = vadd.f32 0.0, %v4190
    %4192 = vmatprep.mubr.bf16.mxu0 0
    %4193 = vmatmul.mubr.bf16.gmra.mrb[0].mxu0 %v4008
    %v4194 = vpop.f32.mrb[0].mxu0
    %v4195 = vadd.f32 0.0, %v4194
    %v4196 = vpop.f32.mrb[0].mxu0
    %v4197 = vadd.f32 0.0, %v4196
    %v4198 = vpop.f32.mrb[0].mxu0
    %v4199 = vadd.f32 0.0, %v4198
    %v4200 = vpop.f32.mrb[0].mxu0
    %v4201 = vadd.f32 0.0, %v4200
    %4202 = vdwg.mxu0
    %v4203 = vrot.slane %v4047, 4
    %v4204 = vrot.slane %v4051, 4
    %v4205 = vrot.slane %v4057, 4
    %v4206 = vrot.slane %v4061, 4
    %v4207 = vrot.slane %v4067, 4
    %v4208 = vrot.slane %v4071, 4
    %v4209 = vrot.slane %v4077, 4
    %v4210 = vrot.slane %v4081, 4
    %v4211 = vrot.slane %v4087, 4
    %v4212 = vrot.slane %v4091, 4
    %v4213 = vrot.slane %v4097, 4
    %v4214 = vrot.slane %v4101, 4
    %v4215 = vrot.slane %v4107, 4
    %v4216 = vrot.slane %v4111, 4
    %v4217 = vrot.slane %v4117, 4
    %v4218 = vrot.slane %v4121, 4
    %v4219 = vrot.slane %v4127, 4
    %v4220 = vrot.slane %v4131, 4
    %v4221 = vrot.slane %v4137, 4
    %v4222 = vrot.slane %v4141, 4
    %v4223 = vrot.slane %v4147, 4
    %v4224 = vrot.slane %v4151, 4
    %v4225 = vrot.slane %v4157, 4
    %v4226 = vrot.slane %v4161, 4
    %v4227 = vrot.slane %v4167, 4
    %v4228 = vrot.slane %v4171, 4
    %v4229 = vrot.slane %v4177, 4
    %v4230 = vrot.slane %v4181, 4
    %v4231 = vrot.slane %v4187, 4
    %v4232 = vrot.slane %v4191, 4
    %v4233 = vrot.slane %v4197, 4
    %v4234 = vrot.slane %v4201, 4
    %v4235 = vsel %vm1387, %v4233, %v4234
    %v4236 = vsel %vm1387, %v4232, %v4233
    %v4237 = vsel %vm1387, %v4231, %v4232
    %v4238 = vsel %vm1387, %v4230, %v4231
    %v4239 = vsel %vm1387, %v4229, %v4230
    %v4240 = vsel %vm1387, %v4228, %v4229
    %v4241 = vsel %vm1387, %v4227, %v4228
    %v4242 = vsel %vm1387, %v4226, %v4227
    %v4243 = vsel %vm1387, %v4225, %v4226
    %v4244 = vsel %vm1387, %v4224, %v4225
    %v4245 = vsel %vm1387, %v4223, %v4224
    %v4246 = vsel %vm1387, %v4222, %v4223
    %v4247 = vsel %vm1387, %v4221, %v4222
    %v4248 = vsel %vm1387, %v4220, %v4221
    %v4249 = vsel %vm1387, %v4219, %v4220
    %v4250 = vsel %vm1387, %v4218, %v4219
    %v4251 = vsel %vm1387, %v4217, %v4218
    %v4252 = vsel %vm1387, %v4216, %v4217
    %v4253 = vsel %vm1387, %v4215, %v4216
    %v4254 = vsel %vm1387, %v4214, %v4215
    %v4255 = vsel %vm1387, %v4213, %v4214
    %v4256 = vsel %vm1387, %v4212, %v4213
    %v4257 = vsel %vm1387, %v4211, %v4212
    %v4258 = vsel %vm1387, %v4210, %v4211
    %v4259 = vsel %vm1387, %v4209, %v4210
    %v4260 = vsel %vm1387, %v4208, %v4209
    %v4261 = vsel %vm1387, %v4207, %v4208
    %v4262 = vsel %vm1387, %v4206, %v4207
    %v4263 = vsel %vm1387, %v4205, %v4206
    %v4264 = vsel %vm1387, %v4204, %v4205
    %v4265 = vsel %vm1387, %v4203, %v4204
    %v4266 = vsel %vm1387, %v4234, %v4203
    %v4267 = vadd.f32 %v4045, %v4265
    %v4268 = vadd.f32 %v4049, %v4264
    %v4269 = vadd.f32 %v4055, %v4263
    %v4270 = vadd.f32 %v4059, %v4262
    %v4271 = vadd.f32 %v4065, %v4261
    %v4272 = vadd.f32 %v4069, %v4260
    %v4273 = vadd.f32 %v4075, %v4259
    %v4274 = vadd.f32 %v4079, %v4258
    %v4275 = vadd.f32 %v4085, %v4257
    %v4276 = vadd.f32 %v4089, %v4256
    %v4277 = vadd.f32 %v4095, %v4255
    %v4278 = vadd.f32 %v4099, %v4254
    %v4279 = vadd.f32 %v4105, %v4253
    %v4280 = vadd.f32 %v4109, %v4252
    %v4281 = vadd.f32 %v4115, %v4251
    %v4282 = vadd.f32 %v4119, %v4250
    %v4283 = vadd.f32 %v4125, %v4249
    %v4284 = vadd.f32 %v4129, %v4248
    %v4285 = vadd.f32 %v4135, %v4247
    %v4286 = vadd.f32 %v4139, %v4246
    %v4287 = vadd.f32 %v4145, %v4245
    %v4288 = vadd.f32 %v4149, %v4244
    %v4289 = vadd.f32 %v4155, %v4243
    %v4290 = vadd.f32 %v4159, %v4242
    %v4291 = vadd.f32 %v4165, %v4241
    %v4292 = vadd.f32 %v4169, %v4240
    %v4293 = vadd.f32 %v4175, %v4239
    %v4294 = vadd.f32 %v4179, %v4238
    %v4295 = vadd.f32 %v4185, %v4237
    %v4296 = vadd.f32 %v4189, %v4236
    %v4297 = vadd.f32 %v4195, %v4235
    %v4298 = vadd.f32 %v4199, %v4266
    %v4299 = vld [vmem:[%s7] sm:$0xff]
    %v4300 = vld [vmem:[%s7 + $0x8] sm:$0xff]
    %v4301 = vld [vmem:[%s7 + $0x10] sm:$0xff]
    %v4302 = vld [vmem:[%s7 + $0x18] sm:$0xff]
    %v4303 = vld [vmem:[%s7 + $0x20] sm:$0xff]
    %v4304 = vld [vmem:[%s7 + $0x28] sm:$0xff]
    %v4305 = vld [vmem:[%s7 + $0x30] sm:$0xff]
    %v4306 = vld [vmem:[%s7 + $0x38] sm:$0xff]
    %v4307 = vld [vmem:[%s7 + $0x40] sm:$0xff]
    %v4308 = vld [vmem:[%s7 + $0x48] sm:$0xff]
    %v4309 = vld [vmem:[%s7 + $0x50] sm:$0xff]
    %v4310 = vld [vmem:[%s7 + $0x58] sm:$0xff]
    %v4311 = vld [vmem:[%s7 + $0x60] sm:$0xff]
    %v4312 = vld [vmem:[%s7 + $0x68] sm:$0xff]
    %v4313 = vld [vmem:[%s7 + $0x70] sm:$0xff]
    %v4314 = vld [vmem:[%s7 + $0x78] sm:$0xff]
    %v4315 = vpack.c.bf16 %v4268, %v4267
    %v4316 = vpack.c.bf16 %v4270, %v4269
    %v4317 = vpack.c.bf16 %v4272, %v4271
    %v4318 = vpack.c.bf16 %v4274, %v4273
    %v4319 = vpack.c.bf16 %v4276, %v4275
    %v4320 = vpack.c.bf16 %v4278, %v4277
    %v4321 = vpack.c.bf16 %v4280, %v4279
    %v4322 = vpack.c.bf16 %v4282, %v4281
    %v4323 = vpack.c.bf16 %v4284, %v4283
    %v4324 = vpack.c.bf16 %v4286, %v4285
    %v4325 = vpack.c.bf16 %v4288, %v4287
    %v4326 = vpack.c.bf16 %v4290, %v4289
    %v4327 = vpack.c.bf16 %v4292, %v4291
    %v4328 = vpack.c.bf16 %v4294, %v4293
    %v4329 = vpack.c.bf16 %v4296, %v4295
    %v4330 = vpack.c.bf16 %v4298, %v4297
    %v4331 = vld [vmem:[%s6] sm:$0x1]
    %v4333 = vlaneseq
    %v4334 = vshrl.u32 %v4333, 7
    %v4335 = vsub.s32 0, %v4334
    %v4336 = vrot.slane %v4331, %v4335
    %v4354 = vunpack.c.l.b16 %v4299
    %v4355 = vunpack.c.h.b16 %v4299
    %v4356 = vunpack.c.l.b16 %v4300
    %v4357 = vunpack.c.h.b16 %v4300
    %v4358 = vunpack.c.l.b16 %v4301
    %v4359 = vunpack.c.h.b16 %v4301
    %v4360 = vunpack.c.l.b16 %v4302
    %v4361 = vunpack.c.h.b16 %v4302
    %v4362 = vunpack.c.l.b16 %v4303
    %v4363 = vunpack.c.h.b16 %v4303
    %v4364 = vunpack.c.l.b16 %v4304
    %v4365 = vunpack.c.h.b16 %v4304
    %v4366 = vunpack.c.l.b16 %v4305
    %v4367 = vunpack.c.h.b16 %v4305
    %v4368 = vunpack.c.l.b16 %v4306
    %v4369 = vunpack.c.h.b16 %v4306
    %v4370 = vunpack.c.l.b16 %v4307
    %v4371 = vunpack.c.h.b16 %v4307
    %v4372 = vunpack.c.l.b16 %v4308
    %v4373 = vunpack.c.h.b16 %v4308
    %v4374 = vunpack.c.l.b16 %v4309
    %v4375 = vunpack.c.h.b16 %v4309
    %v4376 = vunpack.c.l.b16 %v4310
    %v4377 = vunpack.c.h.b16 %v4310
    %v4378 = vunpack.c.l.b16 %v4311
    %v4379 = vunpack.c.h.b16 %v4311
    %v4380 = vunpack.c.l.b16 %v4312
    %v4381 = vunpack.c.h.b16 %v4312
    %v4382 = vunpack.c.l.b16 %v4313
    %v4383 = vunpack.c.h.b16 %v4313
    %v4384 = vunpack.c.l.b16 %v4314
    %v4385 = vunpack.c.h.b16 %v4314
    %v4386 = vpack.c.b16 %v4356, %v4354
    %v4387 = vpack.c.b16 %v4357, %v4355
    %v4388 = vpack.c.b16 %v4360, %v4358
    %v4389 = vpack.c.b16 %v4361, %v4359
    %v4390 = vpack.c.b16 %v4364, %v4362
    %v4391 = vpack.c.b16 %v4365, %v4363
    %v4392 = vpack.c.b16 %v4368, %v4366
    %v4393 = vpack.c.b16 %v4369, %v4367
    %v4394 = vpack.c.b16 %v4372, %v4370
    %v4395 = vpack.c.b16 %v4373, %v4371
    %v4396 = vpack.c.b16 %v4376, %v4374
    %v4397 = vpack.c.b16 %v4377, %v4375
    %v4398 = vpack.c.b16 %v4380, %v4378
    %v4399 = vpack.c.b16 %v4381, %v4379
    %v4400 = vpack.c.b16 %v4384, %v4382
    %v4401 = vpack.c.b16 %v4385, %v4383
    %4418 = vmatprep.subr.bf16.mxu0 0
    %4419 = vmatpush1.bf16.msra.mxu0 %v4315
    %4420 = vmatprep.subr.bf16.mxu0 0
    %4421 = vmatpush1.bf16.msra.mxu0 %v4316
    %4422 = vmatprep.subr.bf16.mxu0 0
    %4423 = vmatpush1.bf16.msra.mxu0 %v4317
    %4424 = vmatprep.subr.bf16.mxu0 0
    %4425 = vmatpush1.bf16.msra.mxu0 %v4318
    %4426 = vmatprep.subr.bf16.mxu0 0
    %4427 = vmatpush1.bf16.msra.mxu0 %v4319
    %4428 = vmatprep.subr.bf16.mxu0 0
    %4429 = vmatpush1.bf16.msra.mxu0 %v4320
    %4430 = vmatprep.subr.bf16.mxu0 0
    %4431 = vmatpush1.bf16.msra.mxu0 %v4321
    %4432 = vmatprep.subr.bf16.mxu0 0
    %4433 = vmatpush1.bf16.msra.mxu0 %v4322
    %4434 = vmatprep.subr.bf16.mxu0 0
    %4435 = vmatpush1.bf16.msra.mxu0 %v4323
    %4436 = vmatprep.subr.bf16.mxu0 0
    %4437 = vmatpush1.bf16.msra.mxu0 %v4324
    %4438 = vmatprep.subr.bf16.mxu0 0
    %4439 = vmatpush1.bf16.msra.mxu0 %v4325
    %4440 = vmatprep.subr.bf16.mxu0 0
    %4441 = vmatpush1.bf16.msra.mxu0 %v4326
    %4442 = vmatprep.subr.bf16.mxu0 0
    %4443 = vmatpush1.bf16.msra.mxu0 %v4327
    %4444 = vmatprep.subr.bf16.mxu0 0
    %4445 = vmatpush1.bf16.msra.mxu0 %v4328
    %4446 = vmatprep.subr.bf16.mxu0 0
    %4447 = vmatpush1.bf16.msra.mxu0 %v4329
    %4448 = vmatprep.subr.bf16.mxu0 0
    %4449 = vmatpush1.bf16.msra.mxu0 %v4330
    %4450 = vmatprep.mubr.bf16.mxu0 %v4387
    %4451 = vmatmul.mubr.bf16.gmra.mrb[0].mxu0 %v4386
    %v4452 = vpop.f32.mrb[0].mxu0
    %v4453 = vadd.f32 %v4336, %v4452
    %v4454 = vpop.f32.mrb[0].mxu0
    %v4455 = vpop.f32.mrb[0].mxu0
    %v4456 = vadd.f32 %v4336, %v4455
    %v4457 = vpop.f32.mrb[0].mxu0
    %4458 = vmatprep.mubr.bf16.mxu0 %v4389
    %4459 = vmatmul.mubr.bf16.gmra.mrb[0].mxu0 %v4388
    %v4460 = vpop.f32.mrb[0].mxu0
    %v4461 = vadd.f32 %v4336, %v4460
    %v4462 = vpop.f32.mrb[0].mxu0
    %v4463 = vpop.f32.mrb[0].mxu0
    %v4464 = vadd.f32 %v4336, %v4463
    %v4465 = vpop.f32.mrb[0].mxu0
    %4466 = vmatprep.mubr.bf16.mxu0 %v4391
    %4467 = vmatmul.mubr.bf16.gmra.mrb[0].mxu0 %v4390
    %v4468 = vpop.f32.mrb[0].mxu0
    %v4469 = vadd.f32 %v4336, %v4468
    %v4470 = vpop.f32.mrb[0].mxu0
    %v4471 = vpop.f32.mrb[0].mxu0
    %v4472 = vadd.f32 %v4336, %v4471
    %v4473 = vpop.f32.mrb[0].mxu0
    %4474 = vmatprep.mubr.bf16.mxu0 %v4393
    %4475 = vmatmul.mubr.bf16.gmra.mrb[0].mxu0 %v4392
    %v4476 = vpop.f32.mrb[0].mxu0
    %v4477 = vadd.f32 %v4336, %v4476
    %v4478 = vpop.f32.mrb[0].mxu0
    %v4479 = vpop.f32.mrb[0].mxu0
    %v4480 = vadd.f32 %v4336, %v4479
    %v4481 = vpop.f32.mrb[0].mxu0
    %4482 = vmatprep.mubr.bf16.mxu0 %v4395
    %4483 = vmatmul.mubr.bf16.gmra.mrb[0].mxu0 %v4394
    %v4484 = vpop.f32.mrb[0].mxu0
    %v4485 = vadd.f32 %v4336, %v4484
    %v4486 = vpop.f32.mrb[0].mxu0
    %v4487 = vpop.f32.mrb[0].mxu0
    %v4488 = vadd.f32 %v4336, %v4487
    %v4489 = vpop.f32.mrb[0].mxu0
    %4490 = vmatprep.mubr.bf16.mxu0 %v4397
    %4491 = vmatmul.mubr.bf16.gmra.mrb[0].mxu0 %v4396
    %v4492 = vpop.f32.mrb[0].mxu0
    %v4493 = vadd.f32 %v4336, %v4492
    %v4494 = vpop.f32.mrb[0].mxu0
    %v4495 = vpop.f32.mrb[0].mxu0
    %v4496 = vadd.f32 %v4336, %v4495
    %v4497 = vpop.f32.mrb[0].mxu0
    %4498 = vmatprep.mubr.bf16.mxu0 %v4399
    %4499 = vmatmul.mubr.bf16.gmra.mrb[0].mxu0 %v4398
    %v4500 = vpop.f32.mrb[0].mxu0
    %v4501 = vadd.f32 %v4336, %v4500
    %v4502 = vpop.f32.mrb[0].mxu0
    %v4503 = vpop.f32.mrb[0].mxu0
    %v4504 = vadd.f32 %v4336, %v4503
    %v4505 = vpop.f32.mrb[0].mxu0
    %4506 = vmatprep.mubr.bf16.mxu0 %v4401
    %4507 = vmatmul.mubr.bf16.gmra.mrb[0].mxu0 %v4400
    %v4508 = vpop.f32.mrb[0].mxu0
    %v4509 = vadd.f32 %v4336, %v4508
    %v4510 = vpop.f32.mrb[0].mxu0
    %v4511 = vpop.f32.mrb[0].mxu0
    %v4512 = vadd.f32 %v4336, %v4511
    %v4513 = vpop.f32.mrb[0].mxu0
    %4514 = vdwg.mxu0
    %vm4515 = vcmp.lt.s32.totalorder %v377, 0
    %v4516 = vsub.s32 0, %v377
    %v4517 = vsel %vm4515, %v4516, %v377
    %v4518 = vshrl.u32 %v4517, 6
    %v4519 = vand.u32 %v4517, 63
    %v4520 = vsub.s32 0, %v4519
    %v4521 = vsel %vm4515, %v4520, %v4519
    %vm4522 = vcmp.lt.s32.totalorder %v378, 0
    %v4523 = vsub.s32 0, %v378
    %v4524 = vsel %vm4522, %v4523, %v378
    %v4525 = vshrl.u32 %v4524, 6
    %v4526 = vand.u32 %v4524, 63
    %v4527 = vsub.s32 0, %v4526
    %v4528 = vsel %vm4522, %v4527, %v4526
    %vm4529 = vcmp.lt.s32.totalorder %v379, 0
    %v4530 = vsub.s32 0, %v379
    %v4531 = vsel %vm4529, %v4530, %v379
    %v4532 = vshrl.u32 %v4531, 6
    %v4533 = vand.u32 %v4531, 63
    %v4534 = vsub.s32 0, %v4533
    %v4535 = vsel %vm4529, %v4534, %v4533
    %vm4536 = vcmp.lt.s32.totalorder %v380, 0
    %v4537 = vsub.s32 0, %v380
    %v4538 = vsel %vm4536, %v4537, %v380
    %v4539 = vshrl.u32 %v4538, 6
    %v4540 = vand.u32 %v4538, 63
    %v4541 = vsub.s32 0, %v4540
    %v4542 = vsel %vm4536, %v4541, %v4540
    %vm4543 = vcmp.lt.s32.totalorder %v381, 0
    %v4544 = vsub.s32 0, %v381
    %v4545 = vsel %vm4543, %v4544, %v381
    %v4546 = vshrl.u32 %v4545, 6
    %v4547 = vand.u32 %v4545, 63
    %v4548 = vsub.s32 0, %v4547
    %v4549 = vsel %vm4543, %v4548, %v4547
    %vm4550 = vcmp.lt.s32.totalorder %v382, 0
    %v4551 = vsub.s32 0, %v382
    %v4552 = vsel %vm4550, %v4551, %v382
    %v4553 = vshrl.u32 %v4552, 6
    %v4554 = vand.u32 %v4552, 63
    %v4555 = vsub.s32 0, %v4554
    %v4556 = vsel %vm4550, %v4555, %v4554
    %vm4557 = vcmp.lt.s32.totalorder %v383, 0
    %v4558 = vsub.s32 0, %v383
    %v4559 = vsel %vm4557, %v4558, %v383
    %v4560 = vshrl.u32 %v4559, 6
    %v4561 = vand.u32 %v4559, 63
    %v4562 = vsub.s32 0, %v4561
    %v4563 = vsel %vm4557, %v4562, %v4561
    %vm4564 = vcmp.lt.s32.totalorder %v384, 0
    %v4565 = vsub.s32 0, %v384
    %v4566 = vsel %vm4564, %v4565, %v384
    %v4567 = vshrl.u32 %v4566, 6
    %v4568 = vand.u32 %v4566, 63
    %v4569 = vsub.s32 0, %v4568
    %v4570 = vsel %vm4564, %v4569, %v4568
    %vm4571 = vcmp.lt.s32.totalorder %v385, 0
    %v4572 = vsub.s32 0, %v385
    %v4573 = vsel %vm4571, %v4572, %v385
    %v4574 = vshrl.u32 %v4573, 6
    %v4575 = vand.u32 %v4573, 63
    %v4576 = vsub.s32 0, %v4575
    %v4577 = vsel %vm4571, %v4576, %v4575
    %vm4578 = vcmp.lt.s32.totalorder %v386, 0
    %v4579 = vsub.s32 0, %v386
    %v4580 = vsel %vm4578, %v4579, %v386
    %v4581 = vshrl.u32 %v4580, 6
    %v4582 = vand.u32 %v4580, 63
    %v4583 = vsub.s32 0, %v4582
    %v4584 = vsel %vm4578, %v4583, %v4582
    %vm4585 = vcmp.lt.s32.totalorder %v387, 0
    %v4586 = vsub.s32 0, %v387
    %v4587 = vsel %vm4585, %v4586, %v387
    %v4588 = vshrl.u32 %v4587, 6
    %v4589 = vand.u32 %v4587, 63
    %v4590 = vsub.s32 0, %v4589
    %v4591 = vsel %vm4585, %v4590, %v4589
    %vm4592 = vcmp.lt.s32.totalorder %v388, 0
    %v4593 = vsub.s32 0, %v388
    %v4594 = vsel %vm4592, %v4593, %v388
    %v4595 = vshrl.u32 %v4594, 6
    %v4596 = vand.u32 %v4594, 63
    %v4597 = vsub.s32 0, %v4596
    %v4598 = vsel %vm4592, %v4597, %v4596
    %vm4599 = vcmp.lt.s32.totalorder %v389, 0
    %v4600 = vsub.s32 0, %v389
    %v4601 = vsel %vm4599, %v4600, %v389
    %v4602 = vshrl.u32 %v4601, 6
    %v4603 = vand.u32 %v4601, 63
    %v4604 = vsub.s32 0, %v4603
    %v4605 = vsel %vm4599, %v4604, %v4603
    %vm4606 = vcmp.lt.s32.totalorder %v390, 0
    %v4607 = vsub.s32 0, %v390
    %v4608 = vsel %vm4606, %v4607, %v390
    %v4609 = vshrl.u32 %v4608, 6
    %v4610 = vand.u32 %v4608, 63
    %v4611 = vsub.s32 0, %v4610
    %v4612 = vsel %vm4606, %v4611, %v4610
    %vm4613 = vcmp.lt.s32.totalorder %v391, 0
    %v4614 = vsub.s32 0, %v391
    %v4615 = vsel %vm4613, %v4614, %v391
    %v4616 = vshrl.u32 %v4615, 6
    %v4617 = vand.u32 %v4615, 63
    %v4618 = vsub.s32 0, %v4617
    %v4619 = vsel %vm4613, %v4618, %v4617
    %vm4620 = vcmp.lt.s32.totalorder %v392, 0
    %v4621 = vsub.s32 0, %v392
    %v4622 = vsel %vm4620, %v4621, %v392
    %v4623 = vshrl.u32 %v4622, 6
    %v4624 = vand.u32 %v4622, 63
    %v4625 = vsub.s32 0, %v4624
    %v4626 = vsel %vm4620, %v4625, %v4624
    %vm4627 = vcmp.ne.s32.totalorder %v4521, 0
    %vm4628 = vcmp.ne.s32.totalorder %v4528, 0
    %vm4629 = vcmp.ne.s32.totalorder %v4535, 0
    %vm4630 = vcmp.ne.s32.totalorder %v4542, 0
    %vm4631 = vcmp.ne.s32.totalorder %v4549, 0
    %vm4632 = vcmp.ne.s32.totalorder %v4556, 0
    %vm4633 = vcmp.ne.s32.totalorder %v4563, 0
    %vm4634 = vcmp.ne.s32.totalorder %v4570, 0
    %vm4635 = vcmp.ne.s32.totalorder %v4577, 0
    %vm4636 = vcmp.ne.s32.totalorder %v4584, 0
    %vm4637 = vcmp.ne.s32.totalorder %v4591, 0
    %vm4638 = vcmp.ne.s32.totalorder %v4598, 0
    %vm4639 = vcmp.ne.s32.totalorder %v4605, 0
    %vm4640 = vcmp.ne.s32.totalorder %v4612, 0
    %vm4641 = vcmp.ne.s32.totalorder %v4619, 0
    %vm4642 = vcmp.ne.s32.totalorder %v4626, 0
    %vm4643 = vcmp.lt.s32.totalorder %v4521, 0
    %vm4644 = vcmp.lt.s32.totalorder %v4528, 0
    %vm4645 = vcmp.lt.s32.totalorder %v4535, 0
    %vm4646 = vcmp.lt.s32.totalorder %v4542, 0
    %vm4647 = vcmp.lt.s32.totalorder %v4549, 0
    %vm4648 = vcmp.lt.s32.totalorder %v4556, 0
    %vm4649 = vcmp.lt.s32.totalorder %v4563, 0
    %vm4650 = vcmp.lt.s32.totalorder %v4570, 0
    %vm4651 = vcmp.lt.s32.totalorder %v4577, 0
    %vm4652 = vcmp.lt.s32.totalorder %v4584, 0
    %vm4653 = vcmp.lt.s32.totalorder %v4591, 0
    %vm4654 = vcmp.lt.s32.totalorder %v4598, 0
    %vm4655 = vcmp.lt.s32.totalorder %v4605, 0
    %vm4656 = vcmp.lt.s32.totalorder %v4612, 0
    %vm4657 = vcmp.lt.s32.totalorder %v4619, 0
    %vm4658 = vcmp.lt.s32.totalorder %v4626, 0
    %vm4659 = vmand %vm4643, %vm4627
    %vm4660 = vmand %vm4644, %vm4628
    %vm4661 = vmand %vm4645, %vm4629
    %vm4662 = vmand %vm4646, %vm4630
    %vm4663 = vmand %vm4647, %vm4631
    %vm4664 = vmand %vm4648, %vm4632
    %vm4665 = vmand %vm4649, %vm4633
    %vm4666 = vmand %vm4650, %vm4634
    %vm4667 = vmand %vm4651, %vm4635
    %vm4668 = vmand %vm4652, %vm4636
    %vm4669 = vmand %vm4653, %vm4637
    %vm4670 = vmand %vm4654, %vm4638
    %vm4671 = vmand %vm4655, %vm4639
    %vm4672 = vmand %vm4656, %vm4640
    %vm4673 = vmand %vm4657, %vm4641
    %vm4674 = vmand %vm4658, %vm4642
    %v4675 = vadd.s32 %v4521, 64
    %v4676 = vadd.s32 %v4528, 64
    %v4677 = vadd.s32 %v4535, 64
    %v4678 = vadd.s32 %v4542, 64
    %v4679 = vadd.s32 %v4549, 64
    %v4680 = vadd.s32 %v4556, 64
    %v4681 = vadd.s32 %v4563, 64
    %v4682 = vadd.s32 %v4570, 64
    %v4683 = vadd.s32 %v4577, 64
    %v4684 = vadd.s32 %v4584, 64
    %v4685 = vadd.s32 %v4591, 64
    %v4686 = vadd.s32 %v4598, 64
    %v4687 = vadd.s32 %v4605, 64
    %v4688 = vadd.s32 %v4612, 64
    %v4689 = vadd.s32 %v4619, 64
    %v4690 = vadd.s32 %v4626, 64
    %v4691 = vsel %vm4659, %v4675, %v4521
    %v4692 = vsel %vm4660, %v4676, %v4528
    %v4693 = vsel %vm4661, %v4677, %v4535
    %v4694 = vsel %vm4662, %v4678, %v4542
    %v4695 = vsel %vm4663, %v4679, %v4549
    %v4696 = vsel %vm4664, %v4680, %v4556
    %v4697 = vsel %vm4665, %v4681, %v4563
    %v4698 = vsel %vm4666, %v4682, %v4570
    %v4699 = vsel %vm4667, %v4683, %v4577
    %v4700 = vsel %vm4668, %v4684, %v4584
    %v4701 = vsel %vm4669, %v4685, %v4591
    %v4702 = vsel %vm4670, %v4686, %v4598
    %v4703 = vsel %vm4671, %v4687, %v4605
    %v4704 = vsel %vm4672, %v4688, %v4612
    %v4705 = vsel %vm4673, %v4689, %v4619
    %v4706 = vsel %vm4674, %v4690, %v4626
    %vm4707 = vcmp.ge.s32.totalorder %v4691, 4
    %vm4708 = vcmp.ge.s32.totalorder %v4692, 4
    %vm4709 = vcmp.ge.s32.totalorder %v4693, 4
    %vm4710 = vcmp.ge.s32.totalorder %v4694, 4
    %vm4711 = vcmp.ge.s32.totalorder %v4695, 4
    %vm4712 = vcmp.ge.s32.totalorder %v4696, 4
    %vm4713 = vcmp.ge.s32.totalorder %v4697, 4
    %vm4714 = vcmp.ge.s32.totalorder %v4698, 4
    %vm4715 = vcmp.ge.s32.totalorder %v4699, 4
    %vm4716 = vcmp.ge.s32.totalorder %v4700, 4
    %vm4717 = vcmp.ge.s32.totalorder %v4701, 4
    %vm4718 = vcmp.ge.s32.totalorder %v4702, 4
    %vm4719 = vcmp.ge.s32.totalorder %v4703, 4
    %vm4720 = vcmp.ge.s32.totalorder %v4704, 4
    %vm4721 = vcmp.ge.s32.totalorder %v4705, 4
    %vm4722 = vcmp.ge.s32.totalorder %v4706, 4
    %vm4723 = vcmp.lt.s32.totalorder %v4691, 60
    %vm4724 = vcmp.lt.s32.totalorder %v4692, 60
    %vm4725 = vcmp.lt.s32.totalorder %v4693, 60
    %vm4726 = vcmp.lt.s32.totalorder %v4694, 60
    %vm4727 = vcmp.lt.s32.totalorder %v4695, 60
    %vm4728 = vcmp.lt.s32.totalorder %v4696, 60
    %vm4729 = vcmp.lt.s32.totalorder %v4697, 60
    %vm4730 = vcmp.lt.s32.totalorder %v4698, 60
    %vm4731 = vcmp.lt.s32.totalorder %v4699, 60
    %vm4732 = vcmp.lt.s32.totalorder %v4700, 60
    %vm4733 = vcmp.lt.s32.totalorder %v4701, 60
    %vm4734 = vcmp.lt.s32.totalorder %v4702, 60
    %vm4735 = vcmp.lt.s32.totalorder %v4703, 60
    %vm4736 = vcmp.lt.s32.totalorder %v4704, 60
    %vm4737 = vcmp.lt.s32.totalorder %v4705, 60
    %vm4738 = vcmp.lt.s32.totalorder %v4706, 60
    %v4739 = vpack.c.bf16 %v4456, %v4453
    %v4740 = vpack.c.bf16 %v4464, %v4461
    %v4741 = vpack.c.bf16 %v4472, %v4469
    %v4742 = vpack.c.bf16 %v4480, %v4477
    %v4743 = vpack.c.bf16 %v4488, %v4485
    %v4744 = vpack.c.bf16 %v4496, %v4493
    %v4745 = vpack.c.bf16 %v4504, %v4501
    %v4746 = vpack.c.bf16 %v4512, %v4509
    %v4747 = vld [vmem:[%s8] sm:$0xff]
    %v4748 = vld [vmem:[%s8 + $0x8] sm:$0xf]
    %v4749 = vld [vmem:[%s8 + $0xc] sm:$0xff]
    %v4750 = vld [vmem:[%s8 + $0x14] sm:$0xf]
    %v4751 = vld [vmem:[%s8 + $0x18] sm:$0xff]
    %v4752 = vld [vmem:[%s8 + $0x20] sm:$0xf]
    %v4753 = vld [vmem:[%s8 + $0x24] sm:$0xff]
    %v4754 = vld [vmem:[%s8 + $0x2c] sm:$0xf]
    %v4755 = vld [vmem:[%s8 + $0x30] sm:$0xff]
    %v4756 = vld [vmem:[%s8 + $0x38] sm:$0xf]
    %v4757 = vld [vmem:[%s8 + $0x3c] sm:$0xff]
    %v4758 = vld [vmem:[%s8 + $0x44] sm:$0xf]
    %v4771 = vunpack.c.l.b16 %v4747
    %v4772 = vunpack.c.h.b16 %v4747
    %v4773 = vunpack.c.l.b16 %v4748
    %v4774 = vunpack.c.l.b16 %v4749
    %v4775 = vunpack.c.h.b16 %v4749
    %v4776 = vunpack.c.l.b16 %v4750
    %v4777 = vunpack.c.l.b16 %v4751
    %v4778 = vunpack.c.h.b16 %v4751
    %v4779 = vunpack.c.l.b16 %v4752
    %v4780 = vunpack.c.l.b16 %v4753
    %v4781 = vunpack.c.h.b16 %v4753
    %v4782 = vunpack.c.l.b16 %v4754
    %v4783 = vunpack.c.l.b16 %v4755
    %v4784 = vunpack.c.h.b16 %v4755
    %v4785 = vunpack.c.l.b16 %v4756
    %v4786 = vunpack.c.l.b16 %v4757
    %v4787 = vunpack.c.h.b16 %v4757
    %v4788 = vunpack.c.l.b16 %v4758
    %v4789 = vpack.c.b16 %v4774, %v4771
    %v4790 = vpack.c.b16 %v4775, %v4772
    %v4791 = vpack.c.b16 %v4776, %v4773
    %v4792 = vpack.c.b16 %v4780, %v4777
    %v4793 = vpack.c.b16 %v4781, %v4778
    %v4794 = vpack.c.b16 %v4782, %v4779
    %v4795 = vpack.c.b16 %v4786, %v4783
    %v4796 = vpack.c.b16 %v4787, %v4784
    %v4797 = vpack.c.b16 %v4788, %v4785
    %vm4807 = vcmask 392192
    %v4809 = vsel %vm4807, %v4739, 0
    %v4812 = vsel %vm4807, %v4740, 0
    %v4815 = vsel %vm4807, %v4741, 0
    %v4818 = vsel %vm4807, %v4742, 0
    %v4821 = vsel %vm4807, %v4743, 0
    %v4824 = vsel %vm4807, %v4744, 0
    %v4827 = vsel %vm4807, %v4745, 0
    %v4830 = vsel %vm4807, %v4746, 0
    %4832 = vmatprep.subr.bf16.mxu0 %v4790
    %4833 = vmatpush1.bf16.msra.mxu0 %v4789
    %4834 = vmatprep.subr.bf16.mxu0 %v4793
    %4835 = vmatpush1.bf16.msra.mxu0 %v4792
    %4836 = vmatprep.subr.bf16.mxu0 %v4796
    %4837 = vmatpush1.bf16.msra.mxu0 %v4795
    %4838 = vmatprep.subr.bf16.mxu0 0
    %4839 = vmatpush1.bf16.msra.mxu0 0
    %4840 = vmatprep.subr.bf16.mxu0 0
    %4841 = vmatpush1.bf16.msra.mxu0 0
    %4842 = vmatprep.subr.bf16.mxu0 0
    %4843 = vmatpush1.bf16.msra.mxu0 0
    %4844 = vmatprep.subr.bf16.mxu0 0
    %4845 = vmatpush1.bf16.msra.mxu0 0
    %4846 = vmatprep.subr.bf16.mxu0 0
    %4847 = vmatpush1.bf16.msra.mxu0 0
    %4848 = vmatprep.subr.bf16.mxu0 0
    %4849 = vmatpush1.bf16.msra.mxu0 0
    %4850 = vmatprep.subr.bf16.mxu0 0
    %4851 = vmatpush1.bf16.msra.mxu0 0
    %4852 = vmatprep.subr.bf16.mxu0 0
    %4853 = vmatpush1.bf16.msra.mxu0 0
    %4854 = vmatprep.subr.bf16.mxu0 0
    %4855 = vmatpush1.bf16.msra.mxu0 0
    %4856 = vmatprep.subr.bf16.mxu0 0
    %4857 = vmatpush1.bf16.msra.mxu0 0
    %4858 = vmatprep.subr.bf16.mxu0 0
    %4859 = vmatpush1.bf16.msra.mxu0 0
    %4860 = vmatprep.subr.bf16.mxu0 0
    %4861 = vmatpush1.bf16.msra.mxu0 0
    %4862 = vmatprep.subr.bf16.mxu0 0
    %4863 = vmatpush1.bf16.msra.mxu0 0
    %4864 = vmatprep.mubr.bf16.mxu0 0
    %4865 = vmatmul.mubr.bf16.gmra.mrb[0].mxu0 %v4809
    %v4866 = vpop.f32.mrb[0].mxu0
    %v4867 = vadd.f32 0.0, %v4866
    %v4868 = vpop.f32.mrb[0].mxu0
    %v4869 = vadd.f32 0.0, %v4868
    %v4870 = vpop.f32.mrb[0].mxu0
    %v4871 = vadd.f32 0.0, %v4870
    %v4872 = vpop.f32.mrb[0].mxu0
    %v4873 = vadd.f32 0.0, %v4872
    %4874 = vmatprep.mubr.bf16.mxu0 0
    %4875 = vmatmul.mubr.bf16.gmra.mrb[0].mxu0 %v4812
    %v4876 = vpop.f32.mrb[0].mxu0
    %v4877 = vadd.f32 0.0, %v4876
    %v4878 = vpop.f32.mrb[0].mxu0
    %v4879 = vadd.f32 0.0, %v4878
    %v4880 = vpop.f32.mrb[0].mxu0
    %v4881 = vadd.f32 0.0, %v4880
    %v4882 = vpop.f32.mrb[0].mxu0
    %v4883 = vadd.f32 0.0, %v4882
    %4884 = vmatprep.mubr.bf16.mxu0 0
    %4885 = vmatmul.mubr.bf16.gmra.mrb[0].mxu0 %v4815
    %v4886 = vpop.f32.mrb[0].mxu0
    %v4887 = vadd.f32 0.0, %v4886
    %v4888 = vpop.f32.mrb[0].mxu0
    %v4889 = vadd.f32 0.0, %v4888
    %v4890 = vpop.f32.mrb[0].mxu0
    %v4891 = vadd.f32 0.0, %v4890
    %v4892 = vpop.f32.mrb[0].mxu0
    %v4893 = vadd.f32 0.0, %v4892
    %4894 = vmatprep.mubr.bf16.mxu0 0
    %4895 = vmatmul.mubr.bf16.gmra.mrb[0].mxu0 %v4818
    %v4896 = vpop.f32.mrb[0].mxu0
    %v4897 = vadd.f32 0.0, %v4896
    %v4898 = vpop.f32.mrb[0].mxu0
    %v4899 = vadd.f32 0.0, %v4898
    %v4900 = vpop.f32.mrb[0].mxu0
    %v4901 = vadd.f32 0.0, %v4900
    %v4902 = vpop.f32.mrb[0].mxu0
    %v4903 = vadd.f32 0.0, %v4902
    %4904 = vmatprep.mubr.bf16.mxu0 0
    %4905 = vmatmul.mubr.bf16.gmra.mrb[0].mxu0 %v4821
    %v4906 = vpop.f32.mrb[0].mxu0
    %v4907 = vadd.f32 0.0, %v4906
    %v4908 = vpop.f32.mrb[0].mxu0
    %v4909 = vadd.f32 0.0, %v4908
    %v4910 = vpop.f32.mrb[0].mxu0
    %v4911 = vadd.f32 0.0, %v4910
    %v4912 = vpop.f32.mrb[0].mxu0
    %v4913 = vadd.f32 0.0, %v4912
    %4914 = vmatprep.mubr.bf16.mxu0 0
    %4915 = vmatmul.mubr.bf16.gmra.mrb[0].mxu0 %v4824
    %v4916 = vpop.f32.mrb[0].mxu0
    %v4917 = vadd.f32 0.0, %v4916
    %v4918 = vpop.f32.mrb[0].mxu0
    %v4919 = vadd.f32 0.0, %v4918
    %v4920 = vpop.f32.mrb[0].mxu0
    %v4921 = vadd.f32 0.0, %v4920
    %v4922 = vpop.f32.mrb[0].mxu0
    %v4923 = vadd.f32 0.0, %v4922
    %4924 = vmatprep.mubr.bf16.mxu0 0
    %4925 = vmatmul.mubr.bf16.gmra.mrb[0].mxu0 %v4827
    %v4926 = vpop.f32.mrb[0].mxu0
    %v4927 = vadd.f32 0.0, %v4926
    %v4928 = vpop.f32.mrb[0].mxu0
    %v4929 = vadd.f32 0.0, %v4928
    %v4930 = vpop.f32.mrb[0].mxu0
    %v4931 = vadd.f32 0.0, %v4930
    %v4932 = vpop.f32.mrb[0].mxu0
    %v4933 = vadd.f32 0.0, %v4932
    %4934 = vmatprep.mubr.bf16.mxu0 0
    %4935 = vmatmul.mubr.bf16.gmra.mrb[0].mxu0 %v4830
    %v4936 = vpop.f32.mrb[0].mxu0
    %v4937 = vadd.f32 0.0, %v4936
    %v4938 = vpop.f32.mrb[0].mxu0
    %v4939 = vadd.f32 0.0, %v4938
    %v4940 = vpop.f32.mrb[0].mxu0
    %v4941 = vadd.f32 0.0, %v4940
    %v4942 = vpop.f32.mrb[0].mxu0
    %v4943 = vadd.f32 0.0, %v4942
    %4944 = vdwg.mxu0
    %4945 = vmatprep.subr.bf16.mxu0 0
    %4946 = vmatpush1.bf16.msra.mxu0 %v4791
    %4947 = vmatprep.subr.bf16.mxu0 0
    %4948 = vmatpush1.bf16.msra.mxu0 %v4794
    %4949 = vmatprep.subr.bf16.mxu0 0
    %4950 = vmatpush1.bf16.msra.mxu0 %v4797
    %4951 = vmatprep.subr.bf16.mxu0 0
    %4952 = vmatpush1.bf16.msra.mxu0 0
    %4953 = vmatprep.subr.bf16.mxu0 0
    %4954 = vmatpush1.bf16.msra.mxu0 0
    %4955 = vmatprep.subr.bf16.mxu0 0
    %4956 = vmatpush1.bf16.msra.mxu0 0
    %4957 = vmatprep.subr.bf16.mxu0 0
    %4958 = vmatpush1.bf16.msra.mxu0 0
    %4959 = vmatprep.subr.bf16.mxu0 0
    %4960 = vmatpush1.bf16.msra.mxu0 0
    %4961 = vmatprep.subr.bf16.mxu0 0
    %4962 = vmatpush1.bf16.msra.mxu0 0
    %4963 = vmatprep.subr.bf16.mxu0 0
    %4964 = vmatpush1.bf16.msra.mxu0 0
    %4965 = vmatprep.subr.bf16.mxu0 0
    %4966 = vmatpush1.bf16.msra.mxu0 0
    %4967 = vmatprep.subr.bf16.mxu0 0
    %4968 = vmatpush1.bf16.msra.mxu0 0
    %4969 = vmatprep.subr.bf16.mxu0 0
    %4970 = vmatpush1.bf16.msra.mxu0 0
    %4971 = vmatprep.subr.bf16.mxu0 0
    %4972 = vmatpush1.bf16.msra.mxu0 0
    %4973 = vmatprep.subr.bf16.mxu0 0
    %4974 = vmatpush1.bf16.msra.mxu0 0
    %4975 = vmatprep.subr.bf16.mxu0 0
    %4976 = vmatpush1.bf16.msra.mxu0 0
    %4977 = vmatprep.mubr.bf16.mxu0 0
    %4978 = vmatmul.mubr.bf16.gmra.mrb[0].mxu0 %v4809
    %v4979 = vpop.f32.mrb[0].mxu0
    %v4980 = vadd.f32 0.0, %v4979
    %v4981 = vpop.f32.mrb[0].mxu0
    %v4982 = vpop.f32.mrb[0].mxu0
    %v4983 = vadd.f32 0.0, %v4982
    %v4984 = vpop.f32.mrb[0].mxu0
    %4985 = vmatprep.mubr.bf16.mxu0 0
    %4986 = vmatmul.mubr.bf16.gmra.mrb[0].mxu0 %v4812
    %v4987 = vpop.f32.mrb[0].mxu0
    %v4988 = vadd.f32 0.0, %v4987
    %v4989 = vpop.f32.mrb[0].mxu0
    %v4990 = vpop.f32.mrb[0].mxu0
    %v4991 = vadd.f32 0.0, %v4990
    %v4992 = vpop.f32.mrb[0].mxu0
    %4993 = vmatprep.mubr.bf16.mxu0 0
    %4994 = vmatmul.mubr.bf16.gmra.mrb[0].mxu0 %v4815
    %v4995 = vpop.f32.mrb[0].mxu0
    %v4996 = vadd.f32 0.0, %v4995
    %v4997 = vpop.f32.mrb[0].mxu0
    %v4998 = vpop.f32.mrb[0].mxu0
    %v4999 = vadd.f32 0.0, %v4998
    %v5000 = vpop.f32.mrb[0].mxu0
    %5001 = vmatprep.mubr.bf16.mxu0 0
    %5002 = vmatmul.mubr.bf16.gmra.mrb[0].mxu0 %v4818
    %v5003 = vpop.f32.mrb[0].mxu0
    %v5004 = vadd.f32 0.0, %v5003
    %v5005 = vpop.f32.mrb[0].mxu0
    %v5006 = vpop.f32.mrb[0].mxu0
    %v5007 = vadd.f32 0.0, %v5006
    %v5008 = vpop.f32.mrb[0].mxu0
    %5009 = vmatprep.mubr.bf16.mxu0 0
    %5010 = vmatmul.mubr.bf16.gmra.mrb[0].mxu0 %v4821
    %v5011 = vpop.f32.mrb[0].mxu0
    %v5012 = vadd.f32 0.0, %v5011
    %v5013 = vpop.f32.mrb[0].mxu0
    %v5014 = vpop.f32.mrb[0].mxu0
    %v5015 = vadd.f32 0.0, %v5014
    %v5016 = vpop.f32.mrb[0].mxu0
    %5017 = vmatprep.mubr.bf16.mxu0 0
    %5018 = vmatmul.mubr.bf16.gmra.mrb[0].mxu0 %v4824
    %v5019 = vpop.f32.mrb[0].mxu0
    %v5020 = vadd.f32 0.0, %v5019
    %v5021 = vpop.f32.mrb[0].mxu0
    %v5022 = vpop.f32.mrb[0].mxu0
    %v5023 = vadd.f32 0.0, %v5022
    %v5024 = vpop.f32.mrb[0].mxu0
    %5025 = vmatprep.mubr.bf16.mxu0 0
    %5026 = vmatmul.mubr.bf16.gmra.mrb[0].mxu0 %v4827
    %v5027 = vpop.f32.mrb[0].mxu0
    %v5028 = vadd.f32 0.0, %v5027
    %v5029 = vpop.f32.mrb[0].mxu0
    %v5030 = vpop.f32.mrb[0].mxu0
    %v5031 = vadd.f32 0.0, %v5030
    %v5032 = vpop.f32.mrb[0].mxu0
    %5033 = vmatprep.mubr.bf16.mxu0 0
    %5034 = vmatmul.mubr.bf16.gmra.mrb[0].mxu0 %v4830
    %v5035 = vpop.f32.mrb[0].mxu0
    %v5036 = vadd.f32 0.0, %v5035
    %v5037 = vpop.f32.mrb[0].mxu0
    %v5038 = vpop.f32.mrb[0].mxu0
    %v5039 = vadd.f32 0.0, %v5038
    %v5040 = vpop.f32.mrb[0].mxu0
    %5041 = vdwg.mxu0
    %v5042 = vld [vmem:[%s9] sm:$0x1]
    %v5044 = vlaneseq
    %v5045 = vshrl.u32 %v5044, 7
    %v5046 = vsub.s32 0, %v5045
    %v5047 = vrot.slane %v5042, %v5046
    %v5049 = vadd.f32 %v4869, %v5047
    %v5050 = vadd.f32 %v4873, %v5047
    %v5051 = vadd.f32 %v4879, %v5047
    %v5052 = vadd.f32 %v4883, %v5047
    %v5053 = vadd.f32 %v4889, %v5047
    %v5054 = vadd.f32 %v4893, %v5047
    %v5055 = vadd.f32 %v4899, %v5047
    %v5056 = vadd.f32 %v4903, %v5047
    %v5057 = vadd.f32 %v4909, %v5047
    %v5058 = vadd.f32 %v4913, %v5047
    %v5059 = vadd.f32 %v4919, %v5047
    %v5060 = vadd.f32 %v4923, %v5047
    %v5061 = vadd.f32 %v4929, %v5047
    %v5062 = vadd.f32 %v4933, %v5047
    %v5063 = vadd.f32 %v4939, %v5047
    %v5064 = vadd.f32 %v4943, %v5047
    %v5065 = vrot.slane %v4867, 4
    %v5066 = vrot.slane %v4871, 4
    %v5067 = vrot.slane %v4877, 4
    %v5068 = vrot.slane %v4881, 4
    %v5069 = vrot.slane %v4887, 4
    %v5070 = vrot.slane %v4891, 4
    %v5071 = vrot.slane %v4897, 4
    %v5072 = vrot.slane %v4901, 4
    %v5073 = vrot.slane %v4907, 4
    %v5074 = vrot.slane %v4911, 4
    %v5075 = vrot.slane %v4917, 4
    %v5076 = vrot.slane %v4921, 4
    %v5077 = vrot.slane %v4927, 4
    %v5078 = vrot.slane %v4931, 4
    %v5079 = vrot.slane %v4937, 4
    %v5080 = vrot.slane %v4941, 4
    %v5081 = vsel %vm1387, %v5079, %v5080
    %v5082 = vsel %vm1387, %v5078, %v5079
    %v5083 = vsel %vm1387, %v5077, %v5078
    %v5084 = vsel %vm1387, %v5076, %v5077
    %v5085 = vsel %vm1387, %v5075, %v5076
    %v5086 = vsel %vm1387, %v5074, %v5075
    %v5087 = vsel %vm1387, %v5073, %v5074
    %v5088 = vsel %vm1387, %v5072, %v5073
    %v5089 = vsel %vm1387, %v5071, %v5072
    %v5090 = vsel %vm1387, %v5070, %v5071
    %v5091 = vsel %vm1387, %v5069, %v5070
    %v5092 = vsel %vm1387, %v5068, %v5069
    %v5093 = vsel %vm1387, %v5067, %v5068
    %v5094 = vsel %vm1387, %v5066, %v5067
    %v5095 = vsel %vm1387, %v5065, %v5066
    %v5096 = vsel %vm1387, %v5080, %v5065
    %v5097 = vsel %vm4707, 1, 0
    %v5098 = vsel %vm4708, 1, 0
    %v5099 = vsel %vm4709, 1, 0
    %v5100 = vsel %vm4710, 1, 0
    %v5101 = vsel %vm4711, 1, 0
    %v5102 = vsel %vm4712, 1, 0
    %v5103 = vsel %vm4713, 1, 0
    %v5104 = vsel %vm4714, 1, 0
    %v5105 = vsel %vm4715, 1, 0
    %v5106 = vsel %vm4716, 1, 0
    %v5107 = vsel %vm4717, 1, 0
    %v5108 = vsel %vm4718, 1, 0
    %v5109 = vsel %vm4719, 1, 0
    %v5110 = vsel %vm4720, 1, 0
    %v5111 = vsel %vm4721, 1, 0
    %v5112 = vsel %vm4722, 1, 0
    %vm5113 = vcmp.eq.s32.totalorder %v5097, 1
    %vm5114 = vcmp.eq.s32.totalorder %v5098, 1
    %vm5115 = vcmp.eq.s32.totalorder %v5099, 1
    %vm5116 = vcmp.eq.s32.totalorder %v5100, 1
    %vm5117 = vcmp.eq.s32.totalorder %v5101, 1
    %vm5118 = vcmp.eq.s32.totalorder %v5102, 1
    %vm5119 = vcmp.eq.s32.totalorder %v5103, 1
    %vm5120 = vcmp.eq.s32.totalorder %v5104, 1
    %vm5121 = vcmp.eq.s32.totalorder %v5105, 1
    %vm5122 = vcmp.eq.s32.totalorder %v5106, 1
    %vm5123 = vcmp.eq.s32.totalorder %v5107, 1
    %vm5124 = vcmp.eq.s32.totalorder %v5108, 1
    %vm5125 = vcmp.eq.s32.totalorder %v5109, 1
    %vm5126 = vcmp.eq.s32.totalorder %v5110, 1
    %vm5127 = vcmp.eq.s32.totalorder %v5111, 1
    %vm5128 = vcmp.eq.s32.totalorder %v5112, 1
    %v5129 = vsel %vm5113, %v5096, 0.0
    %v5130 = vsel %vm5114, %v5095, 0.0
    %v5131 = vsel %vm5115, %v5094, 0.0
    %v5132 = vsel %vm5116, %v5093, 0.0
    %v5133 = vsel %vm5117, %v5092, 0.0
    %v5134 = vsel %vm5118, %v5091, 0.0
    %v5135 = vsel %vm5119, %v5090, 0.0
    %v5136 = vsel %vm5120, %v5089, 0.0
    %v5137 = vsel %vm5121, %v5088, 0.0
    %v5138 = vsel %vm5122, %v5087, 0.0
    %v5139 = vsel %vm5123, %v5086, 0.0
    %v5140 = vsel %vm5124, %v5085, 0.0
    %v5141 = vsel %vm5125, %v5084, 0.0
    %v5142 = vsel %vm5126, %v5083, 0.0
    %v5143 = vsel %vm5127, %v5082, 0.0
    %v5144 = vsel %vm5128, %v5081, 0.0
    %v5145 = vadd.f32 %v5049, %v5129
    %v5146 = vadd.f32 %v5050, %v5130
    %v5147 = vadd.f32 %v5051, %v5131
    %v5148 = vadd.f32 %v5052, %v5132
    %v5149 = vadd.f32 %v5053, %v5133
    %v5150 = vadd.f32 %v5054, %v5134
    %v5151 = vadd.f32 %v5055, %v5135
    %v5152 = vadd.f32 %v5056, %v5136
    %v5153 = vadd.f32 %v5057, %v5137
    %v5154 = vadd.f32 %v5058, %v5138
    %v5155 = vadd.f32 %v5059, %v5139
    %v5156 = vadd.f32 %v5060, %v5140
    %v5157 = vadd.f32 %v5061, %v5141
    %v5158 = vadd.f32 %v5062, %v5142
    %v5159 = vadd.f32 %v5063, %v5143
    %v5160 = vadd.f32 %v5064, %v5144
    %v5161 = vrot.slane %v4980, 4
    %v5162 = vrot.slane %v4983, 4
    %v5163 = vrot.slane %v4988, 4
    %v5164 = vrot.slane %v4991, 4
    %v5165 = vrot.slane %v4996, 4
    %v5166 = vrot.slane %v4999, 4
    %v5167 = vrot.slane %v5004, 4
    %v5168 = vrot.slane %v5007, 4
    %v5169 = vrot.slane %v5012, 4
    %v5170 = vrot.slane %v5015, 4
    %v5171 = vrot.slane %v5020, 4
    %v5172 = vrot.slane %v5023, 4
    %v5173 = vrot.slane %v5028, 4
    %v5174 = vrot.slane %v5031, 4
    %v5175 = vrot.slane %v5036, 4
    %v5176 = vrot.slane %v5039, 4
    %v5177 = vsel %vm1387, %v5175, %v5176
    %v5178 = vsel %vm1387, %v5174, %v5175
    %v5179 = vsel %vm1387, %v5173, %v5174
    %v5180 = vsel %vm1387, %v5172, %v5173
    %v5181 = vsel %vm1387, %v5171, %v5172
    %v5182 = vsel %vm1387, %v5170, %v5171
    %v5183 = vsel %vm1387, %v5169, %v5170
    %v5184 = vsel %vm1387, %v5168, %v5169
    %v5185 = vsel %vm1387, %v5167, %v5168
    %v5186 = vsel %vm1387, %v5166, %v5167
    %v5187 = vsel %vm1387, %v5165, %v5166
    %v5188 = vsel %vm1387, %v5164, %v5165
    %v5189 = vsel %vm1387, %v5163, %v5164
    %v5190 = vsel %vm1387, %v5162, %v5163
    %v5191 = vsel %vm1387, %v5161, %v5162
    %v5192 = vsel %vm1387, %v5176, %v5161
    %v5193 = vsel %vm4723, 1, 0
    %v5194 = vsel %vm4724, 1, 0
    %v5195 = vsel %vm4725, 1, 0
    %v5196 = vsel %vm4726, 1, 0
    %v5197 = vsel %vm4727, 1, 0
    %v5198 = vsel %vm4728, 1, 0
    %v5199 = vsel %vm4729, 1, 0
    %v5200 = vsel %vm4730, 1, 0
    %v5201 = vsel %vm4731, 1, 0
    %v5202 = vsel %vm4732, 1, 0
    %v5203 = vsel %vm4733, 1, 0
    %v5204 = vsel %vm4734, 1, 0
    %v5205 = vsel %vm4735, 1, 0
    %v5206 = vsel %vm4736, 1, 0
    %v5207 = vsel %vm4737, 1, 0
    %v5208 = vsel %vm4738, 1, 0
    %vm5209 = vcmp.eq.s32.totalorder %v5193, 1
    %vm5210 = vcmp.eq.s32.totalorder %v5194, 1
    %vm5211 = vcmp.eq.s32.totalorder %v5195, 1
    %vm5212 = vcmp.eq.s32.totalorder %v5196, 1
    %vm5213 = vcmp.eq.s32.totalorder %v5197, 1
    %vm5214 = vcmp.eq.s32.totalorder %v5198, 1
    %vm5215 = vcmp.eq.s32.totalorder %v5199, 1
    %vm5216 = vcmp.eq.s32.totalorder %v5200, 1
    %vm5217 = vcmp.eq.s32.totalorder %v5201, 1
    %vm5218 = vcmp.eq.s32.totalorder %v5202, 1
    %vm5219 = vcmp.eq.s32.totalorder %v5203, 1
    %vm5220 = vcmp.eq.s32.totalorder %v5204, 1
    %vm5221 = vcmp.eq.s32.totalorder %v5205, 1
    %vm5222 = vcmp.eq.s32.totalorder %v5206, 1
    %vm5223 = vcmp.eq.s32.totalorder %v5207, 1
    %vm5224 = vcmp.eq.s32.totalorder %v5208, 1
    %v5225 = vsel %vm5209, %v5191, 0.0
    %v5226 = vsel %vm5210, %v5190, 0.0
    %v5227 = vsel %vm5211, %v5189, 0.0
    %v5228 = vsel %vm5212, %v5188, 0.0
    %v5229 = vsel %vm5213, %v5187, 0.0
    %v5230 = vsel %vm5214, %v5186, 0.0
    %v5231 = vsel %vm5215, %v5185, 0.0
    %v5232 = vsel %vm5216, %v5184, 0.0
    %v5233 = vsel %vm5217, %v5183, 0.0
    %v5234 = vsel %vm5218, %v5182, 0.0
    %v5235 = vsel %vm5219, %v5181, 0.0
    %v5236 = vsel %vm5220, %v5180, 0.0
    %v5237 = vsel %vm5221, %v5179, 0.0
    %v5238 = vsel %vm5222, %v5178, 0.0
    %v5239 = vsel %vm5223, %v5177, 0.0
    %v5240 = vsel %vm5224, %v5192, 0.0
    %v5241 = vadd.f32 %v5145, %v5225
    %v5242 = vadd.f32 %v5146, %v5226
    %v5243 = vadd.f32 %v5147, %v5227
    %v5244 = vadd.f32 %v5148, %v5228
    %v5245 = vadd.f32 %v5149, %v5229
    %v5246 = vadd.f32 %v5150, %v5230
    %v5247 = vadd.f32 %v5151, %v5231
    %v5248 = vadd.f32 %v5152, %v5232
    %v5249 = vadd.f32 %v5153, %v5233
    %v5250 = vadd.f32 %v5154, %v5234
    %v5251 = vadd.f32 %v5155, %v5235
    %v5252 = vadd.f32 %v5156, %v5236
    %v5253 = vadd.f32 %v5157, %v5237
    %v5254 = vadd.f32 %v5158, %v5238
    %v5255 = vadd.f32 %v5159, %v5239
    %v5256 = vadd.f32 %v5160, %v5240
    %vm5257 = vcmp.gt.f32.partialorder %v5241, 0.0
    %vm5258 = vcmp.gt.f32.partialorder %v5242, 0.0
    %vm5259 = vcmp.gt.f32.partialorder %v5243, 0.0
    %vm5260 = vcmp.gt.f32.partialorder %v5244, 0.0
    %vm5261 = vcmp.gt.f32.partialorder %v5245, 0.0
    %vm5262 = vcmp.gt.f32.partialorder %v5246, 0.0
    %vm5263 = vcmp.gt.f32.partialorder %v5247, 0.0
    %vm5264 = vcmp.gt.f32.partialorder %v5248, 0.0
    %vm5265 = vcmp.gt.f32.partialorder %v5249, 0.0
    %vm5266 = vcmp.gt.f32.partialorder %v5250, 0.0
    %vm5267 = vcmp.gt.f32.partialorder %v5251, 0.0
    %vm5268 = vcmp.gt.f32.partialorder %v5252, 0.0
    %vm5269 = vcmp.gt.f32.partialorder %v5253, 0.0
    %vm5270 = vcmp.gt.f32.partialorder %v5254, 0.0
    %vm5271 = vcmp.gt.f32.partialorder %v5255, 0.0
    %vm5272 = vcmp.gt.f32.partialorder %v5256, 0.0
    %v5273 = vmin.f32 %v5241, 0.0
    %v5274 = vmin.f32 %v5242, 0.0
    %v5275 = vmin.f32 %v5243, 0.0
    %v5276 = vmin.f32 %v5244, 0.0
    %v5277 = vmin.f32 %v5245, 0.0
    %v5278 = vmin.f32 %v5246, 0.0
    %v5279 = vmin.f32 %v5247, 0.0
    %v5280 = vmin.f32 %v5248, 0.0
    %v5281 = vmin.f32 %v5249, 0.0
    %v5282 = vmin.f32 %v5250, 0.0
    %v5283 = vmin.f32 %v5251, 0.0
    %v5284 = vmin.f32 %v5252, 0.0
    %v5285 = vmin.f32 %v5253, 0.0
    %v5286 = vmin.f32 %v5254, 0.0
    %v5287 = vmin.f32 %v5255, 0.0
    %v5288 = vmin.f32 %v5256, 0.0
    %v5289 = vmul.f32 %v5273, 1.442695
    %v5290 = vpow.pop %v5289
    %v5291 = vmul.f32 %v5274, 1.442695
    %v5292 = vpow.pop %v5291
    %v5293 = vmul.f32 %v5275, 1.442695
    %v5294 = vpow.pop %v5293
    %v5295 = vmul.f32 %v5276, 1.442695
    %v5296 = vpow.pop %v5295
    %v5297 = vmul.f32 %v5277, 1.442695
    %v5298 = vpow.pop %v5297
    %v5299 = vmul.f32 %v5278, 1.442695
    %v5300 = vpow.pop %v5299
    %v5301 = vmul.f32 %v5279, 1.442695
    %v5302 = vpow.pop %v5301
    %v5303 = vmul.f32 %v5280, 1.442695
    %v5304 = vpow.pop %v5303
    %v5305 = vmul.f32 %v5281, 1.442695
    %v5306 = vpow.pop %v5305
    %v5307 = vmul.f32 %v5282, 1.442695
    %v5308 = vpow.pop %v5307
    %v5309 = vmul.f32 %v5283, 1.442695
    %v5310 = vpow.pop %v5309
    %v5311 = vmul.f32 %v5284, 1.442695
    %v5312 = vpow.pop %v5311
    %v5313 = vmul.f32 %v5285, 1.442695
    %v5314 = vpow.pop %v5313
    %v5315 = vmul.f32 %v5286, 1.442695
    %v5316 = vpow.pop %v5315
    %v5317 = vmul.f32 %v5287, 1.442695
    %v5318 = vpow.pop %v5317
    %v5319 = vmul.f32 %v5288, 1.442695
    %v5320 = vpow.pop %v5319
    %v5321 = vsub.f32 %v5290, 1.0
    %v5322 = vsub.f32 %v5292, 1.0
    %v5323 = vsub.f32 %v5294, 1.0
    %v5324 = vsub.f32 %v5296, 1.0
    %v5325 = vsub.f32 %v5298, 1.0
    %v5326 = vsub.f32 %v5300, 1.0
    %v5327 = vsub.f32 %v5302, 1.0
    %v5328 = vsub.f32 %v5304, 1.0
    %v5329 = vsub.f32 %v5306, 1.0
    %v5330 = vsub.f32 %v5308, 1.0
    %v5331 = vsub.f32 %v5310, 1.0
    %v5332 = vsub.f32 %v5312, 1.0
    %v5333 = vsub.f32 %v5314, 1.0
    %v5334 = vsub.f32 %v5316, 1.0
    %v5335 = vsub.f32 %v5318, 1.0
    %v5336 = vsub.f32 %v5320, 1.0
    %v5337 = vsel %vm5257, %v5241, %v5321
    %v5338 = vsel %vm5258, %v5242, %v5322
    %v5339 = vsel %vm5259, %v5243, %v5323
    %v5340 = vsel %vm5260, %v5244, %v5324
    %v5341 = vsel %vm5261, %v5245, %v5325
    %v5342 = vsel %vm5262, %v5246, %v5326
    %v5343 = vsel %vm5263, %v5247, %v5327
    %v5344 = vsel %vm5264, %v5248, %v5328
    %v5345 = vsel %vm5265, %v5249, %v5329
    %v5346 = vsel %vm5266, %v5250, %v5330
    %v5347 = vsel %vm5267, %v5251, %v5331
    %v5348 = vsel %vm5268, %v5252, %v5332
    %v5349 = vsel %vm5269, %v5253, %v5333
    %v5350 = vsel %vm5270, %v5254, %v5334
    %v5351 = vsel %vm5271, %v5255, %v5335
    %v5352 = vsel %vm5272, %v5256, %v5336
    %v5353 = vadd.f32 %v4453, %v5337
    %v5354 = vadd.f32 %v4456, %v5338
    %v5355 = vadd.f32 %v4461, %v5339
    %v5356 = vadd.f32 %v4464, %v5340
    %v5357 = vadd.f32 %v4469, %v5341
    %v5358 = vadd.f32 %v4472, %v5342
    %v5359 = vadd.f32 %v4477, %v5343
    %v5360 = vadd.f32 %v4480, %v5344
    %v5361 = vadd.f32 %v4485, %v5345
    %v5362 = vadd.f32 %v4488, %v5346
    %v5363 = vadd.f32 %v4493, %v5347
    %v5364 = vadd.f32 %v4496, %v5348
    %v5365 = vadd.f32 %v4501, %v5349
    %v5366 = vadd.f32 %v4504, %v5350
    %v5367 = vadd.f32 %v4509, %v5351
    %v5368 = vadd.f32 %v4512, %v5352
    %v5369 = vpack.c.bf16 %v5354, %v5353
    %v5370 = vpack.c.bf16 %v5356, %v5355
    %v5371 = vpack.c.bf16 %v5358, %v5357
    %v5372 = vpack.c.bf16 %v5360, %v5359
    %v5373 = vpack.c.bf16 %v5362, %v5361
    %v5374 = vpack.c.bf16 %v5364, %v5363
    %v5375 = vpack.c.bf16 %v5366, %v5365
    %v5376 = vpack.c.bf16 %v5368, %v5367
    %s5377 = scalar_lea.vmem %s8, 72
    %v5378 = vld [vmem:[%s5377] sm:$0xff]
    %v5379 = vld [vmem:[%s5377 + $0x8] sm:$0xf]
    %v5380 = vld [vmem:[%s5377 + $0xc] sm:$0xff]
    %v5381 = vld [vmem:[%s5377 + $0x14] sm:$0xf]
    %v5382 = vld [vmem:[%s5377 + $0x18] sm:$0xff]
    %v5383 = vld [vmem:[%s5377 + $0x20] sm:$0xf]
    %v5384 = vld [vmem:[%s5377 + $0x24] sm:$0xff]
    %v5385 = vld [vmem:[%s5377 + $0x2c] sm:$0xf]
    %v5386 = vld [vmem:[%s5377 + $0x30] sm:$0xff]
    %v5387 = vld [vmem:[%s5377 + $0x38] sm:$0xf]
    %v5388 = vld [vmem:[%s5377 + $0x3c] sm:$0xff]
    %v5389 = vld [vmem:[%s5377 + $0x44] sm:$0xf]
    %v5402 = vunpack.c.l.b16 %v5378
    %v5403 = vunpack.c.h.b16 %v5378
    %v5404 = vunpack.c.l.b16 %v5379
    %v5405 = vunpack.c.l.b16 %v5380
    %v5406 = vunpack.c.h.b16 %v5380
    %v5407 = vunpack.c.l.b16 %v5381
    %v5408 = vunpack.c.l.b16 %v5382
    %v5409 = vunpack.c.h.b16 %v5382
    %v5410 = vunpack.c.l.b16 %v5383
    %v5411 = vunpack.c.l.b16 %v5384
    %v5412 = vunpack.c.h.b16 %v5384
    %v5413 = vunpack.c.l.b16 %v5385
    %v5414 = vunpack.c.l.b16 %v5386
    %v5415 = vunpack.c.h.b16 %v5386
    %v5416 = vunpack.c.l.b16 %v5387
    %v5417 = vunpack.c.l.b16 %v5388
    %v5418 = vunpack.c.h.b16 %v5388
    %v5419 = vunpack.c.l.b16 %v5389
    %v5420 = vpack.c.b16 %v5405, %v5402
    %v5421 = vpack.c.b16 %v5406, %v5403
    %v5422 = vpack.c.b16 %v5407, %v5404
    %v5423 = vpack.c.b16 %v5411, %v5408
    %v5424 = vpack.c.b16 %v5412, %v5409
    %v5425 = vpack.c.b16 %v5413, %v5410
    %v5426 = vpack.c.b16 %v5417, %v5414
    %v5427 = vpack.c.b16 %v5418, %v5415
    %v5428 = vpack.c.b16 %v5419, %v5416
    %v5439 = vsel %vm4807, %v5369, 0
    %v5442 = vsel %vm4807, %v5370, 0
    %v5445 = vsel %vm4807, %v5371, 0
    %v5448 = vsel %vm4807, %v5372, 0
    %v5451 = vsel %vm4807, %v5373, 0
    %v5454 = vsel %vm4807, %v5374, 0
    %v5457 = vsel %vm4807, %v5375, 0
    %v5460 = vsel %vm4807, %v5376, 0
    %5462 = vmatprep.subr.bf16.mxu0 %v5421
    %5463 = vmatpush1.bf16.msra.mxu0 %v5420
    %5464 = vmatprep.subr.bf16.mxu0 %v5424
    %5465 = vmatpush1.bf16.msra.mxu0 %v5423
    %5466 = vmatprep.subr.bf16.mxu0 %v5427
    %5467 = vmatpush1.bf16.msra.mxu0 %v5426
    %5468 = vmatprep.subr.bf16.mxu0 0
    %5469 = vmatpush1.bf16.msra.mxu0 0
    %5470 = vmatprep.subr.bf16.mxu0 0
    %5471 = vmatpush1.bf16.msra.mxu0 0
    %5472 = vmatprep.subr.bf16.mxu0 0
    %5473 = vmatpush1.bf16.msra.mxu0 0
    %5474 = vmatprep.subr.bf16.mxu0 0
    %5475 = vmatpush1.bf16.msra.mxu0 0
    %5476 = vmatprep.subr.bf16.mxu0 0
    %5477 = vmatpush1.bf16.msra.mxu0 0
    %5478 = vmatprep.subr.bf16.mxu0 0
    %5479 = vmatpush1.bf16.msra.mxu0 0
    %5480 = vmatprep.subr.bf16.mxu0 0
    %5481 = vmatpush1.bf16.msra.mxu0 0
    %5482 = vmatprep.subr.bf16.mxu0 0
    %5483 = vmatpush1.bf16.msra.mxu0 0
    %5484 = vmatprep.subr.bf16.mxu0 0
    %5485 = vmatpush1.bf16.msra.mxu0 0
    %5486 = vmatprep.subr.bf16.mxu0 0
    %5487 = vmatpush1.bf16.msra.mxu0 0
    %5488 = vmatprep.subr.bf16.mxu0 0
    %5489 = vmatpush1.bf16.msra.mxu0 0
    %5490 = vmatprep.subr.bf16.mxu0 0
    %5491 = vmatpush1.bf16.msra.mxu0 0
    %5492 = vmatprep.subr.bf16.mxu0 0
    %5493 = vmatpush1.bf16.msra.mxu0 0
    %5494 = vmatprep.mubr.bf16.mxu0 0
    %5495 = vmatmul.mubr.bf16.gmra.mrb[0].mxu0 %v5439
    %v5496 = vpop.f32.mrb[0].mxu0
    %v5497 = vadd.f32 0.0, %v5496
    %v5498 = vpop.f32.mrb[0].mxu0
    %v5499 = vadd.f32 0.0, %v5498
    %v5500 = vpop.f32.mrb[0].mxu0
    %v5501 = vadd.f32 0.0, %v5500
    %v5502 = vpop.f32.mrb[0].mxu0
    %v5503 = vadd.f32 0.0, %v5502
    %5504 = vmatprep.mubr.bf16.mxu0 0
    %5505 = vmatmul.mubr.bf16.gmra.mrb[0].mxu0 %v5442
    %v5506 = vpop.f32.mrb[0].mxu0
    %v5507 = vadd.f32 0.0, %v5506
    %v5508 = vpop.f32.mrb[0].mxu0
    %v5509 = vadd.f32 0.0, %v5508
    %v5510 = vpop.f32.mrb[0].mxu0
    %v5511 = vadd.f32 0.0, %v5510
    %v5512 = vpop.f32.mrb[0].mxu0
    %v5513 = vadd.f32 0.0, %v5512
    %5514 = vmatprep.mubr.bf16.mxu0 0
    %5515 = vmatmul.mubr.bf16.gmra.mrb[0].mxu0 %v5445
    %v5516 = vpop.f32.mrb[0].mxu0
    %v5517 = vadd.f32 0.0, %v5516
    %v5518 = vpop.f32.mrb[0].mxu0
    %v5519 = vadd.f32 0.0, %v5518
    %v5520 = vpop.f32.mrb[0].mxu0
    %v5521 = vadd.f32 0.0, %v5520
    %v5522 = vpop.f32.mrb[0].mxu0
    %v5523 = vadd.f32 0.0, %v5522
    %5524 = vmatprep.mubr.bf16.mxu0 0
    %5525 = vmatmul.mubr.bf16.gmra.mrb[0].mxu0 %v5448
    %v5526 = vpop.f32.mrb[0].mxu0
    %v5527 = vadd.f32 0.0, %v5526
    %v5528 = vpop.f32.mrb[0].mxu0
    %v5529 = vadd.f32 0.0, %v5528
    %v5530 = vpop.f32.mrb[0].mxu0
    %v5531 = vadd.f32 0.0, %v5530
    %v5532 = vpop.f32.mrb[0].mxu0
    %v5533 = vadd.f32 0.0, %v5532
    %5534 = vmatprep.mubr.bf16.mxu0 0
    %5535 = vmatmul.mubr.bf16.gmra.mrb[0].mxu0 %v5451
    %v5536 = vpop.f32.mrb[0].mxu0
    %v5537 = vadd.f32 0.0, %v5536
    %v5538 = vpop.f32.mrb[0].mxu0
    %v5539 = vadd.f32 0.0, %v5538
    %v5540 = vpop.f32.mrb[0].mxu0
    %v5541 = vadd.f32 0.0, %v5540
    %v5542 = vpop.f32.mrb[0].mxu0
    %v5543 = vadd.f32 0.0, %v5542
    %5544 = vmatprep.mubr.bf16.mxu0 0
    %5545 = vmatmul.mubr.bf16.gmra.mrb[0].mxu0 %v5454
    %v5546 = vpop.f32.mrb[0].mxu0
    %v5547 = vadd.f32 0.0, %v5546
    %v5548 = vpop.f32.mrb[0].mxu0
    %v5549 = vadd.f32 0.0, %v5548
    %v5550 = vpop.f32.mrb[0].mxu0
    %v5551 = vadd.f32 0.0, %v5550
    %v5552 = vpop.f32.mrb[0].mxu0
    %v5553 = vadd.f32 0.0, %v5552
    %5554 = vmatprep.mubr.bf16.mxu0 0
    %5555 = vmatmul.mubr.bf16.gmra.mrb[0].mxu0 %v5457
    %v5556 = vpop.f32.mrb[0].mxu0
    %v5557 = vadd.f32 0.0, %v5556
    %v5558 = vpop.f32.mrb[0].mxu0
    %v5559 = vadd.f32 0.0, %v5558
    %v5560 = vpop.f32.mrb[0].mxu0
    %v5561 = vadd.f32 0.0, %v5560
    %v5562 = vpop.f32.mrb[0].mxu0
    %v5563 = vadd.f32 0.0, %v5562
    %5564 = vmatprep.mubr.bf16.mxu0 0
    %5565 = vmatmul.mubr.bf16.gmra.mrb[0].mxu0 %v5460
    %v5566 = vpop.f32.mrb[0].mxu0
    %v5567 = vadd.f32 0.0, %v5566
    %v5568 = vpop.f32.mrb[0].mxu0
    %v5569 = vadd.f32 0.0, %v5568
    %v5570 = vpop.f32.mrb[0].mxu0
    %v5571 = vadd.f32 0.0, %v5570
    %v5572 = vpop.f32.mrb[0].mxu0
    %v5573 = vadd.f32 0.0, %v5572
    %5574 = vdwg.mxu0
    %5575 = vmatprep.subr.bf16.mxu0 0
    %5576 = vmatpush1.bf16.msra.mxu0 %v5422
    %5577 = vmatprep.subr.bf16.mxu0 0
    %5578 = vmatpush1.bf16.msra.mxu0 %v5425
    %5579 = vmatprep.subr.bf16.mxu0 0
    %5580 = vmatpush1.bf16.msra.mxu0 %v5428
    %5581 = vmatprep.subr.bf16.mxu0 0
    %5582 = vmatpush1.bf16.msra.mxu0 0
    %5583 = vmatprep.subr.bf16.mxu0 0
    %5584 = vmatpush1.bf16.msra.mxu0 0
    %5585 = vmatprep.subr.bf16.mxu0 0
    %5586 = vmatpush1.bf16.msra.mxu0 0
    %5587 = vmatprep.subr.bf16.mxu0 0
    %5588 = vmatpush1.bf16.msra.mxu0 0
    %5589 = vmatprep.subr.bf16.mxu0 0
    %5590 = vmatpush1.bf16.msra.mxu0 0
    %5591 = vmatprep.subr.bf16.mxu0 0
    %5592 = vmatpush1.bf16.msra.mxu0 0
    %5593 = vmatprep.subr.bf16.mxu0 0
    %5594 = vmatpush1.bf16.msra.mxu0 0
    %5595 = vmatprep.subr.bf16.mxu0 0
    %5596 = vmatpush1.bf16.msra.mxu0 0
    %5597 = vmatprep.subr.bf16.mxu0 0
    %5598 = vmatpush1.bf16.msra.mxu0 0
    %5599 = vmatprep.subr.bf16.mxu0 0
    %5600 = vmatpush1.bf16.msra.mxu0 0
    %5601 = vmatprep.subr.bf16.mxu0 0
    %5602 = vmatpush1.bf16.msra.mxu0 0
    %5603 = vmatprep.subr.bf16.mxu0 0
    %5604 = vmatpush1.bf16.msra.mxu0 0
    %5605 = vmatprep.subr.bf16.mxu0 0
    %5606 = vmatpush1.bf16.msra.mxu0 0
    %5607 = vmatprep.mubr.bf16.mxu0 0
    %5608 = vmatmul.mubr.bf16.gmra.mrb[0].mxu0 %v5439
    %v5609 = vpop.f32.mrb[0].mxu0
    %v5610 = vadd.f32 0.0, %v5609
    %v5611 = vpop.f32.mrb[0].mxu0
    %v5612 = vpop.f32.mrb[0].mxu0
    %v5613 = vadd.f32 0.0, %v5612
    %v5614 = vpop.f32.mrb[0].mxu0
    %5615 = vmatprep.mubr.bf16.mxu0 0
    %5616 = vmatmul.mubr.bf16.gmra.mrb[0].mxu0 %v5442
    %v5617 = vpop.f32.mrb[0].mxu0
    %v5618 = vadd.f32 0.0, %v5617
    %v5619 = vpop.f32.mrb[0].mxu0
    %v5620 = vpop.f32.mrb[0].mxu0
    %v5621 = vadd.f32 0.0, %v5620
    %v5622 = vpop.f32.mrb[0].mxu0
    %5623 = vmatprep.mubr.bf16.mxu0 0
    %5624 = vmatmul.mubr.bf16.gmra.mrb[0].mxu0 %v5445
    %v5625 = vpop.f32.mrb[0].mxu0
    %v5626 = vadd.f32 0.0, %v5625
    %v5627 = vpop.f32.mrb[0].mxu0
    %v5628 = vpop.f32.mrb[0].mxu0
    %v5629 = vadd.f32 0.0, %v5628
    %v5630 = vpop.f32.mrb[0].mxu0
    %5631 = vmatprep.mubr.bf16.mxu0 0
    %5632 = vmatmul.mubr.bf16.gmra.mrb[0].mxu0 %v5448
    %v5633 = vpop.f32.mrb[0].mxu0
    %v5634 = vadd.f32 0.0, %v5633
    %v5635 = vpop.f32.mrb[0].mxu0
    %v5636 = vpop.f32.mrb[0].mxu0
    %v5637 = vadd.f32 0.0, %v5636
    %v5638 = vpop.f32.mrb[0].mxu0
    %5639 = vmatprep.mubr.bf16.mxu0 0
    %5640 = vmatmul.mubr.bf16.gmra.mrb[0].mxu0 %v5451
    %v5641 = vpop.f32.mrb[0].mxu0
    %v5642 = vadd.f32 0.0, %v5641
    %v5643 = vpop.f32.mrb[0].mxu0
    %v5644 = vpop.f32.mrb[0].mxu0
    %v5645 = vadd.f32 0.0, %v5644
    %v5646 = vpop.f32.mrb[0].mxu0
    %5647 = vmatprep.mubr.bf16.mxu0 0
    %5648 = vmatmul.mubr.bf16.gmra.mrb[0].mxu0 %v5454
    %v5649 = vpop.f32.mrb[0].mxu0
    %v5650 = vadd.f32 0.0, %v5649
    %v5651 = vpop.f32.mrb[0].mxu0
    %v5652 = vpop.f32.mrb[0].mxu0
    %v5653 = vadd.f32 0.0, %v5652
    %v5654 = vpop.f32.mrb[0].mxu0
    %5655 = vmatprep.mubr.bf16.mxu0 0
    %5656 = vmatmul.mubr.bf16.gmra.mrb[0].mxu0 %v5457
    %v5657 = vpop.f32.mrb[0].mxu0
    %v5658 = vadd.f32 0.0, %v5657
    %v5659 = vpop.f32.mrb[0].mxu0
    %v5660 = vpop.f32.mrb[0].mxu0
    %v5661 = vadd.f32 0.0, %v5660
    %v5662 = vpop.f32.mrb[0].mxu0
    %5663 = vmatprep.mubr.bf16.mxu0 0
    %5664 = vmatmul.mubr.bf16.gmra.mrb[0].mxu0 %v5460
    %v5665 = vpop.f32.mrb[0].mxu0
    %v5666 = vadd.f32 0.0, %v5665
    %v5667 = vpop.f32.mrb[0].mxu0
    %v5668 = vpop.f32.mrb[0].mxu0
    %v5669 = vadd.f32 0.0, %v5668
    %v5670 = vpop.f32.mrb[0].mxu0
    %5671 = vdwg.mxu0
    %s5672 = scalar_lea.vmem %s9, 1
    %v5673 = vld [vmem:[%s5672] sm:$0x1]
    %v5675 = vlaneseq
    %v5676 = vshrl.u32 %v5675, 7
    %v5677 = vsub.s32 0, %v5676
    %v5678 = vrot.slane %v5673, %v5677
    %v5680 = vadd.f32 %v5499, %v5678
    %v5681 = vadd.f32 %v5503, %v5678
    %v5682 = vadd.f32 %v5509, %v5678
    %v5683 = vadd.f32 %v5513, %v5678
    %v5684 = vadd.f32 %v5519, %v5678
    %v5685 = vadd.f32 %v5523, %v5678
    %v5686 = vadd.f32 %v5529, %v5678
    %v5687 = vadd.f32 %v5533, %v5678
    %v5688 = vadd.f32 %v5539, %v5678
    %v5689 = vadd.f32 %v5543, %v5678
    %v5690 = vadd.f32 %v5549, %v5678
    %v5691 = vadd.f32 %v5553, %v5678
    %v5692 = vadd.f32 %v5559, %v5678
    %v5693 = vadd.f32 %v5563, %v5678
    %v5694 = vadd.f32 %v5569, %v5678
    %v5695 = vadd.f32 %v5573, %v5678
    %v5696 = vrot.slane %v5497, 4
    %v5697 = vrot.slane %v5501, 4
    %v5698 = vrot.slane %v5507, 4
    %v5699 = vrot.slane %v5511, 4
    %v5700 = vrot.slane %v5517, 4
    %v5701 = vrot.slane %v5521, 4
    %v5702 = vrot.slane %v5527, 4
    %v5703 = vrot.slane %v5531, 4
    %v5704 = vrot.slane %v5537, 4
    %v5705 = vrot.slane %v5541, 4
    %v5706 = vrot.slane %v5547, 4
    %v5707 = vrot.slane %v5551, 4
    %v5708 = vrot.slane %v5557, 4
    %v5709 = vrot.slane %v5561, 4
    %v5710 = vrot.slane %v5567, 4
    %v5711 = vrot.slane %v5571, 4
    %v5712 = vsel %vm1387, %v5710, %v5711
    %v5713 = vsel %vm1387, %v5709, %v5710
    %v5714 = vsel %vm1387, %v5708, %v5709
    %v5715 = vsel %vm1387, %v5707, %v5708
    %v5716 = vsel %vm1387, %v5706, %v5707
    %v5717 = vsel %vm1387, %v5705, %v5706
    %v5718 = vsel %vm1387, %v5704, %v5705
    %v5719 = vsel %vm1387, %v5703, %v5704
    %v5720 = vsel %vm1387, %v5702, %v5703
    %v5721 = vsel %vm1387, %v5701, %v5702
    %v5722 = vsel %vm1387, %v5700, %v5701
    %v5723 = vsel %vm1387, %v5699, %v5700
    %v5724 = vsel %vm1387, %v5698, %v5699
    %v5725 = vsel %vm1387, %v5697, %v5698
    %v5726 = vsel %vm1387, %v5696, %v5697
    %v5727 = vsel %vm1387, %v5711, %v5696
    %v5728 = vsel %vm5113, %v5727, 0.0
    %v5729 = vsel %vm5114, %v5726, 0.0
    %v5730 = vsel %vm5115, %v5725, 0.0
    %v5731 = vsel %vm5116, %v5724, 0.0
    %v5732 = vsel %vm5117, %v5723, 0.0
    %v5733 = vsel %vm5118, %v5722, 0.0
    %v5734 = vsel %vm5119, %v5721, 0.0
    %v5735 = vsel %vm5120, %v5720, 0.0
    %v5736 = vsel %vm5121, %v5719, 0.0
    %v5737 = vsel %vm5122, %v5718, 0.0
    %v5738 = vsel %vm5123, %v5717, 0.0
    %v5739 = vsel %vm5124, %v5716, 0.0
    %v5740 = vsel %vm5125, %v5715, 0.0
    %v5741 = vsel %vm5126, %v5714, 0.0
    %v5742 = vsel %vm5127, %v5713, 0.0
    %v5743 = vsel %vm5128, %v5712, 0.0
    %v5744 = vadd.f32 %v5680, %v5728
    %v5745 = vadd.f32 %v5681, %v5729
    %v5746 = vadd.f32 %v5682, %v5730
    %v5747 = vadd.f32 %v5683, %v5731
    %v5748 = vadd.f32 %v5684, %v5732
    %v5749 = vadd.f32 %v5685, %v5733
    %v5750 = vadd.f32 %v5686, %v5734
    %v5751 = vadd.f32 %v5687, %v5735
    %v5752 = vadd.f32 %v5688, %v5736
    %v5753 = vadd.f32 %v5689, %v5737
    %v5754 = vadd.f32 %v5690, %v5738
    %v5755 = vadd.f32 %v5691, %v5739
    %v5756 = vadd.f32 %v5692, %v5740
    %v5757 = vadd.f32 %v5693, %v5741
    %v5758 = vadd.f32 %v5694, %v5742
    %v5759 = vadd.f32 %v5695, %v5743
    %v5760 = vrot.slane %v5610, 4
    %v5761 = vrot.slane %v5613, 4
    %v5762 = vrot.slane %v5618, 4
    %v5763 = vrot.slane %v5621, 4
    %v5764 = vrot.slane %v5626, 4
    %v5765 = vrot.slane %v5629, 4
    %v5766 = vrot.slane %v5634, 4
    %v5767 = vrot.slane %v5637, 4
    %v5768 = vrot.slane %v5642, 4
    %v5769 = vrot.slane %v5645, 4
    %v5770 = vrot.slane %v5650, 4
    %v5771 = vrot.slane %v5653, 4
    %v5772 = vrot.slane %v5658, 4
    %v5773 = vrot.slane %v5661, 4
    %v5774 = vrot.slane %v5666, 4
    %v5775 = vrot.slane %v5669, 4
    %v5776 = vsel %vm1387, %v5774, %v5775
    %v5777 = vsel %vm1387, %v5773, %v5774
    %v5778 = vsel %vm1387, %v5772, %v5773
    %v5779 = vsel %vm1387, %v5771, %v5772
    %v5780 = vsel %vm1387, %v5770, %v5771
    %v5781 = vsel %vm1387, %v5769, %v5770
    %v5782 = vsel %vm1387, %v5768, %v5769
    %v5783 = vsel %vm1387, %v5767, %v5768
    %v5784 = vsel %vm1387, %v5766, %v5767
    %v5785 = vsel %vm1387, %v5765, %v5766
    %v5786 = vsel %vm1387, %v5764, %v5765
    %v5787 = vsel %vm1387, %v5763, %v5764
    %v5788 = vsel %vm1387, %v5762, %v5763
    %v5789 = vsel %vm1387, %v5761, %v5762
    %v5790 = vsel %vm1387, %v5760, %v5761
    %v5791 = vsel %vm1387, %v5775, %v5760
    %v5792 = vsel %vm5209, %v5790, 0.0
    %v5793 = vsel %vm5210, %v5789, 0.0
    %v5794 = vsel %vm5211, %v5788, 0.0
    %v5795 = vsel %vm5212, %v5787, 0.0
    %v5796 = vsel %vm5213, %v5786, 0.0
    %v5797 = vsel %vm5214, %v5785, 0.0
    %v5798 = vsel %vm5215, %v5784, 0.0
    %v5799 = vsel %vm5216, %v5783, 0.0
    %v5800 = vsel %vm5217, %v5782, 0.0
    %v5801 = vsel %vm5218, %v5781, 0.0
    %v5802 = vsel %vm5219, %v5780, 0.0
    %v5803 = vsel %vm5220, %v5779, 0.0
    %v5804 = vsel %vm5221, %v5778, 0.0
    %v5805 = vsel %vm5222, %v5777, 0.0
    %v5806 = vsel %vm5223, %v5776, 0.0
    %v5807 = vsel %vm5224, %v5791, 0.0
    %v5808 = vadd.f32 %v5744, %v5792
    %v5809 = vadd.f32 %v5745, %v5793
    %v5810 = vadd.f32 %v5746, %v5794
    %v5811 = vadd.f32 %v5747, %v5795
    %v5812 = vadd.f32 %v5748, %v5796
    %v5813 = vadd.f32 %v5749, %v5797
    %v5814 = vadd.f32 %v5750, %v5798
    %v5815 = vadd.f32 %v5751, %v5799
    %v5816 = vadd.f32 %v5752, %v5800
    %v5817 = vadd.f32 %v5753, %v5801
    %v5818 = vadd.f32 %v5754, %v5802
    %v5819 = vadd.f32 %v5755, %v5803
    %v5820 = vadd.f32 %v5756, %v5804
    %v5821 = vadd.f32 %v5757, %v5805
    %v5822 = vadd.f32 %v5758, %v5806
    %v5823 = vadd.f32 %v5759, %v5807
    %vm5824 = vcmp.gt.f32.partialorder %v5808, 0.0
    %vm5825 = vcmp.gt.f32.partialorder %v5809, 0.0
    %vm5826 = vcmp.gt.f32.partialorder %v5810, 0.0
    %vm5827 = vcmp.gt.f32.partialorder %v5811, 0.0
    %vm5828 = vcmp.gt.f32.partialorder %v5812, 0.0
    %vm5829 = vcmp.gt.f32.partialorder %v5813, 0.0
    %vm5830 = vcmp.gt.f32.partialorder %v5814, 0.0
    %vm5831 = vcmp.gt.f32.partialorder %v5815, 0.0
    %vm5832 = vcmp.gt.f32.partialorder %v5816, 0.0
    %vm5833 = vcmp.gt.f32.partialorder %v5817, 0.0
    %vm5834 = vcmp.gt.f32.partialorder %v5818, 0.0
    %vm5835 = vcmp.gt.f32.partialorder %v5819, 0.0
    %vm5836 = vcmp.gt.f32.partialorder %v5820, 0.0
    %vm5837 = vcmp.gt.f32.partialorder %v5821, 0.0
    %vm5838 = vcmp.gt.f32.partialorder %v5822, 0.0
    %vm5839 = vcmp.gt.f32.partialorder %v5823, 0.0
    %v5840 = vmin.f32 %v5808, 0.0
    %v5841 = vmin.f32 %v5809, 0.0
    %v5842 = vmin.f32 %v5810, 0.0
    %v5843 = vmin.f32 %v5811, 0.0
    %v5844 = vmin.f32 %v5812, 0.0
    %v5845 = vmin.f32 %v5813, 0.0
    %v5846 = vmin.f32 %v5814, 0.0
    %v5847 = vmin.f32 %v5815, 0.0
    %v5848 = vmin.f32 %v5816, 0.0
    %v5849 = vmin.f32 %v5817, 0.0
    %v5850 = vmin.f32 %v5818, 0.0
    %v5851 = vmin.f32 %v5819, 0.0
    %v5852 = vmin.f32 %v5820, 0.0
    %v5853 = vmin.f32 %v5821, 0.0
    %v5854 = vmin.f32 %v5822, 0.0
    %v5855 = vmin.f32 %v5823, 0.0
    %v5856 = vmul.f32 %v5840, 1.442695
    %v5857 = vpow.pop %v5856
    %v5858 = vmul.f32 %v5841, 1.442695
    %v5859 = vpow.pop %v5858
    %v5860 = vmul.f32 %v5842, 1.442695
    %v5861 = vpow.pop %v5860
    %v5862 = vmul.f32 %v5843, 1.442695
    %v5863 = vpow.pop %v5862
    %v5864 = vmul.f32 %v5844, 1.442695
    %v5865 = vpow.pop %v5864
    %v5866 = vmul.f32 %v5845, 1.442695
    %v5867 = vpow.pop %v5866
    %v5868 = vmul.f32 %v5846, 1.442695
    %v5869 = vpow.pop %v5868
    %v5870 = vmul.f32 %v5847, 1.442695
    %v5871 = vpow.pop %v5870
    %v5872 = vmul.f32 %v5848, 1.442695
    %v5873 = vpow.pop %v5872
    %v5874 = vmul.f32 %v5849, 1.442695
    %v5875 = vpow.pop %v5874
    %v5876 = vmul.f32 %v5850, 1.442695
    %v5877 = vpow.pop %v5876
    %v5878 = vmul.f32 %v5851, 1.442695
    %v5879 = vpow.pop %v5878
    %v5880 = vmul.f32 %v5852, 1.442695
    %v5881 = vpow.pop %v5880
    %v5882 = vmul.f32 %v5853, 1.442695
    %v5883 = vpow.pop %v5882
    %v5884 = vmul.f32 %v5854, 1.442695
    %v5885 = vpow.pop %v5884
    %v5886 = vmul.f32 %v5855, 1.442695
    %v5887 = vpow.pop %v5886
    %v5888 = vsub.f32 %v5857, 1.0
    %v5889 = vsub.f32 %v5859, 1.0
    %v5890 = vsub.f32 %v5861, 1.0
    %v5891 = vsub.f32 %v5863, 1.0
    %v5892 = vsub.f32 %v5865, 1.0
    %v5893 = vsub.f32 %v5867, 1.0
    %v5894 = vsub.f32 %v5869, 1.0
    %v5895 = vsub.f32 %v5871, 1.0
    %v5896 = vsub.f32 %v5873, 1.0
    %v5897 = vsub.f32 %v5875, 1.0
    %v5898 = vsub.f32 %v5877, 1.0
    %v5899 = vsub.f32 %v5879, 1.0
    %v5900 = vsub.f32 %v5881, 1.0
    %v5901 = vsub.f32 %v5883, 1.0
    %v5902 = vsub.f32 %v5885, 1.0
    %v5903 = vsub.f32 %v5887, 1.0
    %v5904 = vsel %vm5824, %v5808, %v5888
    %v5905 = vsel %vm5825, %v5809, %v5889
    %v5906 = vsel %vm5826, %v5810, %v5890
    %v5907 = vsel %vm5827, %v5811, %v5891
    %v5908 = vsel %vm5828, %v5812, %v5892
    %v5909 = vsel %vm5829, %v5813, %v5893
    %v5910 = vsel %vm5830, %v5814, %v5894
    %v5911 = vsel %vm5831, %v5815, %v5895
    %v5912 = vsel %vm5832, %v5816, %v5896
    %v5913 = vsel %vm5833, %v5817, %v5897
    %v5914 = vsel %vm5834, %v5818, %v5898
    %v5915 = vsel %vm5835, %v5819, %v5899
    %v5916 = vsel %vm5836, %v5820, %v5900
    %v5917 = vsel %vm5837, %v5821, %v5901
    %v5918 = vsel %vm5838, %v5822, %v5902
    %v5919 = vsel %vm5839, %v5823, %v5903
    %v5920 = vadd.f32 %v5353, %v5904
    %v5921 = vadd.f32 %v5354, %v5905
    %v5922 = vadd.f32 %v5355, %v5906
    %v5923 = vadd.f32 %v5356, %v5907
    %v5924 = vadd.f32 %v5357, %v5908
    %v5925 = vadd.f32 %v5358, %v5909
    %v5926 = vadd.f32 %v5359, %v5910
    %v5927 = vadd.f32 %v5360, %v5911
    %v5928 = vadd.f32 %v5361, %v5912
    %v5929 = vadd.f32 %v5362, %v5913
    %v5930 = vadd.f32 %v5363, %v5914
    %v5931 = vadd.f32 %v5364, %v5915
    %v5932 = vadd.f32 %v5365, %v5916
    %v5933 = vadd.f32 %v5366, %v5917
    %v5934 = vadd.f32 %v5367, %v5918
    %v5935 = vadd.f32 %v5368, %v5919
    %v5936 = vpack.c.bf16 %v5921, %v5920
    %v5937 = vpack.c.bf16 %v5923, %v5922
    %v5938 = vpack.c.bf16 %v5925, %v5924
    %v5939 = vpack.c.bf16 %v5927, %v5926
    %v5940 = vpack.c.bf16 %v5929, %v5928
    %v5941 = vpack.c.bf16 %v5931, %v5930
    %v5942 = vpack.c.bf16 %v5933, %v5932
    %v5943 = vpack.c.bf16 %v5935, %v5934
    %s5944 = scalar_lea.vmem %s8, 144
    %v5945 = vld [vmem:[%s5944] sm:$0xff]
    %v5946 = vld [vmem:[%s5944 + $0x8] sm:$0xf]
    %v5947 = vld [vmem:[%s5944 + $0xc] sm:$0xff]
    %v5948 = vld [vmem:[%s5944 + $0x14] sm:$0xf]
    %v5949 = vld [vmem:[%s5944 + $0x18] sm:$0xff]
    %v5950 = vld [vmem:[%s5944 + $0x20] sm:$0xf]
    %v5951 = vld [vmem:[%s5944 + $0x24] sm:$0xff]
    %v5952 = vld [vmem:[%s5944 + $0x2c] sm:$0xf]
    %v5953 = vld [vmem:[%s5944 + $0x30] sm:$0xff]
    %v5954 = vld [vmem:[%s5944 + $0x38] sm:$0xf]
    %v5955 = vld [vmem:[%s5944 + $0x3c] sm:$0xff]
    %v5956 = vld [vmem:[%s5944 + $0x44] sm:$0xf]
    %v5969 = vunpack.c.l.b16 %v5945
    %v5970 = vunpack.c.h.b16 %v5945
    %v5971 = vunpack.c.l.b16 %v5946
    %v5972 = vunpack.c.l.b16 %v5947
    %v5973 = vunpack.c.h.b16 %v5947
    %v5974 = vunpack.c.l.b16 %v5948
    %v5975 = vunpack.c.l.b16 %v5949
    %v5976 = vunpack.c.h.b16 %v5949
    %v5977 = vunpack.c.l.b16 %v5950
    %v5978 = vunpack.c.l.b16 %v5951
    %v5979 = vunpack.c.h.b16 %v5951
    %v5980 = vunpack.c.l.b16 %v5952
    %v5981 = vunpack.c.l.b16 %v5953
    %v5982 = vunpack.c.h.b16 %v5953
    %v5983 = vunpack.c.l.b16 %v5954
    %v5984 = vunpack.c.l.b16 %v5955
    %v5985 = vunpack.c.h.b16 %v5955
    %v5986 = vunpack.c.l.b16 %v5956
    %v5987 = vpack.c.b16 %v5972, %v5969
    %v5988 = vpack.c.b16 %v5973, %v5970
    %v5989 = vpack.c.b16 %v5974, %v5971
    %v5990 = vpack.c.b16 %v5978, %v5975
    %v5991 = vpack.c.b16 %v5979, %v5976
    %v5992 = vpack.c.b16 %v5980, %v5977
    %v5993 = vpack.c.b16 %v5984, %v5981
    %v5994 = vpack.c.b16 %v5985, %v5982
    %v5995 = vpack.c.b16 %v5986, %v5983
    %v6006 = vsel %vm4807, %v5936, 0
    %v6009 = vsel %vm4807, %v5937, 0
    %v6012 = vsel %vm4807, %v5938, 0
    %v6015 = vsel %vm4807, %v5939, 0
    %v6018 = vsel %vm4807, %v5940, 0
    %v6021 = vsel %vm4807, %v5941, 0
    %v6024 = vsel %vm4807, %v5942, 0
    %v6027 = vsel %vm4807, %v5943, 0
    %6029 = vmatprep.subr.bf16.mxu0 %v5988
    %6030 = vmatpush1.bf16.msra.mxu0 %v5987
    %6031 = vmatprep.subr.bf16.mxu0 %v5991
    %6032 = vmatpush1.bf16.msra.mxu0 %v5990
    %6033 = vmatprep.subr.bf16.mxu0 %v5994
    %6034 = vmatpush1.bf16.msra.mxu0 %v5993
    %6035 = vmatprep.subr.bf16.mxu0 0
    %6036 = vmatpush1.bf16.msra.mxu0 0
    %6037 = vmatprep.subr.bf16.mxu0 0
    %6038 = vmatpush1.bf16.msra.mxu0 0
    %6039 = vmatprep.subr.bf16.mxu0 0
    %6040 = vmatpush1.bf16.msra.mxu0 0
    %6041 = vmatprep.subr.bf16.mxu0 0
    %6042 = vmatpush1.bf16.msra.mxu0 0
    %6043 = vmatprep.subr.bf16.mxu0 0
    %6044 = vmatpush1.bf16.msra.mxu0 0
    %6045 = vmatprep.subr.bf16.mxu0 0
    %6046 = vmatpush1.bf16.msra.mxu0 0
    %6047 = vmatprep.subr.bf16.mxu0 0
    %6048 = vmatpush1.bf16.msra.mxu0 0
    %6049 = vmatprep.subr.bf16.mxu0 0
    %6050 = vmatpush1.bf16.msra.mxu0 0
    %6051 = vmatprep.subr.bf16.mxu0 0
    %6052 = vmatpush1.bf16.msra.mxu0 0
    %6053 = vmatprep.subr.bf16.mxu0 0
    %6054 = vmatpush1.bf16.msra.mxu0 0
    %6055 = vmatprep.subr.bf16.mxu0 0
    %6056 = vmatpush1.bf16.msra.mxu0 0
    %6057 = vmatprep.subr.bf16.mxu0 0
    %6058 = vmatpush1.bf16.msra.mxu0 0
    %6059 = vmatprep.subr.bf16.mxu0 0
    %6060 = vmatpush1.bf16.msra.mxu0 0
    %6061 = vmatprep.mubr.bf16.mxu0 0
    %6062 = vmatmul.mubr.bf16.gmra.mrb[0].mxu0 %v6006
    %v6063 = vpop.f32.mrb[0].mxu0
    %v6064 = vadd.f32 0.0, %v6063
    %v6065 = vpop.f32.mrb[0].mxu0
    %v6066 = vadd.f32 0.0, %v6065
    %v6067 = vpop.f32.mrb[0].mxu0
    %v6068 = vadd.f32 0.0, %v6067
    %v6069 = vpop.f32.mrb[0].mxu0
    %v6070 = vadd.f32 0.0, %v6069
    %6071 = vmatprep.mubr.bf16.mxu0 0
    %6072 = vmatmul.mubr.bf16.gmra.mrb[0].mxu0 %v6009
    %v6073 = vpop.f32.mrb[0].mxu0
    %v6074 = vadd.f32 0.0, %v6073
    %v6075 = vpop.f32.mrb[0].mxu0
    %v6076 = vadd.f32 0.0, %v6075
    %v6077 = vpop.f32.mrb[0].mxu0
    %v6078 = vadd.f32 0.0, %v6077
    %v6079 = vpop.f32.mrb[0].mxu0
    %v6080 = vadd.f32 0.0, %v6079
    %6081 = vmatprep.mubr.bf16.mxu0 0
    %6082 = vmatmul.mubr.bf16.gmra.mrb[0].mxu0 %v6012
    %v6083 = vpop.f32.mrb[0].mxu0
    %v6084 = vadd.f32 0.0, %v6083
    %v6085 = vpop.f32.mrb[0].mxu0
    %v6086 = vadd.f32 0.0, %v6085
    %v6087 = vpop.f32.mrb[0].mxu0
    %v6088 = vadd.f32 0.0, %v6087
    %v6089 = vpop.f32.mrb[0].mxu0
    %v6090 = vadd.f32 0.0, %v6089
    %6091 = vmatprep.mubr.bf16.mxu0 0
    %6092 = vmatmul.mubr.bf16.gmra.mrb[0].mxu0 %v6015
    %v6093 = vpop.f32.mrb[0].mxu0
    %v6094 = vadd.f32 0.0, %v6093
    %v6095 = vpop.f32.mrb[0].mxu0
    %v6096 = vadd.f32 0.0, %v6095
    %v6097 = vpop.f32.mrb[0].mxu0
    %v6098 = vadd.f32 0.0, %v6097
    %v6099 = vpop.f32.mrb[0].mxu0
    %v6100 = vadd.f32 0.0, %v6099
    %6101 = vmatprep.mubr.bf16.mxu0 0
    %6102 = vmatmul.mubr.bf16.gmra.mrb[0].mxu0 %v6018
    %v6103 = vpop.f32.mrb[0].mxu0
    %v6104 = vadd.f32 0.0, %v6103
    %v6105 = vpop.f32.mrb[0].mxu0
    %v6106 = vadd.f32 0.0, %v6105
    %v6107 = vpop.f32.mrb[0].mxu0
    %v6108 = vadd.f32 0.0, %v6107
    %v6109 = vpop.f32.mrb[0].mxu0
    %v6110 = vadd.f32 0.0, %v6109
    %6111 = vmatprep.mubr.bf16.mxu0 0
    %6112 = vmatmul.mubr.bf16.gmra.mrb[0].mxu0 %v6021
    %v6113 = vpop.f32.mrb[0].mxu0
    %v6114 = vadd.f32 0.0, %v6113
    %v6115 = vpop.f32.mrb[0].mxu0
    %v6116 = vadd.f32 0.0, %v6115
    %v6117 = vpop.f32.mrb[0].mxu0
    %v6118 = vadd.f32 0.0, %v6117
    %v6119 = vpop.f32.mrb[0].mxu0
    %v6120 = vadd.f32 0.0, %v6119
    %6121 = vmatprep.mubr.bf16.mxu0 0
    %6122 = vmatmul.mubr.bf16.gmra.mrb[0].mxu0 %v6024
    %v6123 = vpop.f32.mrb[0].mxu0
    %v6124 = vadd.f32 0.0, %v6123
    %v6125 = vpop.f32.mrb[0].mxu0
    %v6126 = vadd.f32 0.0, %v6125
    %v6127 = vpop.f32.mrb[0].mxu0
    %v6128 = vadd.f32 0.0, %v6127
    %v6129 = vpop.f32.mrb[0].mxu0
    %v6130 = vadd.f32 0.0, %v6129
    %6131 = vmatprep.mubr.bf16.mxu0 0
    %6132 = vmatmul.mubr.bf16.gmra.mrb[0].mxu0 %v6027
    %v6133 = vpop.f32.mrb[0].mxu0
    %v6134 = vadd.f32 0.0, %v6133
    %v6135 = vpop.f32.mrb[0].mxu0
    %v6136 = vadd.f32 0.0, %v6135
    %v6137 = vpop.f32.mrb[0].mxu0
    %v6138 = vadd.f32 0.0, %v6137
    %v6139 = vpop.f32.mrb[0].mxu0
    %v6140 = vadd.f32 0.0, %v6139
    %6141 = vdwg.mxu0
    %6142 = vmatprep.subr.bf16.mxu0 0
    %6143 = vmatpush1.bf16.msra.mxu0 %v5989
    %6144 = vmatprep.subr.bf16.mxu0 0
    %6145 = vmatpush1.bf16.msra.mxu0 %v5992
    %6146 = vmatprep.subr.bf16.mxu0 0
    %6147 = vmatpush1.bf16.msra.mxu0 %v5995
    %6148 = vmatprep.subr.bf16.mxu0 0
    %6149 = vmatpush1.bf16.msra.mxu0 0
    %6150 = vmatprep.subr.bf16.mxu0 0
    %6151 = vmatpush1.bf16.msra.mxu0 0
    %6152 = vmatprep.subr.bf16.mxu0 0
    %6153 = vmatpush1.bf16.msra.mxu0 0
    %6154 = vmatprep.subr.bf16.mxu0 0
    %6155 = vmatpush1.bf16.msra.mxu0 0
    %6156 = vmatprep.subr.bf16.mxu0 0
    %6157 = vmatpush1.bf16.msra.mxu0 0
    %6158 = vmatprep.subr.bf16.mxu0 0
    %6159 = vmatpush1.bf16.msra.mxu0 0
    %6160 = vmatprep.subr.bf16.mxu0 0
    %6161 = vmatpush1.bf16.msra.mxu0 0
    %6162 = vmatprep.subr.bf16.mxu0 0
    %6163 = vmatpush1.bf16.msra.mxu0 0
    %6164 = vmatprep.subr.bf16.mxu0 0
    %6165 = vmatpush1.bf16.msra.mxu0 0
    %6166 = vmatprep.subr.bf16.mxu0 0
    %6167 = vmatpush1.bf16.msra.mxu0 0
    %6168 = vmatprep.subr.bf16.mxu0 0
    %6169 = vmatpush1.bf16.msra.mxu0 0
    %6170 = vmatprep.subr.bf16.mxu0 0
    %6171 = vmatpush1.bf16.msra.mxu0 0
    %6172 = vmatprep.subr.bf16.mxu0 0
    %6173 = vmatpush1.bf16.msra.mxu0 0
    %6174 = vmatprep.mubr.bf16.mxu0 0
    %6175 = vmatmul.mubr.bf16.gmra.mrb[0].mxu0 %v6006
    %v6176 = vpop.f32.mrb[0].mxu0
    %v6177 = vadd.f32 0.0, %v6176
    %v6178 = vpop.f32.mrb[0].mxu0
    %v6179 = vpop.f32.mrb[0].mxu0
    %v6180 = vadd.f32 0.0, %v6179
    %v6181 = vpop.f32.mrb[0].mxu0
    %6182 = vmatprep.mubr.bf16.mxu0 0
    %6183 = vmatmul.mubr.bf16.gmra.mrb[0].mxu0 %v6009
    %v6184 = vpop.f32.mrb[0].mxu0
    %v6185 = vadd.f32 0.0, %v6184
    %v6186 = vpop.f32.mrb[0].mxu0
    %v6187 = vpop.f32.mrb[0].mxu0
    %v6188 = vadd.f32 0.0, %v6187
    %v6189 = vpop.f32.mrb[0].mxu0
    %6190 = vmatprep.mubr.bf16.mxu0 0
    %6191 = vmatmul.mubr.bf16.gmra.mrb[0].mxu0 %v6012
    %v6192 = vpop.f32.mrb[0].mxu0
    %v6193 = vadd.f32 0.0, %v6192
    %v6194 = vpop.f32.mrb[0].mxu0
    %v6195 = vpop.f32.mrb[0].mxu0
    %v6196 = vadd.f32 0.0, %v6195
    %v6197 = vpop.f32.mrb[0].mxu0
    %6198 = vmatprep.mubr.bf16.mxu0 0
    %6199 = vmatmul.mubr.bf16.gmra.mrb[0].mxu0 %v6015
    %v6200 = vpop.f32.mrb[0].mxu0
    %v6201 = vadd.f32 0.0, %v6200
    %v6202 = vpop.f32.mrb[0].mxu0
    %v6203 = vpop.f32.mrb[0].mxu0
    %v6204 = vadd.f32 0.0, %v6203
    %v6205 = vpop.f32.mrb[0].mxu0
    %6206 = vmatprep.mubr.bf16.mxu0 0
    %6207 = vmatmul.mubr.bf16.gmra.mrb[0].mxu0 %v6018
    %v6208 = vpop.f32.mrb[0].mxu0
    %v6209 = vadd.f32 0.0, %v6208
    %v6210 = vpop.f32.mrb[0].mxu0
    %v6211 = vpop.f32.mrb[0].mxu0
    %v6212 = vadd.f32 0.0, %v6211
    %v6213 = vpop.f32.mrb[0].mxu0
    %6214 = vmatprep.mubr.bf16.mxu0 0
    %6215 = vmatmul.mubr.bf16.gmra.mrb[0].mxu0 %v6021
    %v6216 = vpop.f32.mrb[0].mxu0
    %v6217 = vadd.f32 0.0, %v6216
    %v6218 = vpop.f32.mrb[0].mxu0
    %v6219 = vpop.f32.mrb[0].mxu0
    %v6220 = vadd.f32 0.0, %v6219
    %v6221 = vpop.f32.mrb[0].mxu0
    %6222 = vmatprep.mubr.bf16.mxu0 0
    %6223 = vmatmul.mubr.bf16.gmra.mrb[0].mxu0 %v6024
    %v6224 = vpop.f32.mrb[0].mxu0
    %v6225 = vadd.f32 0.0, %v6224
    %v6226 = vpop.f32.mrb[0].mxu0
    %v6227 = vpop.f32.mrb[0].mxu0
    %v6228 = vadd.f32 0.0, %v6227
    %v6229 = vpop.f32.mrb[0].mxu0
    %6230 = vmatprep.mubr.bf16.mxu0 0
    %6231 = vmatmul.mubr.bf16.gmra.mrb[0].mxu0 %v6027
    %v6232 = vpop.f32.mrb[0].mxu0
    %v6233 = vadd.f32 0.0, %v6232
    %v6234 = vpop.f32.mrb[0].mxu0
    %v6235 = vpop.f32.mrb[0].mxu0
    %v6236 = vadd.f32 0.0, %v6235
    %v6237 = vpop.f32.mrb[0].mxu0
    %6238 = vdwg.mxu0
    %s6239 = scalar_lea.vmem %s9, 2
    %v6240 = vld [vmem:[%s6239] sm:$0x1]
    %v6242 = vlaneseq
    %v6243 = vshrl.u32 %v6242, 7
    %v6244 = vsub.s32 0, %v6243
    %v6245 = vrot.slane %v6240, %v6244
    %v6247 = vadd.f32 %v6066, %v6245
    %v6248 = vadd.f32 %v6070, %v6245
    %v6249 = vadd.f32 %v6076, %v6245
    %v6250 = vadd.f32 %v6080, %v6245
    %v6251 = vadd.f32 %v6086, %v6245
    %v6252 = vadd.f32 %v6090, %v6245
    %v6253 = vadd.f32 %v6096, %v6245
    %v6254 = vadd.f32 %v6100, %v6245
    %v6255 = vadd.f32 %v6106, %v6245
    %v6256 = vadd.f32 %v6110, %v6245
    %v6257 = vadd.f32 %v6116, %v6245
    %v6258 = vadd.f32 %v6120, %v6245
    %v6259 = vadd.f32 %v6126, %v6245
    %v6260 = vadd.f32 %v6130, %v6245
    %v6261 = vadd.f32 %v6136, %v6245
    %v6262 = vadd.f32 %v6140, %v6245
    %v6263 = vrot.slane %v6064, 4
    %v6264 = vrot.slane %v6068, 4
    %v6265 = vrot.slane %v6074, 4
    %v6266 = vrot.slane %v6078, 4
    %v6267 = vrot.slane %v6084, 4
    %v6268 = vrot.slane %v6088, 4
    %v6269 = vrot.slane %v6094, 4
    %v6270 = vrot.slane %v6098, 4
    %v6271 = vrot.slane %v6104, 4
    %v6272 = vrot.slane %v6108, 4
    %v6273 = vrot.slane %v6114, 4
    %v6274 = vrot.slane %v6118, 4
    %v6275 = vrot.slane %v6124, 4
    %v6276 = vrot.slane %v6128, 4
    %v6277 = vrot.slane %v6134, 4
    %v6278 = vrot.slane %v6138, 4
    %v6279 = vsel %vm1387, %v6277, %v6278
    %v6280 = vsel %vm1387, %v6276, %v6277
    %v6281 = vsel %vm1387, %v6275, %v6276
    %v6282 = vsel %vm1387, %v6274, %v6275
    %v6283 = vsel %vm1387, %v6273, %v6274
    %v6284 = vsel %vm1387, %v6272, %v6273
    %v6285 = vsel %vm1387, %v6271, %v6272
    %v6286 = vsel %vm1387, %v6270, %v6271
    %v6287 = vsel %vm1387, %v6269, %v6270
    %v6288 = vsel %vm1387, %v6268, %v6269
    %v6289 = vsel %vm1387, %v6267, %v6268
    %v6290 = vsel %vm1387, %v6266, %v6267
    %v6291 = vsel %vm1387, %v6265, %v6266
    %v6292 = vsel %vm1387, %v6264, %v6265
    %v6293 = vsel %vm1387, %v6263, %v6264
    %v6294 = vsel %vm1387, %v6278, %v6263
    %v6295 = vsel %vm5113, %v6294, 0.0
    %v6296 = vsel %vm5114, %v6293, 0.0
    %v6297 = vsel %vm5115, %v6292, 0.0
    %v6298 = vsel %vm5116, %v6291, 0.0
    %v6299 = vsel %vm5117, %v6290, 0.0
    %v6300 = vsel %vm5118, %v6289, 0.0
    %v6301 = vsel %vm5119, %v6288, 0.0
    %v6302 = vsel %vm5120, %v6287, 0.0
    %v6303 = vsel %vm5121, %v6286, 0.0
    %v6304 = vsel %vm5122, %v6285, 0.0
    %v6305 = vsel %vm5123, %v6284, 0.0
    %v6306 = vsel %vm5124, %v6283, 0.0
    %v6307 = vsel %vm5125, %v6282, 0.0
    %v6308 = vsel %vm5126, %v6281, 0.0
    %v6309 = vsel %vm5127, %v6280, 0.0
    %v6310 = vsel %vm5128, %v6279, 0.0
    %v6311 = vadd.f32 %v6247, %v6295
    %v6312 = vadd.f32 %v6248, %v6296
    %v6313 = vadd.f32 %v6249, %v6297
    %v6314 = vadd.f32 %v6250, %v6298
    %v6315 = vadd.f32 %v6251, %v6299
    %v6316 = vadd.f32 %v6252, %v6300
    %v6317 = vadd.f32 %v6253, %v6301
    %v6318 = vadd.f32 %v6254, %v6302
    %v6319 = vadd.f32 %v6255, %v6303
    %v6320 = vadd.f32 %v6256, %v6304
    %v6321 = vadd.f32 %v6257, %v6305
    %v6322 = vadd.f32 %v6258, %v6306
    %v6323 = vadd.f32 %v6259, %v6307
    %v6324 = vadd.f32 %v6260, %v6308
    %v6325 = vadd.f32 %v6261, %v6309
    %v6326 = vadd.f32 %v6262, %v6310
    %v6327 = vrot.slane %v6177, 4
    %v6328 = vrot.slane %v6180, 4
    %v6329 = vrot.slane %v6185, 4
    %v6330 = vrot.slane %v6188, 4
    %v6331 = vrot.slane %v6193, 4
    %v6332 = vrot.slane %v6196, 4
    %v6333 = vrot.slane %v6201, 4
    %v6334 = vrot.slane %v6204, 4
    %v6335 = vrot.slane %v6209, 4
    %v6336 = vrot.slane %v6212, 4
    %v6337 = vrot.slane %v6217, 4
    %v6338 = vrot.slane %v6220, 4
    %v6339 = vrot.slane %v6225, 4
    %v6340 = vrot.slane %v6228, 4
    %v6341 = vrot.slane %v6233, 4
    %v6342 = vrot.slane %v6236, 4
    %v6343 = vsel %vm1387, %v6341, %v6342
    %v6344 = vsel %vm1387, %v6340, %v6341
    %v6345 = vsel %vm1387, %v6339, %v6340
    %v6346 = vsel %vm1387, %v6338, %v6339
    %v6347 = vsel %vm1387, %v6337, %v6338
    %v6348 = vsel %vm1387, %v6336, %v6337
    %v6349 = vsel %vm1387, %v6335, %v6336
    %v6350 = vsel %vm1387, %v6334, %v6335
    %v6351 = vsel %vm1387, %v6333, %v6334
    %v6352 = vsel %vm1387, %v6332, %v6333
    %v6353 = vsel %vm1387, %v6331, %v6332
    %v6354 = vsel %vm1387, %v6330, %v6331
    %v6355 = vsel %vm1387, %v6329, %v6330
    %v6356 = vsel %vm1387, %v6328, %v6329
    %v6357 = vsel %vm1387, %v6327, %v6328
    %v6358 = vsel %vm1387, %v6342, %v6327
    %v6359 = vsel %vm5209, %v6357, 0.0
    %v6360 = vsel %vm5210, %v6356, 0.0
    %v6361 = vsel %vm5211, %v6355, 0.0
    %v6362 = vsel %vm5212, %v6354, 0.0
    %v6363 = vsel %vm5213, %v6353, 0.0
    %v6364 = vsel %vm5214, %v6352, 0.0
    %v6365 = vsel %vm5215, %v6351, 0.0
    %v6366 = vsel %vm5216, %v6350, 0.0
    %v6367 = vsel %vm5217, %v6349, 0.0
    %v6368 = vsel %vm5218, %v6348, 0.0
    %v6369 = vsel %vm5219, %v6347, 0.0
    %v6370 = vsel %vm5220, %v6346, 0.0
    %v6371 = vsel %vm5221, %v6345, 0.0
    %v6372 = vsel %vm5222, %v6344, 0.0
    %v6373 = vsel %vm5223, %v6343, 0.0
    %v6374 = vsel %vm5224, %v6358, 0.0
    %v6375 = vadd.f32 %v6311, %v6359
    %v6376 = vadd.f32 %v6312, %v6360
    %v6377 = vadd.f32 %v6313, %v6361
    %v6378 = vadd.f32 %v6314, %v6362
    %v6379 = vadd.f32 %v6315, %v6363
    %v6380 = vadd.f32 %v6316, %v6364
    %v6381 = vadd.f32 %v6317, %v6365
    %v6382 = vadd.f32 %v6318, %v6366
    %v6383 = vadd.f32 %v6319, %v6367
    %v6384 = vadd.f32 %v6320, %v6368
    %v6385 = vadd.f32 %v6321, %v6369
    %v6386 = vadd.f32 %v6322, %v6370
    %v6387 = vadd.f32 %v6323, %v6371
    %v6388 = vadd.f32 %v6324, %v6372
    %v6389 = vadd.f32 %v6325, %v6373
    %v6390 = vadd.f32 %v6326, %v6374
    %vm6391 = vcmp.gt.f32.partialorder %v6375, 0.0
    %vm6392 = vcmp.gt.f32.partialorder %v6376, 0.0
    %vm6393 = vcmp.gt.f32.partialorder %v6377, 0.0
    %vm6394 = vcmp.gt.f32.partialorder %v6378, 0.0
    %vm6395 = vcmp.gt.f32.partialorder %v6379, 0.0
    %vm6396 = vcmp.gt.f32.partialorder %v6380, 0.0
    %vm6397 = vcmp.gt.f32.partialorder %v6381, 0.0
    %vm6398 = vcmp.gt.f32.partialorder %v6382, 0.0
    %vm6399 = vcmp.gt.f32.partialorder %v6383, 0.0
    %vm6400 = vcmp.gt.f32.partialorder %v6384, 0.0
    %vm6401 = vcmp.gt.f32.partialorder %v6385, 0.0
    %vm6402 = vcmp.gt.f32.partialorder %v6386, 0.0
    %vm6403 = vcmp.gt.f32.partialorder %v6387, 0.0
    %vm6404 = vcmp.gt.f32.partialorder %v6388, 0.0
    %vm6405 = vcmp.gt.f32.partialorder %v6389, 0.0
    %vm6406 = vcmp.gt.f32.partialorder %v6390, 0.0
    %v6407 = vmin.f32 %v6375, 0.0
    %v6408 = vmin.f32 %v6376, 0.0
    %v6409 = vmin.f32 %v6377, 0.0
    %v6410 = vmin.f32 %v6378, 0.0
    %v6411 = vmin.f32 %v6379, 0.0
    %v6412 = vmin.f32 %v6380, 0.0
    %v6413 = vmin.f32 %v6381, 0.0
    %v6414 = vmin.f32 %v6382, 0.0
    %v6415 = vmin.f32 %v6383, 0.0
    %v6416 = vmin.f32 %v6384, 0.0
    %v6417 = vmin.f32 %v6385, 0.0
    %v6418 = vmin.f32 %v6386, 0.0
    %v6419 = vmin.f32 %v6387, 0.0
    %v6420 = vmin.f32 %v6388, 0.0
    %v6421 = vmin.f32 %v6389, 0.0
    %v6422 = vmin.f32 %v6390, 0.0
    %v6423 = vmul.f32 %v6407, 1.442695
    %v6424 = vpow.pop %v6423
    %v6425 = vmul.f32 %v6408, 1.442695
    %v6426 = vpow.pop %v6425
    %v6427 = vmul.f32 %v6409, 1.442695
    %v6428 = vpow.pop %v6427
    %v6429 = vmul.f32 %v6410, 1.442695
    %v6430 = vpow.pop %v6429
    %v6431 = vmul.f32 %v6411, 1.442695
    %v6432 = vpow.pop %v6431
    %v6433 = vmul.f32 %v6412, 1.442695
    %v6434 = vpow.pop %v6433
    %v6435 = vmul.f32 %v6413, 1.442695
    %v6436 = vpow.pop %v6435
    %v6437 = vmul.f32 %v6414, 1.442695
    %v6438 = vpow.pop %v6437
    %v6439 = vmul.f32 %v6415, 1.442695
    %v6440 = vpow.pop %v6439
    %v6441 = vmul.f32 %v6416, 1.442695
    %v6442 = vpow.pop %v6441
    %v6443 = vmul.f32 %v6417, 1.442695
    %v6444 = vpow.pop %v6443
    %v6445 = vmul.f32 %v6418, 1.442695
    %v6446 = vpow.pop %v6445
    %v6447 = vmul.f32 %v6419, 1.442695
    %v6448 = vpow.pop %v6447
    %v6449 = vmul.f32 %v6420, 1.442695
    %v6450 = vpow.pop %v6449
    %v6451 = vmul.f32 %v6421, 1.442695
    %v6452 = vpow.pop %v6451
    %v6453 = vmul.f32 %v6422, 1.442695
    %v6454 = vpow.pop %v6453
    %v6455 = vsub.f32 %v6424, 1.0
    %v6456 = vsub.f32 %v6426, 1.0
    %v6457 = vsub.f32 %v6428, 1.0
    %v6458 = vsub.f32 %v6430, 1.0
    %v6459 = vsub.f32 %v6432, 1.0
    %v6460 = vsub.f32 %v6434, 1.0
    %v6461 = vsub.f32 %v6436, 1.0
    %v6462 = vsub.f32 %v6438, 1.0
    %v6463 = vsub.f32 %v6440, 1.0
    %v6464 = vsub.f32 %v6442, 1.0
    %v6465 = vsub.f32 %v6444, 1.0
    %v6466 = vsub.f32 %v6446, 1.0
    %v6467 = vsub.f32 %v6448, 1.0
    %v6468 = vsub.f32 %v6450, 1.0
    %v6469 = vsub.f32 %v6452, 1.0
    %v6470 = vsub.f32 %v6454, 1.0
    %v6471 = vsel %vm6391, %v6375, %v6455
    %v6472 = vsel %vm6392, %v6376, %v6456
    %v6473 = vsel %vm6393, %v6377, %v6457
    %v6474 = vsel %vm6394, %v6378, %v6458
    %v6475 = vsel %vm6395, %v6379, %v6459
    %v6476 = vsel %vm6396, %v6380, %v6460
    %v6477 = vsel %vm6397, %v6381, %v6461
    %v6478 = vsel %vm6398, %v6382, %v6462
    %v6479 = vsel %vm6399, %v6383, %v6463
    %v6480 = vsel %vm6400, %v6384, %v6464
    %v6481 = vsel %vm6401, %v6385, %v6465
    %v6482 = vsel %vm6402, %v6386, %v6466
    %v6483 = vsel %vm6403, %v6387, %v6467
    %v6484 = vsel %vm6404, %v6388, %v6468
    %v6485 = vsel %vm6405, %v6389, %v6469
    %v6486 = vsel %vm6406, %v6390, %v6470
    %v6487 = vadd.f32 %v5920, %v6471
    %v6488 = vadd.f32 %v5921, %v6472
    %v6489 = vadd.f32 %v5922, %v6473
    %v6490 = vadd.f32 %v5923, %v6474
    %v6491 = vadd.f32 %v5924, %v6475
    %v6492 = vadd.f32 %v5925, %v6476
    %v6493 = vadd.f32 %v5926, %v6477
    %v6494 = vadd.f32 %v5927, %v6478
    %v6495 = vadd.f32 %v5928, %v6479
    %v6496 = vadd.f32 %v5929, %v6480
    %v6497 = vadd.f32 %v5930, %v6481
    %v6498 = vadd.f32 %v5931, %v6482
    %v6499 = vadd.f32 %v5932, %v6483
    %v6500 = vadd.f32 %v5933, %v6484
    %v6501 = vadd.f32 %v5934, %v6485
    %v6502 = vadd.f32 %v5935, %v6486
    %v6503 = vpack.c.bf16 %v6488, %v6487
    %v6504 = vpack.c.bf16 %v6490, %v6489
    %v6505 = vpack.c.bf16 %v6492, %v6491
    %v6506 = vpack.c.bf16 %v6494, %v6493
    %v6507 = vpack.c.bf16 %v6496, %v6495
    %v6508 = vpack.c.bf16 %v6498, %v6497
    %v6509 = vpack.c.bf16 %v6500, %v6499
    %v6510 = vpack.c.bf16 %v6502, %v6501
    %v6511 = vld [vmem:[%s10] sm:$0xff]
    %v6512 = vld [vmem:[%s10 + $0x8] sm:$0xff]
    %v6513 = vld [vmem:[%s10 + $0x10] sm:$0xff]
    %v6514 = vld [vmem:[%s10 + $0x18] sm:$0xff]
    %v6515 = vld [vmem:[%s10 + $0x20] sm:$0xff]
    %v6516 = vld [vmem:[%s10 + $0x28] sm:$0xff]
    %v6523 = vunpack.c.l.b16 %v6511
    %v6524 = vunpack.c.h.b16 %v6511
    %v6525 = vunpack.c.l.b16 %v6512
    %v6526 = vunpack.c.h.b16 %v6512
    %v6527 = vunpack.c.l.b16 %v6513
    %v6528 = vunpack.c.h.b16 %v6513
    %v6529 = vunpack.c.l.b16 %v6514
    %v6530 = vunpack.c.h.b16 %v6514
    %v6531 = vunpack.c.l.b16 %v6515
    %v6532 = vunpack.c.h.b16 %v6515
    %v6533 = vunpack.c.l.b16 %v6516
    %v6534 = vunpack.c.h.b16 %v6516
    %v6535 = vpack.c.b16 %v6525, %v6523
    %v6536 = vpack.c.b16 %v6526, %v6524
    %v6537 = vpack.c.b16 %v6529, %v6527
    %v6538 = vpack.c.b16 %v6530, %v6528
    %v6539 = vpack.c.b16 %v6533, %v6531
    %v6540 = vpack.c.b16 %v6534, %v6532
    %v6548 = vsel %vm4807, %v6503, 0
    %v6551 = vsel %vm4807, %v6504, 0
    %v6554 = vsel %vm4807, %v6505, 0
    %v6557 = vsel %vm4807, %v6506, 0
    %v6560 = vsel %vm4807, %v6507, 0
    %v6563 = vsel %vm4807, %v6508, 0
    %v6566 = vsel %vm4807, %v6509, 0
    %v6569 = vsel %vm4807, %v6510, 0
    %6571 = vmatprep.subr.bf16.mxu0 %v6536
    %6572 = vmatpush1.bf16.msra.mxu0 %v6535
    %6573 = vmatprep.subr.bf16.mxu0 %v6538
    %6574 = vmatpush1.bf16.msra.mxu0 %v6537
    %6575 = vmatprep.subr.bf16.mxu0 %v6540
    %6576 = vmatpush1.bf16.msra.mxu0 %v6539
    %6577 = vmatprep.subr.bf16.mxu0 0
    %6578 = vmatpush1.bf16.msra.mxu0 0
    %6579 = vmatprep.subr.bf16.mxu0 0
    %6580 = vmatpush1.bf16.msra.mxu0 0
    %6581 = vmatprep.subr.bf16.mxu0 0
    %6582 = vmatpush1.bf16.msra.mxu0 0
    %6583 = vmatprep.subr.bf16.mxu0 0
    %6584 = vmatpush1.bf16.msra.mxu0 0
    %6585 = vmatprep.subr.bf16.mxu0 0
    %6586 = vmatpush1.bf16.msra.mxu0 0
    %6587 = vmatprep.subr.bf16.mxu0 0
    %6588 = vmatpush1.bf16.msra.mxu0 0
    %6589 = vmatprep.subr.bf16.mxu0 0
    %6590 = vmatpush1.bf16.msra.mxu0 0
    %6591 = vmatprep.subr.bf16.mxu0 0
    %6592 = vmatpush1.bf16.msra.mxu0 0
    %6593 = vmatprep.subr.bf16.mxu0 0
    %6594 = vmatpush1.bf16.msra.mxu0 0
    %6595 = vmatprep.subr.bf16.mxu0 0
    %6596 = vmatpush1.bf16.msra.mxu0 0
    %6597 = vmatprep.subr.bf16.mxu0 0
    %6598 = vmatpush1.bf16.msra.mxu0 0
    %6599 = vmatprep.subr.bf16.mxu0 0
    %6600 = vmatpush1.bf16.msra.mxu0 0
    %6601 = vmatprep.subr.bf16.mxu0 0
    %6602 = vmatpush1.bf16.msra.mxu0 0
    %6603 = vmatprep.mubr.bf16.mxu0 0
    %6604 = vmatmul.mubr.bf16.gmra.mrb[0].mxu0 %v6548
    %v6605 = vpop.f32.mrb[0].mxu0
    %v6606 = vadd.f32 0.0, %v6605
    %v6607 = vpop.f32.mrb[0].mxu0
    %v6608 = vadd.f32 0.0, %v6607
    %v6609 = vpop.f32.mrb[0].mxu0
    %v6610 = vadd.f32 0.0, %v6609
    %v6611 = vpop.f32.mrb[0].mxu0
    %v6612 = vadd.f32 0.0, %v6611
    %6613 = vmatprep.mubr.bf16.mxu0 0
    %6614 = vmatmul.mubr.bf16.gmra.mrb[0].mxu0 %v6551
    %v6615 = vpop.f32.mrb[0].mxu0
    %v6616 = vadd.f32 0.0, %v6615
    %v6617 = vpop.f32.mrb[0].mxu0
    %v6618 = vadd.f32 0.0, %v6617
    %v6619 = vpop.f32.mrb[0].mxu0
    %v6620 = vadd.f32 0.0, %v6619
    %v6621 = vpop.f32.mrb[0].mxu0
    %v6622 = vadd.f32 0.0, %v6621
    %6623 = vmatprep.mubr.bf16.mxu0 0
    %6624 = vmatmul.mubr.bf16.gmra.mrb[0].mxu0 %v6554
    %v6625 = vpop.f32.mrb[0].mxu0
    %v6626 = vadd.f32 0.0, %v6625
    %v6627 = vpop.f32.mrb[0].mxu0
    %v6628 = vadd.f32 0.0, %v6627
    %v6629 = vpop.f32.mrb[0].mxu0
    %v6630 = vadd.f32 0.0, %v6629
    %v6631 = vpop.f32.mrb[0].mxu0
    %v6632 = vadd.f32 0.0, %v6631
    %6633 = vmatprep.mubr.bf16.mxu0 0
    %6634 = vmatmul.mubr.bf16.gmra.mrb[0].mxu0 %v6557
    %v6635 = vpop.f32.mrb[0].mxu0
    %v6636 = vadd.f32 0.0, %v6635
    %v6637 = vpop.f32.mrb[0].mxu0
    %v6638 = vadd.f32 0.0, %v6637
    %v6639 = vpop.f32.mrb[0].mxu0
    %v6640 = vadd.f32 0.0, %v6639
    %v6641 = vpop.f32.mrb[0].mxu0
    %v6642 = vadd.f32 0.0, %v6641
    %6643 = vmatprep.mubr.bf16.mxu0 0
    %6644 = vmatmul.mubr.bf16.gmra.mrb[0].mxu0 %v6560
    %v6645 = vpop.f32.mrb[0].mxu0
    %v6646 = vadd.f32 0.0, %v6645
    %v6647 = vpop.f32.mrb[0].mxu0
    %v6648 = vadd.f32 0.0, %v6647
    %v6649 = vpop.f32.mrb[0].mxu0
    %v6650 = vadd.f32 0.0, %v6649
    %v6651 = vpop.f32.mrb[0].mxu0
    %v6652 = vadd.f32 0.0, %v6651
    %6653 = vmatprep.mubr.bf16.mxu0 0
    %6654 = vmatmul.mubr.bf16.gmra.mrb[0].mxu0 %v6563
    %v6655 = vpop.f32.mrb[0].mxu0
    %v6656 = vadd.f32 0.0, %v6655
    %v6657 = vpop.f32.mrb[0].mxu0
    %v6658 = vadd.f32 0.0, %v6657
    %v6659 = vpop.f32.mrb[0].mxu0
    %v6660 = vadd.f32 0.0, %v6659
    %v6661 = vpop.f32.mrb[0].mxu0
    %v6662 = vadd.f32 0.0, %v6661
    %6663 = vmatprep.mubr.bf16.mxu0 0
    %6664 = vmatmul.mubr.bf16.gmra.mrb[0].mxu0 %v6566
    %v6665 = vpop.f32.mrb[0].mxu0
    %v6666 = vadd.f32 0.0, %v6665
    %v6667 = vpop.f32.mrb[0].mxu0
    %v6668 = vadd.f32 0.0, %v6667
    %v6669 = vpop.f32.mrb[0].mxu0
    %v6670 = vadd.f32 0.0, %v6669
    %v6671 = vpop.f32.mrb[0].mxu0
    %v6672 = vadd.f32 0.0, %v6671
    %6673 = vmatprep.mubr.bf16.mxu0 0
    %6674 = vmatmul.mubr.bf16.gmra.mrb[0].mxu0 %v6569
    %v6675 = vpop.f32.mrb[0].mxu0
    %v6676 = vadd.f32 0.0, %v6675
    %v6677 = vpop.f32.mrb[0].mxu0
    %v6678 = vadd.f32 0.0, %v6677
    %v6679 = vpop.f32.mrb[0].mxu0
    %v6680 = vadd.f32 0.0, %v6679
    %v6681 = vpop.f32.mrb[0].mxu0
    %v6682 = vadd.f32 0.0, %v6681
    %6683 = vdwg.mxu0
    %v6684 = vrot.slane %v6608, 4
    %v6685 = vrot.slane %v6612, 4
    %v6686 = vrot.slane %v6618, 4
    %v6687 = vrot.slane %v6622, 4
    %v6688 = vrot.slane %v6628, 4
    %v6689 = vrot.slane %v6632, 4
    %v6690 = vrot.slane %v6638, 4
    %v6691 = vrot.slane %v6642, 4
    %v6692 = vrot.slane %v6648, 4
    %v6693 = vrot.slane %v6652, 4
    %v6694 = vrot.slane %v6658, 4
    %v6695 = vrot.slane %v6662, 4
    %v6696 = vrot.slane %v6668, 4
    %v6697 = vrot.slane %v6672, 4
    %v6698 = vrot.slane %v6678, 4
    %v6699 = vrot.slane %v6682, 4
    %v6700 = vsel %vm1387, %v6698, %v6699
    %v6701 = vsel %vm1387, %v6697, %v6698
    %v6702 = vsel %vm1387, %v6696, %v6697
    %v6703 = vsel %vm1387, %v6695, %v6696
    %v6704 = vsel %vm1387, %v6694, %v6695
    %v6705 = vsel %vm1387, %v6693, %v6694
    %v6706 = vsel %vm1387, %v6692, %v6693
    %v6707 = vsel %vm1387, %v6691, %v6692
    %v6708 = vsel %vm1387, %v6690, %v6691
    %v6709 = vsel %vm1387, %v6689, %v6690
    %v6710 = vsel %vm1387, %v6688, %v6689
    %v6711 = vsel %vm1387, %v6687, %v6688
    %v6712 = vsel %vm1387, %v6686, %v6687
    %v6713 = vsel %vm1387, %v6685, %v6686
    %v6714 = vsel %vm1387, %v6684, %v6685
    %v6715 = vsel %vm1387, %v6699, %v6684
    %v6716 = vadd.f32 %v6606, %v6714
    %v6717 = vadd.f32 %v6610, %v6713
    %v6718 = vadd.f32 %v6616, %v6712
    %v6719 = vadd.f32 %v6620, %v6711
    %v6720 = vadd.f32 %v6626, %v6710
    %v6721 = vadd.f32 %v6630, %v6709
    %v6722 = vadd.f32 %v6636, %v6708
    %v6723 = vadd.f32 %v6640, %v6707
    %v6724 = vadd.f32 %v6646, %v6706
    %v6725 = vadd.f32 %v6650, %v6705
    %v6726 = vadd.f32 %v6656, %v6704
    %v6727 = vadd.f32 %v6660, %v6703
    %v6728 = vadd.f32 %v6666, %v6702
    %v6729 = vadd.f32 %v6670, %v6701
    %v6730 = vadd.f32 %v6676, %v6700
    %v6731 = vadd.f32 %v6680, %v6715
    %v6732 = vld [vmem:[%s12] sm:$0xf]
    %v6733 = vld [vmem:[%s12 + $0x4] sm:$0xf]
    %v6734 = vld [vmem:[%s12 + $0x8] sm:$0xf]
    %v6735 = vld [vmem:[%s12 + $0xc] sm:$0xf]
    %v6736 = vld [vmem:[%s12 + $0x10] sm:$0xf]
    %v6737 = vld [vmem:[%s12 + $0x14] sm:$0xf]
    %v6738 = vld [vmem:[%s12 + $0x18] sm:$0xf]
    %v6739 = vld [vmem:[%s12 + $0x1c] sm:$0xf]
    %v6740 = vpack.c.bf16 %v6717, %v6716
    %v6741 = vpack.c.bf16 %v6719, %v6718
    %v6742 = vpack.c.bf16 %v6721, %v6720
    %v6743 = vpack.c.bf16 %v6723, %v6722
    %v6744 = vpack.c.bf16 %v6725, %v6724
    %v6745 = vpack.c.bf16 %v6727, %v6726
    %v6746 = vpack.c.bf16 %v6729, %v6728
    %v6747 = vpack.c.bf16 %v6731, %v6730
    %v6748 = vld [vmem:[%s11] sm:$0x1]
    %v6750 = vlaneseq
    %v6751 = vshrl.u32 %v6750, 7
    %v6752 = vsub.s32 0, %v6751
    %v6753 = vrot.slane %v6748, %v6752
    %v6763 = vunpack.c.l.b16 %v6732
    %v6764 = vunpack.c.l.b16 %v6733
    %v6765 = vunpack.c.l.b16 %v6734
    %v6766 = vunpack.c.l.b16 %v6735
    %v6767 = vunpack.c.l.b16 %v6736
    %v6768 = vunpack.c.l.b16 %v6737
    %v6769 = vunpack.c.l.b16 %v6738
    %v6770 = vunpack.c.l.b16 %v6739
    %v6771 = vpack.c.b16 %v6764, %v6763
    %v6772 = vpack.c.b16 %v6766, %v6765
    %v6773 = vpack.c.b16 %v6768, %v6767
    %v6774 = vpack.c.b16 %v6770, %v6769
    %6779 = vmatprep.subr.bf16.mxu0 0
    %6780 = vmatpush1.bf16.msra.mxu0 %v6740
    %6781 = vmatprep.subr.bf16.mxu0 0
    %6782 = vmatpush1.bf16.msra.mxu0 %v6741
    %6783 = vmatprep.subr.bf16.mxu0 0
    %6784 = vmatpush1.bf16.msra.mxu0 %v6742
    %6785 = vmatprep.subr.bf16.mxu0 0
    %6786 = vmatpush1.bf16.msra.mxu0 %v6743
    %6787 = vmatprep.subr.bf16.mxu0 0
    %6788 = vmatpush1.bf16.msra.mxu0 %v6744
    %6789 = vmatprep.subr.bf16.mxu0 0
    %6790 = vmatpush1.bf16.msra.mxu0 %v6745
    %6791 = vmatprep.subr.bf16.mxu0 0
    %6792 = vmatpush1.bf16.msra.mxu0 %v6746
    %6793 = vmatprep.subr.bf16.mxu0 0
    %6794 = vmatpush1.bf16.msra.mxu0 %v6747
    %6795 = vmatprep.subr.bf16.mxu0 0
    %6796 = vmatpush1.bf16.msra.mxu0 0
    %6797 = vmatprep.subr.bf16.mxu0 0
    %6798 = vmatpush1.bf16.msra.mxu0 0
    %6799 = vmatprep.subr.bf16.mxu0 0
    %6800 = vmatpush1.bf16.msra.mxu0 0
    %6801 = vmatprep.subr.bf16.mxu0 0
    %6802 = vmatpush1.bf16.msra.mxu0 0
    %6803 = vmatprep.subr.bf16.mxu0 0
    %6804 = vmatpush1.bf16.msra.mxu0 0
    %6805 = vmatprep.subr.bf16.mxu0 0
    %6806 = vmatpush1.bf16.msra.mxu0 0
    %6807 = vmatprep.subr.bf16.mxu0 0
    %6808 = vmatpush1.bf16.msra.mxu0 0
    %6809 = vmatprep.subr.bf16.mxu0 0
    %6810 = vmatpush1.bf16.msra.mxu0 0
    %6811 = vmatprep.mubr.bf16.mxu0 0
    %6812 = vmatmul.mubr.bf16.gmra.mrb[0].mxu0 %v6771
    %v6813 = vpop.f32.mrb[0].mxu0
    %v6814 = vadd.f32 %v6753, %v6813
    %v6815 = vpop.f32.mrb[0].mxu0
    %v6816 = vpop.f32.mrb[0].mxu0
    %v6817 = vadd.f32 %v6753, %v6816
    %v6818 = vpop.f32.mrb[0].mxu0
    %6819 = vmatprep.mubr.bf16.mxu0 0
    %6820 = vmatmul.mubr.bf16.gmra.mrb[0].mxu0 %v6772
    %v6821 = vpop.f32.mrb[0].mxu0
    %v6822 = vadd.f32 %v6753, %v6821
    %v6823 = vpop.f32.mrb[0].mxu0
    %v6824 = vpop.f32.mrb[0].mxu0
    %v6825 = vadd.f32 %v6753, %v6824
    %v6826 = vpop.f32.mrb[0].mxu0
    %6827 = vmatprep.mubr.bf16.mxu0 0
    %6828 = vmatmul.mubr.bf16.gmra.mrb[0].mxu0 %v6773
    %v6829 = vpop.f32.mrb[0].mxu0
    %v6830 = vadd.f32 %v6753, %v6829
    %v6831 = vpop.f32.mrb[0].mxu0
    %v6832 = vpop.f32.mrb[0].mxu0
    %v6833 = vadd.f32 %v6753, %v6832
    %v6834 = vpop.f32.mrb[0].mxu0
    %6835 = vmatprep.mubr.bf16.mxu0 0
    %6836 = vmatmul.mubr.bf16.gmra.mrb[0].mxu0 %v6774
    %v6837 = vpop.f32.mrb[0].mxu0
    %v6838 = vadd.f32 %v6753, %v6837
    %v6839 = vpop.f32.mrb[0].mxu0
    %v6840 = vpop.f32.mrb[0].mxu0
    %v6841 = vadd.f32 %v6753, %v6840
    %v6842 = vpop.f32.mrb[0].mxu0
    %6843 = vdwg.mxu0
    %vm6844 = vcmp.lt.s32.totalorder %v377, 0
    %v6845 = vsub.s32 0, %v377
    %v6846 = vsel %vm6844, %v6845, %v377
    %v6847 = vshrl.u32 %v6846, 5
    %v6848 = vand.u32 %v6846, 31
    %v6849 = vsub.s32 0, %v6848
    %v6850 = vsel %vm6844, %v6849, %v6848
    %vm6851 = vcmp.lt.s32.totalorder %v378, 0
    %v6852 = vsub.s32 0, %v378
    %v6853 = vsel %vm6851, %v6852, %v378
    %v6854 = vshrl.u32 %v6853, 5
    %v6855 = vand.u32 %v6853, 31
    %v6856 = vsub.s32 0, %v6855
    %v6857 = vsel %vm6851, %v6856, %v6855
    %vm6858 = vcmp.lt.s32.totalorder %v379, 0
    %v6859 = vsub.s32 0, %v379
    %v6860 = vsel %vm6858, %v6859, %v379
    %v6861 = vshrl.u32 %v6860, 5
    %v6862 = vand.u32 %v6860, 31
    %v6863 = vsub.s32 0, %v6862
    %v6864 = vsel %vm6858, %v6863, %v6862
    %vm6865 = vcmp.lt.s32.totalorder %v380, 0
    %v6866 = vsub.s32 0, %v380
    %v6867 = vsel %vm6865, %v6866, %v380
    %v6868 = vshrl.u32 %v6867, 5
    %v6869 = vand.u32 %v6867, 31
    %v6870 = vsub.s32 0, %v6869
    %v6871 = vsel %vm6865, %v6870, %v6869
    %vm6872 = vcmp.lt.s32.totalorder %v381, 0
    %v6873 = vsub.s32 0, %v381
    %v6874 = vsel %vm6872, %v6873, %v381
    %v6875 = vshrl.u32 %v6874, 5
    %v6876 = vand.u32 %v6874, 31
    %v6877 = vsub.s32 0, %v6876
    %v6878 = vsel %vm6872, %v6877, %v6876
    %vm6879 = vcmp.lt.s32.totalorder %v382, 0
    %v6880 = vsub.s32 0, %v382
    %v6881 = vsel %vm6879, %v6880, %v382
    %v6882 = vshrl.u32 %v6881, 5
    %v6883 = vand.u32 %v6881, 31
    %v6884 = vsub.s32 0, %v6883
    %v6885 = vsel %vm6879, %v6884, %v6883
    %vm6886 = vcmp.lt.s32.totalorder %v383, 0
    %v6887 = vsub.s32 0, %v383
    %v6888 = vsel %vm6886, %v6887, %v383
    %v6889 = vshrl.u32 %v6888, 5
    %v6890 = vand.u32 %v6888, 31
    %v6891 = vsub.s32 0, %v6890
    %v6892 = vsel %vm6886, %v6891, %v6890
    %vm6893 = vcmp.lt.s32.totalorder %v384, 0
    %v6894 = vsub.s32 0, %v384
    %v6895 = vsel %vm6893, %v6894, %v384
    %v6896 = vshrl.u32 %v6895, 5
    %v6897 = vand.u32 %v6895, 31
    %v6898 = vsub.s32 0, %v6897
    %v6899 = vsel %vm6893, %v6898, %v6897
    %vm6900 = vcmp.ne.s32.totalorder %v6850, 0
    %vm6901 = vcmp.ne.s32.totalorder %v6857, 0
    %vm6902 = vcmp.ne.s32.totalorder %v6864, 0
    %vm6903 = vcmp.ne.s32.totalorder %v6871, 0
    %vm6904 = vcmp.ne.s32.totalorder %v6878, 0
    %vm6905 = vcmp.ne.s32.totalorder %v6885, 0
    %vm6906 = vcmp.ne.s32.totalorder %v6892, 0
    %vm6907 = vcmp.ne.s32.totalorder %v6899, 0
    %vm6908 = vcmp.lt.s32.totalorder %v6850, 0
    %vm6909 = vcmp.lt.s32.totalorder %v6857, 0
    %vm6910 = vcmp.lt.s32.totalorder %v6864, 0
    %vm6911 = vcmp.lt.s32.totalorder %v6871, 0
    %vm6912 = vcmp.lt.s32.totalorder %v6878, 0
    %vm6913 = vcmp.lt.s32.totalorder %v6885, 0
    %vm6914 = vcmp.lt.s32.totalorder %v6892, 0
    %vm6915 = vcmp.lt.s32.totalorder %v6899, 0
    %vm6916 = vmand %vm6908, %vm6900
    %vm6917 = vmand %vm6909, %vm6901
    %vm6918 = vmand %vm6910, %vm6902
    %vm6919 = vmand %vm6911, %vm6903
    %vm6920 = vmand %vm6912, %vm6904
    %vm6921 = vmand %vm6913, %vm6905
    %vm6922 = vmand %vm6914, %vm6906
    %vm6923 = vmand %vm6915, %vm6907
    %v6924 = vadd.s32 %v6850, 32
    %v6925 = vadd.s32 %v6857, 32
    %v6926 = vadd.s32 %v6864, 32
    %v6927 = vadd.s32 %v6871, 32
    %v6928 = vadd.s32 %v6878, 32
    %v6929 = vadd.s32 %v6885, 32
    %v6930 = vadd.s32 %v6892, 32
    %v6931 = vadd.s32 %v6899, 32
    %v6932 = vsel %vm6916, %v6924, %v6850
    %v6933 = vsel %vm6917, %v6925, %v6857
    %v6934 = vsel %vm6918, %v6926, %v6864
    %v6935 = vsel %vm6919, %v6927, %v6871
    %v6936 = vsel %vm6920, %v6928, %v6878
    %v6937 = vsel %vm6921, %v6929, %v6885
    %v6938 = vsel %vm6922, %v6930, %v6892
    %v6939 = vsel %vm6923, %v6931, %v6899
    %vm6940 = vcmp.ge.s32.totalorder %v6932, 4
    %vm6941 = vcmp.ge.s32.totalorder %v6933, 4
    %vm6942 = vcmp.ge.s32.totalorder %v6934, 4
    %vm6943 = vcmp.ge.s32.totalorder %v6935, 4
    %vm6944 = vcmp.ge.s32.totalorder %v6936, 4
    %vm6945 = vcmp.ge.s32.totalorder %v6937, 4
    %vm6946 = vcmp.ge.s32.totalorder %v6938, 4
    %vm6947 = vcmp.ge.s32.totalorder %v6939, 4
    %vm6948 = vcmp.lt.s32.totalorder %v6932, 28
    %vm6949 = vcmp.lt.s32.totalorder %v6933, 28
    %vm6950 = vcmp.lt.s32.totalorder %v6934, 28
    %vm6951 = vcmp.lt.s32.totalorder %v6935, 28
    %vm6952 = vcmp.lt.s32.totalorder %v6936, 28
    %vm6953 = vcmp.lt.s32.totalorder %v6937, 28
    %vm6954 = vcmp.lt.s32.totalorder %v6938, 28
    %vm6955 = vcmp.lt.s32.totalorder %v6939, 28
    %v6956 = vpack.c.bf16 %v6817, %v6814
    %v6957 = vpack.c.bf16 %v6825, %v6822
    %v6958 = vpack.c.bf16 %v6833, %v6830
    %v6959 = vpack.c.bf16 %v6841, %v6838
    %v6960 = vld [vmem:[%s13] sm:$0xff]
    %v6961 = vld [vmem:[%s13 + $0x8] sm:$0xf]
    %v6962 = vld [vmem:[%s13 + $0xc] sm:$0xff]
    %v6963 = vld [vmem:[%s13 + $0x14] sm:$0xf]
    %v6964 = vld [vmem:[%s13 + $0x18] sm:$0xff]
    %v6965 = vld [vmem:[%s13 + $0x20] sm:$0xf]
    %v6966 = vld [vmem:[%s13 + $0x24] sm:$0xff]
    %v6967 = vld [vmem:[%s13 + $0x2c] sm:$0xf]
    %v6968 = vld [vmem:[%s13 + $0x30] sm:$0xff]
    %v6969 = vld [vmem:[%s13 + $0x38] sm:$0xf]
    %v6970 = vld [vmem:[%s13 + $0x3c] sm:$0xff]
    %v6971 = vld [vmem:[%s13 + $0x44] sm:$0xf]
    %v6972 = vld [vmem:[%s13 + $0x48] sm:$0xff]
    %v6973 = vld [vmem:[%s13 + $0x50] sm:$0xf]
    %v6974 = vld [vmem:[%s13 + $0x54] sm:$0xff]
    %v6975 = vld [vmem:[%s13 + $0x5c] sm:$0xf]
    %v6992 = vunpack.c.l.b16 %v6960
    %v6993 = vunpack.c.h.b16 %v6960
    %v6994 = vunpack.c.l.b16 %v6961
    %v6995 = vunpack.c.l.b16 %v6962
    %v6996 = vunpack.c.h.b16 %v6962
    %v6997 = vunpack.c.l.b16 %v6963
    %v6998 = vunpack.c.l.b16 %v6964
    %v6999 = vunpack.c.h.b16 %v6964
    %v7000 = vunpack.c.l.b16 %v6965
    %v7001 = vunpack.c.l.b16 %v6966
    %v7002 = vunpack.c.h.b16 %v6966
    %v7003 = vunpack.c.l.b16 %v6967
    %v7004 = vunpack.c.l.b16 %v6968
    %v7005 = vunpack.c.h.b16 %v6968
    %v7006 = vunpack.c.l.b16 %v6969
    %v7007 = vunpack.c.l.b16 %v6970
    %v7008 = vunpack.c.h.b16 %v6970
    %v7009 = vunpack.c.l.b16 %v6971
    %v7010 = vunpack.c.l.b16 %v6972
    %v7011 = vunpack.c.h.b16 %v6972
    %v7012 = vunpack.c.l.b16 %v6973
    %v7013 = vunpack.c.l.b16 %v6974
    %v7014 = vunpack.c.h.b16 %v6974
    %v7015 = vunpack.c.l.b16 %v6975
    %v7016 = vpack.c.b16 %v6995, %v6992
    %v7017 = vpack.c.b16 %v6996, %v6993
    %v7018 = vpack.c.b16 %v6997, %v6994
    %v7019 = vpack.c.b16 %v7001, %v6998
    %v7020 = vpack.c.b16 %v7002, %v6999
    %v7021 = vpack.c.b16 %v7003, %v7000
    %v7022 = vpack.c.b16 %v7007, %v7004
    %v7023 = vpack.c.b16 %v7008, %v7005
    %v7024 = vpack.c.b16 %v7009, %v7006
    %v7025 = vpack.c.b16 %v7013, %v7010
    %v7026 = vpack.c.b16 %v7014, %v7011
    %v7027 = vpack.c.b16 %v7015, %v7012
    %vm7040 = vcmask 523264
    %v7042 = vsel %vm7040, %v6956, 0
    %v7045 = vsel %vm7040, %v6957, 0
    %v7048 = vsel %vm7040, %v6958, 0
    %v7051 = vsel %vm7040, %v6959, 0
    %7053 = vmatprep.subr.bf16.mxu0 %v7017
    %7054 = vmatpush1.bf16.msra.mxu0 %v7016
    %7055 = vmatprep.subr.bf16.mxu0 %v7020
    %7056 = vmatpush1.bf16.msra.mxu0 %v7019
    %7057 = vmatprep.subr.bf16.mxu0 %v7023
    %7058 = vmatpush1.bf16.msra.mxu0 %v7022
    %7059 = vmatprep.subr.bf16.mxu0 %v7026
    %7060 = vmatpush1.bf16.msra.mxu0 %v7025
    %7061 = vmatprep.subr.bf16.mxu0 0
    %7062 = vmatpush1.bf16.msra.mxu0 0
    %7063 = vmatprep.subr.bf16.mxu0 0
    %7064 = vmatpush1.bf16.msra.mxu0 0
    %7065 = vmatprep.subr.bf16.mxu0 0
    %7066 = vmatpush1.bf16.msra.mxu0 0
    %7067 = vmatprep.subr.bf16.mxu0 0
    %7068 = vmatpush1.bf16.msra.mxu0 0
    %7069 = vmatprep.subr.bf16.mxu0 0
    %7070 = vmatpush1.bf16.msra.mxu0 0
    %7071 = vmatprep.subr.bf16.mxu0 0
    %7072 = vmatpush1.bf16.msra.mxu0 0
    %7073 = vmatprep.subr.bf16.mxu0 0
    %7074 = vmatpush1.bf16.msra.mxu0 0
    %7075 = vmatprep.subr.bf16.mxu0 0
    %7076 = vmatpush1.bf16.msra.mxu0 0
    %7077 = vmatprep.subr.bf16.mxu0 0
    %7078 = vmatpush1.bf16.msra.mxu0 0
    %7079 = vmatprep.subr.bf16.mxu0 0
    %7080 = vmatpush1.bf16.msra.mxu0 0
    %7081 = vmatprep.subr.bf16.mxu0 0
    %7082 = vmatpush1.bf16.msra.mxu0 0
    %7083 = vmatprep.subr.bf16.mxu0 0
    %7084 = vmatpush1.bf16.msra.mxu0 0
    %7085 = vmatprep.mubr.bf16.mxu0 0
    %7086 = vmatmul.mubr.bf16.gmra.mrb[0].mxu0 %v7042
    %v7087 = vpop.f32.mrb[0].mxu0
    %v7088 = vadd.f32 0.0, %v7087
    %v7089 = vpop.f32.mrb[0].mxu0
    %v7090 = vadd.f32 0.0, %v7089
    %v7091 = vpop.f32.mrb[0].mxu0
    %v7092 = vadd.f32 0.0, %v7091
    %v7093 = vpop.f32.mrb[0].mxu0
    %v7094 = vadd.f32 0.0, %v7093
    %7095 = vmatprep.mubr.bf16.mxu0 0
    %7096 = vmatmul.mubr.bf16.gmra.mrb[0].mxu0 %v7045
    %v7097 = vpop.f32.mrb[0].mxu0
    %v7098 = vadd.f32 0.0, %v7097
    %v7099 = vpop.f32.mrb[0].mxu0
    %v7100 = vadd.f32 0.0, %v7099
    %v7101 = vpop.f32.mrb[0].mxu0
    %v7102 = vadd.f32 0.0, %v7101
    %v7103 = vpop.f32.mrb[0].mxu0
    %v7104 = vadd.f32 0.0, %v7103
    %7105 = vmatprep.mubr.bf16.mxu0 0
    %7106 = vmatmul.mubr.bf16.gmra.mrb[0].mxu0 %v7048
    %v7107 = vpop.f32.mrb[0].mxu0
    %v7108 = vadd.f32 0.0, %v7107
    %v7109 = vpop.f32.mrb[0].mxu0
    %v7110 = vadd.f32 0.0, %v7109
    %v7111 = vpop.f32.mrb[0].mxu0
    %v7112 = vadd.f32 0.0, %v7111
    %v7113 = vpop.f32.mrb[0].mxu0
    %v7114 = vadd.f32 0.0, %v7113
    %7115 = vmatprep.mubr.bf16.mxu0 0
    %7116 = vmatmul.mubr.bf16.gmra.mrb[0].mxu0 %v7051
    %v7117 = vpop.f32.mrb[0].mxu0
    %v7118 = vadd.f32 0.0, %v7117
    %v7119 = vpop.f32.mrb[0].mxu0
    %v7120 = vadd.f32 0.0, %v7119
    %v7121 = vpop.f32.mrb[0].mxu0
    %v7122 = vadd.f32 0.0, %v7121
    %v7123 = vpop.f32.mrb[0].mxu0
    %v7124 = vadd.f32 0.0, %v7123
    %7125 = vdwg.mxu0
    %7126 = vmatprep.subr.bf16.mxu0 0
    %7127 = vmatpush1.bf16.msra.mxu0 %v7018
    %7128 = vmatprep.subr.bf16.mxu0 0
    %7129 = vmatpush1.bf16.msra.mxu0 %v7021
    %7130 = vmatprep.subr.bf16.mxu0 0
    %7131 = vmatpush1.bf16.msra.mxu0 %v7024
    %7132 = vmatprep.subr.bf16.mxu0 0
    %7133 = vmatpush1.bf16.msra.mxu0 %v7027
    %7134 = vmatprep.subr.bf16.mxu0 0
    %7135 = vmatpush1.bf16.msra.mxu0 0
    %7136 = vmatprep.subr.bf16.mxu0 0
    %7137 = vmatpush1.bf16.msra.mxu0 0
    %7138 = vmatprep.subr.bf16.mxu0 0
    %7139 = vmatpush1.bf16.msra.mxu0 0
    %7140 = vmatprep.subr.bf16.mxu0 0
    %7141 = vmatpush1.bf16.msra.mxu0 0
    %7142 = vmatprep.subr.bf16.mxu0 0
    %7143 = vmatpush1.bf16.msra.mxu0 0
    %7144 = vmatprep.subr.bf16.mxu0 0
    %7145 = vmatpush1.bf16.msra.mxu0 0
    %7146 = vmatprep.subr.bf16.mxu0 0
    %7147 = vmatpush1.bf16.msra.mxu0 0
    %7148 = vmatprep.subr.bf16.mxu0 0
    %7149 = vmatpush1.bf16.msra.mxu0 0
    %7150 = vmatprep.subr.bf16.mxu0 0
    %7151 = vmatpush1.bf16.msra.mxu0 0
    %7152 = vmatprep.subr.bf16.mxu0 0
    %7153 = vmatpush1.bf16.msra.mxu0 0
    %7154 = vmatprep.subr.bf16.mxu0 0
    %7155 = vmatpush1.bf16.msra.mxu0 0
    %7156 = vmatprep.subr.bf16.mxu0 0
    %7157 = vmatpush1.bf16.msra.mxu0 0
    %7158 = vmatprep.mubr.bf16.mxu0 0
    %7159 = vmatmul.mubr.bf16.gmra.mrb[0].mxu0 %v7042
    %v7160 = vpop.f32.mrb[0].mxu0
    %v7161 = vadd.f32 0.0, %v7160
    %v7162 = vpop.f32.mrb[0].mxu0
    %v7163 = vpop.f32.mrb[0].mxu0
    %v7164 = vadd.f32 0.0, %v7163
    %v7165 = vpop.f32.mrb[0].mxu0
    %7166 = vmatprep.mubr.bf16.mxu0 0
    %7167 = vmatmul.mubr.bf16.gmra.mrb[0].mxu0 %v7045
    %v7168 = vpop.f32.mrb[0].mxu0
    %v7169 = vadd.f32 0.0, %v7168
    %v7170 = vpop.f32.mrb[0].mxu0
    %v7171 = vpop.f32.mrb[0].mxu0
    %v7172 = vadd.f32 0.0, %v7171
    %v7173 = vpop.f32.mrb[0].mxu0
    %7174 = vmatprep.mubr.bf16.mxu0 0
    %7175 = vmatmul.mubr.bf16.gmra.mrb[0].mxu0 %v7048
    %v7176 = vpop.f32.mrb[0].mxu0
    %v7177 = vadd.f32 0.0, %v7176
    %v7178 = vpop.f32.mrb[0].mxu0
    %v7179 = vpop.f32.mrb[0].mxu0
    %v7180 = vadd.f32 0.0, %v7179
    %v7181 = vpop.f32.mrb[0].mxu0
    %7182 = vmatprep.mubr.bf16.mxu0 0
    %7183 = vmatmul.mubr.bf16.gmra.mrb[0].mxu0 %v7051
    %v7184 = vpop.f32.mrb[0].mxu0
    %v7185 = vadd.f32 0.0, %v7184
    %v7186 = vpop.f32.mrb[0].mxu0
    %v7187 = vpop.f32.mrb[0].mxu0
    %v7188 = vadd.f32 0.0, %v7187
    %v7189 = vpop.f32.mrb[0].mxu0
    %7190 = vdwg.mxu0
    %v7191 = vld [vmem:[%s14] sm:$0x1]
    %v7193 = vlaneseq
    %v7194 = vshrl.u32 %v7193, 7
    %v7195 = vsub.s32 0, %v7194
    %v7196 = vrot.slane %v7191, %v7195
    %v7198 = vadd.f32 %v7090, %v7196
    %v7199 = vadd.f32 %v7094, %v7196
    %v7200 = vadd.f32 %v7100, %v7196
    %v7201 = vadd.f32 %v7104, %v7196
    %v7202 = vadd.f32 %v7110, %v7196
    %v7203 = vadd.f32 %v7114, %v7196
    %v7204 = vadd.f32 %v7120, %v7196
    %v7205 = vadd.f32 %v7124, %v7196
    %v7206 = vrot.slane %v7088, 4
    %v7207 = vrot.slane %v7092, 4
    %v7208 = vrot.slane %v7098, 4
    %v7209 = vrot.slane %v7102, 4
    %v7210 = vrot.slane %v7108, 4
    %v7211 = vrot.slane %v7112, 4
    %v7212 = vrot.slane %v7118, 4
    %v7213 = vrot.slane %v7122, 4
    %v7214 = vsel %vm1387, %v7212, %v7213
    %v7215 = vsel %vm1387, %v7211, %v7212
    %v7216 = vsel %vm1387, %v7210, %v7211
    %v7217 = vsel %vm1387, %v7209, %v7210
    %v7218 = vsel %vm1387, %v7208, %v7209
    %v7219 = vsel %vm1387, %v7207, %v7208
    %v7220 = vsel %vm1387, %v7206, %v7207
    %v7221 = vsel %vm1387, %v7213, %v7206
    %v7222 = vsel %vm6940, 1, 0
    %v7223 = vsel %vm6941, 1, 0
    %v7224 = vsel %vm6942, 1, 0
    %v7225 = vsel %vm6943, 1, 0
    %v7226 = vsel %vm6944, 1, 0
    %v7227 = vsel %vm6945, 1, 0
    %v7228 = vsel %vm6946, 1, 0
    %v7229 = vsel %vm6947, 1, 0
    %vm7230 = vcmp.eq.s32.totalorder %v7222, 1
    %vm7231 = vcmp.eq.s32.totalorder %v7223, 1
    %vm7232 = vcmp.eq.s32.totalorder %v7224, 1
    %vm7233 = vcmp.eq.s32.totalorder %v7225, 1
    %vm7234 = vcmp.eq.s32.totalorder %v7226, 1
    %vm7235 = vcmp.eq.s32.totalorder %v7227, 1
    %vm7236 = vcmp.eq.s32.totalorder %v7228, 1
    %vm7237 = vcmp.eq.s32.totalorder %v7229, 1
    %v7238 = vsel %vm7230, %v7221, 0.0
    %v7239 = vsel %vm7231, %v7220, 0.0
    %v7240 = vsel %vm7232, %v7219, 0.0
    %v7241 = vsel %vm7233, %v7218, 0.0
    %v7242 = vsel %vm7234, %v7217, 0.0
    %v7243 = vsel %vm7235, %v7216, 0.0
    %v7244 = vsel %vm7236, %v7215, 0.0
    %v7245 = vsel %vm7237, %v7214, 0.0
    %v7246 = vadd.f32 %v7198, %v7238
    %v7247 = vadd.f32 %v7199, %v7239
    %v7248 = vadd.f32 %v7200, %v7240
    %v7249 = vadd.f32 %v7201, %v7241
    %v7250 = vadd.f32 %v7202, %v7242
    %v7251 = vadd.f32 %v7203, %v7243
    %v7252 = vadd.f32 %v7204, %v7244
    %v7253 = vadd.f32 %v7205, %v7245
    %v7254 = vrot.slane %v7161, 4
    %v7255 = vrot.slane %v7164, 4
    %v7256 = vrot.slane %v7169, 4
    %v7257 = vrot.slane %v7172, 4
    %v7258 = vrot.slane %v7177, 4
    %v7259 = vrot.slane %v7180, 4
    %v7260 = vrot.slane %v7185, 4
    %v7261 = vrot.slane %v7188, 4
    %v7262 = vsel %vm1387, %v7260, %v7261
    %v7263 = vsel %vm1387, %v7259, %v7260
    %v7264 = vsel %vm1387, %v7258, %v7259
    %v7265 = vsel %vm1387, %v7257, %v7258
    %v7266 = vsel %vm1387, %v7256, %v7257
    %v7267 = vsel %vm1387, %v7255, %v7256
    %v7268 = vsel %vm1387, %v7254, %v7255
    %v7269 = vsel %vm1387, %v7261, %v7254
    %v7270 = vsel %vm6948, 1, 0
    %v7271 = vsel %vm6949, 1, 0
    %v7272 = vsel %vm6950, 1, 0
    %v7273 = vsel %vm6951, 1, 0
    %v7274 = vsel %vm6952, 1, 0
    %v7275 = vsel %vm6953, 1, 0
    %v7276 = vsel %vm6954, 1, 0
    %v7277 = vsel %vm6955, 1, 0
    %vm7278 = vcmp.eq.s32.totalorder %v7270, 1
    %vm7279 = vcmp.eq.s32.totalorder %v7271, 1
    %vm7280 = vcmp.eq.s32.totalorder %v7272, 1
    %vm7281 = vcmp.eq.s32.totalorder %v7273, 1
    %vm7282 = vcmp.eq.s32.totalorder %v7274, 1
    %vm7283 = vcmp.eq.s32.totalorder %v7275, 1
    %vm7284 = vcmp.eq.s32.totalorder %v7276, 1
    %vm7285 = vcmp.eq.s32.totalorder %v7277, 1
    %v7286 = vsel %vm7278, %v7268, 0.0
    %v7287 = vsel %vm7279, %v7267, 0.0
    %v7288 = vsel %vm7280, %v7266, 0.0
    %v7289 = vsel %vm7281, %v7265, 0.0
    %v7290 = vsel %vm7282, %v7264, 0.0
    %v7291 = vsel %vm7283, %v7263, 0.0
    %v7292 = vsel %vm7284, %v7262, 0.0
    %v7293 = vsel %vm7285, %v7269, 0.0
    %v7294 = vadd.f32 %v7246, %v7286
    %v7295 = vadd.f32 %v7247, %v7287
    %v7296 = vadd.f32 %v7248, %v7288
    %v7297 = vadd.f32 %v7249, %v7289
    %v7298 = vadd.f32 %v7250, %v7290
    %v7299 = vadd.f32 %v7251, %v7291
    %v7300 = vadd.f32 %v7252, %v7292
    %v7301 = vadd.f32 %v7253, %v7293
    %vm7302 = vcmp.gt.f32.partialorder %v7294, 0.0
    %vm7303 = vcmp.gt.f32.partialorder %v7295, 0.0
    %vm7304 = vcmp.gt.f32.partialorder %v7296, 0.0
    %vm7305 = vcmp.gt.f32.partialorder %v7297, 0.0
    %vm7306 = vcmp.gt.f32.partialorder %v7298, 0.0
    %vm7307 = vcmp.gt.f32.partialorder %v7299, 0.0
    %vm7308 = vcmp.gt.f32.partialorder %v7300, 0.0
    %vm7309 = vcmp.gt.f32.partialorder %v7301, 0.0
    %v7310 = vmin.f32 %v7294, 0.0
    %v7311 = vmin.f32 %v7295, 0.0
    %v7312 = vmin.f32 %v7296, 0.0
    %v7313 = vmin.f32 %v7297, 0.0
    %v7314 = vmin.f32 %v7298, 0.0
    %v7315 = vmin.f32 %v7299, 0.0
    %v7316 = vmin.f32 %v7300, 0.0
    %v7317 = vmin.f32 %v7301, 0.0
    %v7318 = vmul.f32 %v7310, 1.442695
    %v7319 = vpow.pop %v7318
    %v7320 = vmul.f32 %v7311, 1.442695
    %v7321 = vpow.pop %v7320
    %v7322 = vmul.f32 %v7312, 1.442695
    %v7323 = vpow.pop %v7322
    %v7324 = vmul.f32 %v7313, 1.442695
    %v7325 = vpow.pop %v7324
    %v7326 = vmul.f32 %v7314, 1.442695
    %v7327 = vpow.pop %v7326
    %v7328 = vmul.f32 %v7315, 1.442695
    %v7329 = vpow.pop %v7328
    %v7330 = vmul.f32 %v7316, 1.442695
    %v7331 = vpow.pop %v7330
    %v7332 = vmul.f32 %v7317, 1.442695
    %v7333 = vpow.pop %v7332
    %v7334 = vsub.f32 %v7319, 1.0
    %v7335 = vsub.f32 %v7321, 1.0
    %v7336 = vsub.f32 %v7323, 1.0
    %v7337 = vsub.f32 %v7325, 1.0
    %v7338 = vsub.f32 %v7327, 1.0
    %v7339 = vsub.f32 %v7329, 1.0
    %v7340 = vsub.f32 %v7331, 1.0
    %v7341 = vsub.f32 %v7333, 1.0
    %v7342 = vsel %vm7302, %v7294, %v7334
    %v7343 = vsel %vm7303, %v7295, %v7335
    %v7344 = vsel %vm7304, %v7296, %v7336
    %v7345 = vsel %vm7305, %v7297, %v7337
    %v7346 = vsel %vm7306, %v7298, %v7338
    %v7347 = vsel %vm7307, %v7299, %v7339
    %v7348 = vsel %vm7308, %v7300, %v7340
    %v7349 = vsel %vm7309, %v7301, %v7341
    %v7350 = vadd.f32 %v6814, %v7342
    %v7351 = vadd.f32 %v6817, %v7343
    %v7352 = vadd.f32 %v6822, %v7344
    %v7353 = vadd.f32 %v6825, %v7345
    %v7354 = vadd.f32 %v6830, %v7346
    %v7355 = vadd.f32 %v6833, %v7347
    %v7356 = vadd.f32 %v6838, %v7348
    %v7357 = vadd.f32 %v6841, %v7349
    %v7358 = vpack.c.bf16 %v7351, %v7350
    %v7359 = vpack.c.bf16 %v7353, %v7352
    %v7360 = vpack.c.bf16 %v7355, %v7354
    %v7361 = vpack.c.bf16 %v7357, %v7356
    %s7362 = scalar_lea.vmem %s13, 96
    %v7363 = vld [vmem:[%s7362] sm:$0xff]
    %v7364 = vld [vmem:[%s7362 + $0x8] sm:$0xf]
    %v7365 = vld [vmem:[%s7362 + $0xc] sm:$0xff]
    %v7366 = vld [vmem:[%s7362 + $0x14] sm:$0xf]
    %v7367 = vld [vmem:[%s7362 + $0x18] sm:$0xff]
    %v7368 = vld [vmem:[%s7362 + $0x20] sm:$0xf]
    %v7369 = vld [vmem:[%s7362 + $0x24] sm:$0xff]
    %v7370 = vld [vmem:[%s7362 + $0x2c] sm:$0xf]
    %v7371 = vld [vmem:[%s7362 + $0x30] sm:$0xff]
    %v7372 = vld [vmem:[%s7362 + $0x38] sm:$0xf]
    %v7373 = vld [vmem:[%s7362 + $0x3c] sm:$0xff]
    %v7374 = vld [vmem:[%s7362 + $0x44] sm:$0xf]
    %v7375 = vld [vmem:[%s7362 + $0x48] sm:$0xff]
    %v7376 = vld [vmem:[%s7362 + $0x50] sm:$0xf]
    %v7377 = vld [vmem:[%s7362 + $0x54] sm:$0xff]
    %v7378 = vld [vmem:[%s7362 + $0x5c] sm:$0xf]
    %v7395 = vunpack.c.l.b16 %v7363
    %v7396 = vunpack.c.h.b16 %v7363
    %v7397 = vunpack.c.l.b16 %v7364
    %v7398 = vunpack.c.l.b16 %v7365
    %v7399 = vunpack.c.h.b16 %v7365
    %v7400 = vunpack.c.l.b16 %v7366
    %v7401 = vunpack.c.l.b16 %v7367
    %v7402 = vunpack.c.h.b16 %v7367
    %v7403 = vunpack.c.l.b16 %v7368
    %v7404 = vunpack.c.l.b16 %v7369
    %v7405 = vunpack.c.h.b16 %v7369
    %v7406 = vunpack.c.l.b16 %v7370
    %v7407 = vunpack.c.l.b16 %v7371
    %v7408 = vunpack.c.h.b16 %v7371
    %v7409 = vunpack.c.l.b16 %v7372
    %v7410 = vunpack.c.l.b16 %v7373
    %v7411 = vunpack.c.h.b16 %v7373
    %v7412 = vunpack.c.l.b16 %v7374
    %v7413 = vunpack.c.l.b16 %v7375
    %v7414 = vunpack.c.h.b16 %v7375
    %v7415 = vunpack.c.l.b16 %v7376
    %v7416 = vunpack.c.l.b16 %v7377
    %v7417 = vunpack.c.h.b16 %v7377
    %v7418 = vunpack.c.l.b16 %v7378
    %v7419 = vpack.c.b16 %v7398, %v7395
    %v7420 = vpack.c.b16 %v7399, %v7396
    %v7421 = vpack.c.b16 %v7400, %v7397
    %v7422 = vpack.c.b16 %v7404, %v7401
    %v7423 = vpack.c.b16 %v7405, %v7402
    %v7424 = vpack.c.b16 %v7406, %v7403
    %v7425 = vpack.c.b16 %v7410, %v7407
    %v7426 = vpack.c.b16 %v7411, %v7408
    %v7427 = vpack.c.b16 %v7412, %v7409
    %v7428 = vpack.c.b16 %v7416, %v7413
    %v7429 = vpack.c.b16 %v7417, %v7414
    %v7430 = vpack.c.b16 %v7418, %v7415
    %v7444 = vsel %vm7040, %v7358, 0
    %v7447 = vsel %vm7040, %v7359, 0
    %v7450 = vsel %vm7040, %v7360, 0
    %v7453 = vsel %vm7040, %v7361, 0
    %7455 = vmatprep.subr.bf16.mxu0 %v7420
    %7456 = vmatpush1.bf16.msra.mxu0 %v7419
    %7457 = vmatprep.subr.bf16.mxu0 %v7423
    %7458 = vmatpush1.bf16.msra.mxu0 %v7422
    %7459 = vmatprep.subr.bf16.mxu0 %v7426
    %7460 = vmatpush1.bf16.msra.mxu0 %v7425
    %7461 = vmatprep.subr.bf16.mxu0 %v7429
    %7462 = vmatpush1.bf16.msra.mxu0 %v7428
    %7463 = vmatprep.subr.bf16.mxu0 0
    %7464 = vmatpush1.bf16.msra.mxu0 0
    %7465 = vmatprep.subr.bf16.mxu0 0
    %7466 = vmatpush1.bf16.msra.mxu0 0
    %7467 = vmatprep.subr.bf16.mxu0 0
    %7468 = vmatpush1.bf16.msra.mxu0 0
    %7469 = vmatprep.subr.bf16.mxu0 0
    %7470 = vmatpush1.bf16.msra.mxu0 0
    %7471 = vmatprep.subr.bf16.mxu0 0
    %7472 = vmatpush1.bf16.msra.mxu0 0
    %7473 = vmatprep.subr.bf16.mxu0 0
    %7474 = vmatpush1.bf16.msra.mxu0 0
    %7475 = vmatprep.subr.bf16.mxu0 0
    %7476 = vmatpush1.bf16.msra.mxu0 0
    %7477 = vmatprep.subr.bf16.mxu0 0
    %7478 = vmatpush1.bf16.msra.mxu0 0
    %7479 = vmatprep.subr.bf16.mxu0 0
    %7480 = vmatpush1.bf16.msra.mxu0 0
    %7481 = vmatprep.subr.bf16.mxu0 0
    %7482 = vmatpush1.bf16.msra.mxu0 0
    %7483 = vmatprep.subr.bf16.mxu0 0
    %7484 = vmatpush1.bf16.msra.mxu0 0
    %7485 = vmatprep.subr.bf16.mxu0 0
    %7486 = vmatpush1.bf16.msra.mxu0 0
    %7487 = vmatprep.mubr.bf16.mxu0 0
    %7488 = vmatmul.mubr.bf16.gmra.mrb[0].mxu0 %v7444
    %v7489 = vpop.f32.mrb[0].mxu0
    %v7490 = vadd.f32 0.0, %v7489
    %v7491 = vpop.f32.mrb[0].mxu0
    %v7492 = vadd.f32 0.0, %v7491
    %v7493 = vpop.f32.mrb[0].mxu0
    %v7494 = vadd.f32 0.0, %v7493
    %v7495 = vpop.f32.mrb[0].mxu0
    %v7496 = vadd.f32 0.0, %v7495
    %7497 = vmatprep.mubr.bf16.mxu0 0
    %7498 = vmatmul.mubr.bf16.gmra.mrb[0].mxu0 %v7447
    %v7499 = vpop.f32.mrb[0].mxu0
    %v7500 = vadd.f32 0.0, %v7499
    %v7501 = vpop.f32.mrb[0].mxu0
    %v7502 = vadd.f32 0.0, %v7501
    %v7503 = vpop.f32.mrb[0].mxu0
    %v7504 = vadd.f32 0.0, %v7503
    %v7505 = vpop.f32.mrb[0].mxu0
    %v7506 = vadd.f32 0.0, %v7505
    %7507 = vmatprep.mubr.bf16.mxu0 0
    %7508 = vmatmul.mubr.bf16.gmra.mrb[0].mxu0 %v7450
    %v7509 = vpop.f32.mrb[0].mxu0
    %v7510 = vadd.f32 0.0, %v7509
    %v7511 = vpop.f32.mrb[0].mxu0
    %v7512 = vadd.f32 0.0, %v7511
    %v7513 = vpop.f32.mrb[0].mxu0
    %v7514 = vadd.f32 0.0, %v7513
    %v7515 = vpop.f32.mrb[0].mxu0
    %v7516 = vadd.f32 0.0, %v7515
    %7517 = vmatprep.mubr.bf16.mxu0 0
    %7518 = vmatmul.mubr.bf16.gmra.mrb[0].mxu0 %v7453
    %v7519 = vpop.f32.mrb[0].mxu0
    %v7520 = vadd.f32 0.0, %v7519
    %v7521 = vpop.f32.mrb[0].mxu0
    %v7522 = vadd.f32 0.0, %v7521
    %v7523 = vpop.f32.mrb[0].mxu0
    %v7524 = vadd.f32 0.0, %v7523
    %v7525 = vpop.f32.mrb[0].mxu0
    %v7526 = vadd.f32 0.0, %v7525
    %7527 = vdwg.mxu0
    %7528 = vmatprep.subr.bf16.mxu0 0
    %7529 = vmatpush1.bf16.msra.mxu0 %v7421
    %7530 = vmatprep.subr.bf16.mxu0 0
    %7531 = vmatpush1.bf16.msra.mxu0 %v7424
    %7532 = vmatprep.subr.bf16.mxu0 0
    %7533 = vmatpush1.bf16.msra.mxu0 %v7427
    %7534 = vmatprep.subr.bf16.mxu0 0
    %7535 = vmatpush1.bf16.msra.mxu0 %v7430
    %7536 = vmatprep.subr.bf16.mxu0 0
    %7537 = vmatpush1.bf16.msra.mxu0 0
    %7538 = vmatprep.subr.bf16.mxu0 0
    %7539 = vmatpush1.bf16.msra.mxu0 0
    %7540 = vmatprep.subr.bf16.mxu0 0
    %7541 = vmatpush1.bf16.msra.mxu0 0
    %7542 = vmatprep.subr.bf16.mxu0 0
    %7543 = vmatpush1.bf16.msra.mxu0 0
    %7544 = vmatprep.subr.bf16.mxu0 0
    %7545 = vmatpush1.bf16.msra.mxu0 0
    %7546 = vmatprep.subr.bf16.mxu0 0
    %7547 = vmatpush1.bf16.msra.mxu0 0
    %7548 = vmatprep.subr.bf16.mxu0 0
    %7549 = vmatpush1.bf16.msra.mxu0 0
    %7550 = vmatprep.subr.bf16.mxu0 0
    %7551 = vmatpush1.bf16.msra.mxu0 0
    %7552 = vmatprep.subr.bf16.mxu0 0
    %7553 = vmatpush1.bf16.msra.mxu0 0
    %7554 = vmatprep.subr.bf16.mxu0 0
    %7555 = vmatpush1.bf16.msra.mxu0 0
    %7556 = vmatprep.subr.bf16.mxu0 0
    %7557 = vmatpush1.bf16.msra.mxu0 0
    %7558 = vmatprep.subr.bf16.mxu0 0
    %7559 = vmatpush1.bf16.msra.mxu0 0
    %7560 = vmatprep.mubr.bf16.mxu0 0
    %7561 = vmatmul.mubr.bf16.gmra.mrb[0].mxu0 %v7444
    %v7562 = vpop.f32.mrb[0].mxu0
    %v7563 = vadd.f32 0.0, %v7562
    %v7564 = vpop.f32.mrb[0].mxu0
    %v7565 = vpop.f32.mrb[0].mxu0
    %v7566 = vadd.f32 0.0, %v7565
    %v7567 = vpop.f32.mrb[0].mxu0
    %7568 = vmatprep.mubr.bf16.mxu0 0
    %7569 = vmatmul.mubr.bf16.gmra.mrb[0].mxu0 %v7447
    %v7570 = vpop.f32.mrb[0].mxu0
    %v7571 = vadd.f32 0.0, %v7570
    %v7572 = vpop.f32.mrb[0].mxu0
    %v7573 = vpop.f32.mrb[0].mxu0
    %v7574 = vadd.f32 0.0, %v7573
    %v7575 = vpop.f32.mrb[0].mxu0
    %7576 = vmatprep.mubr.bf16.mxu0 0
    %7577 = vmatmul.mubr.bf16.gmra.mrb[0].mxu0 %v7450
    %v7578 = vpop.f32.mrb[0].mxu0
    %v7579 = vadd.f32 0.0, %v7578
    %v7580 = vpop.f32.mrb[0].mxu0
    %v7581 = vpop.f32.mrb[0].mxu0
    %v7582 = vadd.f32 0.0, %v7581
    %v7583 = vpop.f32.mrb[0].mxu0
    %7584 = vmatprep.mubr.bf16.mxu0 0
    %7585 = vmatmul.mubr.bf16.gmra.mrb[0].mxu0 %v7453
    %v7586 = vpop.f32.mrb[0].mxu0
    %v7587 = vadd.f32 0.0, %v7586
    %v7588 = vpop.f32.mrb[0].mxu0
    %v7589 = vpop.f32.mrb[0].mxu0
    %v7590 = vadd.f32 0.0, %v7589
    %v7591 = vpop.f32.mrb[0].mxu0
    %7592 = vdwg.mxu0
    %s7593 = scalar_lea.vmem %s14, 1
    %v7594 = vld [vmem:[%s7593] sm:$0x1]
    %v7596 = vlaneseq
    %v7597 = vshrl.u32 %v7596, 7
    %v7598 = vsub.s32 0, %v7597
    %v7599 = vrot.slane %v7594, %v7598
    %v7601 = vadd.f32 %v7492, %v7599
    %v7602 = vadd.f32 %v7496, %v7599
    %v7603 = vadd.f32 %v7502, %v7599
    %v7604 = vadd.f32 %v7506, %v7599
    %v7605 = vadd.f32 %v7512, %v7599
    %v7606 = vadd.f32 %v7516, %v7599
    %v7607 = vadd.f32 %v7522, %v7599
    %v7608 = vadd.f32 %v7526, %v7599
    %v7609 = vrot.slane %v7490, 4
    %v7610 = vrot.slane %v7494, 4
    %v7611 = vrot.slane %v7500, 4
    %v7612 = vrot.slane %v7504, 4
    %v7613 = vrot.slane %v7510, 4
    %v7614 = vrot.slane %v7514, 4
    %v7615 = vrot.slane %v7520, 4
    %v7616 = vrot.slane %v7524, 4
    %v7617 = vsel %vm1387, %v7615, %v7616
    %v7618 = vsel %vm1387, %v7614, %v7615
    %v7619 = vsel %vm1387, %v7613, %v7614
    %v7620 = vsel %vm1387, %v7612, %v7613
    %v7621 = vsel %vm1387, %v7611, %v7612
    %v7622 = vsel %vm1387, %v7610, %v7611
    %v7623 = vsel %vm1387, %v7609, %v7610
    %v7624 = vsel %vm1387, %v7616, %v7609
    %v7625 = vsel %vm7230, %v7624, 0.0
    %v7626 = vsel %vm7231, %v7623, 0.0
    %v7627 = vsel %vm7232, %v7622, 0.0
    %v7628 = vsel %vm7233, %v7621, 0.0
    %v7629 = vsel %vm7234, %v7620, 0.0
    %v7630 = vsel %vm7235, %v7619, 0.0
    %v7631 = vsel %vm7236, %v7618, 0.0
    %v7632 = vsel %vm7237, %v7617, 0.0
    %v7633 = vadd.f32 %v7601, %v7625
    %v7634 = vadd.f32 %v7602, %v7626
    %v7635 = vadd.f32 %v7603, %v7627
    %v7636 = vadd.f32 %v7604, %v7628
    %v7637 = vadd.f32 %v7605, %v7629
    %v7638 = vadd.f32 %v7606, %v7630
    %v7639 = vadd.f32 %v7607, %v7631
    %v7640 = vadd.f32 %v7608, %v7632
    %v7641 = vrot.slane %v7563, 4
    %v7642 = vrot.slane %v7566, 4
    %v7643 = vrot.slane %v7571, 4
    %v7644 = vrot.slane %v7574, 4
    %v7645 = vrot.slane %v7579, 4
    %v7646 = vrot.slane %v7582, 4
    %v7647 = vrot.slane %v7587, 4
    %v7648 = vrot.slane %v7590, 4
    %v7649 = vsel %vm1387, %v7647, %v7648
    %v7650 = vsel %vm1387, %v7646, %v7647
    %v7651 = vsel %vm1387, %v7645, %v7646
    %v7652 = vsel %vm1387, %v7644, %v7645
    %v7653 = vsel %vm1387, %v7643, %v7644
    %v7654 = vsel %vm1387, %v7642, %v7643
    %v7655 = vsel %vm1387, %v7641, %v7642
    %v7656 = vsel %vm1387, %v7648, %v7641
    %v7657 = vsel %vm7278, %v7655, 0.0
    %v7658 = vsel %vm7279, %v7654, 0.0
    %v7659 = vsel %vm7280, %v7653, 0.0
    %v7660 = vsel %vm7281, %v7652, 0.0
    %v7661 = vsel %vm7282, %v7651, 0.0
    %v7662 = vsel %vm7283, %v7650, 0.0
    %v7663 = vsel %vm7284, %v7649, 0.0
    %v7664 = vsel %vm7285, %v7656, 0.0
    %v7665 = vadd.f32 %v7633, %v7657
    %v7666 = vadd.f32 %v7634, %v7658
    %v7667 = vadd.f32 %v7635, %v7659
    %v7668 = vadd.f32 %v7636, %v7660
    %v7669 = vadd.f32 %v7637, %v7661
    %v7670 = vadd.f32 %v7638, %v7662
    %v7671 = vadd.f32 %v7639, %v7663
    %v7672 = vadd.f32 %v7640, %v7664
    %vm7673 = vcmp.gt.f32.partialorder %v7665, 0.0
    %vm7674 = vcmp.gt.f32.partialorder %v7666, 0.0
    %vm7675 = vcmp.gt.f32.partialorder %v7667, 0.0
    %vm7676 = vcmp.gt.f32.partialorder %v7668, 0.0
    %vm7677 = vcmp.gt.f32.partialorder %v7669, 0.0
    %vm7678 = vcmp.gt.f32.partialorder %v7670, 0.0
    %vm7679 = vcmp.gt.f32.partialorder %v7671, 0.0
    %vm7680 = vcmp.gt.f32.partialorder %v7672, 0.0
    %v7681 = vmin.f32 %v7665, 0.0
    %v7682 = vmin.f32 %v7666, 0.0
    %v7683 = vmin.f32 %v7667, 0.0
    %v7684 = vmin.f32 %v7668, 0.0
    %v7685 = vmin.f32 %v7669, 0.0
    %v7686 = vmin.f32 %v7670, 0.0
    %v7687 = vmin.f32 %v7671, 0.0
    %v7688 = vmin.f32 %v7672, 0.0
    %v7689 = vmul.f32 %v7681, 1.442695
    %v7690 = vpow.pop %v7689
    %v7691 = vmul.f32 %v7682, 1.442695
    %v7692 = vpow.pop %v7691
    %v7693 = vmul.f32 %v7683, 1.442695
    %v7694 = vpow.pop %v7693
    %v7695 = vmul.f32 %v7684, 1.442695
    %v7696 = vpow.pop %v7695
    %v7697 = vmul.f32 %v7685, 1.442695
    %v7698 = vpow.pop %v7697
    %v7699 = vmul.f32 %v7686, 1.442695
    %v7700 = vpow.pop %v7699
    %v7701 = vmul.f32 %v7687, 1.442695
    %v7702 = vpow.pop %v7701
    %v7703 = vmul.f32 %v7688, 1.442695
    %v7704 = vpow.pop %v7703
    %v7705 = vsub.f32 %v7690, 1.0
    %v7706 = vsub.f32 %v7692, 1.0
    %v7707 = vsub.f32 %v7694, 1.0
    %v7708 = vsub.f32 %v7696, 1.0
    %v7709 = vsub.f32 %v7698, 1.0
    %v7710 = vsub.f32 %v7700, 1.0
    %v7711 = vsub.f32 %v7702, 1.0
    %v7712 = vsub.f32 %v7704, 1.0
    %v7713 = vsel %vm7673, %v7665, %v7705
    %v7714 = vsel %vm7674, %v7666, %v7706
    %v7715 = vsel %vm7675, %v7667, %v7707
    %v7716 = vsel %vm7676, %v7668, %v7708
    %v7717 = vsel %vm7677, %v7669, %v7709
    %v7718 = vsel %vm7678, %v7670, %v7710
    %v7719 = vsel %vm7679, %v7671, %v7711
    %v7720 = vsel %vm7680, %v7672, %v7712
    %v7721 = vadd.f32 %v7350, %v7713
    %v7722 = vadd.f32 %v7351, %v7714
    %v7723 = vadd.f32 %v7352, %v7715
    %v7724 = vadd.f32 %v7353, %v7716
    %v7725 = vadd.f32 %v7354, %v7717
    %v7726 = vadd.f32 %v7355, %v7718
    %v7727 = vadd.f32 %v7356, %v7719
    %v7728 = vadd.f32 %v7357, %v7720
    %v7729 = vpack.c.bf16 %v7722, %v7721
    %v7730 = vpack.c.bf16 %v7724, %v7723
    %v7731 = vpack.c.bf16 %v7726, %v7725
    %v7732 = vpack.c.bf16 %v7728, %v7727
    %s7733 = scalar_lea.vmem %s13, 192
    %v7734 = vld [vmem:[%s7733] sm:$0xff]
    %v7735 = vld [vmem:[%s7733 + $0x8] sm:$0xf]
    %v7736 = vld [vmem:[%s7733 + $0xc] sm:$0xff]
    %v7737 = vld [vmem:[%s7733 + $0x14] sm:$0xf]
    %v7738 = vld [vmem:[%s7733 + $0x18] sm:$0xff]
    %v7739 = vld [vmem:[%s7733 + $0x20] sm:$0xf]
    %v7740 = vld [vmem:[%s7733 + $0x24] sm:$0xff]
    %v7741 = vld [vmem:[%s7733 + $0x2c] sm:$0xf]
    %v7742 = vld [vmem:[%s7733 + $0x30] sm:$0xff]
    %v7743 = vld [vmem:[%s7733 + $0x38] sm:$0xf]
    %v7744 = vld [vmem:[%s7733 + $0x3c] sm:$0xff]
    %v7745 = vld [vmem:[%s7733 + $0x44] sm:$0xf]
    %v7746 = vld [vmem:[%s7733 + $0x48] sm:$0xff]
    %v7747 = vld [vmem:[%s7733 + $0x50] sm:$0xf]
    %v7748 = vld [vmem:[%s7733 + $0x54] sm:$0xff]
    %v7749 = vld [vmem:[%s7733 + $0x5c] sm:$0xf]
    %v7766 = vunpack.c.l.b16 %v7734
    %v7767 = vunpack.c.h.b16 %v7734
    %v7768 = vunpack.c.l.b16 %v7735
    %v7769 = vunpack.c.l.b16 %v7736
    %v7770 = vunpack.c.h.b16 %v7736
    %v7771 = vunpack.c.l.b16 %v7737
    %v7772 = vunpack.c.l.b16 %v7738
    %v7773 = vunpack.c.h.b16 %v7738
    %v7774 = vunpack.c.l.b16 %v7739
    %v7775 = vunpack.c.l.b16 %v7740
    %v7776 = vunpack.c.h.b16 %v7740
    %v7777 = vunpack.c.l.b16 %v7741
    %v7778 = vunpack.c.l.b16 %v7742
    %v7779 = vunpack.c.h.b16 %v7742
    %v7780 = vunpack.c.l.b16 %v7743
    %v7781 = vunpack.c.l.b16 %v7744
    %v7782 = vunpack.c.h.b16 %v7744
    %v7783 = vunpack.c.l.b16 %v7745
    %v7784 = vunpack.c.l.b16 %v7746
    %v7785 = vunpack.c.h.b16 %v7746
    %v7786 = vunpack.c.l.b16 %v7747
    %v7787 = vunpack.c.l.b16 %v7748
    %v7788 = vunpack.c.h.b16 %v7748
    %v7789 = vunpack.c.l.b16 %v7749
    %v7790 = vpack.c.b16 %v7769, %v7766
    %v7791 = vpack.c.b16 %v7770, %v7767
    %v7792 = vpack.c.b16 %v7771, %v7768
    %v7793 = vpack.c.b16 %v7775, %v7772
    %v7794 = vpack.c.b16 %v7776, %v7773
    %v7795 = vpack.c.b16 %v7777, %v7774
    %v7796 = vpack.c.b16 %v7781, %v7778
    %v7797 = vpack.c.b16 %v7782, %v7779
    %v7798 = vpack.c.b16 %v7783, %v7780
    %v7799 = vpack.c.b16 %v7787, %v7784
    %v7800 = vpack.c.b16 %v7788, %v7785
    %v7801 = vpack.c.b16 %v7789, %v7786
    %v7815 = vsel %vm7040, %v7729, 0
    %v7818 = vsel %vm7040, %v7730, 0
    %v7821 = vsel %vm7040, %v7731, 0
    %v7824 = vsel %vm7040, %v7732, 0
    %7826 = vmatprep.subr.bf16.mxu0 %v7791
    %7827 = vmatpush1.bf16.msra.mxu0 %v7790
    %7828 = vmatprep.subr.bf16.mxu0 %v7794
    %7829 = vmatpush1.bf16.msra.mxu0 %v7793
    %7830 = vmatprep.subr.bf16.mxu0 %v7797
    %7831 = vmatpush1.bf16.msra.mxu0 %v7796
    %7832 = vmatprep.subr.bf16.mxu0 %v7800
    %7833 = vmatpush1.bf16.msra.mxu0 %v7799
    %7834 = vmatprep.subr.bf16.mxu0 0
    %7835 = vmatpush1.bf16.msra.mxu0 0
    %7836 = vmatprep.subr.bf16.mxu0 0
    %7837 = vmatpush1.bf16.msra.mxu0 0
    %7838 = vmatprep.subr.bf16.mxu0 0
    %7839 = vmatpush1.bf16.msra.mxu0 0
    %7840 = vmatprep.subr.bf16.mxu0 0
    %7841 = vmatpush1.bf16.msra.mxu0 0
    %7842 = vmatprep.subr.bf16.mxu0 0
    %7843 = vmatpush1.bf16.msra.mxu0 0
    %7844 = vmatprep.subr.bf16.mxu0 0
    %7845 = vmatpush1.bf16.msra.mxu0 0
    %7846 = vmatprep.subr.bf16.mxu0 0
    %7847 = vmatpush1.bf16.msra.mxu0 0
    %7848 = vmatprep.subr.bf16.mxu0 0
    %7849 = vmatpush1.bf16.msra.mxu0 0
    %7850 = vmatprep.subr.bf16.mxu0 0
    %7851 = vmatpush1.bf16.msra.mxu0 0
    %7852 = vmatprep.subr.bf16.mxu0 0
    %7853 = vmatpush1.bf16.msra.mxu0 0
    %7854 = vmatprep.subr.bf16.mxu0 0
    %7855 = vmatpush1.bf16.msra.mxu0 0
    %7856 = vmatprep.subr.bf16.mxu0 0
    %7857 = vmatpush1.bf16.msra.mxu0 0
    %7858 = vmatprep.mubr.bf16.mxu0 0
    %7859 = vmatmul.mubr.bf16.gmra.mrb[0].mxu0 %v7815
    %v7860 = vpop.f32.mrb[0].mxu0
    %v7861 = vadd.f32 0.0, %v7860
    %v7862 = vpop.f32.mrb[0].mxu0
    %v7863 = vadd.f32 0.0, %v7862
    %v7864 = vpop.f32.mrb[0].mxu0
    %v7865 = vadd.f32 0.0, %v7864
    %v7866 = vpop.f32.mrb[0].mxu0
    %v7867 = vadd.f32 0.0, %v7866
    %7868 = vmatprep.mubr.bf16.mxu0 0
    %7869 = vmatmul.mubr.bf16.gmra.mrb[0].mxu0 %v7818
    %v7870 = vpop.f32.mrb[0].mxu0
    %v7871 = vadd.f32 0.0, %v7870
    %v7872 = vpop.f32.mrb[0].mxu0
    %v7873 = vadd.f32 0.0, %v7872
    %v7874 = vpop.f32.mrb[0].mxu0
    %v7875 = vadd.f32 0.0, %v7874
    %v7876 = vpop.f32.mrb[0].mxu0
    %v7877 = vadd.f32 0.0, %v7876
    %7878 = vmatprep.mubr.bf16.mxu0 0
    %7879 = vmatmul.mubr.bf16.gmra.mrb[0].mxu0 %v7821
    %v7880 = vpop.f32.mrb[0].mxu0
    %v7881 = vadd.f32 0.0, %v7880
    %v7882 = vpop.f32.mrb[0].mxu0
    %v7883 = vadd.f32 0.0, %v7882
    %v7884 = vpop.f32.mrb[0].mxu0
    %v7885 = vadd.f32 0.0, %v7884
    %v7886 = vpop.f32.mrb[0].mxu0
    %v7887 = vadd.f32 0.0, %v7886
    %7888 = vmatprep.mubr.bf16.mxu0 0
    %7889 = vmatmul.mubr.bf16.gmra.mrb[0].mxu0 %v7824
    %v7890 = vpop.f32.mrb[0].mxu0
    %v7891 = vadd.f32 0.0, %v7890
    %v7892 = vpop.f32.mrb[0].mxu0
    %v7893 = vadd.f32 0.0, %v7892
    %v7894 = vpop.f32.mrb[0].mxu0
    %v7895 = vadd.f32 0.0, %v7894
    %v7896 = vpop.f32.mrb[0].mxu0
    %v7897 = vadd.f32 0.0, %v7896
    %7898 = vdwg.mxu0
    %7899 = vmatprep.subr.bf16.mxu0 0
    %7900 = vmatpush1.bf16.msra.mxu0 %v7792
    %7901 = vmatprep.subr.bf16.mxu0 0
    %7902 = vmatpush1.bf16.msra.mxu0 %v7795
    %7903 = vmatprep.subr.bf16.mxu0 0
    %7904 = vmatpush1.bf16.msra.mxu0 %v7798
    %7905 = vmatprep.subr.bf16.mxu0 0
    %7906 = vmatpush1.bf16.msra.mxu0 %v7801
    %7907 = vmatprep.subr.bf16.mxu0 0
    %7908 = vmatpush1.bf16.msra.mxu0 0
    %7909 = vmatprep.subr.bf16.mxu0 0
    %7910 = vmatpush1.bf16.msra.mxu0 0
    %7911 = vmatprep.subr.bf16.mxu0 0
    %7912 = vmatpush1.bf16.msra.mxu0 0
    %7913 = vmatprep.subr.bf16.mxu0 0
    %7914 = vmatpush1.bf16.msra.mxu0 0
    %7915 = vmatprep.subr.bf16.mxu0 0
    %7916 = vmatpush1.bf16.msra.mxu0 0
    %7917 = vmatprep.subr.bf16.mxu0 0
    %7918 = vmatpush1.bf16.msra.mxu0 0
    %7919 = vmatprep.subr.bf16.mxu0 0
    %7920 = vmatpush1.bf16.msra.mxu0 0
    %7921 = vmatprep.subr.bf16.mxu0 0
    %7922 = vmatpush1.bf16.msra.mxu0 0
    %7923 = vmatprep.subr.bf16.mxu0 0
    %7924 = vmatpush1.bf16.msra.mxu0 0
    %7925 = vmatprep.subr.bf16.mxu0 0
    %7926 = vmatpush1.bf16.msra.mxu0 0
    %7927 = vmatprep.subr.bf16.mxu0 0
    %7928 = vmatpush1.bf16.msra.mxu0 0
    %7929 = vmatprep.subr.bf16.mxu0 0
    %7930 = vmatpush1.bf16.msra.mxu0 0
    %7931 = vmatprep.mubr.bf16.mxu0 0
    %7932 = vmatmul.mubr.bf16.gmra.mrb[0].mxu0 %v7815
    %v7933 = vpop.f32.mrb[0].mxu0
    %v7934 = vadd.f32 0.0, %v7933
    %v7935 = vpop.f32.mrb[0].mxu0
    %v7936 = vpop.f32.mrb[0].mxu0
    %v7937 = vadd.f32 0.0, %v7936
    %v7938 = vpop.f32.mrb[0].mxu0
    %7939 = vmatprep.mubr.bf16.mxu0 0
    %7940 = vmatmul.mubr.bf16.gmra.mrb[0].mxu0 %v7818
    %v7941 = vpop.f32.mrb[0].mxu0
    %v7942 = vadd.f32 0.0, %v7941
    %v7943 = vpop.f32.mrb[0].mxu0
    %v7944 = vpop.f32.mrb[0].mxu0
    %v7945 = vadd.f32 0.0, %v7944
    %v7946 = vpop.f32.mrb[0].mxu0
    %7947 = vmatprep.mubr.bf16.mxu0 0
    %7948 = vmatmul.mubr.bf16.gmra.mrb[0].mxu0 %v7821
    %v7949 = vpop.f32.mrb[0].mxu0
    %v7950 = vadd.f32 0.0, %v7949
    %v7951 = vpop.f32.mrb[0].mxu0
    %v7952 = vpop.f32.mrb[0].mxu0
    %v7953 = vadd.f32 0.0, %v7952
    %v7954 = vpop.f32.mrb[0].mxu0
    %7955 = vmatprep.mubr.bf16.mxu0 0
    %7956 = vmatmul.mubr.bf16.gmra.mrb[0].mxu0 %v7824
    %v7957 = vpop.f32.mrb[0].mxu0
    %v7958 = vadd.f32 0.0, %v7957
    %v7959 = vpop.f32.mrb[0].mxu0
    %v7960 = vpop.f32.mrb[0].mxu0
    %v7961 = vadd.f32 0.0, %v7960
    %v7962 = vpop.f32.mrb[0].mxu0
    %7963 = vdwg.mxu0
    %s7964 = scalar_lea.vmem %s14, 2
    %v7965 = vld [vmem:[%s7964] sm:$0x1]
    %v7967 = vlaneseq
    %v7968 = vshrl.u32 %v7967, 7
    %v7969 = vsub.s32 0, %v7968
    %v7970 = vrot.slane %v7965, %v7969
    %v7972 = vadd.f32 %v7863, %v7970
    %v7973 = vadd.f32 %v7867, %v7970
    %v7974 = vadd.f32 %v7873, %v7970
    %v7975 = vadd.f32 %v7877, %v7970
    %v7976 = vadd.f32 %v7883, %v7970
    %v7977 = vadd.f32 %v7887, %v7970
    %v7978 = vadd.f32 %v7893, %v7970
    %v7979 = vadd.f32 %v7897, %v7970
    %v7980 = vrot.slane %v7861, 4
    %v7981 = vrot.slane %v7865, 4
    %v7982 = vrot.slane %v7871, 4
    %v7983 = vrot.slane %v7875, 4
    %v7984 = vrot.slane %v7881, 4
    %v7985 = vrot.slane %v7885, 4
    %v7986 = vrot.slane %v7891, 4
    %v7987 = vrot.slane %v7895, 4
    %v7988 = vsel %vm1387, %v7986, %v7987
    %v7989 = vsel %vm1387, %v7985, %v7986
    %v7990 = vsel %vm1387, %v7984, %v7985
    %v7991 = vsel %vm1387, %v7983, %v7984
    %v7992 = vsel %vm1387, %v7982, %v7983
    %v7993 = vsel %vm1387, %v7981, %v7982
    %v7994 = vsel %vm1387, %v7980, %v7981
    %v7995 = vsel %vm1387, %v7987, %v7980
    %v7996 = vsel %vm7230, %v7995, 0.0
    %v7997 = vsel %vm7231, %v7994, 0.0
    %v7998 = vsel %vm7232, %v7993, 0.0
    %v7999 = vsel %vm7233, %v7992, 0.0
    %v8000 = vsel %vm7234, %v7991, 0.0
    %v8001 = vsel %vm7235, %v7990, 0.0
    %v8002 = vsel %vm7236, %v7989, 0.0
    %v8003 = vsel %vm7237, %v7988, 0.0
    %v8004 = vadd.f32 %v7972, %v7996
    %v8005 = vadd.f32 %v7973, %v7997
    %v8006 = vadd.f32 %v7974, %v7998
    %v8007 = vadd.f32 %v7975, %v7999
    %v8008 = vadd.f32 %v7976, %v8000
    %v8009 = vadd.f32 %v7977, %v8001
    %v8010 = vadd.f32 %v7978, %v8002
    %v8011 = vadd.f32 %v7979, %v8003
    %v8012 = vrot.slane %v7934, 4
    %v8013 = vrot.slane %v7937, 4
    %v8014 = vrot.slane %v7942, 4
    %v8015 = vrot.slane %v7945, 4
    %v8016 = vrot.slane %v7950, 4
    %v8017 = vrot.slane %v7953, 4
    %v8018 = vrot.slane %v7958, 4
    %v8019 = vrot.slane %v7961, 4
    %v8020 = vsel %vm1387, %v8018, %v8019
    %v8021 = vsel %vm1387, %v8017, %v8018
    %v8022 = vsel %vm1387, %v8016, %v8017
    %v8023 = vsel %vm1387, %v8015, %v8016
    %v8024 = vsel %vm1387, %v8014, %v8015
    %v8025 = vsel %vm1387, %v8013, %v8014
    %v8026 = vsel %vm1387, %v8012, %v8013
    %v8027 = vsel %vm1387, %v8019, %v8012
    %v8028 = vsel %vm7278, %v8026, 0.0
    %v8029 = vsel %vm7279, %v8025, 0.0
    %v8030 = vsel %vm7280, %v8024, 0.0
    %v8031 = vsel %vm7281, %v8023, 0.0
    %v8032 = vsel %vm7282, %v8022, 0.0
    %v8033 = vsel %vm7283, %v8021, 0.0
    %v8034 = vsel %vm7284, %v8020, 0.0
    %v8035 = vsel %vm7285, %v8027, 0.0
    %v8036 = vadd.f32 %v8004, %v8028
    %v8037 = vadd.f32 %v8005, %v8029
    %v8038 = vadd.f32 %v8006, %v8030
    %v8039 = vadd.f32 %v8007, %v8031
    %v8040 = vadd.f32 %v8008, %v8032
    %v8041 = vadd.f32 %v8009, %v8033
    %v8042 = vadd.f32 %v8010, %v8034
    %v8043 = vadd.f32 %v8011, %v8035
    %vm8044 = vcmp.gt.f32.partialorder %v8036, 0.0
    %vm8045 = vcmp.gt.f32.partialorder %v8037, 0.0
    %vm8046 = vcmp.gt.f32.partialorder %v8038, 0.0
    %vm8047 = vcmp.gt.f32.partialorder %v8039, 0.0
    %vm8048 = vcmp.gt.f32.partialorder %v8040, 0.0
    %vm8049 = vcmp.gt.f32.partialorder %v8041, 0.0
    %vm8050 = vcmp.gt.f32.partialorder %v8042, 0.0
    %vm8051 = vcmp.gt.f32.partialorder %v8043, 0.0
    %v8052 = vmin.f32 %v8036, 0.0
    %v8053 = vmin.f32 %v8037, 0.0
    %v8054 = vmin.f32 %v8038, 0.0
    %v8055 = vmin.f32 %v8039, 0.0
    %v8056 = vmin.f32 %v8040, 0.0
    %v8057 = vmin.f32 %v8041, 0.0
    %v8058 = vmin.f32 %v8042, 0.0
    %v8059 = vmin.f32 %v8043, 0.0
    %v8060 = vmul.f32 %v8052, 1.442695
    %v8061 = vpow.pop %v8060
    %v8062 = vmul.f32 %v8053, 1.442695
    %v8063 = vpow.pop %v8062
    %v8064 = vmul.f32 %v8054, 1.442695
    %v8065 = vpow.pop %v8064
    %v8066 = vmul.f32 %v8055, 1.442695
    %v8067 = vpow.pop %v8066
    %v8068 = vmul.f32 %v8056, 1.442695
    %v8069 = vpow.pop %v8068
    %v8070 = vmul.f32 %v8057, 1.442695
    %v8071 = vpow.pop %v8070
    %v8072 = vmul.f32 %v8058, 1.442695
    %v8073 = vpow.pop %v8072
    %v8074 = vmul.f32 %v8059, 1.442695
    %v8075 = vpow.pop %v8074
    %v8076 = vsub.f32 %v8061, 1.0
    %v8077 = vsub.f32 %v8063, 1.0
    %v8078 = vsub.f32 %v8065, 1.0
    %v8079 = vsub.f32 %v8067, 1.0
    %v8080 = vsub.f32 %v8069, 1.0
    %v8081 = vsub.f32 %v8071, 1.0
    %v8082 = vsub.f32 %v8073, 1.0
    %v8083 = vsub.f32 %v8075, 1.0
    %v8084 = vsel %vm8044, %v8036, %v8076
    %v8085 = vsel %vm8045, %v8037, %v8077
    %v8086 = vsel %vm8046, %v8038, %v8078
    %v8087 = vsel %vm8047, %v8039, %v8079
    %v8088 = vsel %vm8048, %v8040, %v8080
    %v8089 = vsel %vm8049, %v8041, %v8081
    %v8090 = vsel %vm8050, %v8042, %v8082
    %v8091 = vsel %vm8051, %v8043, %v8083
    %v8092 = vadd.f32 %v7721, %v8084
    %v8093 = vadd.f32 %v7722, %v8085
    %v8094 = vadd.f32 %v7723, %v8086
    %v8095 = vadd.f32 %v7724, %v8087
    %v8096 = vadd.f32 %v7725, %v8088
    %v8097 = vadd.f32 %v7726, %v8089
    %v8098 = vadd.f32 %v7727, %v8090
    %v8099 = vadd.f32 %v7728, %v8091
    %v8100 = vpack.c.bf16 %v8093, %v8092
    %v8101 = vpack.c.bf16 %v8095, %v8094
    %v8102 = vpack.c.bf16 %v8097, %v8096
    %v8103 = vpack.c.bf16 %v8099, %v8098
    %v8104 = vld [vmem:[%s15] sm:$0xff]
    %v8105 = vld [vmem:[%s15 + $0x8] sm:$0xff]
    %v8106 = vld [vmem:[%s15 + $0x10] sm:$0xff]
    %v8107 = vld [vmem:[%s15 + $0x18] sm:$0xff]
    %v8108 = vld [vmem:[%s15 + $0x20] sm:$0xff]
    %v8109 = vld [vmem:[%s15 + $0x28] sm:$0xff]
    %v8110 = vld [vmem:[%s15 + $0x30] sm:$0xff]
    %v8111 = vld [vmem:[%s15 + $0x38] sm:$0xff]
    %v8120 = vunpack.c.l.b16 %v8104
    %v8121 = vunpack.c.h.b16 %v8104
    %v8122 = vunpack.c.l.b16 %v8105
    %v8123 = vunpack.c.h.b16 %v8105
    %v8124 = vunpack.c.l.b16 %v8106
    %v8125 = vunpack.c.h.b16 %v8106
    %v8126 = vunpack.c.l.b16 %v8107
    %v8127 = vunpack.c.h.b16 %v8107
    %v8128 = vunpack.c.l.b16 %v8108
    %v8129 = vunpack.c.h.b16 %v8108
    %v8130 = vunpack.c.l.b16 %v8109
    %v8131 = vunpack.c.h.b16 %v8109
    %v8132 = vunpack.c.l.b16 %v8110
    %v8133 = vunpack.c.h.b16 %v8110
    %v8134 = vunpack.c.l.b16 %v8111
    %v8135 = vunpack.c.h.b16 %v8111
    %v8136 = vpack.c.b16 %v8122, %v8120
    %v8137 = vpack.c.b16 %v8123, %v8121
    %v8138 = vpack.c.b16 %v8126, %v8124
    %v8139 = vpack.c.b16 %v8127, %v8125
    %v8140 = vpack.c.b16 %v8130, %v8128
    %v8141 = vpack.c.b16 %v8131, %v8129
    %v8142 = vpack.c.b16 %v8134, %v8132
    %v8143 = vpack.c.b16 %v8135, %v8133
    %v8153 = vsel %vm7040, %v8100, 0
    %v8156 = vsel %vm7040, %v8101, 0
    %v8159 = vsel %vm7040, %v8102, 0
    %v8162 = vsel %vm7040, %v8103, 0
    %8164 = vmatprep.subr.bf16.mxu0 %v8137
    %8165 = vmatpush1.bf16.msra.mxu0 %v8136
    %8166 = vmatprep.subr.bf16.mxu0 %v8139
    %8167 = vmatpush1.bf16.msra.mxu0 %v8138
    %8168 = vmatprep.subr.bf16.mxu0 %v8141
    %8169 = vmatpush1.bf16.msra.mxu0 %v8140
    %8170 = vmatprep.subr.bf16.mxu0 %v8143
    %8171 = vmatpush1.bf16.msra.mxu0 %v8142
    %8172 = vmatprep.subr.bf16.mxu0 0
    %8173 = vmatpush1.bf16.msra.mxu0 0
    %8174 = vmatprep.subr.bf16.mxu0 0
    %8175 = vmatpush1.bf16.msra.mxu0 0
    %8176 = vmatprep.subr.bf16.mxu0 0
    %8177 = vmatpush1.bf16.msra.mxu0 0
    %8178 = vmatprep.subr.bf16.mxu0 0
    %8179 = vmatpush1.bf16.msra.mxu0 0
    %8180 = vmatprep.subr.bf16.mxu0 0
    %8181 = vmatpush1.bf16.msra.mxu0 0
    %8182 = vmatprep.subr.bf16.mxu0 0
    %8183 = vmatpush1.bf16.msra.mxu0 0
    %8184 = vmatprep.subr.bf16.mxu0 0
    %8185 = vmatpush1.bf16.msra.mxu0 0
    %8186 = vmatprep.subr.bf16.mxu0 0
    %8187 = vmatpush1.bf16.msra.mxu0 0
    %8188 = vmatprep.subr.bf16.mxu0 0
    %8189 = vmatpush1.bf16.msra.mxu0 0
    %8190 = vmatprep.subr.bf16.mxu0 0
    %8191 = vmatpush1.bf16.msra.mxu0 0
    %8192 = vmatprep.subr.bf16.mxu0 0
    %8193 = vmatpush1.bf16.msra.mxu0 0
    %8194 = vmatprep.subr.bf16.mxu0 0
    %8195 = vmatpush1.bf16.msra.mxu0 0
    %8196 = vmatprep.mubr.bf16.mxu0 0
    %8197 = vmatmul.mubr.bf16.gmra.mrb[0].mxu0 %v8153
    %v8198 = vpop.f32.mrb[0].mxu0
    %v8199 = vadd.f32 0.0, %v8198
    %v8200 = vpop.f32.mrb[0].mxu0
    %v8201 = vadd.f32 0.0, %v8200
    %v8202 = vpop.f32.mrb[0].mxu0
    %v8203 = vadd.f32 0.0, %v8202
    %v8204 = vpop.f32.mrb[0].mxu0
    %v8205 = vadd.f32 0.0, %v8204
    %8206 = vmatprep.mubr.bf16.mxu0 0
    %8207 = vmatmul.mubr.bf16.gmra.mrb[0].mxu0 %v8156
    %v8208 = vpop.f32.mrb[0].mxu0
    %v8209 = vadd.f32 0.0, %v8208
    %v8210 = vpop.f32.mrb[0].mxu0
    %v8211 = vadd.f32 0.0, %v8210
    %v8212 = vpop.f32.mrb[0].mxu0
    %v8213 = vadd.f32 0.0, %v8212
    %v8214 = vpop.f32.mrb[0].mxu0
    %v8215 = vadd.f32 0.0, %v8214
    %8216 = vmatprep.mubr.bf16.mxu0 0
    %8217 = vmatmul.mubr.bf16.gmra.mrb[0].mxu0 %v8159
    %v8218 = vpop.f32.mrb[0].mxu0
    %v8219 = vadd.f32 0.0, %v8218
    %v8220 = vpop.f32.mrb[0].mxu0
    %v8221 = vadd.f32 0.0, %v8220
    %v8222 = vpop.f32.mrb[0].mxu0
    %v8223 = vadd.f32 0.0, %v8222
    %v8224 = vpop.f32.mrb[0].mxu0
    %v8225 = vadd.f32 0.0, %v8224
    %8226 = vmatprep.mubr.bf16.mxu0 0
    %8227 = vmatmul.mubr.bf16.gmra.mrb[0].mxu0 %v8162
    %v8228 = vpop.f32.mrb[0].mxu0
    %v8229 = vadd.f32 0.0, %v8228
    %v8230 = vpop.f32.mrb[0].mxu0
    %v8231 = vadd.f32 0.0, %v8230
    %v8232 = vpop.f32.mrb[0].mxu0
    %v8233 = vadd.f32 0.0, %v8232
    %v8234 = vpop.f32.mrb[0].mxu0
    %v8235 = vadd.f32 0.0, %v8234
    %8236 = vdwg.mxu0
    %v8237 = vrot.slane %v8201, 4
    %v8238 = vrot.slane %v8205, 4
    %v8239 = vrot.slane %v8211, 4
    %v8240 = vrot.slane %v8215, 4
    %v8241 = vrot.slane %v8221, 4
    %v8242 = vrot.slane %v8225, 4
    %v8243 = vrot.slane %v8231, 4
    %v8244 = vrot.slane %v8235, 4
    %v8245 = vsel %vm1387, %v8243, %v8244
    %v8246 = vsel %vm1387, %v8242, %v8243
    %v8247 = vsel %vm1387, %v8241, %v8242
    %v8248 = vsel %vm1387, %v8240, %v8241
    %v8249 = vsel %vm1387, %v8239, %v8240
    %v8250 = vsel %vm1387, %v8238, %v8239
    %v8251 = vsel %vm1387, %v8237, %v8238
    %v8252 = vsel %vm1387, %v8244, %v8237
    %v8253 = vadd.f32 %v8199, %v8251
    %v8254 = vadd.f32 %v8203, %v8250
    %v8255 = vadd.f32 %v8209, %v8249
    %v8256 = vadd.f32 %v8213, %v8248
    %v8257 = vadd.f32 %v8219, %v8247
    %v8258 = vadd.f32 %v8223, %v8246
    %v8259 = vadd.f32 %v8229, %v8245
    %v8260 = vadd.f32 %v8233, %v8252
    %v8261 = vld [vmem:[%s17] sm:$0xf]
    %v8262 = vld [vmem:[%s17 + $0x4] sm:$0xf]
    %v8263 = vld [vmem:[%s17 + $0x8] sm:$0xf]
    %v8264 = vld [vmem:[%s17 + $0xc] sm:$0xf]
    %v8265 = vpack.c.bf16 %v8254, %v8253
    %v8266 = vpack.c.bf16 %v8256, %v8255
    %v8267 = vpack.c.bf16 %v8258, %v8257
    %v8268 = vpack.c.bf16 %v8260, %v8259
    %v8269 = vld [vmem:[%s16] sm:$0x1]
    %v8271 = vlaneseq
    %v8272 = vshrl.u32 %v8271, 7
    %v8273 = vsub.s32 0, %v8272
    %v8274 = vrot.slane %v8269, %v8273
    %v8280 = vunpack.c.l.b16 %v8261
    %v8281 = vunpack.c.l.b16 %v8262
    %v8282 = vunpack.c.l.b16 %v8263
    %v8283 = vunpack.c.l.b16 %v8264
    %v8284 = vpack.c.b16 %v8281, %v8280
    %v8285 = vpack.c.b16 %v8283, %v8282
    %v8287 = vsel %vm7040, %v8284, 0
    %v8290 = vsel %vm7040, %v8285, 0
    %8292 = vmatprep.subr.bf16.mxu0 0
    %8293 = vmatpush1.bf16.msra.mxu0 %v8265
    %8294 = vmatprep.subr.bf16.mxu0 0
    %8295 = vmatpush1.bf16.msra.mxu0 %v8266
    %8296 = vmatprep.subr.bf16.mxu0 0
    %8297 = vmatpush1.bf16.msra.mxu0 %v8267
    %8298 = vmatprep.subr.bf16.mxu0 0
    %8299 = vmatpush1.bf16.msra.mxu0 %v8268
    %8300 = vmatprep.subr.bf16.mxu0 0
    %8301 = vmatpush1.bf16.msra.mxu0 0
    %8302 = vmatprep.subr.bf16.mxu0 0
    %8303 = vmatpush1.bf16.msra.mxu0 0
    %8304 = vmatprep.subr.bf16.mxu0 0
    %8305 = vmatpush1.bf16.msra.mxu0 0
    %8306 = vmatprep.subr.bf16.mxu0 0
    %8307 = vmatpush1.bf16.msra.mxu0 0
    %8308 = vmatprep.subr.bf16.mxu0 0
    %8309 = vmatpush1.bf16.msra.mxu0 0
    %8310 = vmatprep.subr.bf16.mxu0 0
    %8311 = vmatpush1.bf16.msra.mxu0 0
    %8312 = vmatprep.subr.bf16.mxu0 0
    %8313 = vmatpush1.bf16.msra.mxu0 0
    %8314 = vmatprep.subr.bf16.mxu0 0
    %8315 = vmatpush1.bf16.msra.mxu0 0
    %8316 = vmatprep.subr.bf16.mxu0 0
    %8317 = vmatpush1.bf16.msra.mxu0 0
    %8318 = vmatprep.subr.bf16.mxu0 0
    %8319 = vmatpush1.bf16.msra.mxu0 0
    %8320 = vmatprep.subr.bf16.mxu0 0
    %8321 = vmatpush1.bf16.msra.mxu0 0
    %8322 = vmatprep.subr.bf16.mxu0 0
    %8323 = vmatpush1.bf16.msra.mxu0 0
    %8324 = vmatprep.mubr.bf16.mxu0 0
    %8325 = vmatmul.mubr.bf16.gmra.mrb[0].mxu0 %v8287
    %v8326 = vpop.f32.mrb[0].mxu0
    %v8327 = vadd.f32 %v8274, %v8326
    %v8328 = vpop.f32.mrb[0].mxu0
    %v8329 = vpop.f32.mrb[0].mxu0
    %v8330 = vadd.f32 %v8274, %v8329
    %v8331 = vpop.f32.mrb[0].mxu0
    %8332 = vmatprep.mubr.bf16.mxu0 0
    %8333 = vmatmul.mubr.bf16.gmra.mrb[0].mxu0 %v8290
    %v8334 = vpop.f32.mrb[0].mxu0
    %v8335 = vadd.f32 %v8274, %v8334
    %v8336 = vpop.f32.mrb[0].mxu0
    %v8337 = vpop.f32.mrb[0].mxu0
    %v8338 = vadd.f32 %v8274, %v8337
    %v8339 = vpop.f32.mrb[0].mxu0
    %8340 = vdwg.mxu0
    %v8341 = vld [vmem:[%s18] sm:$0x1]
    %v8342 = vld [vmem:[#allocation2] sm:$0x1]
    %8344 = vset.pattern.permute.xlu0 0
    %8345 = vperm.xlu0 %8344, %v8342
    %v8346 = vpop.permute.xlu0 %8345
    %v8348 = vlaneseq
    %v8349 = vshrl.u32 %v8348, 7
    %v8350 = vsub.s32 0, %v8349
    %v8351 = vrot.slane %v8346, %v8350
    %vm8352 = vcmask 654336
    %v8354 = vsel %vm8352, %v8341, 0
    %v8357 = vsel %vm8352, %v8327, 0
    %v8360 = vsel %vm8352, %v8330, 0
    %v8363 = vsel %vm8352, %v8335, 0
    %v8366 = vsel %vm8352, %v8338, 0
    %8368 = vmatprep.subr.mxu0 0.0
    %8369 = vmatpush1.xpose.msra.mxu0 %v8357
    %8370 = vmatprep.subr.mxu0 0.0
    %8371 = vmatpush1.xpose.msra.mxu0 %v8360
    %8372 = vmatprep.subr.mxu0 0.0
    %8373 = vmatpush1.xpose.msra.mxu0 %v8363
    %8374 = vmatprep.subr.mxu0 0.0
    %8375 = vmatpush1.xpose.msra.mxu0 %v8366
    %8376 = vmatprep.subr.mxu0 0.0
    %8377 = vmatpush1.xpose.msra.mxu0 0.0
    %8378 = vmatprep.subr.mxu0 0.0
    %8379 = vmatpush1.xpose.msra.mxu0 0.0
    %8380 = vmatprep.subr.mxu0 0.0
    %8381 = vmatpush1.xpose.msra.mxu0 0.0
    %8382 = vmatprep.subr.mxu0 0.0
    %8383 = vmatpush1.xpose.msra.mxu0 0.0
    %8384 = vmatprep.subr.mxu0 0.0
    %8385 = vmatpush1.xpose.msra.mxu0 0.0
    %8386 = vmatprep.subr.mxu0 0.0
    %8387 = vmatpush1.xpose.msra.mxu0 0.0
    %8388 = vmatprep.subr.mxu0 0.0
    %8389 = vmatpush1.xpose.msra.mxu0 0.0
    %8390 = vmatprep.subr.mxu0 0.0
    %8391 = vmatpush1.xpose.msra.mxu0 0.0
    %8392 = vmatprep.subr.mxu0 0.0
    %8393 = vmatpush1.xpose.msra.mxu0 0.0
    %8394 = vmatprep.subr.mxu0 0.0
    %8395 = vmatpush1.xpose.msra.mxu0 0.0
    %8396 = vmatprep.subr.mxu0 0.0
    %8397 = vmatpush1.xpose.msra.mxu0 0.0
    %8398 = vmatprep.subr.mxu0 0.0
    %8399 = vmatpush1.xpose.msra.mxu0 0.0
    %8400 = vmatprep.subr.mxu0 0.0
    %8401 = vmatpush1.xpose.msra.mxu0 0.0
    %8402 = vmatprep.subr.mxu0 0.0
    %8403 = vmatpush1.xpose.msra.mxu0 0.0
    %8404 = vmatprep.subr.mxu0 0.0
    %8405 = vmatpush1.xpose.msra.mxu0 0.0
    %8406 = vmatprep.subr.mxu0 0.0
    %8407 = vmatpush1.xpose.msra.mxu0 0.0
    %8408 = vmatprep.subr.mxu0 0.0
    %8409 = vmatpush1.xpose.msra.mxu0 0.0
    %8410 = vmatprep.subr.mxu0 0.0
    %8411 = vmatpush1.xpose.msra.mxu0 0.0
    %8412 = vmatprep.subr.mxu0 0.0
    %8413 = vmatpush1.xpose.msra.mxu0 0.0
    %8414 = vmatprep.subr.mxu0 0.0
    %8415 = vmatpush1.xpose.msra.mxu0 0.0
    %8416 = vmatprep.subr.mxu0 0.0
    %8417 = vmatpush1.xpose.msra.mxu0 0.0
    %8418 = vmatprep.subr.mxu0 0.0
    %8419 = vmatpush1.xpose.msra.mxu0 0.0
    %8420 = vmatprep.subr.mxu0 0.0
    %8421 = vmatpush1.xpose.msra.mxu0 0.0
    %8422 = vmatprep.subr.mxu0 0.0
    %8423 = vmatpush1.xpose.msra.mxu0 0.0
    %8424 = vmatprep.subr.mxu0 0.0
    %8425 = vmatpush1.xpose.msra.mxu0 0.0
    %8426 = vmatprep.subr.mxu0 0.0
    %8427 = vmatpush1.xpose.msra.mxu0 0.0
    %8428 = vmatprep.subr.mxu0 0.0
    %8429 = vmatpush1.xpose.msra.mxu0 0.0
    %8430 = vmatprep.subr.mxu0 0.0
    %8431 = vmatpush1.xpose.msra.mxu0 0.0
    %8432 = vmatprep.mubr.f32.mxu0 0.0
    %8433 = vmatmul.mubr.f32.gmra.mrb[0].mxu0 %v8354
    %v8434 = vpop.f32.mrb[0].mxu0
    %v8435 = vadd.f32 %v8351, %v8434
    %v8436 = vpop.f32.mrb[0].mxu0
    %8437 = vdwg.mxu0
    %v8439 = vrot.slane %v8435, 7
    %8440 = vrot.lane.b32.xlu0 %v8439, 112
    %v8441 = vpop.permute.xlu0 %8440
    %v8443 = vsel %vm209, %v8435, %v8441
    %v8444 = vpack.c.bf16 %v8443, %v8443
    %v8445 = vld [vmem:[%s20] sm:$0xf]
    %v8446 = vld [vmem:[%s20 + $0x4] sm:$0xf]
    %v8447 = vld [vmem:[%s21] sm:$0x1]
    %v8449 = vlaneseq
    %v8450 = vshrl.u32 %v8449, 7
    %v8451 = vsub.s32 0, %v8450
    %v8452 = vrot.slane %v8447, %v8451
    %v8456 = vunpack.c.l.b16 %v8445
    %v8457 = vunpack.c.l.b16 %v8446
    %v8458 = vpack.c.b16 %v8457, %v8456
    %vm8460 = vcmask 130048
    %v8462 = vsel %vm8460, %v8444, 0
    %8464 = vmatprep.subr.bf16.mxu0 0
    %8465 = vmatpush1.bf16.msra.mxu0 %v8458
    %8466 = vmatprep.subr.bf16.mxu0 0
    %8467 = vmatpush1.bf16.msra.mxu0 0
    %8468 = vmatprep.subr.bf16.mxu0 0
    %8469 = vmatpush1.bf16.msra.mxu0 0
    %8470 = vmatprep.subr.bf16.mxu0 0
    %8471 = vmatpush1.bf16.msra.mxu0 0
    %8472 = vmatprep.subr.bf16.mxu0 0
    %8473 = vmatpush1.bf16.msra.mxu0 0
    %8474 = vmatprep.subr.bf16.mxu0 0
    %8475 = vmatpush1.bf16.msra.mxu0 0
    %8476 = vmatprep.subr.bf16.mxu0 0
    %8477 = vmatpush1.bf16.msra.mxu0 0
    %8478 = vmatprep.subr.bf16.mxu0 0
    %8479 = vmatpush1.bf16.msra.mxu0 0
    %8480 = vmatprep.subr.bf16.mxu0 0
    %8481 = vmatpush1.bf16.msra.mxu0 0
    %8482 = vmatprep.subr.bf16.mxu0 0
    %8483 = vmatpush1.bf16.msra.mxu0 0
    %8484 = vmatprep.subr.bf16.mxu0 0
    %8485 = vmatpush1.bf16.msra.mxu0 0
    %8486 = vmatprep.subr.bf16.mxu0 0
    %8487 = vmatpush1.bf16.msra.mxu0 0
    %8488 = vmatprep.subr.bf16.mxu0 0
    %8489 = vmatpush1.bf16.msra.mxu0 0
    %8490 = vmatprep.subr.bf16.mxu0 0
    %8491 = vmatpush1.bf16.msra.mxu0 0
    %8492 = vmatprep.subr.bf16.mxu0 0
    %8493 = vmatpush1.bf16.msra.mxu0 0
    %8494 = vmatprep.subr.bf16.mxu0 0
    %8495 = vmatpush1.bf16.msra.mxu0 0
    %8496 = vmatprep.mubr.bf16.mxu0 0
    %8497 = vmatmul.mubr.bf16.gmra.mrb[0].mxu0 %v8462
    %v8498 = vpop.f32.mrb[0].mxu0
    %v8499 = vadd.f32 %v8452, %v8498
    %v8500 = vpop.f32.mrb[0].mxu0
    %v8501 = vpop.f32.mrb[0].mxu0
    %v8502 = vpop.f32.mrb[0].mxu0
    %8503 = vdwg.mxu0
    %vm8504 = vcmp.gt.f32.partialorder %v8499, 0.0
    %v8505 = vmin.f32 %v8499, 0.0
    %v8506 = vmul.f32 %v8505, 1.442695
    %v8507 = vpow.pop %v8506
    %v8508 = vsub.f32 %v8507, 1.0
    %v8509 = vsel %vm8504, %v8499, %v8508
    %v8510 = vpack.c.bf16 %v8509, %v8509
    %v8511 = vld [vmem:[%s22] sm:$0xf]
    %v8512 = vld [vmem:[%s22 + $0x4] sm:$0xf]
    %v8513 = vld [vmem:[%s22 + $0x8] sm:$0xf]
    %v8514 = vld [vmem:[%s22 + $0xc] sm:$0xf]
    %v8515 = vld [vmem:[%s23] sm:$0x1]
    %v8517 = vlaneseq
    %v8518 = vshrl.u32 %v8517, 7
    %v8519 = vsub.s32 0, %v8518
    %v8520 = vrot.slane %v8515, %v8519
    %v8526 = vunpack.c.l.b16 %v8511
    %v8527 = vunpack.c.l.b16 %v8512
    %v8528 = vunpack.c.l.b16 %v8513
    %v8529 = vunpack.c.l.b16 %v8514
    %v8530 = vpack.c.b16 %v8527, %v8526
    %v8531 = vpack.c.b16 %v8529, %v8528
    %v8535 = vsel %vm913, %v8510, 0
    %8537 = vmatprep.subr.bf16.mxu0 0
    %8538 = vmatpush1.bf16.msra.mxu0 %v8530
    %8539 = vmatprep.subr.bf16.mxu0 0
    %8540 = vmatpush1.bf16.msra.mxu0 %v8531
    %8541 = vmatprep.subr.bf16.mxu0 0
    %8542 = vmatpush1.bf16.msra.mxu0 0
    %8543 = vmatprep.subr.bf16.mxu0 0
    %8544 = vmatpush1.bf16.msra.mxu0 0
    %8545 = vmatprep.subr.bf16.mxu0 0
    %8546 = vmatpush1.bf16.msra.mxu0 0
    %8547 = vmatprep.subr.bf16.mxu0 0
    %8548 = vmatpush1.bf16.msra.mxu0 0
    %8549 = vmatprep.subr.bf16.mxu0 0
    %8550 = vmatpush1.bf16.msra.mxu0 0
    %8551 = vmatprep.subr.bf16.mxu0 0
    %8552 = vmatpush1.bf16.msra.mxu0 0
    %8553 = vmatprep.subr.bf16.mxu0 0
    %8554 = vmatpush1.bf16.msra.mxu0 0
    %8555 = vmatprep.subr.bf16.mxu0 0
    %8556 = vmatpush1.bf16.msra.mxu0 0
    %8557 = vmatprep.subr.bf16.mxu0 0
    %8558 = vmatpush1.bf16.msra.mxu0 0
    %8559 = vmatprep.subr.bf16.mxu0 0
    %8560 = vmatpush1.bf16.msra.mxu0 0
    %8561 = vmatprep.subr.bf16.mxu0 0
    %8562 = vmatpush1.bf16.msra.mxu0 0
    %8563 = vmatprep.subr.bf16.mxu0 0
    %8564 = vmatpush1.bf16.msra.mxu0 0
    %8565 = vmatprep.subr.bf16.mxu0 0
    %8566 = vmatpush1.bf16.msra.mxu0 0
    %8567 = vmatprep.subr.bf16.mxu0 0
    %8568 = vmatpush1.bf16.msra.mxu0 0
    %8569 = vmatprep.mubr.bf16.mxu0 0
    %8570 = vmatmul.mubr.bf16.gmra.mrb[0].mxu0 %v8535
    %v8571 = vpop.f32.mrb[0].mxu0
    %v8572 = vadd.f32 %v8520, %v8571
    %v8573 = vpop.f32.mrb[0].mxu0
    %v8574 = vpop.f32.mrb[0].mxu0
    %v8575 = vpop.f32.mrb[0].mxu0
    %8576 = vdwg.mxu0
    %vm8577 = vcmp.gt.f32.partialorder %v8572, 0.0
    %v8578 = vmin.f32 %v8572, 0.0
    %v8579 = vmul.f32 %v8578, 1.442695
    %v8580 = vpow.pop %v8579
    %v8581 = vsub.f32 %v8580, 1.0
    %v8582 = vsel %vm8577, %v8572, %v8581
    %v8583 = vpack.c.bf16 %v8582, %v8582
    %v8584 = vld [vmem:[%s24] sm:$0xf]
    %v8585 = vld [vmem:[%s24 + $0x4] sm:$0xf]
    %v8586 = vld [vmem:[%s24 + $0x8] sm:$0xf]
    %v8587 = vld [vmem:[%s24 + $0xc] sm:$0xf]
    %v8588 = vld [vmem:[%s25] sm:$0x1]
    %v8590 = vlaneseq
    %v8591 = vshrl.u32 %v8590, 7
    %v8592 = vsub.s32 0, %v8591
    %v8593 = vrot.slane %v8588, %v8592
    %v8599 = vunpack.c.l.b16 %v8584
    %v8600 = vunpack.c.l.b16 %v8585
    %v8601 = vunpack.c.l.b16 %v8586
    %v8602 = vunpack.c.l.b16 %v8587
    %v8603 = vpack.c.b16 %v8600, %v8599
    %v8604 = vpack.c.b16 %v8602, %v8601
    %v8608 = vsel %vm913, %v8583, 0
    %8610 = vmatprep.subr.bf16.mxu0 0
    %8611 = vmatpush1.bf16.msra.mxu0 %v8603
    %8612 = vmatprep.subr.bf16.mxu0 0
    %8613 = vmatpush1.bf16.msra.mxu0 %v8604
    %8614 = vmatprep.subr.bf16.mxu0 0
    %8615 = vmatpush1.bf16.msra.mxu0 0
    %8616 = vmatprep.subr.bf16.mxu0 0
    %8617 = vmatpush1.bf16.msra.mxu0 0
    %8618 = vmatprep.subr.bf16.mxu0 0
    %8619 = vmatpush1.bf16.msra.mxu0 0
    %8620 = vmatprep.subr.bf16.mxu0 0
    %8621 = vmatpush1.bf16.msra.mxu0 0
    %8622 = vmatprep.subr.bf16.mxu0 0
    %8623 = vmatpush1.bf16.msra.mxu0 0
    %8624 = vmatprep.subr.bf16.mxu0 0
    %8625 = vmatpush1.bf16.msra.mxu0 0
    %8626 = vmatprep.subr.bf16.mxu0 0
    %8627 = vmatpush1.bf16.msra.mxu0 0
    %8628 = vmatprep.subr.bf16.mxu0 0
    %8629 = vmatpush1.bf16.msra.mxu0 0
    %8630 = vmatprep.subr.bf16.mxu0 0
    %8631 = vmatpush1.bf16.msra.mxu0 0
    %8632 = vmatprep.subr.bf16.mxu0 0
    %8633 = vmatpush1.bf16.msra.mxu0 0
    %8634 = vmatprep.subr.bf16.mxu0 0
    %8635 = vmatpush1.bf16.msra.mxu0 0
    %8636 = vmatprep.subr.bf16.mxu0 0
    %8637 = vmatpush1.bf16.msra.mxu0 0
    %8638 = vmatprep.subr.bf16.mxu0 0
    %8639 = vmatpush1.bf16.msra.mxu0 0
    %8640 = vmatprep.subr.bf16.mxu0 0
    %8641 = vmatpush1.bf16.msra.mxu0 0
    %8642 = vmatprep.mubr.bf16.mxu0 0
    %8643 = vmatmul.mubr.bf16.gmra.mrb[0].mxu0 %v8608
    %v8644 = vpop.f32.mrb[0].mxu0
    %v8645 = vadd.f32 %v8593, %v8644
    %v8646 = vpop.f32.mrb[0].mxu0
    %v8647 = vpop.f32.mrb[0].mxu0
    %v8648 = vpop.f32.mrb[0].mxu0
    %8649 = vdwg.mxu0
    %vm8650 = vcmp.gt.f32.partialorder %v8645, 0.0
    %v8651 = vmin.f32 %v8645, 0.0
    %v8652 = vmul.f32 %v8651, 1.442695
    %v8653 = vpow.pop %v8652
    %v8654 = vsub.f32 %v8653, 1.0
    %v8655 = vsel %vm8650, %v8645, %v8654
    %v8656 = vpack.c.bf16 %v8655, %v8655
    %v8657 = vld [vmem:[%s26] sm:$0xf]
    %v8658 = vld [vmem:[%s26 + $0x4] sm:$0xf]
    %v8659 = vld [vmem:[%s26 + $0x8] sm:$0xf]
    %v8660 = vld [vmem:[%s26 + $0xc] sm:$0xf]
    %v8661 = vld [vmem:[%s27] sm:$0x1]
    %v8663 = vlaneseq
    %v8664 = vshrl.u32 %v8663, 7
    %v8665 = vsub.s32 0, %v8664
    %v8666 = vrot.slane %v8661, %v8665
    %v8672 = vunpack.c.l.b16 %v8657
    %v8673 = vunpack.c.l.b16 %v8658
    %v8674 = vunpack.c.l.b16 %v8659
    %v8675 = vunpack.c.l.b16 %v8660
    %v8676 = vpack.c.b16 %v8673, %v8672
    %v8677 = vpack.c.b16 %v8675, %v8674
    %v8681 = vsel %vm913, %v8656, 0
    %8683 = vmatprep.subr.bf16.mxu0 0
    %8684 = vmatpush1.bf16.msra.mxu0 %v8676
    %8685 = vmatprep.subr.bf16.mxu0 0
    %8686 = vmatpush1.bf16.msra.mxu0 %v8677
    %8687 = vmatprep.subr.bf16.mxu0 0
    %8688 = vmatpush1.bf16.msra.mxu0 0
    %8689 = vmatprep.subr.bf16.mxu0 0
    %8690 = vmatpush1.bf16.msra.mxu0 0
    %8691 = vmatprep.subr.bf16.mxu0 0
    %8692 = vmatpush1.bf16.msra.mxu0 0
    %8693 = vmatprep.subr.bf16.mxu0 0
    %8694 = vmatpush1.bf16.msra.mxu0 0
    %8695 = vmatprep.subr.bf16.mxu0 0
    %8696 = vmatpush1.bf16.msra.mxu0 0
    %8697 = vmatprep.subr.bf16.mxu0 0
    %8698 = vmatpush1.bf16.msra.mxu0 0
    %8699 = vmatprep.subr.bf16.mxu0 0
    %8700 = vmatpush1.bf16.msra.mxu0 0
    %8701 = vmatprep.subr.bf16.mxu0 0
    %8702 = vmatpush1.bf16.msra.mxu0 0
    %8703 = vmatprep.subr.bf16.mxu0 0
    %8704 = vmatpush1.bf16.msra.mxu0 0
    %8705 = vmatprep.subr.bf16.mxu0 0
    %8706 = vmatpush1.bf16.msra.mxu0 0
    %8707 = vmatprep.subr.bf16.mxu0 0
    %8708 = vmatpush1.bf16.msra.mxu0 0
    %8709 = vmatprep.subr.bf16.mxu0 0
    %8710 = vmatpush1.bf16.msra.mxu0 0
    %8711 = vmatprep.subr.bf16.mxu0 0
    %8712 = vmatpush1.bf16.msra.mxu0 0
    %8713 = vmatprep.subr.bf16.mxu0 0
    %8714 = vmatpush1.bf16.msra.mxu0 0
    %8715 = vmatprep.mubr.bf16.mxu0 0
    %8716 = vmatmul.mubr.bf16.gmra.mrb[0].mxu0 %v8681
    %v8717 = vpop.f32.mrb[0].mxu0
    %v8718 = vadd.f32 %v8666, %v8717
    %v8719 = vpop.f32.mrb[0].mxu0
    %v8720 = vpop.f32.mrb[0].mxu0
    %v8721 = vpop.f32.mrb[0].mxu0
    %8722 = vdwg.mxu0
    %vm8723 = vcmask 9216
    %v8724 = vsel %vm8723, %v8718, -inf
    %8725 = vmax.xlane.f32.xlu0 %v8724
    %v8726 = vpop.xlane.xlu0 %8725
    %v8727 = vsub.f32 %v8718, %v8726
    %v8728 = vmul.f32 %v8727, 1.442695
    %v8729 = vpow.pop %v8728
    %v8730 = vsel %vm8723, %v8729, 0.0
    %8731 = vadd.xlane.f32.xlu0 %v8730
    %v8732 = vpop.xlane.xlu0 %8731
    %v8733 = vrcp.pop %v8732
    %v8734 = vmul.f32 %v8729, %v8733
    %8735 = vst.msk [vmem:[#allocation3] sm:$0x3] %vm8723, %v8734
    // Predicated region
    $region114: #{forward.1} parent=1 // pred_check
      _
    $region115: #{forward.1} parent=1 // pred_check_branch
      %8737 = sbr.rel (0) target = $region117
    $region116: #{forward.1} parent=1 // pred_region
      %s8739 = ssub.s32 32, 32
      %8740 = vsyncadd [#allocation4], %s8739
      %s8742 = sshll.u32 [#allocation3], 4
      %s8743 = int_to_ptr.vmem [resolvable:$true] %s8742
      %8745 = dma.vmem_to_hbm [thread:$0]  %s8743, 32, %s28, [#allocation4]
    $region117: #{forward.1} parent=1 // pred_fallthru
      _
    // Predicated region
    $region118: #{forward.1} parent=1 // pred_check
      _
    $region119: #{forward.1} parent=1 // pred_check_branch
      %8747 = sbr.rel (0) target = $region121
    $region120: #{forward.1} parent=1 // pred_region
      %8748 = dma.done [#allocation4], 32
    $region121: #{forward.1} parent=1 // pred_fallthru
      _
    %8749 = vsyncpa [#allocation4], 1

</llo_original>
